<compile_context>
chip_gen: v7x
topology: tpu7x:2x2x1
jax: 0.10.0
libtpu: 0.0.40
codegen_flags: <defaults>
</compile_context>

<pallas_src>
import functools
import math

import jax
import jax.numpy as jnp
from jax import lax
from jax.experimental import pallas as pl
from jax.experimental.pallas import tpu as pltpu

LSTM_HIDDEN = 128
MAIN_OUT = 512
# (cout, kernel, stride) per conv layer; cin of the first conv is num_inputs.
CONV_CFG = ((32, 8, 4), (64, 4, 2), (32, 3, 1))
VMEM_LIMIT = 32 * 1024 * 1024        # explicit scoped-VMEM budget (fits v5e..v7x)


def _round_up(x, m):
    return (x + m - 1) // m * m


def _choose_tm(M):
    """Pick (TM, Mp): TM <= 512 (v5e VMEM budget at large K) and >= 2 M tiles
    whenever possible so v7x's second TensorCore gets work."""
    Mp = _round_up(M, 8)
    if Mp <= 16:
        return 8, 16                    # two 8-row tiles (2nd tile may be padding)
    if Mp <= 1024:
        Mp = _round_up(Mp, 16)
        return Mp // 2, Mp              # exactly 2 tiles, TM <= 512
    return 512, _round_up(M, 512)       # many 512-row tiles


# ---------------------------------------------------------------------------
# Pallas kernels
# ---------------------------------------------------------------------------
def _linear_kernel(x_ref, w_ref, b_ref, o_ref, *, relu):
    # bf16 operands -> MXU, f32 accumulation.
    y = jnp.dot(x_ref[...], w_ref[...], preferred_element_type=jnp.float32)
    y = y + b_ref[...]
    if relu:
        y = jnp.maximum(y, 0.0)
    o_ref[...] = y.astype(o_ref.dtype)


def pallas_linear(x, w, b, relu=False, out_dtype=jnp.float32):
    """x: (M, K), w: (K, N) bf16, b: (N,) f32 -> (M, N) out_dtype.

    Pads M to the tile size and N to a multiple of 128 (lane-dense stores).
    Callers pass bf16 activations; nothing is re-cast on the hot path."""
    M, K = x.shape
    _, N = w.shape
    Np = _round_up(N, 128)
    TM, Mp = _choose_tm(M)

    xp = x if Mp == M else jnp.pad(x, ((0, Mp - M), (0, 0)))
    wp = w if Np == N else jnp.pad(w, ((0, 0), (0, Np - N)))
    bp = b if Np == N else jnp.pad(b, (0, Np - N))
    if xp.dtype != jnp.bfloat16:
        xp = xp.astype(jnp.bfloat16)
    if wp.dtype != jnp.bfloat16:
        wp = wp.astype(jnp.bfloat16)

    out = pl.pallas_call(
        functools.partial(_linear_kernel, relu=relu),
        out_shape=jax.ShapeDtypeStruct((Mp, Np), out_dtype),
        grid=(Mp // TM,),
        in_specs=[
            pl.BlockSpec((TM, K), lambda i: (i, 0)),
            pl.BlockSpec((K, Np), lambda i: (0, 0)),
            pl.BlockSpec((1, Np), lambda i: (0, 0)),
        ],
        out_specs=pl.BlockSpec((TM, Np), lambda i: (i, 0)),
        compiler_params=pltpu.CompilerParams(
            dimension_semantics=("parallel",),
            vmem_limit_bytes=VMEM_LIMIT),
    )(xp, wp, bp.reshape(1, Np))
    if Mp != M or Np != N:
        out = out[:M, :N]
    return out


def _fc_gates_kernel(x_ref, wfc_ref, bfc_ref, wih_ref, bl_ref, g_ref):
    """Fused fc + LSTM input projection: feat never leaves VMEM."""
    feat = jnp.dot(x_ref[...], wfc_ref[...], preferred_element_type=jnp.float32)
    feat = jnp.maximum(feat + bfc_ref[...], 0.0)
    g = jnp.dot(feat.astype(jnp.bfloat16), wih_ref[...],
                preferred_element_type=jnp.float32)
    g_ref[...] = g + bl_ref[...]


def pallas_fc_gates(x, w_fc, b_fc, w_ih, b_lstm):
    """x: (M, 1568) bf16 -> gates (M, 4H) f32 = relu(x@W_fc+b_fc) @ W_ih + b."""
    M, K = x.shape
    N1 = w_fc.shape[1]
    N2 = w_ih.shape[1]
    TM, Mp = _choose_tm(M)
    xp = x if Mp == M else jnp.pad(x, ((0, Mp - M), (0, 0)))

    out = pl.pallas_call(
        _fc_gates_kernel,
        out_shape=jax.ShapeDtypeStruct((Mp, N2), jnp.float32),
        grid=(Mp // TM,),
        in_specs=[
            pl.BlockSpec((TM, K), lambda i: (i, 0)),
            pl.BlockSpec((K, N1), lambda i: (0, 0)),
            pl.BlockSpec((1, N1), lambda i: (0, 0)),
            pl.BlockSpec((N1, N2), lambda i: (0, 0)),
            pl.BlockSpec((1, N2), lambda i: (0, 0)),
        ],
        out_specs=pl.BlockSpec((TM, N2), lambda i: (i, 0)),
        compiler_params=pltpu.CompilerParams(
            dimension_semantics=("parallel",),
            vmem_limit_bytes=VMEM_LIMIT),
    )(xp, w_fc, b_fc.reshape(1, N1), w_ih, b_lstm.reshape(1, N2))
    return out if Mp == M else out[:M]


def _lstm_kernel(gx_ref, m_ref, h0_ref, c0_ref, whh_ref,
                 hseq_ref, hf_ref, cf_ref, *, hidden, seq_len):
    """Single-invocation masked LSTM over time. The input projection (incl.
    bias) is already folded into gx_ref; only h @ W_hh (bf16 MXU, f32 acc)
    runs per step."""
    whh = whh_ref[...]                      # bf16, loaded once

    def step(t, carry):
        h, c = carry
        m = m_ref[t]                        # (B, 1); mask == 0 resets the state
        h = h * m
        c = c * m
        gates = gx_ref[t] + jnp.dot(h.astype(jnp.bfloat16), whh,
                                    preferred_element_type=jnp.float32)
        # PyTorch LSTM gate order: i, f, g, o
        i = jax.nn.sigmoid(gates[:, 0 * hidden:1 * hidden])
        f = jax.nn.sigmoid(gates[:, 1 * hidden:2 * hidden])
        g = jnp.tanh(gates[:, 2 * hidden:3 * hidden])
        o = jax.nn.sigmoid(gates[:, 3 * hidden:4 * hidden])
        c_new = f * c + i * g
        h_new = o * jnp.tanh(c_new)
        hseq_ref[t] = h_new
        return h_new, c_new

    h_f, c_f = lax.fori_loop(0, seq_len, step, (h0_ref[...], c0_ref[...]),
                             unroll=min(4, max(1, seq_len)))
    hf_ref[...] = h_f                       # final states written exactly once
    cf_ref[...] = c_f


def pallas_masked_lstm(gates_t, masks_t, h0, c0, w_hh):
    """gates_t: (T, B, 4H) f32 (bias folded in, time-major — no transpose);
    masks_t: (T, B, 1) f32; h0/c0: (B, H) f32; w_hh: (H, 4H) bf16."""
    T, B, G = gates_t.shape
    H = h0.shape[-1]
    nb = 2 if (B % 16 == 0) else 1          # v7x: batch-split across both TCs
    Bb = B // nb

    h_seq, h_f, c_f = pl.pallas_call(
        functools.partial(_lstm_kernel, hidden=H, seq_len=T),
        out_shape=(jax.ShapeDtypeStruct((T, B, H), jnp.float32),
                   jax.ShapeDtypeStruct((B, H), jnp.float32),
                   jax.ShapeDtypeStruct((B, H), jnp.float32)),
        grid=(nb,),
        in_specs=[
            pl.BlockSpec((T, Bb, G), lambda i: (0, i, 0)),
            pl.BlockSpec((T, Bb, 1), lambda i: (0, i, 0)),
            pl.BlockSpec((Bb, H), lambda i: (i, 0)),
            pl.BlockSpec((Bb, H), lambda i: (i, 0)),
            pl.BlockSpec((H, G), lambda i: (0, 0)),
        ],
        out_specs=(pl.BlockSpec((T, Bb, H), lambda i: (0, i, 0)),
                   pl.BlockSpec((Bb, H), lambda i: (i, 0)),
                   pl.BlockSpec((Bb, H), lambda i: (i, 0))),
        compiler_params=pltpu.CompilerParams(
            dimension_semantics=("parallel",),
            vmem_limit_bytes=VMEM_LIMIT),
    )(gates_t, masks_t, h0, c0, w_hh)
    return h_seq, h_f, c_f


# ---------------------------------------------------------------------------
# Glue: im2col (trace-time slicing only), parameter init, full forward
# ---------------------------------------------------------------------------
def _im2col(x, k, s):
    """x: (N, H, W, C) bf16 -> patches (N, Ho, Wo, k*k*C) in (di, dj, c) order."""
    # TODO(synk): fully fusing the patch extraction into the conv matmul kernel
    # (DMA an input row-strip per grid step, build patches in VMEM) would remove
    # the remaining HBM round trip; left to XLA here, but done in bf16.
    N, H, W, C = x.shape
    Ho = (H - k) // s + 1
    Wo = (W - k) // s + 1
    cols = []
    for di in range(k):
        for dj in range(k):
            cols.append(x[:, di:di + s * Ho:s, dj:dj + s * Wo:s, :])
    p = jnp.stack(cols, axis=3)                         # (N, Ho, Wo, k*k, C)
    return p.reshape(N, Ho, Wo, k * k * C), Ho, Wo


def _orthogonal(key, rows, cols, gain):
    return jax.nn.initializers.orthogonal(scale=gain)(key, (rows, cols), jnp.float32)


def init_params(key, num_inputs, num_outputs):
    ks = jax.random.split(key, 10)
    relu_gain = math.sqrt(2.0)
    params = {}

    convs = []
    cin = num_inputs
    for idx, (cout, k, s) in enumerate(CONV_CFG):
        # PyTorch orthogonal_ on (Cout, Cin*k*k); bias zeros.
        w = _orthogonal(ks[idx], cout, cin * k * k, relu_gain)
        # reshape to (Cout, Cin, k, k) then to im2col-matmul layout (k*k*Cin, Cout)
        w = w.reshape(cout, cin, k, k).transpose(2, 3, 1, 0).reshape(k * k * cin, cout)
        convs.append((w.astype(jnp.bfloat16), jnp.zeros((cout,), jnp.float32)))
        cin = cout
    params["convs"] = convs

    # Linear(32*7*7, 512), ReLU. Weight rows permuted from torch (C,H,W) flatten
    # order to the NHWC flatten order used by the conv stack, so the forward
    # pass needs no activation transpose before the fc matmul.
    w_fc = _orthogonal(ks[3], MAIN_OUT, 32 * 7 * 7, relu_gain)
    w_fc = w_fc.reshape(MAIN_OUT, 32, 7, 7).transpose(2, 3, 1, 0).reshape(7 * 7 * 32, MAIN_OUT)
    params["fc"] = (w_fc.astype(jnp.bfloat16), jnp.zeros((MAIN_OUT,), jnp.float32))

    # TODO(synk): parent class defines policy/critic heads with 512-dim inputs,
    # but the LSTM output fed to them is 128-dim; heads are sized 128-in so the
    # forward pass is actually executable.
    params["policy"] = (_orthogonal(ks[4], num_outputs, LSTM_HIDDEN, 0.01).T.astype(jnp.bfloat16),
                        jnp.zeros((num_outputs,), jnp.float32))
    params["critic"] = (_orthogonal(ks[5], 1, LSTM_HIDDEN, 1.0).T.astype(jnp.bfloat16),
                        jnp.zeros((1,), jnp.float32))

    # nn.LSTM(512, 128) default init: U(-1/sqrt(H), 1/sqrt(H)) for all params.
    kb = 1.0 / math.sqrt(LSTM_HIDDEN)
    w_ih = jax.random.uniform(ks[6], (4 * LSTM_HIDDEN, MAIN_OUT), jnp.float32, -kb, kb)
    w_hh = jax.random.uniform(ks[7], (4 * LSTM_HIDDEN, LSTM_HIDDEN), jnp.float32, -kb, kb)
    b_ih = jax.random.uniform(ks[8], (4 * LSTM_HIDDEN,), jnp.float32, -kb, kb)
    b_hh = jax.random.uniform(ks[9], (4 * LSTM_HIDDEN,), jnp.float32, -kb, kb)
    params["lstm"] = (w_ih.T.astype(jnp.bfloat16),
                      w_hh.T.astype(jnp.bfloat16),
                      b_ih + b_hh)
    return params


def lstm_conv_forward(params, inputs, masks, states):
    """inputs: (B, T, C, H, W) f32; masks: (B, T) f32; states: 2 x (B, 1, 128)."""
    B, T, C, H, W = inputs.shape

    # One transpose does both NCHW->NHWC and the B/T swap (time-major frames),
    # in bf16 so the largest HBM tensors are half-width from here on.
    x = jnp.transpose(inputs.astype(jnp.bfloat16), (1, 0, 3, 4, 2))
    x = x.reshape(T * B, H, W, C)

    # conv stack: each conv = bf16 im2col + Pallas matmul+bias+ReLU (bf16 out)
    for (w, b), (cout, k, s) in zip(params["convs"], CONV_CFG):
        patches, Ho, Wo = _im2col(x, k, s)
        y = pallas_linear(patches.reshape(T * B * Ho * Wo, -1), w, b,
                          relu=True, out_dtype=jnp.bfloat16)
        x = y.reshape(T * B, Ho, Wo, cout)

    # Fused fc+ReLU and LSTM input projection (feat stays in VMEM):
    # gates_x = relu(flat @ W_fc + b_fc) @ W_ih + (b_ih + b_hh)
    w_ih, w_hh, b_lstm = params["lstm"]
    flat = x.reshape(T * B, -1)                                    # (T*B, 1568) bf16
    gates_x = pallas_fc_gates(flat, params["fc"][0], params["fc"][1], w_ih, b_lstm)
    gates_t = gates_x.reshape(T, B, 4 * LSTM_HIDDEN)               # time-major, no transpose

    # masked LSTM (forward_masked_rnn_transposed): states (B, layers=1, H)
    masks_t = jnp.transpose(masks, (1, 0)).reshape(T, B, 1)        # tiny
    h0 = states[0][:, 0, :]
    c0 = states[1][:, 0, :]
    h_seq_t, h_f, c_f = pallas_masked_lstm(gates_t, masks_t, h0, c0, w_hh)

    # Fused policy + critic heads: one lane-padded matmul, split afterwards.
    pw, pb = params["policy"]
    cw, cb = params["critic"]
    num_outputs = pw.shape[1]
    w_head = jnp.concatenate([pw, cw], axis=1)                     # (128, A+1) bf16
    b_head = jnp.concatenate([pb, cb], axis=0)
    heads = pallas_linear(h_seq_t.reshape(T * B, LSTM_HIDDEN).astype(jnp.bfloat16),
                          w_head, b_head, relu=False, out_dtype=jnp.float32)
    heads = jnp.transpose(heads.reshape(T, B, num_outputs + 1), (1, 0, 2))  # (B,T,A+1) tiny
    policy_logits = heads[:, :, :num_outputs]
    critic = heads[:, :, num_outputs:num_outputs + 1]

    new_states = (h_f[:, None, :], c_f[:, None, :])                # back to (B, layers, H)
    return policy_logits, critic, new_states


if __name__ == "__main__":
    num_inputs, num_outputs = 4, 6
    B, T, IMG = 2, 4, 84          # 84x84 required by Linear(32*7*7, 512)
    key = jax.random.PRNGKey(0)
    pkey, xkey = jax.random.split(key)

    params = init_params(pkey, num_inputs, num_outputs)
    inputs = jax.random.normal(xkey, (B, T, num_inputs, IMG, IMG), jnp.float32)
    masks = jnp.ones((B, T), jnp.float32).at[0, 2].set(0.0)   # one episode reset
    states = (jnp.zeros((B, 1, LSTM_HIDDEN), jnp.float32),
              jnp.zeros((B, 1, LSTM_HIDDEN), jnp.float32))

    fwd = jax.jit(lstm_conv_forward)
    policy_logits, critic, new_states = fwd(params, inputs, masks, states)
    jax.block_until_ready((policy_logits, critic, new_states))

    assert policy_logits.shape == (B, T, num_outputs)
    assert critic.shape == (B, T, 1)
    assert new_states[0].shape == (B, 1, LSTM_HIDDEN)
    assert new_states[1].shape == (B, 1, LSTM_HIDDEN)
    assert bool(jnp.all(jnp.isfinite(policy_logits)))
    assert bool(jnp.all(jnp.isfinite(critic)))
    print("KERNEL_OK")
</pallas_src>

<mosaic_0001>
module attributes {stable_mosaic.version = 11 : i64} {
  func.func @_linear_kernel(%arg0: i32, %arg1: memref<512x256xbf16, #tpu.memory_space<vmem>>, %arg2: memref<256x128xbf16, #tpu.memory_space<vmem>>, %arg3: memref<1x128xf32, #tpu.memory_space<vmem>>, %arg4: memref<512x128xbf16, #tpu.memory_space<vmem>>) attributes {dimension_semantics = [#tpu.dimension_semantics<parallel>], iteration_bounds = array<i64: 7>, scalar_prefetch = 0 : i64, scratch_operands = 0 : i64, tpu.core_type = #tpu.core_type<tc>, window_params = [{transform_indices = @transform_0, window_bounds = array<i64: 512, 256>}, {pipeline_mode = #tpu.pipeline_mode<synchronous>, transform_indices = @transform_1, window_bounds = array<i64: 256, 128>}, {pipeline_mode = #tpu.pipeline_mode<synchronous>, transform_indices = @transform_2, window_bounds = array<i64: 1, 128>}, {transform_indices = @transform_3, window_bounds = array<i64: 512, 128>}]} {
    %c0 = arith.constant 0 : index
    %c0_0 = arith.constant 0 : index
    %0 = vector.load %arg1[%c0, %c0_0] : memref<512x256xbf16, #tpu.memory_space<vmem>>, vector<512x256xbf16>
    %c0_1 = arith.constant 0 : index
    %c0_2 = arith.constant 0 : index
    %1 = vector.load %arg2[%c0_1, %c0_2] : memref<256x128xbf16, #tpu.memory_space<vmem>>, vector<256x128xbf16>
    %cst = arith.constant dense<0.000000e+00> : vector<512x128xf32>
    %2 = tpu.matmul %0, %1, %cst {dimension_numbers = #tpu.dot_dimension_numbers<[1], [0], [0], [1], [0, 0, 1, 1], [], []>} : vector<512x256xbf16>, vector<256x128xbf16>, vector<512x128xf32> -> vector<512x128xf32>
    %c0_3 = arith.constant 0 : index
    %c0_4 = arith.constant 0 : index
    %3 = vector.load %arg3[%c0_3, %c0_4] : memref<1x128xf32, #tpu.memory_space<vmem>>, vector<1x128xf32>
    %4 = vector.broadcast %3 : vector<1x128xf32> to vector<512x128xf32>
    %5 = arith.addf %2, %4 : vector<512x128xf32>
    %cst_5 = arith.constant 0.000000e+00 : f32
    %6 = vector.broadcast %cst_5 : f32 to vector<512x128xf32>
    %7 = arith.maximumf %5, %6 : vector<512x128xf32>
    %8 = arith.truncf %7 : vector<512x128xf32> to vector<512x128xbf16>
    %c0_6 = arith.constant 0 : index
    %c0_7 = arith.constant 0 : index
    %9 = vector.load %arg4[%c0_6, %c0_7] : memref<512x128xbf16, #tpu.memory_space<vmem>>, vector<512x128xbf16>
    tpu.vector_store %arg4[%c0_6, %c0_7], %8 {strides = array<i32>} : memref<512x128xbf16, #tpu.memory_space<vmem>>, vector<512x128xbf16>,
    return
  }
  func.func @transform_0(%arg0: i32) -> (i32, i32) {
    %c0_i32 = arith.constant 0 : i32
    %c0_i32_0 = arith.constant 0 : i32
    return %arg0, %c0_i32 : i32, i32
  }
  func.func @transform_1(%arg0: i32) -> (i32, i32) {
    %c0_i32 = arith.constant 0 : i32
    %c0_i32_0 = arith.constant 0 : i32
    %c0_i32_1 = arith.constant 0 : i32
    return %c0_i32, %c0_i32_0 : i32, i32
  }
  func.func @transform_2(%arg0: i32) -> (i32, i32) {
    %c0_i32 = arith.constant 0 : i32
    %c0_i32_0 = arith.constant 0 : i32
    %c0_i32_1 = arith.constant 0 : i32
    return %c0_i32, %c0_i32_0 : i32, i32
  }
  func.func @transform_3(%arg0: i32) -> (i32, i32) {
    %c0_i32 = arith.constant 0 : i32
    %c0_i32_0 = arith.constant 0 : i32
    return %arg0, %c0_i32 : i32, i32
  }
}

module attributes {stable_mosaic.version = 11 : i64} {
  func.func @_linear_kernel(%arg0: i32, %arg1: memref<328x512xbf16, #tpu.memory_space<vmem>>, %arg2: memref<512x128xbf16, #tpu.memory_space<vmem>>, %arg3: memref<1x128xf32, #tpu.memory_space<vmem>>, %arg4: memref<328x128xbf16, #tpu.memory_space<vmem>>) attributes {dimension_semantics = [#tpu.dimension_semantics<parallel>], iteration_bounds = array<i64: 2>, scalar_prefetch = 0 : i64, scratch_operands = 0 : i64, tpu.core_type = #tpu.core_type<tc>, window_params = [{transform_indices = @transform_0, window_bounds = array<i64: 328, 512>}, {pipeline_mode = #tpu.pipeline_mode<synchronous>, transform_indices = @transform_1, window_bounds = array<i64: 512, 128>}, {pipeline_mode = #tpu.pipeline_mode<synchronous>, transform_indices = @transform_2, window_bounds = array<i64: 1, 128>}, {transform_indices = @transform_3, window_bounds = array<i64: 328, 128>}]} {
    %c0 = arith.constant 0 : index
    %c0_0 = arith.constant 0 : index
    %0 = vector.load %arg1[%c0, %c0_0] : memref<328x512xbf16, #tpu.memory_space<vmem>>, vector<328x512xbf16>
    %c0_1 = arith.constant 0 : index
    %c0_2 = arith.constant 0 : index
    %1 = vector.load %arg2[%c0_1, %c0_2] : memref<512x128xbf16, #tpu.memory_space<vmem>>, vector<512x128xbf16>
    %cst = arith.constant dense<0.000000e+00> : vector<328x128xf32>
    %2 = tpu.matmul %0, %1, %cst {dimension_numbers = #tpu.dot_dimension_numbers<[1], [0], [0], [1], [0, 0, 1, 1], [], []>} : vector<328x512xbf16>, vector<512x128xbf16>, vector<328x128xf32> -> vector<328x128xf32>
    %c0_3 = arith.constant 0 : index
    %c0_4 = arith.constant 0 : index
    %3 = vector.load %arg3[%c0_3, %c0_4] : memref<1x128xf32, #tpu.memory_space<vmem>>, vector<1x128xf32>
    %4 = vector.broadcast %3 : vector<1x128xf32> to vector<328x128xf32>
    %5 = arith.addf %2, %4 : vector<328x128xf32>
    %cst_5 = arith.constant 0.000000e+00 : f32
    %6 = vector.broadcast %cst_5 : f32 to vector<328x128xf32>
    %7 = arith.maximumf %5, %6 : vector<328x128xf32>
    %8 = arith.truncf %7 : vector<328x128xf32> to vector<328x128xbf16>
    %c0_6 = arith.constant 0 : index
    %c0_7 = arith.constant 0 : index
    %9 = vector.load %arg4[%c0_6, %c0_7] : memref<328x128xbf16, #tpu.memory_space<vmem>>, vector<328x128xbf16>
    tpu.vector_store %arg4[%c0_6, %c0_7], %8 {strides = array<i32>} : memref<328x128xbf16, #tpu.memory_space<vmem>>, vector<328x128xbf16>,
    return
  }
  func.func @transform_0(%arg0: i32) -> (i32, i32) {
    %c0_i32 = arith.constant 0 : i32
    %c0_i32_0 = arith.constant 0 : i32
    return %arg0, %c0_i32 : i32, i32
  }
  func.func @transform_1(%arg0: i32) -> (i32, i32) {
    %c0_i32 = arith.constant 0 : i32
    %c0_i32_0 = arith.constant 0 : i32
    %c0_i32_1 = arith.constant 0 : i32
    return %c0_i32, %c0_i32_0 : i32, i32
  }
  func.func @transform_2(%arg0: i32) -> (i32, i32) {
    %c0_i32 = arith.constant 0 : i32
    %c0_i32_0 = arith.constant 0 : i32
    %c0_i32_1 = arith.constant 0 : i32
    return %c0_i32, %c0_i32_0 : i32, i32
  }
  func.func @transform_3(%arg0: i32) -> (i32, i32) {
    %c0_i32 = arith.constant 0 : i32
    %c0_i32_0 = arith.constant 0 : i32
    return %arg0, %c0_i32 : i32, i32
  }
}

module attributes {stable_mosaic.version = 11 : i64} {
  func.func @_linear_kernel(%arg0: i32, %arg1: memref<200x576xbf16, #tpu.memory_space<vmem>>, %arg2: memref<576x128xbf16, #tpu.memory_space<vmem>>, %arg3: memref<1x128xf32, #tpu.memory_space<vmem>>, %arg4: memref<200x128xbf16, #tpu.memory_space<vmem>>) attributes {dimension_semantics = [#tpu.dimension_semantics<parallel>], iteration_bounds = array<i64: 2>, scalar_prefetch = 0 : i64, scratch_operands = 0 : i64, tpu.core_type = #tpu.core_type<tc>, window_params = [{transform_indices = @transform_0, window_bounds = array<i64: 200, 576>}, {pipeline_mode = #tpu.pipeline_mode<synchronous>, transform_indices = @transform_1, window_bounds = array<i64: 576, 128>}, {pipeline_mode = #tpu.pipeline_mode<synchronous>, transform_indices = @transform_2, window_bounds = array<i64: 1, 128>}, {transform_indices = @transform_3, window_bounds = array<i64: 200, 128>}]} {
    %c0 = arith.constant 0 : index
    %c0_0 = arith.constant 0 : index
    %0 = vector.load %arg1[%c0, %c0_0] : memref<200x576xbf16, #tpu.memory_space<vmem>>, vector<200x576xbf16>
    %c0_1 = arith.constant 0 : index
    %c0_2 = arith.constant 0 : index
    %1 = vector.load %arg2[%c0_1, %c0_2] : memref<576x128xbf16, #tpu.memory_space<vmem>>, vector<576x128xbf16>
    %cst = arith.constant dense<0.000000e+00> : vector<200x128xf32>
    %2 = tpu.matmul %0, %1, %cst {dimension_numbers = #tpu.dot_dimension_numbers<[1], [0], [0], [1], [0, 0, 1, 1], [], []>} : vector<200x576xbf16>, vector<576x128xbf16>, vector<200x128xf32> -> vector<200x128xf32>
    %c0_3 = arith.constant 0 : index
    %c0_4 = arith.constant 0 : index
    %3 = vector.load %arg3[%c0_3, %c0_4] : memref<1x128xf32, #tpu.memory_space<vmem>>, vector<1x128xf32>
    %4 = vector.broadcast %3 : vector<1x128xf32> to vector<200x128xf32>
    %5 = arith.addf %2, %4 : vector<200x128xf32>
    %cst_5 = arith.constant 0.000000e+00 : f32
    %6 = vector.broadcast %cst_5 : f32 to vector<200x128xf32>
    %7 = arith.maximumf %5, %6 : vector<200x128xf32>
    %8 = arith.truncf %7 : vector<200x128xf32> to vector<200x128xbf16>
    %c0_6 = arith.constant 0 : index
    %c0_7 = arith.constant 0 : index
    %9 = vector.load %arg4[%c0_6, %c0_7] : memref<200x128xbf16, #tpu.memory_space<vmem>>, vector<200x128xbf16>
    tpu.vector_store %arg4[%c0_6, %c0_7], %8 {strides = array<i32>} : memref<200x128xbf16, #tpu.memory_space<vmem>>, vector<200x128xbf16>,
    return
  }
  func.func @transform_0(%arg0: i32) -> (i32, i32) {
    %c0_i32 = arith.constant 0 : i32
    %c0_i32_0 = arith.constant 0 : i32
    return %arg0, %c0_i32 : i32, i32
  }
  func.func @transform_1(%arg0: i32) -> (i32, i32) {
    %c0_i32 = arith.constant 0 : i32
    %c0_i32_0 = arith.constant 0 : i32
    %c0_i32_1 = arith.constant 0 : i32
    return %c0_i32, %c0_i32_0 : i32, i32
  }
  func.func @transform_2(%arg0: i32) -> (i32, i32) {
    %c0_i32 = arith.constant 0 : i32
    %c0_i32_0 = arith.constant 0 : i32
    %c0_i32_1 = arith.constant 0 : i32
    return %c0_i32, %c0_i32_0 : i32, i32
  }
  func.func @transform_3(%arg0: i32) -> (i32, i32) {
    %c0_i32 = arith.constant 0 : i32
    %c0_i32_0 = arith.constant 0 : i32
    return %arg0, %c0_i32 : i32, i32
  }
}

module attributes {stable_mosaic.version = 11 : i64} {
  func.func @_fc_gates_kernel(%arg0: i32, %arg1: memref<8x1568xbf16, #tpu.memory_space<vmem>>, %arg2: memref<1568x512xbf16, #tpu.memory_space<vmem>>, %arg3: memref<1x512xf32, #tpu.memory_space<vmem>>, %arg4: memref<512x512xbf16, #tpu.memory_space<vmem>>, %arg5: memref<1x512xf32, #tpu.memory_space<vmem>>, %arg6: memref<8x512xf32, #tpu.memory_space<vmem>>) attributes {dimension_semantics = [#tpu.dimension_semantics<parallel>], iteration_bounds = array<i64: 2>, scalar_prefetch = 0 : i64, scratch_operands = 0 : i64, tpu.core_type = #tpu.core_type<tc>, window_params = [{transform_indices = @transform_0, window_bounds = array<i64: 8, 1568>}, {pipeline_mode = #tpu.pipeline_mode<synchronous>, transform_indices = @transform_1, window_bounds = array<i64: 1568, 512>}, {pipeline_mode = #tpu.pipeline_mode<synchronous>, transform_indices = @transform_2, window_bounds = array<i64: 1, 512>}, {pipeline_mode = #tpu.pipeline_mode<synchronous>, transform_indices = @transform_3, window_bounds = array<i64: 512, 512>}, {pipeline_mode = #tpu.pipeline_mode<synchronous>, transform_indices = @transform_4, window_bounds = array<i64: 1, 512>}, {transform_indices = @transform_5, window_bounds = array<i64: 8, 512>}]} {
    %c0 = arith.constant 0 : index
    %c0_0 = arith.constant 0 : index
    %0 = vector.load %arg1[%c0, %c0_0] : memref<8x1568xbf16, #tpu.memory_space<vmem>>, vector<8x1568xbf16>
    %c0_1 = arith.constant 0 : index
    %c0_2 = arith.constant 0 : index
    %1 = vector.load %arg2[%c0_1, %c0_2] : memref<1568x512xbf16, #tpu.memory_space<vmem>>, vector<1568x512xbf16>
    %cst = arith.constant dense<0.000000e+00> : vector<8x512xf32>
    %2 = tpu.matmul %0, %1, %cst {dimension_numbers = #tpu.dot_dimension_numbers<[1], [0], [0], [1], [0, 0, 1, 1], [], []>} : vector<8x1568xbf16>, vector<1568x512xbf16>, vector<8x512xf32> -> vector<8x512xf32>
    %c0_3 = arith.constant 0 : index
    %c0_4 = arith.constant 0 : index
    %3 = vector.load %arg3[%c0_3, %c0_4] : memref<1x512xf32, #tpu.memory_space<vmem>>, vector<1x512xf32>
    %4 = vector.broadcast %3 : vector<1x512xf32> to vector<8x512xf32>
    %5 = arith.addf %2, %4 : vector<8x512xf32>
    %cst_5 = arith.constant 0.000000e+00 : f32
    %6 = vector.broadcast %cst_5 : f32 to vector<8x512xf32>
    %7 = arith.maximumf %5, %6 : vector<8x512xf32>
    %8 = arith.truncf %7 : vector<8x512xf32> to vector<8x512xbf16>
    %c0_6 = arith.constant 0 : index
    %c0_7 = arith.constant 0 : index
    %9 = vector.load %arg4[%c0_6, %c0_7] : memref<512x512xbf16, #tpu.memory_space<vmem>>, vector<512x512xbf16>
    %cst_8 = arith.constant dense<0.000000e+00> : vector<8x512xf32>
    %10 = tpu.matmul %8, %9, %cst_8 {dimension_numbers = #tpu.dot_dimension_numbers<[1], [0], [0], [1], [0, 0, 1, 1], [], []>} : vector<8x512xbf16>, vector<512x512xbf16>, vector<8x512xf32> -> vector<8x512xf32>
    %c0_9 = arith.constant 0 : index
    %c0_10 = arith.constant 0 : index
    %11 = vector.load %arg5[%c0_9, %c0_10] : memref<1x512xf32, #tpu.memory_space<vmem>>, vector<1x512xf32>
    %12 = vector.broadcast %11 : vector<1x512xf32> to vector<8x512xf32>
    %13 = arith.addf %10, %12 : vector<8x512xf32>
    %c0_11 = arith.constant 0 : index
    %c0_12 = arith.constant 0 : index
    %14 = vector.load %arg6[%c0_11, %c0_12] : memref<8x512xf32, #tpu.memory_space<vmem>>, vector<8x512xf32>
    tpu.vector_store %arg6[%c0_11, %c0_12], %13 {strides = array<i32>} : memref<8x512xf32, #tpu.memory_space<vmem>>, vector<8x512xf32>,
    return
  }
  func.func @transform_0(%arg0: i32) -> (i32, i32) {
    %c0_i32 = arith.constant 0 : i32
    %c0_i32_0 = arith.constant 0 : i32
    return %arg0, %c0_i32 : i32, i32
  }
  func.func @transform_1(%arg0: i32) -> (i32, i32) {
    %c0_i32 = arith.constant 0 : i32
    %c0_i32_0 = arith.constant 0 : i32
    %c0_i32_1 = arith.constant 0 : i32
    return %c0_i32, %c0_i32_0 : i32, i32
  }
  func.func @transform_2(%arg0: i32) -> (i32, i32) {
    %c0_i32 = arith.constant 0 : i32
    %c0_i32_0 = arith.constant 0 : i32
    %c0_i32_1 = arith.constant 0 : i32
    return %c0_i32, %c0_i32_0 : i32, i32
  }
  func.func @transform_3(%arg0: i32) -> (i32, i32) {
    %c0_i32 = arith.constant 0 : i32
    %c0_i32_0 = arith.constant 0 : i32
    %c0_i32_1 = arith.constant 0 : i32
    return %c0_i32, %c0_i32_0 : i32, i32
  }
  func.func @transform_4(%arg0: i32) -> (i32, i32) {
    %c0_i32 = arith.constant 0 : i32
    %c0_i32_0 = arith.constant 0 : i32
    %c0_i32_1 = arith.constant 0 : i32
    return %c0_i32, %c0_i32_0 : i32, i32
  }
  func.func @transform_5(%arg0: i32) -> (i32, i32) {
    %c0_i32 = arith.constant 0 : i32
    %c0_i32_0 = arith.constant 0 : i32
    return %arg0, %c0_i32 : i32, i32
  }
}

module attributes {stable_mosaic.version = 11 : i64} {
  func.func @_lstm_kernel(%arg0: i32, %arg1: memref<4x2x512xf32, #tpu.memory_space<vmem>>, %arg2: memref<4x2x1xf32, #tpu.memory_space<vmem>>, %arg3: memref<2x128xf32, #tpu.memory_space<vmem>>, %arg4: memref<2x128xf32, #tpu.memory_space<vmem>>, %arg5: memref<128x512xbf16, #tpu.memory_space<vmem>>, %arg6: memref<4x2x128xf32, #tpu.memory_space<vmem>>, %arg7: memref<2x128xf32, #tpu.memory_space<vmem>>, %arg8: memref<2x128xf32, #tpu.memory_space<vmem>>) attributes {dimension_semantics = [#tpu.dimension_semantics<parallel>], iteration_bounds = array<i64: 1>, scalar_prefetch = 0 : i64, scratch_operands = 0 : i64, tpu.core_type = #tpu.core_type<tc>, window_params = [{transform_indices = @transform_0, window_bounds = array<i64: 4, 2, 512>}, {transform_indices = @transform_1, window_bounds = array<i64: 4, 2, 1>}, {transform_indices = @transform_2, window_bounds = array<i64: 2, 128>}, {transform_indices = @transform_3, window_bounds = array<i64: 2, 128>}, {pipeline_mode = #tpu.pipeline_mode<synchronous>, transform_indices = @transform_4, window_bounds = array<i64: 128, 512>}, {transform_indices = @transform_5, window_bounds = array<i64: 4, 2, 128>}, {transform_indices = @transform_6, window_bounds = array<i64: 2, 128>}, {transform_indices = @transform_7, window_bounds = array<i64: 2, 128>}]} {
    %c0 = arith.constant 0 : index
    %c0_0 = arith.constant 0 : index
    %0 = vector.load %arg5[%c0, %c0_0] : memref<128x512xbf16, #tpu.memory_space<vmem>>, vector<128x512xbf16>
    %c0_1 = arith.constant 0 : index
    %c0_2 = arith.constant 0 : index
    %1 = vector.load %arg3[%c0_1, %c0_2] : memref<2x128xf32, #tpu.memory_space<vmem>>, vector<2x128xf32>
    %c0_3 = arith.constant 0 : index
    %c0_4 = arith.constant 0 : index
    %2 = vector.load %arg4[%c0_3, %c0_4] : memref<2x128xf32, #tpu.memory_space<vmem>>, vector<2x128xf32>
    %c0_i32 = arith.constant 0 : i32
    %3 = arith.index_cast %c0_i32 : i32 to index
    %c0_5 = arith.constant 0 : index
    %c0_6 = arith.constant 0 : index
    %4 = vector.load %arg2[%3, %c0_5, %c0_6] : memref<4x2x1xf32, #tpu.memory_space<vmem>>, vector<1x2x1xf32>
    %5 = vector.shape_cast %4 : vector<1x2x1xf32> to vector<2x1xf32>
    %6 = vector.broadcast %5 : vector<2x1xf32> to vector<2x128xf32>
    %7 = arith.mulf %1, %6 : vector<2x128xf32>
    %8 = vector.broadcast %5 : vector<2x1xf32> to vector<2x128xf32>
    %9 = arith.mulf %2, %8 : vector<2x128xf32>
    %10 = arith.index_cast %c0_i32 : i32 to index
    %c0_7 = arith.constant 0 : index
    %c0_8 = arith.constant 0 : index
    %11 = vector.load %arg1[%10, %c0_7, %c0_8] : memref<4x2x512xf32, #tpu.memory_space<vmem>>, vector<1x2x512xf32>
    %12 = vector.shape_cast %11 : vector<1x2x512xf32> to vector<2x512xf32>
    %13 = arith.truncf %7 : vector<2x128xf32> to vector<2x128xbf16>
    %cst = arith.constant dense<0.000000e+00> : vector<2x512xf32>
    %14 = tpu.matmul %13, %0, %cst {dimension_numbers = #tpu.dot_dimension_numbers<[1], [0], [0], [1], [0, 0, 1, 1], [], []>} : vector<2x128xbf16>, vector<128x512xbf16>, vector<2x512xf32> -> vector<2x512xf32>
    %15 = arith.addf %12, %14 : vector<2x512xf32>
    %16 = vector.extract_strided_slice %15 {offsets = [0, 0], sizes = [2, 128], strides = [1, 1]} : vector<2x512xf32> to vector<2x128xf32>
    %17 = arith.negf %16 : vector<2x128xf32>
    %18 = math.exp %17 : vector<2x128xf32>
    %cst_9 = arith.constant 1.000000e+00 : f32
    %19 = vector.broadcast %cst_9 : f32 to vector<2x128xf32>
    %20 = arith.addf %19, %18 : vector<2x128xf32>
    %21 = arith.divf %19, %20 : vector<2x128xf32>
    %22 = vector.extract_strided_slice %15 {offsets = [0, 128], sizes = [2, 128], strides = [1, 1]} : vector<2x512xf32> to vector<2x128xf32>
    %23 = arith.negf %22 : vector<2x128xf32>
    %24 = math.exp %23 : vector<2x128xf32>
    %cst_10 = arith.constant 1.000000e+00 : f32
    %25 = vector.broadcast %cst_10 : f32 to vector<2x128xf32>
    %26 = arith.addf %25, %24 : vector<2x128xf32>
    %27 = arith.divf %25, %26 : vector<2x128xf32>
    %28 = vector.extract_strided_slice %15 {offsets = [0, 256], sizes = [2, 128], strides = [1, 1]} : vector<2x512xf32> to vector<2x128xf32>
    %29 = math.tanh %28 : vector<2x128xf32>
    %30 = vector.extract_strided_slice %15 {offsets = [0, 384], sizes = [2, 128], strides = [1, 1]} : vector<2x512xf32> to vector<2x128xf32>
    %31 = arith.negf %30 : vector<2x128xf32>
    %32 = math.exp %31 : vector<2x128xf32>
    %cst_11 = arith.constant 1.000000e+00 : f32
    %33 = vector.broadcast %cst_11 : f32 to vector<2x128xf32>
    %34 = arith.addf %33, %32 : vector<2x128xf32>
    %35 = arith.divf %33, %34 : vector<2x128xf32>
    %36 = arith.mulf %27, %9 : vector<2x128xf32>
    %37 = arith.mulf %21, %29 : vector<2x128xf32>
    %38 = arith.addf %36, %37 : vector<2x128xf32>
    %39 = math.tanh %38 : vector<2x128xf32>
    %40 = arith.mulf %35, %39 : vector<2x128xf32>
    %41 = arith.index_cast %c0_i32 : i32 to index
    %c0_12 = arith.constant 0 : index
    %c0_13 = arith.constant 0 : index
    %42 = vector.load %arg6[%41, %c0_12, %c0_13] : memref<4x2x128xf32, #tpu.memory_space<vmem>>, vector<1x2x128xf32>
    %43 = vector.shape_cast %42 : vector<1x2x128xf32> to vector<2x128xf32>
    %44 = vector.shape_cast %40 : vector<2x128xf32> to vector<1x2x128xf32>
    tpu.vector_store %arg6[%41, %c0_12, %c0_13], %44 {strides = array<i32>} : memref<4x2x128xf32, #tpu.memory_space<vmem>>, vector<1x2x128xf32>,
    %c1_i32 = arith.constant 1 : i32
    %45 = arith.index_cast %c1_i32 : i32 to index
    %c0_14 = arith.constant 0 : index
    %c0_15 = arith.constant 0 : index
    %46 = vector.load %arg2[%45, %c0_14, %c0_15] : memref<4x2x1xf32, #tpu.memory_space<vmem>>, vector<1x2x1xf32>
    %47 = vector.shape_cast %46 : vector<1x2x1xf32> to vector<2x1xf32>
    %48 = vector.broadcast %47 : vector<2x1xf32> to vector<2x128xf32>
    %49 = arith.mulf %40, %48 : vector<2x128xf32>
    %50 = vector.broadcast %47 : vector<2x1xf32> to vector<2x128xf32>
    %51 = arith.mulf %38, %50 : vector<2x128xf32>
    %52 = arith.index_cast %c1_i32 : i32 to index
    %c0_16 = arith.constant 0 : index
    %c0_17 = arith.constant 0 : index
    %53 = vector.load %arg1[%52, %c0_16, %c0_17] : memref<4x2x512xf32, #tpu.memory_space<vmem>>, vector<1x2x512xf32>
    %54 = vector.shape_cast %53 : vector<1x2x512xf32> to vector<2x512xf32>
    %55 = arith.truncf %49 : vector<2x128xf32> to vector<2x128xbf16>
    %cst_18 = arith.constant dense<0.000000e+00> : vector<2x512xf32>
    %56 = tpu.matmul %55, %0, %cst_18 {dimension_numbers = #tpu.dot_dimension_numbers<[1], [0], [0], [1], [0, 0, 1, 1], [], []>} : vector<2x128xbf16>, vector<128x512xbf16>, vector<2x512xf32> -> vector<2x512xf32>
    %57 = arith.addf %54, %56 : vector<2x512xf32>
    %58 = vector.extract_strided_slice %57 {offsets = [0, 0], sizes = [2, 128], strides = [1, 1]} : vector<2x512xf32> to vector<2x128xf32>
    %59 = arith.negf %58 : vector<2x128xf32>
    %60 = math.exp %59 : vector<2x128xf32>
    %cst_19 = arith.constant 1.000000e+00 : f32
    %61 = vector.broadcast %cst_19 : f32 to vector<2x128xf32>
    %62 = arith.addf %61, %60 : vector<2x128xf32>
    %63 = arith.divf %61, %62 : vector<2x128xf32>
    %64 = vector.extract_strided_slice %57 {offsets = [0, 128], sizes = [2, 128], strides = [1, 1]} : vector<2x512xf32> to vector<2x128xf32>
    %65 = arith.negf %64 : vector<2x128xf32>
    %66 = math.exp %65 : vector<2x128xf32>
    %cst_20 = arith.constant 1.000000e+00 : f32
    %67 = vector.broadcast %cst_20 : f32 to vector<2x128xf32>
    %68 = arith.addf %67, %66 : vector<2x128xf32>
    %69 = arith.divf %67, %68 : vector<2x128xf32>
    %70 = vector.extract_strided_slice %57 {offsets = [0, 256], sizes = [2, 128], strides = [1, 1]} : vector<2x512xf32> to vector<2x128xf32>
    %71 = math.tanh %70 : vector<2x128xf32>
    %72 = vector.extract_strided_slice %57 {offsets = [0, 384], sizes = [2, 128], strides = [1, 1]} : vector<2x512xf32> to vector<2x128xf32>
    %73 = arith.negf %72 : vector<2x128xf32>
    %74 = math.exp %73 : vector<2x128xf32>
    %cst_21 = arith.constant 1.000000e+00 : f32
    %75 = vector.broadcast %cst_21 : f32 to vector<2x128xf32>
    %76 = arith.addf %75, %74 : vector<2x128xf32>
    %77 = arith.divf %75, %76 : vector<2x128xf32>
    %78 = arith.mulf %69, %51 : vector<2x128xf32>
    %79 = arith.mulf %63, %71 : vector<2x128xf32>
    %80 = arith.addf %78, %79 : vector<2x128xf32>
    %81 = math.tanh %80 : vector<2x128xf32>
    %82 = arith.mulf %77, %81 : vector<2x128xf32>
    %83 = arith.index_cast %c1_i32 : i32 to index
    %c0_22 = arith.constant 0 : index
    %c0_23 = arith.constant 0 : index
    %84 = vector.load %arg6[%83, %c0_22, %c0_23] : memref<4x2x128xf32, #tpu.memory_space<vmem>>, vector<1x2x128xf32>
    %85 = vector.shape_cast %84 : vector<1x2x128xf32> to vector<2x128xf32>
    %86 = vector.shape_cast %82 : vector<2x128xf32> to vector<1x2x128xf32>
    tpu.vector_store %arg6[%83, %c0_22, %c0_23], %86 {strides = array<i32>} : memref<4x2x128xf32, #tpu.memory_space<vmem>>, vector<1x2x128xf32>,
    %c2_i32 = arith.constant 2 : i32
    %87 = arith.index_cast %c2_i32 : i32 to index
    %c0_24 = arith.constant 0 : index
    %c0_25 = arith.constant 0 : index
    %88 = vector.load %arg2[%87, %c0_24, %c0_25] : memref<4x2x1xf32, #tpu.memory_space<vmem>>, vector<1x2x1xf32>
    %89 = vector.shape_cast %88 : vector<1x2x1xf32> to vector<2x1xf32>
    %90 = vector.broadcast %89 : vector<2x1xf32> to vector<2x128xf32>
    %91 = arith.mulf %82, %90 : vector<2x128xf32>
    %92 = vector.broadcast %89 : vector<2x1xf32> to vector<2x128xf32>
    %93 = arith.mulf %80, %92 : vector<2x128xf32>
    %94 = arith.index_cast %c2_i32 : i32 to index
    %c0_26 = arith.constant 0 : index
    %c0_27 = arith.constant 0 : index
    %95 = vector.load %arg1[%94, %c0_26, %c0_27] : memref<4x2x512xf32, #tpu.memory_space<vmem>>, vector<1x2x512xf32>
    %96 = vector.shape_cast %95 : vector<1x2x512xf32> to vector<2x512xf32>
    %97 = arith.truncf %91 : vector<2x128xf32> to vector<2x128xbf16>
    %cst_28 = arith.constant dense<0.000000e+00> : vector<2x512xf32>
    %98 = tpu.matmul %97, %0, %cst_28 {dimension_numbers = #tpu.dot_dimension_numbers<[1], [0], [0], [1], [0, 0, 1, 1], [], []>} : vector<2x128xbf16>, vector<128x512xbf16>, vector<2x512xf32> -> vector<2x512xf32>
    %99 = arith.addf %96, %98 : vector<2x512xf32>
    %100 = vector.extract_strided_slice %99 {offsets = [0, 0], sizes = [2, 128], strides = [1, 1]} : vector<2x512xf32> to vector<2x128xf32>
    %101 = arith.negf %100 : vector<2x128xf32>
    %102 = math.exp %101 : vector<2x128xf32>
    %cst_29 = arith.constant 1.000000e+00 : f32
    %103 = vector.broadcast %cst_29 : f32 to vector<2x128xf32>
    %104 = arith.addf %103, %102 : vector<2x128xf32>
    %105 = arith.divf %103, %104 : vector<2x128xf32>
    %106 = vector.extract_strided_slice %99 {offsets = [0, 128], sizes = [2, 128], strides = [1, 1]} : vector<2x512xf32> to vector<2x128xf32>
    %107 = arith.negf %106 : vector<2x128xf32>
    %108 = math.exp %107 : vector<2x128xf32>
    %cst_30 = arith.constant 1.000000e+00 : f32
    %109 = vector.broadcast %cst_30 : f32 to vector<2x128xf32>
    %110 = arith.addf %109, %108 : vector<2x128xf32>
    %111 = arith.divf %109, %110 : vector<2x128xf32>
    %112 = vector.extract_strided_slice %99 {offsets = [0, 256], sizes = [2, 128], strides = [1, 1]} : vector<2x512xf32> to vector<2x128xf32>
    %113 = math.tanh %112 : vector<2x128xf32>
    %114 = vector.extract_strided_slice %99 {offsets = [0, 384], sizes = [2, 128], strides = [1, 1]} : vector<2x512xf32> to vector<2x128xf32>
    %115 = arith.negf %114 : vector<2x128xf32>
    %116 = math.exp %115 : vector<2x128xf32>
    %cst_31 = arith.constant 1.000000e+00 : f32
    %117 = vector.broadcast %cst_31 : f32 to vector<2x128xf32>
    %118 = arith.addf %117, %116 : vector<2x128xf32>
    %119 = arith.divf %117, %118 : vector<2x128xf32>
    %120 = arith.mulf %111, %93 : vector<2x128xf32>
    %121 = arith.mulf %105, %113 : vector<2x128xf32>
    %122 = arith.addf %120, %121 : vector<2x128xf32>
    %123 = math.tanh %122 : vector<2x128xf32>
    %124 = arith.mulf %119, %123 : vector<2x128xf32>
    %125 = arith.index_cast %c2_i32 : i32 to index
    %c0_32 = arith.constant 0 : index
    %c0_33 = arith.constant 0 : index
    %126 = vector.load %arg6[%125, %c0_32, %c0_33] : memref<4x2x128xf32, #tpu.memory_space<vmem>>, vector<1x2x128xf32>
    %127 = vector.shape_cast %126 : vector<1x2x128xf32> to vector<2x128xf32>
    %128 = vector.shape_cast %124 : vector<2x128xf32> to vector<1x2x128xf32>
    tpu.vector_store %arg6[%125, %c0_32, %c0_33], %128 {strides = array<i32>} : memref<4x2x128xf32, #tpu.memory_space<vmem>>, vector<1x2x128xf32>,
    %c3_i32 = arith.constant 3 : i32
    %129 = arith.index_cast %c3_i32 : i32 to index
    %c0_34 = arith.constant 0 : index
    %c0_35 = arith.constant 0 : index
    %130 = vector.load %arg2[%129, %c0_34, %c0_35] : memref<4x2x1xf32, #tpu.memory_space<vmem>>, vector<1x2x1xf32>
    %131 = vector.shape_cast %130 : vector<1x2x1xf32> to vector<2x1xf32>
    %132 = vector.broadcast %131 : vector<2x1xf32> to vector<2x128xf32>
    %133 = arith.mulf %124, %132 : vector<2x128xf32>
    %134 = vector.broadcast %131 : vector<2x1xf32> to vector<2x128xf32>
    %135 = arith.mulf %122, %134 : vector<2x128xf32>
    %136 = arith.index_cast %c3_i32 : i32 to index
    %c0_36 = arith.constant 0 : index
    %c0_37 = arith.constant 0 : index
    %137 = vector.load %arg1[%136, %c0_36, %c0_37] : memref<4x2x512xf32, #tpu.memory_space<vmem>>, vector<1x2x512xf32>
    %138 = vector.shape_cast %137 : vector<1x2x512xf32> to vector<2x512xf32>
    %139 = arith.truncf %133 : vector<2x128xf32> to vector<2x128xbf16>
    %cst_38 = arith.constant dense<0.000000e+00> : vector<2x512xf32>
    %140 = tpu.matmul %139, %0, %cst_38 {dimension_numbers = #tpu.dot_dimension_numbers<[1], [0], [0], [1], [0, 0, 1, 1], [], []>} : vector<2x128xbf16>, vector<128x512xbf16>, vector<2x512xf32> -> vector<2x512xf32>
    %141 = arith.addf %138, %140 : vector<2x512xf32>
    %142 = vector.extract_strided_slice %141 {offsets = [0, 0], sizes = [2, 128], strides = [1, 1]} : vector<2x512xf32> to vector<2x128xf32>
    %143 = arith.negf %142 : vector<2x128xf32>
    %144 = math.exp %143 : vector<2x128xf32>
    %cst_39 = arith.constant 1.000000e+00 : f32
    %145 = vector.broadcast %cst_39 : f32 to vector<2x128xf32>
    %146 = arith.addf %145, %144 : vector<2x128xf32>
    %147 = arith.divf %145, %146 : vector<2x128xf32>
    %148 = vector.extract_strided_slice %141 {offsets = [0, 128], sizes = [2, 128], strides = [1, 1]} : vector<2x512xf32> to vector<2x128xf32>
    %149 = arith.negf %148 : vector<2x128xf32>
    %150 = math.exp %149 : vector<2x128xf32>
    %cst_40 = arith.constant 1.000000e+00 : f32
    %151 = vector.broadcast %cst_40 : f32 to vector<2x128xf32>
    %152 = arith.addf %151, %150 : vector<2x128xf32>
    %153 = arith.divf %151, %152 : vector<2x128xf32>
    %154 = vector.extract_strided_slice %141 {offsets = [0, 256], sizes = [2, 128], strides = [1, 1]} : vector<2x512xf32> to vector<2x128xf32>
    %155 = math.tanh %154 : vector<2x128xf32>
    %156 = vector.extract_strided_slice %141 {offsets = [0, 384], sizes = [2, 128], strides = [1, 1]} : vector<2x512xf32> to vector<2x128xf32>
    %157 = arith.negf %156 : vector<2x128xf32>
    %158 = math.exp %157 : vector<2x128xf32>
    %cst_41 = arith.constant 1.000000e+00 : f32
    %159 = vector.broadcast %cst_41 : f32 to vector<2x128xf32>
    %160 = arith.addf %159, %158 : vector<2x128xf32>
    %161 = arith.divf %159, %160 : vector<2x128xf32>
    %162 = arith.mulf %153, %135 : vector<2x128xf32>
    %163 = arith.mulf %147, %155 : vector<2x128xf32>
    %164 = arith.addf %162, %163 : vector<2x128xf32>
    %165 = math.tanh %164 : vector<2x128xf32>
    %166 = arith.mulf %161, %165 : vector<2x128xf32>
    %167 = arith.index_cast %c3_i32 : i32 to index
    %c0_42 = arith.constant 0 : index
    %c0_43 = arith.constant 0 : index
    %168 = vector.load %arg6[%167, %c0_42, %c0_43] : memref<4x2x128xf32, #tpu.memory_space<vmem>>, vector<1x2x128xf32>
    %169 = vector.shape_cast %168 : vector<1x2x128xf32> to vector<2x128xf32>
    %170 = vector.shape_cast %166 : vector<2x128xf32> to vector<1x2x128xf32>
    tpu.vector_store %arg6[%167, %c0_42, %c0_43], %170 {strides = array<i32>} : memref<4x2x128xf32, #tpu.memory_space<vmem>>, vector<1x2x128xf32>,
    %c4_i32 = arith.constant 4 : i32
    %c0_44 = arith.constant 0 : index
    %c0_45 = arith.constant 0 : index
    %171 = vector.load %arg7[%c0_44, %c0_45] : memref<2x128xf32, #tpu.memory_space<vmem>>, vector<2x128xf32>
    tpu.vector_store %arg7[%c0_44, %c0_45], %166 {strides = array<i32>} : memref<2x128xf32, #tpu.memory_space<vmem>>, vector<2x128xf32>,
    %c0_46 = arith.constant 0 : index
    %c0_47 = arith.constant 0 : index
    %172 = vector.load %arg8[%c0_46, %c0_47] : memref<2x128xf32, #tpu.memory_space<vmem>>, vector<2x128xf32>
    tpu.vector_store %arg8[%c0_46, %c0_47], %164 {strides = array<i32>} : memref<2x128xf32, #tpu.memory_space<vmem>>, vector<2x128xf32>,
    return
  }
  func.func @transform_0(%arg0: i32) -> (i32, i32, i32) {
    %c0_i32 = arith.constant 0 : i32
    %c0_i32_0 = arith.constant 0 : i32
    %c0_i32_1 = arith.constant 0 : i32
    return %c0_i32, %arg0, %c0_i32_0 : i32, i32, i32
  }
  func.func @transform_1(%arg0: i32) -> (i32, i32, i32) {
    %c0_i32 = arith.constant 0 : i32
    %c0_i32_0 = arith.constant 0 : i32
    %c0_i32_1 = arith.constant 0 : i32
    return %c0_i32, %arg0, %c0_i32_0 : i32, i32, i32
  }
  func.func @transform_2(%arg0: i32) -> (i32, i32) {
    %c0_i32 = arith.constant 0 : i32
    %c0_i32_0 = arith.constant 0 : i32
    return %arg0, %c0_i32 : i32, i32
  }
  func.func @transform_3(%arg0: i32) -> (i32, i32) {
    %c0_i32 = arith.constant 0 : i32
    %c0_i32_0 = arith.constant 0 : i32
    return %arg0, %c0_i32 : i32, i32
  }
  func.func @transform_4(%arg0: i32) -> (i32, i32) {
    %c0_i32 = arith.constant 0 : i32
    %c0_i32_0 = arith.constant 0 : i32
    %c0_i32_1 = arith.constant 0 : i32
    return %c0_i32, %c0_i32_0 : i32, i32
  }
  func.func @transform_5(%arg0: i32) -> (i32, i32, i32) {
    %c0_i32 = arith.constant 0 : i32
    %c0_i32_0 = arith.constant 0 : i32
    %c0_i32_1 = arith.constant 0 : i32
    return %c0_i32, %arg0, %c0_i32_0 : i32, i32, i32
  }
  func.func @transform_6(%arg0: i32) -> (i32, i32) {
    %c0_i32 = arith.constant 0 : i32
    %c0_i32_0 = arith.constant 0 : i32
    return %arg0, %c0_i32 : i32, i32
  }
  func.func @transform_7(%arg0: i32) -> (i32, i32) {
    %c0_i32 = arith.constant 0 : i32
    %c0_i32_0 = arith.constant 0 : i32
    return %arg0, %c0_i32 : i32, i32
  }
}

module attributes {stable_mosaic.version = 11 : i64} {
  func.func @_linear_kernel(%arg0: i32, %arg1: memref<8x128xbf16, #tpu.memory_space<vmem>>, %arg2: memref<128x128xbf16, #tpu.memory_space<vmem>>, %arg3: memref<1x128xf32, #tpu.memory_space<vmem>>, %arg4: memref<8x128xf32, #tpu.memory_space<vmem>>) attributes {dimension_semantics = [#tpu.dimension_semantics<parallel>], iteration_bounds = array<i64: 2>, scalar_prefetch = 0 : i64, scratch_operands = 0 : i64, tpu.core_type = #tpu.core_type<tc>, window_params = [{transform_indices = @transform_0, window_bounds = array<i64: 8, 128>}, {pipeline_mode = #tpu.pipeline_mode<synchronous>, transform_indices = @transform_1, window_bounds = array<i64: 128, 128>}, {pipeline_mode = #tpu.pipeline_mode<synchronous>, transform_indices = @transform_2, window_bounds = array<i64: 1, 128>}, {transform_indices = @transform_3, window_bounds = array<i64: 8, 128>}]} {
    %c0 = arith.constant 0 : index
    %c0_0 = arith.constant 0 : index
    %0 = vector.load %arg1[%c0, %c0_0] : memref<8x128xbf16, #tpu.memory_space<vmem>>, vector<8x128xbf16>
    %c0_1 = arith.constant 0 : index
    %c0_2 = arith.constant 0 : index
    %1 = vector.load %arg2[%c0_1, %c0_2] : memref<128x128xbf16, #tpu.memory_space<vmem>>, vector<128x128xbf16>
    %cst = arith.constant dense<0.000000e+00> : vector<8x128xf32>
    %2 = tpu.matmul %0, %1, %cst {dimension_numbers = #tpu.dot_dimension_numbers<[1], [0], [0], [1], [0, 0, 1, 1], [], []>} : vector<8x128xbf16>, vector<128x128xbf16>, vector<8x128xf32> -> vector<8x128xf32>
    %c0_3 = arith.constant 0 : index
    %c0_4 = arith.constant 0 : index
    %3 = vector.load %arg3[%c0_3, %c0_4] : memref<1x128xf32, #tpu.memory_space<vmem>>, vector<1x128xf32>
    %4 = vector.broadcast %3 : vector<1x128xf32> to vector<8x128xf32>
    %5 = arith.addf %2, %4 : vector<8x128xf32>
    %c0_5 = arith.constant 0 : index
    %c0_6 = arith.constant 0 : index
    %6 = vector.load %arg4[%c0_5, %c0_6] : memref<8x128xf32, #tpu.memory_space<vmem>>, vector<8x128xf32>
    tpu.vector_store %arg4[%c0_5, %c0_6], %5 {strides = array<i32>} : memref<8x128xf32, #tpu.memory_space<vmem>>, vector<8x128xf32>,
    return
  }
  func.func @transform_0(%arg0: i32) -> (i32, i32) {
    %c0_i32 = arith.constant 0 : i32
    %c0_i32_0 = arith.constant 0 : i32
    return %arg0, %c0_i32 : i32, i32
  }
  func.func @transform_1(%arg0: i32) -> (i32, i32) {
    %c0_i32 = arith.constant 0 : i32
    %c0_i32_0 = arith.constant 0 : i32
    %c0_i32_1 = arith.constant 0 : i32
    return %c0_i32, %c0_i32_0 : i32, i32
  }
  func.func @transform_2(%arg0: i32) -> (i32, i32) {
    %c0_i32 = arith.constant 0 : i32
    %c0_i32_0 = arith.constant 0 : i32
    %c0_i32_1 = arith.constant 0 : i32
    return %c0_i32, %c0_i32_0 : i32, i32
  }
  func.func @transform_3(%arg0: i32) -> (i32, i32) {
    %c0_i32 = arith.constant 0 : i32
    %c0_i32_0 = arith.constant 0 : i32
    return %arg0, %c0_i32 : i32, i32
  }
}

</mosaic_0001>

<llo_original>
// kernel: lstm_conv_forward.6
$region0: #{lstm_conv_forward.6}
  #allocation0 [shape = 'u32[]', space=smem, size = 0x4, offset = 0x4, fixed_abs, tag = 'smem constant byte address 0x4 - core index']
  #allocation1 [shape = 'u32[144,128]{1,0:T(1,128)}', space=vmem, size = 0x12000, scoped, tag = 'internal scratch']
  %s0 = inlined_call_operand.vmem [shape: bf16[3584,256], index: 0, kind: input, shape index: {}]
  %s1 = inlined_call_operand.vmem [shape: bf16[256,128], index: 1, kind: input, shape index: {}]
  %s2 = inlined_call_operand.vmem [shape: f32[1,128], index: 2, kind: input, shape index: {}]
  %s3 = inlined_call_operand.vmem [shape: bf16[3584,128], index: 3, kind: output, shape index: {}]
  %s4 = sld [smem:[#allocation0]]
  $region45: #{lstm_conv_forward.6} parent=0
    _
  %s6 = ssub.s32 1, %s4
  %s7 = scalar_select 0, %s6, %s4
  loop: start=0, step=1, limit=9
  $region2: #{lstm_conv_forward.6} parent=0 // loop_pre_header
    _
  $region3: #{lstm_conv_forward.6} parent=0 // loop_header
    %s9 = sphi 0, %s13
    %p10 = scmp.ge.s32.totalorder %s9, 9
    %s19 = sphi 0, %s21
    %s22 = sphi 0, %s19
    %s23 = sphi 0, %s22
    %s39 = sphi 0, %s23
    %s43 = sphi 0, %s43
    %s45 = sphi 0, %s43
    %s46 = sphi 0, %s45
    %s60 = sphi 0, %s46
    %s64 = sphi 0, %s64
    %s66 = sphi 0, %s64
    %s67 = sphi 0, %s66
    %s81 = sphi 0, %s67
    %s87 = sphi 0, %s89
    %s90 = sphi 0, %s87
    %s91 = sphi 0, %s90
    %s107 = sphi 0, %s91
  $region4: #{lstm_conv_forward.6} parent=0 // loop_header_branch
    %12 = sbr.rel (%p10) target = $region8
  $region5: #{lstm_conv_forward.6} parent=0 // loop_body
    %s14 = ssub.s32 %s9, 1
    %s15 = ssub.s32 %s9, 2
    %s16 = sadd.s32 %s9, 1
    %s17 = ssub.s32 %s9, %s16
    %p18 = scmp.eq.s32.totalorder %s17, 0
    %s20 = sadd.s32 %s19, 1
    %s21 = scalar_select %p18, %s19, %s20
    %p24 = pneg %p18
    %p25 = scmp.eq.s32.totalorder %s9, 6
    %p26 = por %p24, %p25
    %p27 = scmp.ne.s32.totalorder %s19, %s22
    %p28 = scmp.eq.s32.totalorder %s9, 0
    %p29 = por %p27, %p28
    %p30 = scmp.ne.s32.totalorder %s19, %s22
    %p31 = scmp.eq.s32.totalorder %s14, 6
    %p32 = por %p30, %p31
    %p33 = scmp.ne.s32.totalorder %s22, %s23
    %p34 = scmp.eq.s32.totalorder %s14, 0
    %p35 = por %p33, %p34
    %p36 = scmp.ne.s32.totalorder %s22, %s23
    %p37 = scmp.eq.s32.totalorder %s15, 6
    %p38 = por %p36, %p37
    %p40 = scmp.ne.s32.totalorder %s23, %s39
    %p41 = scmp.eq.s32.totalorder %s15, 0
    %p42 = por %p40, %p41
    %s44 = sadd.s32 %s43, 1
    %p47 = scmp.eq.s32.totalorder %s9, 6
    %p48 = scmp.ne.s32.totalorder %s43, %s45
    %p49 = scmp.eq.s32.totalorder %s9, 0
    %p50 = por %p48, %p49
    %p51 = scmp.ne.s32.totalorder %s43, %s45
    %p52 = scmp.eq.s32.totalorder %s14, 6
    %p53 = por %p51, %p52
    %p54 = scmp.ne.s32.totalorder %s45, %s46
    %p55 = scmp.eq.s32.totalorder %s14, 0
    %p56 = por %p54, %p55
    %p57 = scmp.ne.s32.totalorder %s45, %s46
    %p58 = scmp.eq.s32.totalorder %s15, 6
    %p59 = por %p57, %p58
    %p61 = scmp.ne.s32.totalorder %s46, %s60
    %p62 = scmp.eq.s32.totalorder %s15, 0
    %p63 = por %p61, %p62
    %s65 = sadd.s32 %s64, 1
    %p68 = scmp.eq.s32.totalorder %s9, 6
    %p69 = scmp.ne.s32.totalorder %s64, %s66
    %p70 = scmp.eq.s32.totalorder %s9, 0
    %p71 = por %p69, %p70
    %p72 = scmp.ne.s32.totalorder %s64, %s66
    %p73 = scmp.eq.s32.totalorder %s14, 6
    %p74 = por %p72, %p73
    %p75 = scmp.ne.s32.totalorder %s66, %s67
    %p76 = scmp.eq.s32.totalorder %s14, 0
    %p77 = por %p75, %p76
    %p78 = scmp.ne.s32.totalorder %s66, %s67
    %p79 = scmp.eq.s32.totalorder %s15, 6
    %p80 = por %p78, %p79
    %p82 = scmp.ne.s32.totalorder %s67, %s81
    %p83 = scmp.eq.s32.totalorder %s15, 0
    %p84 = por %p82, %p83
    %s85 = ssub.s32 %s9, %s16
    %p86 = scmp.eq.s32.totalorder %s85, 0
    %s88 = sadd.s32 %s87, 1
    %s89 = scalar_select %p86, %s87, %s88
    %p92 = pneg %p86
    %p93 = scmp.eq.s32.totalorder %s9, 6
    %p94 = por %p92, %p93
    %p95 = scmp.ne.s32.totalorder %s87, %s90
    %p96 = scmp.eq.s32.totalorder %s9, 0
    %p97 = por %p95, %p96
    %p98 = scmp.ne.s32.totalorder %s87, %s90
    %p99 = scmp.eq.s32.totalorder %s14, 6
    %p100 = por %p98, %p99
    %p101 = scmp.ne.s32.totalorder %s90, %s91
    %p102 = scmp.eq.s32.totalorder %s14, 0
    %p103 = por %p101, %p102
    %p104 = scmp.ne.s32.totalorder %s90, %s91
    %p105 = scmp.eq.s32.totalorder %s15, 6
    %p106 = por %p104, %p105
    %p108 = scmp.ne.s32.totalorder %s91, %s107
    %p109 = scmp.eq.s32.totalorder %s15, 0
    %p110 = por %p108, %p109
    %p111 = scmp.le.s32.totalorder 1, %s9
    %p112 = scmp.lt.s32.totalorder %s9, 8
    %p113 = pnand %p111, %p112
    %p114 = pneg %p113
    // Predicated region
    $region9: #{lstm_conv_forward.6} parent=5 // pred_check
      _
    $region10: #{lstm_conv_forward.6} parent=5 // pred_check_branch
      %116 = sbr.rel (%p113) target = $region12
    $region11: #{lstm_conv_forward.6} parent=5 // pred_region
      %s117 = ssub.s32 %s9, 1
      // Predicated region
      $region13: #{lstm_conv_forward.6} parent=11 // pred_check
        %p118 = pneg %p56
      $region14: #{lstm_conv_forward.6} parent=11 // pred_check_branch
        %120 = sbr.rel (%p118) target = $region16
      $region15: #{lstm_conv_forward.6} parent=11 // pred_region
        _
      $region16: #{lstm_conv_forward.6} parent=11 // pred_fallthru
        _
      // Predicated region
      $region17: #{lstm_conv_forward.6} parent=11 // pred_check
        %p121 = pneg %p77
      $region18: #{lstm_conv_forward.6} parent=11 // pred_check_branch
        %123 = sbr.rel (%p121) target = $region20
      $region19: #{lstm_conv_forward.6} parent=11 // pred_region
        _
      $region20: #{lstm_conv_forward.6} parent=11 // pred_fallthru
        _
    $region12: #{lstm_conv_forward.6} parent=5 // pred_fallthru
      _
    %p124 = scmp.lt.s32.totalorder %s9, 7
    // Predicated region
    $region21: #{lstm_conv_forward.6} parent=5 // pred_check
      %p125 = pneg %p124
    $region22: #{lstm_conv_forward.6} parent=5 // pred_check_branch
      %127 = sbr.rel (%p125) target = $region24
    $region23: #{lstm_conv_forward.6} parent=5 // pred_region
      // Predicated region
      $region25: #{lstm_conv_forward.6} parent=23 // pred_check
        %p128 = pneg %p29
      $region26: #{lstm_conv_forward.6} parent=23 // pred_check_branch
        %130 = sbr.rel (%p128) target = $region28
      $region27: #{lstm_conv_forward.6} parent=23 // pred_region
        %s131 = smul.u32 64, %s9
        %p132 = scmp.lt.s32.totalorder %s131, 447
        %s133 = scalar_select %p132, %s131, 447
        %s134 = smul.addr %s133, 2
        %s135 = smul.addr %s134, 4
        %s136 = scalar_lea.vmem %s0, %s135
        %s137 = smul.u32 64, %s9
      $region28: #{lstm_conv_forward.6} parent=23 // pred_fallthru
        _
    $region24: #{lstm_conv_forward.6} parent=5 // pred_fallthru
      _
    %p138 = scmp.le.s32.totalorder 1, %s9
    %p139 = scmp.lt.s32.totalorder %s9, 8
    %p140 = pnand %p138, %p139
    %p141 = pneg %p140
    // Predicated region
    $region29: #{lstm_conv_forward.6} parent=5 // pred_check
      _
    $region30: #{lstm_conv_forward.6} parent=5 // pred_check_branch
      %143 = sbr.rel (%p140) target = $region32
    $region31: #{lstm_conv_forward.6} parent=5 // pred_region
      %s144 = ssub.s32 %s9, 1
      %s145 = smul.u32 64, %s14
      %p146 = scmp.lt.s32.totalorder %s145, 447
      %s147 = scalar_select %p146, %s145, 447
      %s148 = smul.addr %s147, 2
      %s149 = smul.addr %s148, 4
      %s150 = scalar_lea.vmem %s0, %s149
      %p151 = pneg %p35
      %p152 = pneg %p32
      %p153 = pneg %p56
      %p154 = pneg %p53
      %p155 = pneg %p77
      %p156 = pneg %p74
      %p157 = pneg %p103
      %p158 = pneg %p100
      %s159 = smul.u32 64, %s14
      %p160 = scmp.lt.s32.totalorder %s159, 447
      %s161 = scalar_select %p160, %s159, 447
      %s162 = smul.addr %s161, 4
      %s163 = scalar_lea.vmem %s3, %s162
      %s164 = smul.u32 64, %s14
      %p165 = scmp.lt.s32.totalorder %s164, 447
      %s166 = scalar_select %p165, %s164, 447
      %s167 = smul.addr %s166, 2
      %s168 = smul.addr %s167, 4
      %s169 = scalar_lea.vmem %s0, %s168
      %s170 = smul.u32 64, %s14
      %s171 = smul.u32 64, %s14
      %p172 = scmp.lt.s32.totalorder %s171, 447
      %s173 = scalar_select %p172, %s171, 447
      %s174 = smul.addr %s173, 4
      %s175 = scalar_lea.vmem %s3, %s174
      %s176 = smul.u32 64, %s14
      %v178 = vld [vmem:[%s169] sm:$0xff]
      %v179 = vld [vmem:[%s169 + $0x8] sm:$0xff]
      %v180 = vld [vmem:[%s169 + $0x10] sm:$0xff]
      %v181 = vld [vmem:[%s169 + $0x18] sm:$0xff]
      %v182 = vld [vmem:[%s169 + $0x20] sm:$0xff]
      %v183 = vld [vmem:[%s169 + $0x28] sm:$0xff]
      %v184 = vld [vmem:[%s169 + $0x30] sm:$0xff]
      %v185 = vld [vmem:[%s169 + $0x38] sm:$0xff]
      %v186 = vld [vmem:[%s169 + $0x40] sm:$0xff]
      %v187 = vld [vmem:[%s169 + $0x48] sm:$0xff]
      %v188 = vld [vmem:[%s169 + $0x50] sm:$0xff]
      %v189 = vld [vmem:[%s169 + $0x58] sm:$0xff]
      %v190 = vld [vmem:[%s169 + $0x60] sm:$0xff]
      %v191 = vld [vmem:[%s169 + $0x68] sm:$0xff]
      %v192 = vld [vmem:[%s169 + $0x70] sm:$0xff]
      %v193 = vld [vmem:[%s169 + $0x78] sm:$0xff]
      %v194 = vld [vmem:[%s169 + $0x80] sm:$0xff]
      %v195 = vld [vmem:[%s169 + $0x88] sm:$0xff]
      %v196 = vld [vmem:[%s169 + $0x90] sm:$0xff]
      %v197 = vld [vmem:[%s169 + $0x98] sm:$0xff]
      %v198 = vld [vmem:[%s169 + $0xa0] sm:$0xff]
      %v199 = vld [vmem:[%s169 + $0xa8] sm:$0xff]
      %v200 = vld [vmem:[%s169 + $0xb0] sm:$0xff]
      %v201 = vld [vmem:[%s169 + $0xb8] sm:$0xff]
      %v202 = vld [vmem:[%s169 + $0xc0] sm:$0xff]
      %v203 = vld [vmem:[%s169 + $0xc8] sm:$0xff]
      %v204 = vld [vmem:[%s169 + $0xd0] sm:$0xff]
      %v205 = vld [vmem:[%s169 + $0xd8] sm:$0xff]
      %v206 = vld [vmem:[%s169 + $0xe0] sm:$0xff]
      %v207 = vld [vmem:[%s169 + $0xe8] sm:$0xff]
      %v208 = vld [vmem:[%s169 + $0xf0] sm:$0xff]
      %v209 = vld [vmem:[%s169 + $0xf8] sm:$0xff]
      %v210 = vld [vmem:[%s169 + $0x100] sm:$0xff]
      %v211 = vld [vmem:[%s169 + $0x108] sm:$0xff]
      %v212 = vld [vmem:[%s169 + $0x110] sm:$0xff]
      %v213 = vld [vmem:[%s169 + $0x118] sm:$0xff]
      %v214 = vld [vmem:[%s169 + $0x120] sm:$0xff]
      %v215 = vld [vmem:[%s169 + $0x128] sm:$0xff]
      %v216 = vld [vmem:[%s169 + $0x130] sm:$0xff]
      %v217 = vld [vmem:[%s169 + $0x138] sm:$0xff]
      %v218 = vld [vmem:[%s169 + $0x140] sm:$0xff]
      %v219 = vld [vmem:[%s169 + $0x148] sm:$0xff]
      %v220 = vld [vmem:[%s169 + $0x150] sm:$0xff]
      %v221 = vld [vmem:[%s169 + $0x158] sm:$0xff]
      %v222 = vld [vmem:[%s169 + $0x160] sm:$0xff]
      %v223 = vld [vmem:[%s169 + $0x168] sm:$0xff]
      %v224 = vld [vmem:[%s169 + $0x170] sm:$0xff]
      %v225 = vld [vmem:[%s169 + $0x178] sm:$0xff]
      %v226 = vld [vmem:[%s169 + $0x180] sm:$0xff]
      %v227 = vld [vmem:[%s169 + $0x188] sm:$0xff]
      %v228 = vld [vmem:[%s169 + $0x190] sm:$0xff]
      %v229 = vld [vmem:[%s169 + $0x198] sm:$0xff]
      %v230 = vld [vmem:[%s169 + $0x1a0] sm:$0xff]
      %v231 = vld [vmem:[%s169 + $0x1a8] sm:$0xff]
      %v232 = vld [vmem:[%s169 + $0x1b0] sm:$0xff]
      %v233 = vld [vmem:[%s169 + $0x1b8] sm:$0xff]
      %v234 = vld [vmem:[%s169 + $0x1c0] sm:$0xff]
      %v235 = vld [vmem:[%s169 + $0x1c8] sm:$0xff]
      %v236 = vld [vmem:[%s169 + $0x1d0] sm:$0xff]
      %v237 = vld [vmem:[%s169 + $0x1d8] sm:$0xff]
      %v238 = vld [vmem:[%s169 + $0x1e0] sm:$0xff]
      %v239 = vld [vmem:[%s169 + $0x1e8] sm:$0xff]
      %v240 = vld [vmem:[%s169 + $0x1f0] sm:$0xff]
      %v241 = vld [vmem:[%s169 + $0x1f8] sm:$0xff]
      %v242 = vld [vmem:[%s1] sm:$0xf]
      %v243 = vld [vmem:[%s1 + $0x4] sm:$0xf]
      %v244 = vld [vmem:[%s1 + $0x8] sm:$0xf]
      %v245 = vld [vmem:[%s1 + $0xc] sm:$0xf]
      %v246 = vld [vmem:[%s1 + $0x10] sm:$0xf]
      %v247 = vld [vmem:[%s1 + $0x14] sm:$0xf]
      %v248 = vld [vmem:[%s1 + $0x18] sm:$0xf]
      %v249 = vld [vmem:[%s1 + $0x1c] sm:$0xf]
      %v250 = vld [vmem:[%s1 + $0x20] sm:$0xf]
      %v251 = vld [vmem:[%s1 + $0x24] sm:$0xf]
      %v252 = vld [vmem:[%s1 + $0x28] sm:$0xf]
      %v253 = vld [vmem:[%s1 + $0x2c] sm:$0xf]
      %v254 = vld [vmem:[%s1 + $0x30] sm:$0xf]
      %v255 = vld [vmem:[%s1 + $0x34] sm:$0xf]
      %v256 = vld [vmem:[%s1 + $0x38] sm:$0xf]
      %v257 = vld [vmem:[%s1 + $0x3c] sm:$0xf]
      %v258 = vld [vmem:[%s1 + $0x40] sm:$0xf]
      %v259 = vld [vmem:[%s1 + $0x44] sm:$0xf]
      %v260 = vld [vmem:[%s1 + $0x48] sm:$0xf]
      %v261 = vld [vmem:[%s1 + $0x4c] sm:$0xf]
      %v262 = vld [vmem:[%s1 + $0x50] sm:$0xf]
      %v263 = vld [vmem:[%s1 + $0x54] sm:$0xf]
      %v264 = vld [vmem:[%s1 + $0x58] sm:$0xf]
      %v265 = vld [vmem:[%s1 + $0x5c] sm:$0xf]
      %v266 = vld [vmem:[%s1 + $0x60] sm:$0xf]
      %v267 = vld [vmem:[%s1 + $0x64] sm:$0xf]
      %v268 = vld [vmem:[%s1 + $0x68] sm:$0xf]
      %v269 = vld [vmem:[%s1 + $0x6c] sm:$0xf]
      %v270 = vld [vmem:[%s1 + $0x70] sm:$0xf]
      %v271 = vld [vmem:[%s1 + $0x74] sm:$0xf]
      %v272 = vld [vmem:[%s1 + $0x78] sm:$0xf]
      %v273 = vld [vmem:[%s1 + $0x7c] sm:$0xf]
      %v274 = vld [vmem:[%s2] sm:$0x1]
      %v276 = vlaneseq
      %v277 = vshrl.u32 %v276, 7
      %v278 = vsub.s32 0, %v277
      %v279 = vrot.slane %v274, %v278
      %v345 = vunpack.c.l.b16 %v178
      %v346 = vunpack.c.h.b16 %v178
      %v347 = vunpack.c.l.b16 %v179
      %v348 = vunpack.c.h.b16 %v179
      %v349 = vunpack.c.l.b16 %v180
      %v350 = vunpack.c.h.b16 %v180
      %v351 = vunpack.c.l.b16 %v181
      %v352 = vunpack.c.h.b16 %v181
      %v353 = vunpack.c.l.b16 %v182
      %v354 = vunpack.c.h.b16 %v182
      %v355 = vunpack.c.l.b16 %v183
      %v356 = vunpack.c.h.b16 %v183
      %v357 = vunpack.c.l.b16 %v184
      %v358 = vunpack.c.h.b16 %v184
      %v359 = vunpack.c.l.b16 %v185
      %v360 = vunpack.c.h.b16 %v185
      %v361 = vunpack.c.l.b16 %v186
      %v362 = vunpack.c.h.b16 %v186
      %v363 = vunpack.c.l.b16 %v187
      %v364 = vunpack.c.h.b16 %v187
      %v365 = vunpack.c.l.b16 %v188
      %v366 = vunpack.c.h.b16 %v188
      %v367 = vunpack.c.l.b16 %v189
      %v368 = vunpack.c.h.b16 %v189
      %v369 = vunpack.c.l.b16 %v190
      %v370 = vunpack.c.h.b16 %v190
      %v371 = vunpack.c.l.b16 %v191
      %v372 = vunpack.c.h.b16 %v191
      %v373 = vunpack.c.l.b16 %v192
      %v374 = vunpack.c.h.b16 %v192
      %v375 = vunpack.c.l.b16 %v193
      %v376 = vunpack.c.h.b16 %v193
      %v377 = vunpack.c.l.b16 %v194
      %v378 = vunpack.c.h.b16 %v194
      %v379 = vunpack.c.l.b16 %v195
      %v380 = vunpack.c.h.b16 %v195
      %v381 = vunpack.c.l.b16 %v196
      %v382 = vunpack.c.h.b16 %v196
      %v383 = vunpack.c.l.b16 %v197
      %v384 = vunpack.c.h.b16 %v197
      %v385 = vunpack.c.l.b16 %v198
      %v386 = vunpack.c.h.b16 %v198
      %v387 = vunpack.c.l.b16 %v199
      %v388 = vunpack.c.h.b16 %v199
      %v389 = vunpack.c.l.b16 %v200
      %v390 = vunpack.c.h.b16 %v200
      %v391 = vunpack.c.l.b16 %v201
      %v392 = vunpack.c.h.b16 %v201
      %v393 = vunpack.c.l.b16 %v202
      %v394 = vunpack.c.h.b16 %v202
      %v395 = vunpack.c.l.b16 %v203
      %v396 = vunpack.c.h.b16 %v203
      %v397 = vunpack.c.l.b16 %v204
      %v398 = vunpack.c.h.b16 %v204
      %v399 = vunpack.c.l.b16 %v205
      %v400 = vunpack.c.h.b16 %v205
      %v401 = vunpack.c.l.b16 %v206
      %v402 = vunpack.c.h.b16 %v206
      %v403 = vunpack.c.l.b16 %v207
      %v404 = vunpack.c.h.b16 %v207
      %v405 = vunpack.c.l.b16 %v208
      %v406 = vunpack.c.h.b16 %v208
      %v407 = vunpack.c.l.b16 %v209
      %v408 = vunpack.c.h.b16 %v209
      %v409 = vunpack.c.l.b16 %v210
      %v410 = vunpack.c.h.b16 %v210
      %v411 = vunpack.c.l.b16 %v211
      %v412 = vunpack.c.h.b16 %v211
      %v413 = vunpack.c.l.b16 %v212
      %v414 = vunpack.c.h.b16 %v212
      %v415 = vunpack.c.l.b16 %v213
      %v416 = vunpack.c.h.b16 %v213
      %v417 = vunpack.c.l.b16 %v214
      %v418 = vunpack.c.h.b16 %v214
      %v419 = vunpack.c.l.b16 %v215
      %v420 = vunpack.c.h.b16 %v215
      %v421 = vunpack.c.l.b16 %v216
      %v422 = vunpack.c.h.b16 %v216
      %v423 = vunpack.c.l.b16 %v217
      %v424 = vunpack.c.h.b16 %v217
      %v425 = vunpack.c.l.b16 %v218
      %v426 = vunpack.c.h.b16 %v218
      %v427 = vunpack.c.l.b16 %v219
      %v428 = vunpack.c.h.b16 %v219
      %v429 = vunpack.c.l.b16 %v220
      %v430 = vunpack.c.h.b16 %v220
      %v431 = vunpack.c.l.b16 %v221
      %v432 = vunpack.c.h.b16 %v221
      %v433 = vunpack.c.l.b16 %v222
      %v434 = vunpack.c.h.b16 %v222
      %v435 = vunpack.c.l.b16 %v223
      %v436 = vunpack.c.h.b16 %v223
      %v437 = vunpack.c.l.b16 %v224
      %v438 = vunpack.c.h.b16 %v224
      %v439 = vunpack.c.l.b16 %v225
      %v440 = vunpack.c.h.b16 %v225
      %v441 = vunpack.c.l.b16 %v226
      %v442 = vunpack.c.h.b16 %v226
      %v443 = vunpack.c.l.b16 %v227
      %v444 = vunpack.c.h.b16 %v227
      %v445 = vunpack.c.l.b16 %v228
      %v446 = vunpack.c.h.b16 %v228
      %v447 = vunpack.c.l.b16 %v229
      %v448 = vunpack.c.h.b16 %v229
      %v449 = vunpack.c.l.b16 %v230
      %v450 = vunpack.c.h.b16 %v230
      %v451 = vunpack.c.l.b16 %v231
      %v452 = vunpack.c.h.b16 %v231
      %v453 = vunpack.c.l.b16 %v232
      %v454 = vunpack.c.h.b16 %v232
      %v455 = vunpack.c.l.b16 %v233
      %v456 = vunpack.c.h.b16 %v233
      %v457 = vunpack.c.l.b16 %v234
      %v458 = vunpack.c.h.b16 %v234
      %v459 = vunpack.c.l.b16 %v235
      %v460 = vunpack.c.h.b16 %v235
      %v461 = vunpack.c.l.b16 %v236
      %v462 = vunpack.c.h.b16 %v236
      %v463 = vunpack.c.l.b16 %v237
      %v464 = vunpack.c.h.b16 %v237
      %v465 = vunpack.c.l.b16 %v238
      %v466 = vunpack.c.h.b16 %v238
      %v467 = vunpack.c.l.b16 %v239
      %v468 = vunpack.c.h.b16 %v239
      %v469 = vunpack.c.l.b16 %v240
      %v470 = vunpack.c.h.b16 %v240
      %v471 = vunpack.c.l.b16 %v241
      %v472 = vunpack.c.h.b16 %v241
      %v473 = vpack.c.b16 %v347, %v345
      %v474 = vpack.c.b16 %v348, %v346
      %v475 = vpack.c.b16 %v351, %v349
      %v476 = vpack.c.b16 %v352, %v350
      %v477 = vpack.c.b16 %v355, %v353
      %v478 = vpack.c.b16 %v356, %v354
      %v479 = vpack.c.b16 %v359, %v357
      %v480 = vpack.c.b16 %v360, %v358
      %v481 = vpack.c.b16 %v363, %v361
      %v482 = vpack.c.b16 %v364, %v362
      %v483 = vpack.c.b16 %v367, %v365
      %v484 = vpack.c.b16 %v368, %v366
      %v485 = vpack.c.b16 %v371, %v369
      %v486 = vpack.c.b16 %v372, %v370
      %v487 = vpack.c.b16 %v375, %v373
      %v488 = vpack.c.b16 %v376, %v374
      %v489 = vpack.c.b16 %v379, %v377
      %v490 = vpack.c.b16 %v380, %v378
      %v491 = vpack.c.b16 %v383, %v381
      %v492 = vpack.c.b16 %v384, %v382
      %v493 = vpack.c.b16 %v387, %v385
      %v494 = vpack.c.b16 %v388, %v386
      %v495 = vpack.c.b16 %v391, %v389
      %v496 = vpack.c.b16 %v392, %v390
      %v497 = vpack.c.b16 %v395, %v393
      %v498 = vpack.c.b16 %v396, %v394
      %v499 = vpack.c.b16 %v399, %v397
      %v500 = vpack.c.b16 %v400, %v398
      %v501 = vpack.c.b16 %v403, %v401
      %v502 = vpack.c.b16 %v404, %v402
      %v503 = vpack.c.b16 %v407, %v405
      %v504 = vpack.c.b16 %v408, %v406
      %v505 = vpack.c.b16 %v411, %v409
      %v506 = vpack.c.b16 %v412, %v410
      %v507 = vpack.c.b16 %v415, %v413
      %v508 = vpack.c.b16 %v416, %v414
      %v509 = vpack.c.b16 %v419, %v417
      %v510 = vpack.c.b16 %v420, %v418
      %v511 = vpack.c.b16 %v423, %v421
      %v512 = vpack.c.b16 %v424, %v422
      %v513 = vpack.c.b16 %v427, %v425
      %v514 = vpack.c.b16 %v428, %v426
      %v515 = vpack.c.b16 %v431, %v429
      %v516 = vpack.c.b16 %v432, %v430
      %v517 = vpack.c.b16 %v435, %v433
      %v518 = vpack.c.b16 %v436, %v434
      %v519 = vpack.c.b16 %v439, %v437
      %v520 = vpack.c.b16 %v440, %v438
      %v521 = vpack.c.b16 %v443, %v441
      %v522 = vpack.c.b16 %v444, %v442
      %v523 = vpack.c.b16 %v447, %v445
      %v524 = vpack.c.b16 %v448, %v446
      %v525 = vpack.c.b16 %v451, %v449
      %v526 = vpack.c.b16 %v452, %v450
      %v527 = vpack.c.b16 %v455, %v453
      %v528 = vpack.c.b16 %v456, %v454
      %v529 = vpack.c.b16 %v459, %v457
      %v530 = vpack.c.b16 %v460, %v458
      %v531 = vpack.c.b16 %v463, %v461
      %v532 = vpack.c.b16 %v464, %v462
      %v533 = vpack.c.b16 %v467, %v465
      %v534 = vpack.c.b16 %v468, %v466
      %v535 = vpack.c.b16 %v471, %v469
      %v536 = vpack.c.b16 %v472, %v470
      %v633 = vunpack.c.l.b16 %v242
      %v634 = vunpack.c.l.b16 %v243
      %v635 = vunpack.c.l.b16 %v244
      %v636 = vunpack.c.l.b16 %v245
      %v637 = vunpack.c.l.b16 %v246
      %v638 = vunpack.c.l.b16 %v247
      %v639 = vunpack.c.l.b16 %v248
      %v640 = vunpack.c.l.b16 %v249
      %v641 = vunpack.c.l.b16 %v250
      %v642 = vunpack.c.l.b16 %v251
      %v643 = vunpack.c.l.b16 %v252
      %v644 = vunpack.c.l.b16 %v253
      %v645 = vunpack.c.l.b16 %v254
      %v646 = vunpack.c.l.b16 %v255
      %v647 = vunpack.c.l.b16 %v256
      %v648 = vunpack.c.l.b16 %v257
      %v649 = vunpack.c.l.b16 %v258
      %v650 = vunpack.c.l.b16 %v259
      %v651 = vunpack.c.l.b16 %v260
      %v652 = vunpack.c.l.b16 %v261
      %v653 = vunpack.c.l.b16 %v262
      %v654 = vunpack.c.l.b16 %v263
      %v655 = vunpack.c.l.b16 %v264
      %v656 = vunpack.c.l.b16 %v265
      %v657 = vunpack.c.l.b16 %v266
      %v658 = vunpack.c.l.b16 %v267
      %v659 = vunpack.c.l.b16 %v268
      %v660 = vunpack.c.l.b16 %v269
      %v661 = vunpack.c.l.b16 %v270
      %v662 = vunpack.c.l.b16 %v271
      %v663 = vunpack.c.l.b16 %v272
      %v664 = vunpack.c.l.b16 %v273
      %v665 = vpack.c.b16 %v634, %v633
      %v666 = vpack.c.b16 %v636, %v635
      %v667 = vpack.c.b16 %v638, %v637
      %v668 = vpack.c.b16 %v640, %v639
      %v669 = vpack.c.b16 %v642, %v641
      %v670 = vpack.c.b16 %v644, %v643
      %v671 = vpack.c.b16 %v646, %v645
      %v672 = vpack.c.b16 %v648, %v647
      %v673 = vpack.c.b16 %v650, %v649
      %v674 = vpack.c.b16 %v652, %v651
      %v675 = vpack.c.b16 %v654, %v653
      %v676 = vpack.c.b16 %v656, %v655
      %v677 = vpack.c.b16 %v658, %v657
      %v678 = vpack.c.b16 %v660, %v659
      %v679 = vpack.c.b16 %v662, %v661
      %v680 = vpack.c.b16 %v664, %v663
      %697 = vmatprep.subr.bf16.mxu0 0
      %698 = vmatpush1.bf16.msra.mxu0 %v665
      %699 = vmatprep.subr.bf16.mxu0 0
      %700 = vmatpush1.bf16.msra.mxu0 %v666
      %701 = vmatprep.subr.bf16.mxu0 0
      %702 = vmatpush1.bf16.msra.mxu0 %v667
      %703 = vmatprep.subr.bf16.mxu0 0
      %704 = vmatpush1.bf16.msra.mxu0 %v668
      %705 = vmatprep.subr.bf16.mxu0 0
      %706 = vmatpush1.bf16.msra.mxu0 %v669
      %707 = vmatprep.subr.bf16.mxu0 0
      %708 = vmatpush1.bf16.msra.mxu0 %v670
      %709 = vmatprep.subr.bf16.mxu0 0
      %710 = vmatpush1.bf16.msra.mxu0 %v671
      %711 = vmatprep.subr.bf16.mxu0 0
      %712 = vmatpush1.bf16.msra.mxu0 %v672
      %713 = vmatprep.subr.bf16.mxu0 0
      %714 = vmatpush1.bf16.msra.mxu0 %v673
      %715 = vmatprep.subr.bf16.mxu0 0
      %716 = vmatpush1.bf16.msra.mxu0 %v674
      %717 = vmatprep.subr.bf16.mxu0 0
      %718 = vmatpush1.bf16.msra.mxu0 %v675
      %719 = vmatprep.subr.bf16.mxu0 0
      %720 = vmatpush1.bf16.msra.mxu0 %v676
      %721 = vmatprep.subr.bf16.mxu0 0
      %722 = vmatpush1.bf16.msra.mxu0 %v677
      %723 = vmatprep.subr.bf16.mxu0 0
      %724 = vmatpush1.bf16.msra.mxu0 %v678
      %725 = vmatprep.subr.bf16.mxu0 0
      %726 = vmatpush1.bf16.msra.mxu0 %v679
      %727 = vmatprep.subr.bf16.mxu0 0
      %728 = vmatpush1.bf16.msra.mxu0 %v680
      %729 = vmatprep.mubr.bf16.mxu0 %v474
      %730 = vmatmul.mubr.bf16.gmra.mrb[0].mxu0 %v473
      %v731 = vpop.f32.mrb[0].mxu0
      %v732 = vadd.f32 %v279, %v731
      %v733 = vpop.f32.mrb[0].mxu0
      %v734 = vpop.f32.mrb[0].mxu0
      %v735 = vadd.f32 %v279, %v734
      %v736 = vpop.f32.mrb[0].mxu0
      %737 = vmatprep.mubr.bf16.mxu0 %v476
      %738 = vmatmul.mubr.bf16.gmra.mrb[0].mxu0 %v475
      %v739 = vpop.f32.mrb[0].mxu0
      %v740 = vadd.f32 %v279, %v739
      %v741 = vpop.f32.mrb[0].mxu0
      %v742 = vpop.f32.mrb[0].mxu0
      %v743 = vadd.f32 %v279, %v742
      %v744 = vpop.f32.mrb[0].mxu0
      %745 = vmatprep.mubr.bf16.mxu0 %v478
      %746 = vmatmul.mubr.bf16.gmra.mrb[0].mxu0 %v477
      %v747 = vpop.f32.mrb[0].mxu0
      %v748 = vadd.f32 %v279, %v747
      %v749 = vpop.f32.mrb[0].mxu0
      %v750 = vpop.f32.mrb[0].mxu0
      %v751 = vadd.f32 %v279, %v750
      %v752 = vpop.f32.mrb[0].mxu0
      %753 = vmatprep.mubr.bf16.mxu0 %v480
      %754 = vmatmul.mubr.bf16.gmra.mrb[0].mxu0 %v479
      %v755 = vpop.f32.mrb[0].mxu0
      %v756 = vadd.f32 %v279, %v755
      %v757 = vpop.f32.mrb[0].mxu0
      %v758 = vpop.f32.mrb[0].mxu0
      %v759 = vadd.f32 %v279, %v758
      %v760 = vpop.f32.mrb[0].mxu0
      %761 = vmatprep.mubr.bf16.mxu0 %v482
      %762 = vmatmul.mubr.bf16.gmra.mrb[0].mxu0 %v481
      %v763 = vpop.f32.mrb[0].mxu0
      %v764 = vadd.f32 %v279, %v763
      %v765 = vpop.f32.mrb[0].mxu0
      %v766 = vpop.f32.mrb[0].mxu0
      %v767 = vadd.f32 %v279, %v766
      %v768 = vpop.f32.mrb[0].mxu0
      %769 = vmatprep.mubr.bf16.mxu0 %v484
      %770 = vmatmul.mubr.bf16.gmra.mrb[0].mxu0 %v483
      %v771 = vpop.f32.mrb[0].mxu0
      %v772 = vadd.f32 %v279, %v771
      %v773 = vpop.f32.mrb[0].mxu0
      %v774 = vpop.f32.mrb[0].mxu0
      %v775 = vadd.f32 %v279, %v774
      %v776 = vpop.f32.mrb[0].mxu0
      %777 = vmatprep.mubr.bf16.mxu0 %v486
      %778 = vmatmul.mubr.bf16.gmra.mrb[0].mxu0 %v485
      %v779 = vpop.f32.mrb[0].mxu0
      %v780 = vadd.f32 %v279, %v779
      %v781 = vpop.f32.mrb[0].mxu0
      %v782 = vpop.f32.mrb[0].mxu0
      %v783 = vadd.f32 %v279, %v782
      %v784 = vpop.f32.mrb[0].mxu0
      %785 = vmatprep.mubr.bf16.mxu0 %v488
      %786 = vmatmul.mubr.bf16.gmra.mrb[0].mxu0 %v487
      %v787 = vpop.f32.mrb[0].mxu0
      %v788 = vadd.f32 %v279, %v787
      %v789 = vpop.f32.mrb[0].mxu0
      %v790 = vpop.f32.mrb[0].mxu0
      %v791 = vadd.f32 %v279, %v790
      %v792 = vpop.f32.mrb[0].mxu0
      %793 = vmatprep.mubr.bf16.mxu0 %v490
      %794 = vmatmul.mubr.bf16.gmra.mrb[0].mxu0 %v489
      %v795 = vpop.f32.mrb[0].mxu0
      %v796 = vadd.f32 %v279, %v795
      %v797 = vpop.f32.mrb[0].mxu0
      %v798 = vpop.f32.mrb[0].mxu0
      %v799 = vadd.f32 %v279, %v798
      %v800 = vpop.f32.mrb[0].mxu0
      %801 = vmatprep.mubr.bf16.mxu0 %v492
      %802 = vmatmul.mubr.bf16.gmra.mrb[0].mxu0 %v491
      %v803 = vpop.f32.mrb[0].mxu0
      %v804 = vadd.f32 %v279, %v803
      %v805 = vpop.f32.mrb[0].mxu0
      %v806 = vpop.f32.mrb[0].mxu0
      %v807 = vadd.f32 %v279, %v806
      %v808 = vpop.f32.mrb[0].mxu0
      %809 = vmatprep.mubr.bf16.mxu0 %v494
      %810 = vmatmul.mubr.bf16.gmra.mrb[0].mxu0 %v493
      %v811 = vpop.f32.mrb[0].mxu0
      %v812 = vadd.f32 %v279, %v811
      %v813 = vpop.f32.mrb[0].mxu0
      %v814 = vpop.f32.mrb[0].mxu0
      %v815 = vadd.f32 %v279, %v814
      %v816 = vpop.f32.mrb[0].mxu0
      %817 = vmatprep.mubr.bf16.mxu0 %v496
      %818 = vmatmul.mubr.bf16.gmra.mrb[0].mxu0 %v495
      %v819 = vpop.f32.mrb[0].mxu0
      %v820 = vadd.f32 %v279, %v819
      %v821 = vpop.f32.mrb[0].mxu0
      %v822 = vpop.f32.mrb[0].mxu0
      %v823 = vadd.f32 %v279, %v822
      %v824 = vpop.f32.mrb[0].mxu0
      %825 = vmatprep.mubr.bf16.mxu0 %v498
      %826 = vmatmul.mubr.bf16.gmra.mrb[0].mxu0 %v497
      %v827 = vpop.f32.mrb[0].mxu0
      %v828 = vadd.f32 %v279, %v827
      %v829 = vpop.f32.mrb[0].mxu0
      %v830 = vpop.f32.mrb[0].mxu0
      %v831 = vadd.f32 %v279, %v830
      %v832 = vpop.f32.mrb[0].mxu0
      %833 = vmatprep.mubr.bf16.mxu0 %v500
      %834 = vmatmul.mubr.bf16.gmra.mrb[0].mxu0 %v499
      %v835 = vpop.f32.mrb[0].mxu0
      %v836 = vadd.f32 %v279, %v835
      %v837 = vpop.f32.mrb[0].mxu0
      %v838 = vpop.f32.mrb[0].mxu0
      %v839 = vadd.f32 %v279, %v838
      %v840 = vpop.f32.mrb[0].mxu0
      %841 = vmatprep.mubr.bf16.mxu0 %v502
      %842 = vmatmul.mubr.bf16.gmra.mrb[0].mxu0 %v501
      %v843 = vpop.f32.mrb[0].mxu0
      %v844 = vadd.f32 %v279, %v843
      %v845 = vpop.f32.mrb[0].mxu0
      %v846 = vpop.f32.mrb[0].mxu0
      %v847 = vadd.f32 %v279, %v846
      %v848 = vpop.f32.mrb[0].mxu0
      %849 = vmatprep.mubr.bf16.mxu0 %v504
      %850 = vmatmul.mubr.bf16.gmra.mrb[0].mxu0 %v503
      %v851 = vpop.f32.mrb[0].mxu0
      %v852 = vadd.f32 %v279, %v851
      %v853 = vpop.f32.mrb[0].mxu0
      %v854 = vpop.f32.mrb[0].mxu0
      %v855 = vadd.f32 %v279, %v854
      %v856 = vpop.f32.mrb[0].mxu0
      %857 = vmatprep.mubr.bf16.mxu0 %v506
      %858 = vmatmul.mubr.bf16.gmra.mrb[0].mxu0 %v505
      %v859 = vpop.f32.mrb[0].mxu0
      %v860 = vadd.f32 %v279, %v859
      %v861 = vpop.f32.mrb[0].mxu0
      %v862 = vpop.f32.mrb[0].mxu0
      %v863 = vadd.f32 %v279, %v862
      %v864 = vpop.f32.mrb[0].mxu0
      %865 = vmatprep.mubr.bf16.mxu0 %v508
      %866 = vmatmul.mubr.bf16.gmra.mrb[0].mxu0 %v507
      %v867 = vpop.f32.mrb[0].mxu0
      %v868 = vadd.f32 %v279, %v867
      %v869 = vpop.f32.mrb[0].mxu0
      %v870 = vpop.f32.mrb[0].mxu0
      %v871 = vadd.f32 %v279, %v870
      %v872 = vpop.f32.mrb[0].mxu0
      %873 = vmatprep.mubr.bf16.mxu0 %v510
      %874 = vmatmul.mubr.bf16.gmra.mrb[0].mxu0 %v509
      %v875 = vpop.f32.mrb[0].mxu0
      %v876 = vadd.f32 %v279, %v875
      %v877 = vpop.f32.mrb[0].mxu0
      %v878 = vpop.f32.mrb[0].mxu0
      %v879 = vadd.f32 %v279, %v878
      %v880 = vpop.f32.mrb[0].mxu0
      %881 = vmatprep.mubr.bf16.mxu0 %v512
      %882 = vmatmul.mubr.bf16.gmra.mrb[0].mxu0 %v511
      %v883 = vpop.f32.mrb[0].mxu0
      %v884 = vadd.f32 %v279, %v883
      %v885 = vpop.f32.mrb[0].mxu0
      %v886 = vpop.f32.mrb[0].mxu0
      %v887 = vadd.f32 %v279, %v886
      %v888 = vpop.f32.mrb[0].mxu0
      %889 = vmatprep.mubr.bf16.mxu0 %v514
      %890 = vmatmul.mubr.bf16.gmra.mrb[0].mxu0 %v513
      %v891 = vpop.f32.mrb[0].mxu0
      %v892 = vadd.f32 %v279, %v891
      %v893 = vpop.f32.mrb[0].mxu0
      %v894 = vpop.f32.mrb[0].mxu0
      %v895 = vadd.f32 %v279, %v894
      %v896 = vpop.f32.mrb[0].mxu0
      %897 = vmatprep.mubr.bf16.mxu0 %v516
      %898 = vmatmul.mubr.bf16.gmra.mrb[0].mxu0 %v515
      %v899 = vpop.f32.mrb[0].mxu0
      %v900 = vadd.f32 %v279, %v899
      %v901 = vpop.f32.mrb[0].mxu0
      %v902 = vpop.f32.mrb[0].mxu0
      %v903 = vadd.f32 %v279, %v902
      %v904 = vpop.f32.mrb[0].mxu0
      %905 = vmatprep.mubr.bf16.mxu0 %v518
      %906 = vmatmul.mubr.bf16.gmra.mrb[0].mxu0 %v517
      %v907 = vpop.f32.mrb[0].mxu0
      %v908 = vadd.f32 %v279, %v907
      %v909 = vpop.f32.mrb[0].mxu0
      %v910 = vpop.f32.mrb[0].mxu0
      %v911 = vadd.f32 %v279, %v910
      %v912 = vpop.f32.mrb[0].mxu0
      %913 = vmatprep.mubr.bf16.mxu0 %v520
      %914 = vmatmul.mubr.bf16.gmra.mrb[0].mxu0 %v519
      %v915 = vpop.f32.mrb[0].mxu0
      %v916 = vadd.f32 %v279, %v915
      %v917 = vpop.f32.mrb[0].mxu0
      %v918 = vpop.f32.mrb[0].mxu0
      %v919 = vadd.f32 %v279, %v918
      %v920 = vpop.f32.mrb[0].mxu0
      %921 = vmatprep.mubr.bf16.mxu0 %v522
      %922 = vmatmul.mubr.bf16.gmra.mrb[0].mxu0 %v521
      %v923 = vpop.f32.mrb[0].mxu0
      %v924 = vadd.f32 %v279, %v923
      %v925 = vpop.f32.mrb[0].mxu0
      %v926 = vpop.f32.mrb[0].mxu0
      %v927 = vadd.f32 %v279, %v926
      %v928 = vpop.f32.mrb[0].mxu0
      %929 = vmatprep.mubr.bf16.mxu0 %v524
      %930 = vmatmul.mubr.bf16.gmra.mrb[0].mxu0 %v523
      %v931 = vpop.f32.mrb[0].mxu0
      %v932 = vadd.f32 %v279, %v931
      %v933 = vpop.f32.mrb[0].mxu0
      %v934 = vpop.f32.mrb[0].mxu0
      %v935 = vadd.f32 %v279, %v934
      %v936 = vpop.f32.mrb[0].mxu0
      %937 = vmatprep.mubr.bf16.mxu0 %v526
      %938 = vmatmul.mubr.bf16.gmra.mrb[0].mxu0 %v525
      %v939 = vpop.f32.mrb[0].mxu0
      %v940 = vadd.f32 %v279, %v939
      %v941 = vpop.f32.mrb[0].mxu0
      %v942 = vpop.f32.mrb[0].mxu0
      %v943 = vadd.f32 %v279, %v942
      %v944 = vpop.f32.mrb[0].mxu0
      %945 = vmatprep.mubr.bf16.mxu0 %v528
      %946 = vmatmul.mubr.bf16.gmra.mrb[0].mxu0 %v527
      %v947 = vpop.f32.mrb[0].mxu0
      %v948 = vadd.f32 %v279, %v947
      %v949 = vpop.f32.mrb[0].mxu0
      %v950 = vpop.f32.mrb[0].mxu0
      %v951 = vadd.f32 %v279, %v950
      %v952 = vpop.f32.mrb[0].mxu0
      %953 = vmatprep.mubr.bf16.mxu0 %v530
      %954 = vmatmul.mubr.bf16.gmra.mrb[0].mxu0 %v529
      %v955 = vpop.f32.mrb[0].mxu0
      %v956 = vadd.f32 %v279, %v955
      %v957 = vpop.f32.mrb[0].mxu0
      %v958 = vpop.f32.mrb[0].mxu0
      %v959 = vadd.f32 %v279, %v958
      %v960 = vpop.f32.mrb[0].mxu0
      %961 = vmatprep.mubr.bf16.mxu0 %v532
      %962 = vmatmul.mubr.bf16.gmra.mrb[0].mxu0 %v531
      %v963 = vpop.f32.mrb[0].mxu0
      %v964 = vadd.f32 %v279, %v963
      %v965 = vpop.f32.mrb[0].mxu0
      %v966 = vpop.f32.mrb[0].mxu0
      %v967 = vadd.f32 %v279, %v966
      %v968 = vpop.f32.mrb[0].mxu0
      %969 = vmatprep.mubr.bf16.mxu0 %v534
      %970 = vmatmul.mubr.bf16.gmra.mrb[0].mxu0 %v533
      %v971 = vpop.f32.mrb[0].mxu0
      %v972 = vadd.f32 %v279, %v971
      %v973 = vpop.f32.mrb[0].mxu0
      %v974 = vpop.f32.mrb[0].mxu0
      %v975 = vadd.f32 %v279, %v974
      %v976 = vpop.f32.mrb[0].mxu0
      %977 = vmatprep.mubr.bf16.mxu0 %v536
      %978 = vmatmul.mubr.bf16.gmra.mrb[0].mxu0 %v535
      %v979 = vpop.f32.mrb[0].mxu0
      %v980 = vadd.f32 %v279, %v979
      %v981 = vpop.f32.mrb[0].mxu0
      %v982 = vpop.f32.mrb[0].mxu0
      %v983 = vadd.f32 %v279, %v982
      %v984 = vpop.f32.mrb[0].mxu0
      %985 = vdwg.mxu0
      %v986 = vmax.f32 %v732, 0.0
      %v987 = vmax.f32 %v735, 0.0
      %v988 = vmax.f32 %v740, 0.0
      %v989 = vmax.f32 %v743, 0.0
      %v990 = vmax.f32 %v748, 0.0
      %v991 = vmax.f32 %v751, 0.0
      %v992 = vmax.f32 %v756, 0.0
      %v993 = vmax.f32 %v759, 0.0
      %v994 = vmax.f32 %v764, 0.0
      %v995 = vmax.f32 %v767, 0.0
      %v996 = vmax.f32 %v772, 0.0
      %v997 = vmax.f32 %v775, 0.0
      %v998 = vmax.f32 %v780, 0.0
      %v999 = vmax.f32 %v783, 0.0
      %v1000 = vmax.f32 %v788, 0.0
      %v1001 = vmax.f32 %v791, 0.0
      %v1002 = vmax.f32 %v796, 0.0
      %v1003 = vmax.f32 %v799, 0.0
      %v1004 = vmax.f32 %v804, 0.0
      %v1005 = vmax.f32 %v807, 0.0
      %v1006 = vmax.f32 %v812, 0.0
      %v1007 = vmax.f32 %v815, 0.0
      %v1008 = vmax.f32 %v820, 0.0
      %v1009 = vmax.f32 %v823, 0.0
      %v1010 = vmax.f32 %v828, 0.0
      %v1011 = vmax.f32 %v831, 0.0
      %v1012 = vmax.f32 %v836, 0.0
      %v1013 = vmax.f32 %v839, 0.0
      %v1014 = vmax.f32 %v844, 0.0
      %v1015 = vmax.f32 %v847, 0.0
      %v1016 = vmax.f32 %v852, 0.0
      %v1017 = vmax.f32 %v855, 0.0
      %v1018 = vmax.f32 %v860, 0.0
      %v1019 = vmax.f32 %v863, 0.0
      %v1020 = vmax.f32 %v868, 0.0
      %v1021 = vmax.f32 %v871, 0.0
      %v1022 = vmax.f32 %v876, 0.0
      %v1023 = vmax.f32 %v879, 0.0
      %v1024 = vmax.f32 %v884, 0.0
      %v1025 = vmax.f32 %v887, 0.0
      %v1026 = vmax.f32 %v892, 0.0
      %v1027 = vmax.f32 %v895, 0.0
      %v1028 = vmax.f32 %v900, 0.0
      %v1029 = vmax.f32 %v903, 0.0
      %v1030 = vmax.f32 %v908, 0.0
      %v1031 = vmax.f32 %v911, 0.0
      %v1032 = vmax.f32 %v916, 0.0
      %v1033 = vmax.f32 %v919, 0.0
      %v1034 = vmax.f32 %v924, 0.0
      %v1035 = vmax.f32 %v927, 0.0
      %v1036 = vmax.f32 %v932, 0.0
      %v1037 = vmax.f32 %v935, 0.0
      %v1038 = vmax.f32 %v940, 0.0
      %v1039 = vmax.f32 %v943, 0.0
      %v1040 = vmax.f32 %v948, 0.0
      %v1041 = vmax.f32 %v951, 0.0
      %v1042 = vmax.f32 %v956, 0.0
      %v1043 = vmax.f32 %v959, 0.0
      %v1044 = vmax.f32 %v964, 0.0
      %v1045 = vmax.f32 %v967, 0.0
      %v1046 = vmax.f32 %v972, 0.0
      %v1047 = vmax.f32 %v975, 0.0
      %v1048 = vmax.f32 %v980, 0.0
      %v1049 = vmax.f32 %v983, 0.0
      %v1050 = vpack.c.bf16 %v987, %v986
      %v1051 = vpack.c.bf16 %v989, %v988
      %v1052 = vpack.c.bf16 %v991, %v990
      %v1053 = vpack.c.bf16 %v993, %v992
      %v1054 = vpack.c.bf16 %v995, %v994
      %v1055 = vpack.c.bf16 %v997, %v996
      %v1056 = vpack.c.bf16 %v999, %v998
      %v1057 = vpack.c.bf16 %v1001, %v1000
      %v1058 = vpack.c.bf16 %v1003, %v1002
      %v1059 = vpack.c.bf16 %v1005, %v1004
      %v1060 = vpack.c.bf16 %v1007, %v1006
      %v1061 = vpack.c.bf16 %v1009, %v1008
      %v1062 = vpack.c.bf16 %v1011, %v1010
      %v1063 = vpack.c.bf16 %v1013, %v1012
      %v1064 = vpack.c.bf16 %v1015, %v1014
      %v1065 = vpack.c.bf16 %v1017, %v1016
      %v1066 = vpack.c.bf16 %v1019, %v1018
      %v1067 = vpack.c.bf16 %v1021, %v1020
      %v1068 = vpack.c.bf16 %v1023, %v1022
      %v1069 = vpack.c.bf16 %v1025, %v1024
      %v1070 = vpack.c.bf16 %v1027, %v1026
      %v1071 = vpack.c.bf16 %v1029, %v1028
      %v1072 = vpack.c.bf16 %v1031, %v1030
      %v1073 = vpack.c.bf16 %v1033, %v1032
      %v1074 = vpack.c.bf16 %v1035, %v1034
      %v1075 = vpack.c.bf16 %v1037, %v1036
      %v1076 = vpack.c.bf16 %v1039, %v1038
      %v1077 = vpack.c.bf16 %v1041, %v1040
      %v1078 = vpack.c.bf16 %v1043, %v1042
      %v1079 = vpack.c.bf16 %v1045, %v1044
      %v1080 = vpack.c.bf16 %v1047, %v1046
      %v1081 = vpack.c.bf16 %v1049, %v1048
      %v1114 = vunpack.c.l.b16 %v1050
      %v1115 = vunpack.c.h.b16 %v1050
      %v1116 = vunpack.c.l.b16 %v1051
      %v1117 = vunpack.c.h.b16 %v1051
      %v1118 = vunpack.c.l.b16 %v1052
      %v1119 = vunpack.c.h.b16 %v1052
      %v1120 = vunpack.c.l.b16 %v1053
      %v1121 = vunpack.c.h.b16 %v1053
      %v1122 = vunpack.c.l.b16 %v1054
      %v1123 = vunpack.c.h.b16 %v1054
      %v1124 = vunpack.c.l.b16 %v1055
      %v1125 = vunpack.c.h.b16 %v1055
      %v1126 = vunpack.c.l.b16 %v1056
      %v1127 = vunpack.c.h.b16 %v1056
      %v1128 = vunpack.c.l.b16 %v1057
      %v1129 = vunpack.c.h.b16 %v1057
      %v1130 = vunpack.c.l.b16 %v1058
      %v1131 = vunpack.c.h.b16 %v1058
      %v1132 = vunpack.c.l.b16 %v1059
      %v1133 = vunpack.c.h.b16 %v1059
      %v1134 = vunpack.c.l.b16 %v1060
      %v1135 = vunpack.c.h.b16 %v1060
      %v1136 = vunpack.c.l.b16 %v1061
      %v1137 = vunpack.c.h.b16 %v1061
      %v1138 = vunpack.c.l.b16 %v1062
      %v1139 = vunpack.c.h.b16 %v1062
      %v1140 = vunpack.c.l.b16 %v1063
      %v1141 = vunpack.c.h.b16 %v1063
      %v1142 = vunpack.c.l.b16 %v1064
      %v1143 = vunpack.c.h.b16 %v1064
      %v1144 = vunpack.c.l.b16 %v1065
      %v1145 = vunpack.c.h.b16 %v1065
      %v1146 = vunpack.c.l.b16 %v1066
      %v1147 = vunpack.c.h.b16 %v1066
      %v1148 = vunpack.c.l.b16 %v1067
      %v1149 = vunpack.c.h.b16 %v1067
      %v1150 = vunpack.c.l.b16 %v1068
      %v1151 = vunpack.c.h.b16 %v1068
      %v1152 = vunpack.c.l.b16 %v1069
      %v1153 = vunpack.c.h.b16 %v1069
      %v1154 = vunpack.c.l.b16 %v1070
      %v1155 = vunpack.c.h.b16 %v1070
      %v1156 = vunpack.c.l.b16 %v1071
      %v1157 = vunpack.c.h.b16 %v1071
      %v1158 = vunpack.c.l.b16 %v1072
      %v1159 = vunpack.c.h.b16 %v1072
      %v1160 = vunpack.c.l.b16 %v1073
      %v1161 = vunpack.c.h.b16 %v1073
      %v1162 = vunpack.c.l.b16 %v1074
      %v1163 = vunpack.c.h.b16 %v1074
      %v1164 = vunpack.c.l.b16 %v1075
      %v1165 = vunpack.c.h.b16 %v1075
      %v1166 = vunpack.c.l.b16 %v1076
      %v1167 = vunpack.c.h.b16 %v1076
      %v1168 = vunpack.c.l.b16 %v1077
      %v1169 = vunpack.c.h.b16 %v1077
      %v1170 = vunpack.c.l.b16 %v1078
      %v1171 = vunpack.c.h.b16 %v1078
      %v1172 = vunpack.c.l.b16 %v1079
      %v1173 = vunpack.c.h.b16 %v1079
      %v1174 = vunpack.c.l.b16 %v1080
      %v1175 = vunpack.c.h.b16 %v1080
      %v1176 = vunpack.c.l.b16 %v1081
      %v1177 = vunpack.c.h.b16 %v1081
      %v1178 = vpack.c.b16 %v1114, %v1114
      %v1179 = vpack.c.b16 %v1115, %v1115
      %v1180 = vpack.c.b16 %v1116, %v1116
      %v1181 = vpack.c.b16 %v1117, %v1117
      %v1182 = vpack.c.b16 %v1118, %v1118
      %v1183 = vpack.c.b16 %v1119, %v1119
      %v1184 = vpack.c.b16 %v1120, %v1120
      %v1185 = vpack.c.b16 %v1121, %v1121
      %v1186 = vpack.c.b16 %v1122, %v1122
      %v1187 = vpack.c.b16 %v1123, %v1123
      %v1188 = vpack.c.b16 %v1124, %v1124
      %v1189 = vpack.c.b16 %v1125, %v1125
      %v1190 = vpack.c.b16 %v1126, %v1126
      %v1191 = vpack.c.b16 %v1127, %v1127
      %v1192 = vpack.c.b16 %v1128, %v1128
      %v1193 = vpack.c.b16 %v1129, %v1129
      %v1194 = vpack.c.b16 %v1130, %v1130
      %v1195 = vpack.c.b16 %v1131, %v1131
      %v1196 = vpack.c.b16 %v1132, %v1132
      %v1197 = vpack.c.b16 %v1133, %v1133
      %v1198 = vpack.c.b16 %v1134, %v1134
      %v1199 = vpack.c.b16 %v1135, %v1135
      %v1200 = vpack.c.b16 %v1136, %v1136
      %v1201 = vpack.c.b16 %v1137, %v1137
      %v1202 = vpack.c.b16 %v1138, %v1138
      %v1203 = vpack.c.b16 %v1139, %v1139
      %v1204 = vpack.c.b16 %v1140, %v1140
      %v1205 = vpack.c.b16 %v1141, %v1141
      %v1206 = vpack.c.b16 %v1142, %v1142
      %v1207 = vpack.c.b16 %v1143, %v1143
      %v1208 = vpack.c.b16 %v1144, %v1144
      %v1209 = vpack.c.b16 %v1145, %v1145
      %v1210 = vpack.c.b16 %v1146, %v1146
      %v1211 = vpack.c.b16 %v1147, %v1147
      %v1212 = vpack.c.b16 %v1148, %v1148
      %v1213 = vpack.c.b16 %v1149, %v1149
      %v1214 = vpack.c.b16 %v1150, %v1150
      %v1215 = vpack.c.b16 %v1151, %v1151
      %v1216 = vpack.c.b16 %v1152, %v1152
      %v1217 = vpack.c.b16 %v1153, %v1153
      %v1218 = vpack.c.b16 %v1154, %v1154
      %v1219 = vpack.c.b16 %v1155, %v1155
      %v1220 = vpack.c.b16 %v1156, %v1156
      %v1221 = vpack.c.b16 %v1157, %v1157
      %v1222 = vpack.c.b16 %v1158, %v1158
      %v1223 = vpack.c.b16 %v1159, %v1159
      %v1224 = vpack.c.b16 %v1160, %v1160
      %v1225 = vpack.c.b16 %v1161, %v1161
      %v1226 = vpack.c.b16 %v1162, %v1162
      %v1227 = vpack.c.b16 %v1163, %v1163
      %v1228 = vpack.c.b16 %v1164, %v1164
      %v1229 = vpack.c.b16 %v1165, %v1165
      %v1230 = vpack.c.b16 %v1166, %v1166
      %v1231 = vpack.c.b16 %v1167, %v1167
      %v1232 = vpack.c.b16 %v1168, %v1168
      %v1233 = vpack.c.b16 %v1169, %v1169
      %v1234 = vpack.c.b16 %v1170, %v1170
      %v1235 = vpack.c.b16 %v1171, %v1171
      %v1236 = vpack.c.b16 %v1172, %v1172
      %v1237 = vpack.c.b16 %v1173, %v1173
      %v1238 = vpack.c.b16 %v1174, %v1174
      %v1239 = vpack.c.b16 %v1175, %v1175
      %v1240 = vpack.c.b16 %v1176, %v1176
      %v1241 = vpack.c.b16 %v1177, %v1177
      %1306 = vst [vmem:[%s175] sm:$0xf] %v1178
      %1307 = vst [vmem:[%s175 + $0x4] sm:$0xf] %v1179
      %1308 = vst [vmem:[%s175 + $0x8] sm:$0xf] %v1180
      %1309 = vst [vmem:[%s175 + $0xc] sm:$0xf] %v1181
      %1310 = vst [vmem:[%s175 + $0x10] sm:$0xf] %v1182
      %1311 = vst [vmem:[%s175 + $0x14] sm:$0xf] %v1183
      %1312 = vst [vmem:[%s175 + $0x18] sm:$0xf] %v1184
      %1313 = vst [vmem:[%s175 + $0x1c] sm:$0xf] %v1185
      %1314 = vst [vmem:[%s175 + $0x20] sm:$0xf] %v1186
      %1315 = vst [vmem:[%s175 + $0x24] sm:$0xf] %v1187
      %1316 = vst [vmem:[%s175 + $0x28] sm:$0xf] %v1188
      %1317 = vst [vmem:[%s175 + $0x2c] sm:$0xf] %v1189
      %1318 = vst [vmem:[%s175 + $0x30] sm:$0xf] %v1190
      %1319 = vst [vmem:[%s175 + $0x34] sm:$0xf] %v1191
      %1320 = vst [vmem:[%s175 + $0x38] sm:$0xf] %v1192
      %1321 = vst [vmem:[%s175 + $0x3c] sm:$0xf] %v1193
      %1322 = vst [vmem:[%s175 + $0x40] sm:$0xf] %v1194
      %1323 = vst [vmem:[%s175 + $0x44] sm:$0xf] %v1195
      %1324 = vst [vmem:[%s175 + $0x48] sm:$0xf] %v1196
      %1325 = vst [vmem:[%s175 + $0x4c] sm:$0xf] %v1197
      %1326 = vst [vmem:[%s175 + $0x50] sm:$0xf] %v1198
      %1327 = vst [vmem:[%s175 + $0x54] sm:$0xf] %v1199
      %1328 = vst [vmem:[%s175 + $0x58] sm:$0xf] %v1200
      %1329 = vst [vmem:[%s175 + $0x5c] sm:$0xf] %v1201
      %1330 = vst [vmem:[%s175 + $0x60] sm:$0xf] %v1202
      %1331 = vst [vmem:[%s175 + $0x64] sm:$0xf] %v1203
      %1332 = vst [vmem:[%s175 + $0x68] sm:$0xf] %v1204
      %1333 = vst [vmem:[%s175 + $0x6c] sm:$0xf] %v1205
      %1334 = vst [vmem:[%s175 + $0x70] sm:$0xf] %v1206
      %1335 = vst [vmem:[%s175 + $0x74] sm:$0xf] %v1207
      %1336 = vst [vmem:[%s175 + $0x78] sm:$0xf] %v1208
      %1337 = vst [vmem:[%s175 + $0x7c] sm:$0xf] %v1209
      %1338 = vst [vmem:[%s175 + $0x80] sm:$0xf] %v1210
      %1339 = vst [vmem:[%s175 + $0x84] sm:$0xf] %v1211
      %1340 = vst [vmem:[%s175 + $0x88] sm:$0xf] %v1212
      %1341 = vst [vmem:[%s175 + $0x8c] sm:$0xf] %v1213
      %1342 = vst [vmem:[%s175 + $0x90] sm:$0xf] %v1214
      %1343 = vst [vmem:[%s175 + $0x94] sm:$0xf] %v1215
      %1344 = vst [vmem:[%s175 + $0x98] sm:$0xf] %v1216
      %1345 = vst [vmem:[%s175 + $0x9c] sm:$0xf] %v1217
      %1346 = vst [vmem:[%s175 + $0xa0] sm:$0xf] %v1218
      %1347 = vst [vmem:[%s175 + $0xa4] sm:$0xf] %v1219
      %1348 = vst [vmem:[%s175 + $0xa8] sm:$0xf] %v1220
      %1349 = vst [vmem:[%s175 + $0xac] sm:$0xf] %v1221
      %1350 = vst [vmem:[%s175 + $0xb0] sm:$0xf] %v1222
      %1351 = vst [vmem:[%s175 + $0xb4] sm:$0xf] %v1223
      %1352 = vst [vmem:[%s175 + $0xb8] sm:$0xf] %v1224
      %1353 = vst [vmem:[%s175 + $0xbc] sm:$0xf] %v1225
      %1354 = vst [vmem:[%s175 + $0xc0] sm:$0xf] %v1226
      %1355 = vst [vmem:[%s175 + $0xc4] sm:$0xf] %v1227
      %1356 = vst [vmem:[%s175 + $0xc8] sm:$0xf] %v1228
      %1357 = vst [vmem:[%s175 + $0xcc] sm:$0xf] %v1229
      %1358 = vst [vmem:[%s175 + $0xd0] sm:$0xf] %v1230
      %1359 = vst [vmem:[%s175 + $0xd4] sm:$0xf] %v1231
      %1360 = vst [vmem:[%s175 + $0xd8] sm:$0xf] %v1232
      %1361 = vst [vmem:[%s175 + $0xdc] sm:$0xf] %v1233
      %1362 = vst [vmem:[%s175 + $0xe0] sm:$0xf] %v1234
      %1363 = vst [vmem:[%s175 + $0xe4] sm:$0xf] %v1235
      %1364 = vst [vmem:[%s175 + $0xe8] sm:$0xf] %v1236
      %1365 = vst [vmem:[%s175 + $0xec] sm:$0xf] %v1237
      %1366 = vst [vmem:[%s175 + $0xf0] sm:$0xf] %v1238
      %1367 = vst [vmem:[%s175 + $0xf4] sm:$0xf] %v1239
      %1368 = vst [vmem:[%s175 + $0xf8] sm:$0xf] %v1240
      %1369 = vst [vmem:[%s175 + $0xfc] sm:$0xf] %v1241
      %s1370 = smul.u32 64, %s14
      %p1371 = scmp.lt.s32.totalorder %s1370, 447
      %s1372 = scalar_select %p1371, %s1370, 447
      %s1373 = smul.addr %s1372, 4
      %s1374 = scalar_lea.vmem %s3, %s1373
      // Predicated region
      $region33: #{lstm_conv_forward.6} parent=31 // pred_check
        %p1375 = pneg %p100
      $region34: #{lstm_conv_forward.6} parent=31 // pred_check_branch
        %1377 = sbr.rel (%p1375) target = $region36
      $region35: #{lstm_conv_forward.6} parent=31 // pred_region
        %s1378 = smul.u32 64, %s14
      $region36: #{lstm_conv_forward.6} parent=31 // pred_fallthru
        _
    $region32: #{lstm_conv_forward.6} parent=5 // pred_fallthru
      _
    %p1379 = scmp.le.s32.totalorder 2, %s9
    // Predicated region
    $region37: #{lstm_conv_forward.6} parent=5 // pred_check
      %p1380 = pneg %p1379
    $region38: #{lstm_conv_forward.6} parent=5 // pred_check_branch
      %1382 = sbr.rel (%p1380) target = $region40
    $region39: #{lstm_conv_forward.6} parent=5 // pred_region
      %s1383 = ssub.s32 %s9, 2
      // Predicated region
      $region41: #{lstm_conv_forward.6} parent=39 // pred_check
        %p1384 = pneg %p106
      $region42: #{lstm_conv_forward.6} parent=39 // pred_check_branch
        %1386 = sbr.rel (%p1384) target = $region44
      $region43: #{lstm_conv_forward.6} parent=39 // pred_region
        %s1387 = smul.u32 64, %s15
        %p1388 = scmp.lt.s32.totalorder %s1387, 447
        %s1389 = scalar_select %p1388, %s1387, 447
        %s1390 = smul.addr %s1389, 4
        %s1391 = scalar_lea.vmem %s3, %s1390
      $region44: #{lstm_conv_forward.6} parent=39 // pred_fallthru
        _
    $region40: #{lstm_conv_forward.6} parent=5 // pred_fallthru
      _
  $region6: #{lstm_conv_forward.6} parent=0 // loop_footer
    %s13 = sadd.s32 1, %s9
  $region7: #{lstm_conv_forward.6} parent=0 // loop_footer_branch
    %8 = sbr.rel target = $region3
  $region8: #{lstm_conv_forward.6} parent=0 // loop_exit
    _

// kernel: lstm_conv_forward.7
$region0: #{lstm_conv_forward.7}
  #allocation0 [shape = 'u32[]', space=smem, size = 0x4, offset = 0x4, fixed_abs, tag = 'smem constant byte address 0x4 - core index']
  #allocation1 [shape = 'u32[144,128]{1,0:T(1,128)}', space=vmem, size = 0x12000, scoped, tag = 'internal scratch']
  %s0 = inlined_call_operand.vmem [shape: bf16[656,512], index: 0, kind: input, shape index: {}]
  %s1 = inlined_call_operand.vmem [shape: bf16[512,128], index: 1, kind: input, shape index: {}]
  %s2 = inlined_call_operand.vmem [shape: f32[1,128], index: 2, kind: input, shape index: {}]
  %s3 = inlined_call_operand.vmem [shape: bf16[656,128], index: 3, kind: output, shape index: {}]
  %s4 = sld [smem:[#allocation0]]
  $region45: #{lstm_conv_forward.7} parent=0
    _
  %s6 = ssub.s32 1, %s4
  %s7 = scalar_select 0, %s6, %s4
  loop: start=0, step=1, limit=4
  $region2: #{lstm_conv_forward.7} parent=0 // loop_pre_header
    _
  $region3: #{lstm_conv_forward.7} parent=0 // loop_header
    %s9 = sphi 0, %s13
    %p10 = scmp.ge.s32.totalorder %s9, 4
    %s19 = sphi 0, %s21
    %s22 = sphi 0, %s19
    %s23 = sphi 0, %s22
    %s39 = sphi 0, %s23
    %s43 = sphi 0, %s43
    %s45 = sphi 0, %s43
    %s46 = sphi 0, %s45
    %s60 = sphi 0, %s46
    %s64 = sphi 0, %s64
    %s66 = sphi 0, %s64
    %s67 = sphi 0, %s66
    %s81 = sphi 0, %s67
    %s87 = sphi 0, %s89
    %s90 = sphi 0, %s87
    %s91 = sphi 0, %s90
    %s107 = sphi 0, %s91
  $region4: #{lstm_conv_forward.7} parent=0 // loop_header_branch
    %12 = sbr.rel (%p10) target = $region8
  $region5: #{lstm_conv_forward.7} parent=0 // loop_body
    %s14 = ssub.s32 %s9, 1
    %s15 = ssub.s32 %s9, 2
    %s16 = sadd.s32 %s9, 1
    %s17 = ssub.s32 %s9, %s16
    %p18 = scmp.eq.s32.totalorder %s17, 0
    %s20 = sadd.s32 %s19, 1
    %s21 = scalar_select %p18, %s19, %s20
    %p24 = pneg %p18
    %p25 = scmp.eq.s32.totalorder %s9, 1
    %p26 = por %p24, %p25
    %p27 = scmp.ne.s32.totalorder %s19, %s22
    %p28 = scmp.eq.s32.totalorder %s9, 0
    %p29 = por %p27, %p28
    %p30 = scmp.ne.s32.totalorder %s19, %s22
    %p31 = scmp.eq.s32.totalorder %s14, 1
    %p32 = por %p30, %p31
    %p33 = scmp.ne.s32.totalorder %s22, %s23
    %p34 = scmp.eq.s32.totalorder %s14, 0
    %p35 = por %p33, %p34
    %p36 = scmp.ne.s32.totalorder %s22, %s23
    %p37 = scmp.eq.s32.totalorder %s15, 1
    %p38 = por %p36, %p37
    %p40 = scmp.ne.s32.totalorder %s23, %s39
    %p41 = scmp.eq.s32.totalorder %s15, 0
    %p42 = por %p40, %p41
    %s44 = sadd.s32 %s43, 1
    %p47 = scmp.eq.s32.totalorder %s9, 1
    %p48 = scmp.ne.s32.totalorder %s43, %s45
    %p49 = scmp.eq.s32.totalorder %s9, 0
    %p50 = por %p48, %p49
    %p51 = scmp.ne.s32.totalorder %s43, %s45
    %p52 = scmp.eq.s32.totalorder %s14, 1
    %p53 = por %p51, %p52
    %p54 = scmp.ne.s32.totalorder %s45, %s46
    %p55 = scmp.eq.s32.totalorder %s14, 0
    %p56 = por %p54, %p55
    %p57 = scmp.ne.s32.totalorder %s45, %s46
    %p58 = scmp.eq.s32.totalorder %s15, 1
    %p59 = por %p57, %p58
    %p61 = scmp.ne.s32.totalorder %s46, %s60
    %p62 = scmp.eq.s32.totalorder %s15, 0
    %p63 = por %p61, %p62
    %s65 = sadd.s32 %s64, 1
    %p68 = scmp.eq.s32.totalorder %s9, 1
    %p69 = scmp.ne.s32.totalorder %s64, %s66
    %p70 = scmp.eq.s32.totalorder %s9, 0
    %p71 = por %p69, %p70
    %p72 = scmp.ne.s32.totalorder %s64, %s66
    %p73 = scmp.eq.s32.totalorder %s14, 1
    %p74 = por %p72, %p73
    %p75 = scmp.ne.s32.totalorder %s66, %s67
    %p76 = scmp.eq.s32.totalorder %s14, 0
    %p77 = por %p75, %p76
    %p78 = scmp.ne.s32.totalorder %s66, %s67
    %p79 = scmp.eq.s32.totalorder %s15, 1
    %p80 = por %p78, %p79
    %p82 = scmp.ne.s32.totalorder %s67, %s81
    %p83 = scmp.eq.s32.totalorder %s15, 0
    %p84 = por %p82, %p83
    %s85 = ssub.s32 %s9, %s16
    %p86 = scmp.eq.s32.totalorder %s85, 0
    %s88 = sadd.s32 %s87, 1
    %s89 = scalar_select %p86, %s87, %s88
    %p92 = pneg %p86
    %p93 = scmp.eq.s32.totalorder %s9, 1
    %p94 = por %p92, %p93
    %p95 = scmp.ne.s32.totalorder %s87, %s90
    %p96 = scmp.eq.s32.totalorder %s9, 0
    %p97 = por %p95, %p96
    %p98 = scmp.ne.s32.totalorder %s87, %s90
    %p99 = scmp.eq.s32.totalorder %s14, 1
    %p100 = por %p98, %p99
    %p101 = scmp.ne.s32.totalorder %s90, %s91
    %p102 = scmp.eq.s32.totalorder %s14, 0
    %p103 = por %p101, %p102
    %p104 = scmp.ne.s32.totalorder %s90, %s91
    %p105 = scmp.eq.s32.totalorder %s15, 1
    %p106 = por %p104, %p105
    %p108 = scmp.ne.s32.totalorder %s91, %s107
    %p109 = scmp.eq.s32.totalorder %s15, 0
    %p110 = por %p108, %p109
    %p111 = scmp.le.s32.totalorder 1, %s9
    %p112 = scmp.lt.s32.totalorder %s9, 3
    %p113 = pnand %p111, %p112
    %p114 = pneg %p113
    // Predicated region
    $region9: #{lstm_conv_forward.7} parent=5 // pred_check
      _
    $region10: #{lstm_conv_forward.7} parent=5 // pred_check_branch
      %116 = sbr.rel (%p113) target = $region12
    $region11: #{lstm_conv_forward.7} parent=5 // pred_region
      %s117 = ssub.s32 %s9, 1
      // Predicated region
      $region13: #{lstm_conv_forward.7} parent=11 // pred_check
        %p118 = pneg %p56
      $region14: #{lstm_conv_forward.7} parent=11 // pred_check_branch
        %120 = sbr.rel (%p118) target = $region16
      $region15: #{lstm_conv_forward.7} parent=11 // pred_region
        _
      $region16: #{lstm_conv_forward.7} parent=11 // pred_fallthru
        _
      // Predicated region
      $region17: #{lstm_conv_forward.7} parent=11 // pred_check
        %p121 = pneg %p77
      $region18: #{lstm_conv_forward.7} parent=11 // pred_check_branch
        %123 = sbr.rel (%p121) target = $region20
      $region19: #{lstm_conv_forward.7} parent=11 // pred_region
        _
      $region20: #{lstm_conv_forward.7} parent=11 // pred_fallthru
        _
    $region12: #{lstm_conv_forward.7} parent=5 // pred_fallthru
      _
    %p124 = scmp.lt.s32.totalorder %s9, 2
    // Predicated region
    $region21: #{lstm_conv_forward.7} parent=5 // pred_check
      %p125 = pneg %p124
    $region22: #{lstm_conv_forward.7} parent=5 // pred_check_branch
      %127 = sbr.rel (%p125) target = $region24
    $region23: #{lstm_conv_forward.7} parent=5 // pred_region
      // Predicated region
      $region25: #{lstm_conv_forward.7} parent=23 // pred_check
        %p128 = pneg %p29
      $region26: #{lstm_conv_forward.7} parent=23 // pred_check_branch
        %130 = sbr.rel (%p128) target = $region28
      $region27: #{lstm_conv_forward.7} parent=23 // pred_region
        %s131 = smul.u32 41, %s9
        %p132 = scmp.lt.s32.totalorder %s131, 81
        %s133 = scalar_select %p132, %s131, 81
        %s134 = smul.addr %s133, 4
        %s135 = smul.addr %s134, 4
        %s136 = scalar_lea.vmem %s0, %s135
        %s137 = smul.u32 41, %s9
      $region28: #{lstm_conv_forward.7} parent=23 // pred_fallthru
        _
    $region24: #{lstm_conv_forward.7} parent=5 // pred_fallthru
      _
    %p138 = scmp.le.s32.totalorder 1, %s9
    %p139 = scmp.lt.s32.totalorder %s9, 3
    %p140 = pnand %p138, %p139
    %p141 = pneg %p140
    // Predicated region
    $region29: #{lstm_conv_forward.7} parent=5 // pred_check
      _
    $region30: #{lstm_conv_forward.7} parent=5 // pred_check_branch
      %143 = sbr.rel (%p140) target = $region32
    $region31: #{lstm_conv_forward.7} parent=5 // pred_region
      %s144 = ssub.s32 %s9, 1
      %s145 = smul.u32 41, %s14
      %p146 = scmp.lt.s32.totalorder %s145, 81
      %s147 = scalar_select %p146, %s145, 81
      %s148 = smul.addr %s147, 4
      %s149 = smul.addr %s148, 4
      %s150 = scalar_lea.vmem %s0, %s149
      %p151 = pneg %p35
      %p152 = pneg %p32
      %p153 = pneg %p56
      %p154 = pneg %p53
      %p155 = pneg %p77
      %p156 = pneg %p74
      %p157 = pneg %p103
      %p158 = pneg %p100
      %s159 = smul.u32 41, %s14
      %p160 = scmp.lt.s32.totalorder %s159, 81
      %s161 = scalar_select %p160, %s159, 81
      %s162 = smul.addr %s161, 4
      %s163 = scalar_lea.vmem %s3, %s162
      %s164 = smul.u32 41, %s14
      %p165 = scmp.lt.s32.totalorder %s164, 81
      %s166 = scalar_select %p165, %s164, 81
      %s167 = smul.addr %s166, 4
      %s168 = smul.addr %s167, 4
      %s169 = scalar_lea.vmem %s0, %s168
      %s170 = smul.u32 41, %s14
      %s171 = smul.u32 41, %s14
      %p172 = scmp.lt.s32.totalorder %s171, 81
      %s173 = scalar_select %p172, %s171, 81
      %s174 = smul.addr %s173, 4
      %s175 = scalar_lea.vmem %s3, %s174
      %s176 = smul.u32 41, %s14
      %v178 = vld [vmem:[%s169] sm:$0xff]
      %v179 = vld [vmem:[%s169 + $0x8] sm:$0xff]
      %v180 = vld [vmem:[%s169 + $0x10] sm:$0xff]
      %v181 = vld [vmem:[%s169 + $0x18] sm:$0xff]
      %v182 = vld [vmem:[%s169 + $0x20] sm:$0xff]
      %v183 = vld [vmem:[%s169 + $0x28] sm:$0xff]
      %v184 = vld [vmem:[%s169 + $0x30] sm:$0xff]
      %v185 = vld [vmem:[%s169 + $0x38] sm:$0xff]
      %v186 = vld [vmem:[%s169 + $0x40] sm:$0xff]
      %v187 = vld [vmem:[%s169 + $0x48] sm:$0xff]
      %v188 = vld [vmem:[%s169 + $0x50] sm:$0xff]
      %v189 = vld [vmem:[%s169 + $0x58] sm:$0xff]
      %v190 = vld [vmem:[%s169 + $0x60] sm:$0xff]
      %v191 = vld [vmem:[%s169 + $0x68] sm:$0xff]
      %v192 = vld [vmem:[%s169 + $0x70] sm:$0xff]
      %v193 = vld [vmem:[%s169 + $0x78] sm:$0xff]
      %v194 = vld [vmem:[%s169 + $0x80] sm:$0xff]
      %v195 = vld [vmem:[%s169 + $0x88] sm:$0xff]
      %v196 = vld [vmem:[%s169 + $0x90] sm:$0xff]
      %v197 = vld [vmem:[%s169 + $0x98] sm:$0xff]
      %v198 = vld [vmem:[%s169 + $0xa0] sm:$0xff]
      %v199 = vld [vmem:[%s169 + $0xa8] sm:$0xff]
      %v200 = vld [vmem:[%s169 + $0xb0] sm:$0xff]
      %v201 = vld [vmem:[%s169 + $0xb8] sm:$0xff]
      %v202 = vld [vmem:[%s169 + $0xc0] sm:$0xff]
      %v203 = vld [vmem:[%s169 + $0xc8] sm:$0xff]
      %v204 = vld [vmem:[%s169 + $0xd0] sm:$0xff]
      %v205 = vld [vmem:[%s169 + $0xd8] sm:$0xff]
      %v206 = vld [vmem:[%s169 + $0xe0] sm:$0xff]
      %v207 = vld [vmem:[%s169 + $0xe8] sm:$0xff]
      %v208 = vld [vmem:[%s169 + $0xf0] sm:$0xff]
      %v209 = vld [vmem:[%s169 + $0xf8] sm:$0xff]
      %v210 = vld [vmem:[%s169 + $0x100] sm:$0xff]
      %v211 = vld [vmem:[%s169 + $0x108] sm:$0xff]
      %v212 = vld [vmem:[%s169 + $0x110] sm:$0xff]
      %v213 = vld [vmem:[%s169 + $0x118] sm:$0xff]
      %v214 = vld [vmem:[%s169 + $0x120] sm:$0xff]
      %v215 = vld [vmem:[%s169 + $0x128] sm:$0xff]
      %v216 = vld [vmem:[%s169 + $0x130] sm:$0xff]
      %v217 = vld [vmem:[%s169 + $0x138] sm:$0xff]
      %v218 = vld [vmem:[%s169 + $0x140] sm:$0xff]
      %v219 = vld [vmem:[%s169 + $0x148] sm:$0xff]
      %v220 = vld [vmem:[%s169 + $0x150] sm:$0xff]
      %v221 = vld [vmem:[%s169 + $0x158] sm:$0xff]
      %v222 = vld [vmem:[%s169 + $0x160] sm:$0xff]
      %v223 = vld [vmem:[%s169 + $0x168] sm:$0xff]
      %v224 = vld [vmem:[%s169 + $0x170] sm:$0xff]
      %v225 = vld [vmem:[%s169 + $0x178] sm:$0xff]
      %v226 = vld [vmem:[%s169 + $0x180] sm:$0xff]
      %v227 = vld [vmem:[%s169 + $0x188] sm:$0xff]
      %v228 = vld [vmem:[%s169 + $0x190] sm:$0xff]
      %v229 = vld [vmem:[%s169 + $0x198] sm:$0xff]
      %v230 = vld [vmem:[%s169 + $0x1a0] sm:$0xff]
      %v231 = vld [vmem:[%s169 + $0x1a8] sm:$0xff]
      %v232 = vld [vmem:[%s169 + $0x1b0] sm:$0xff]
      %v233 = vld [vmem:[%s169 + $0x1b8] sm:$0xff]
      %v234 = vld [vmem:[%s169 + $0x1c0] sm:$0xff]
      %v235 = vld [vmem:[%s169 + $0x1c8] sm:$0xff]
      %v236 = vld [vmem:[%s169 + $0x1d0] sm:$0xff]
      %v237 = vld [vmem:[%s169 + $0x1d8] sm:$0xff]
      %v238 = vld [vmem:[%s169 + $0x1e0] sm:$0xff]
      %v239 = vld [vmem:[%s169 + $0x1e8] sm:$0xff]
      %v240 = vld [vmem:[%s169 + $0x1f0] sm:$0xff]
      %v241 = vld [vmem:[%s169 + $0x1f8] sm:$0xff]
      %v242 = vld [vmem:[%s169 + $0x200] sm:$0xff]
      %v243 = vld [vmem:[%s169 + $0x208] sm:$0xff]
      %v244 = vld [vmem:[%s169 + $0x210] sm:$0xff]
      %v245 = vld [vmem:[%s169 + $0x218] sm:$0xff]
      %v246 = vld [vmem:[%s169 + $0x220] sm:$0xff]
      %v247 = vld [vmem:[%s169 + $0x228] sm:$0xff]
      %v248 = vld [vmem:[%s169 + $0x230] sm:$0xff]
      %v249 = vld [vmem:[%s169 + $0x238] sm:$0xff]
      %v250 = vld [vmem:[%s169 + $0x240] sm:$0xff]
      %v251 = vld [vmem:[%s169 + $0x248] sm:$0xff]
      %v252 = vld [vmem:[%s169 + $0x250] sm:$0xff]
      %v253 = vld [vmem:[%s169 + $0x258] sm:$0xff]
      %v254 = vld [vmem:[%s169 + $0x260] sm:$0xff]
      %v255 = vld [vmem:[%s169 + $0x268] sm:$0xff]
      %v256 = vld [vmem:[%s169 + $0x270] sm:$0xff]
      %v257 = vld [vmem:[%s169 + $0x278] sm:$0xff]
      %v258 = vld [vmem:[%s169 + $0x280] sm:$0xff]
      %v259 = vld [vmem:[%s169 + $0x288] sm:$0xff]
      %v260 = vld [vmem:[%s1] sm:$0xf]
      %v261 = vld [vmem:[%s1 + $0x4] sm:$0xf]
      %v262 = vld [vmem:[%s1 + $0x8] sm:$0xf]
      %v263 = vld [vmem:[%s1 + $0xc] sm:$0xf]
      %v264 = vld [vmem:[%s1 + $0x10] sm:$0xf]
      %v265 = vld [vmem:[%s1 + $0x14] sm:$0xf]
      %v266 = vld [vmem:[%s1 + $0x18] sm:$0xf]
      %v267 = vld [vmem:[%s1 + $0x1c] sm:$0xf]
      %v268 = vld [vmem:[%s1 + $0x20] sm:$0xf]
      %v269 = vld [vmem:[%s1 + $0x24] sm:$0xf]
      %v270 = vld [vmem:[%s1 + $0x28] sm:$0xf]
      %v271 = vld [vmem:[%s1 + $0x2c] sm:$0xf]
      %v272 = vld [vmem:[%s1 + $0x30] sm:$0xf]
      %v273 = vld [vmem:[%s1 + $0x34] sm:$0xf]
      %v274 = vld [vmem:[%s1 + $0x38] sm:$0xf]
      %v275 = vld [vmem:[%s1 + $0x3c] sm:$0xf]
      %v276 = vld [vmem:[%s1 + $0x40] sm:$0xf]
      %v277 = vld [vmem:[%s1 + $0x44] sm:$0xf]
      %v278 = vld [vmem:[%s1 + $0x48] sm:$0xf]
      %v279 = vld [vmem:[%s1 + $0x4c] sm:$0xf]
      %v280 = vld [vmem:[%s1 + $0x50] sm:$0xf]
      %v281 = vld [vmem:[%s1 + $0x54] sm:$0xf]
      %v282 = vld [vmem:[%s1 + $0x58] sm:$0xf]
      %v283 = vld [vmem:[%s1 + $0x5c] sm:$0xf]
      %v284 = vld [vmem:[%s1 + $0x60] sm:$0xf]
      %v285 = vld [vmem:[%s1 + $0x64] sm:$0xf]
      %v286 = vld [vmem:[%s1 + $0x68] sm:$0xf]
      %v287 = vld [vmem:[%s1 + $0x6c] sm:$0xf]
      %v288 = vld [vmem:[%s1 + $0x70] sm:$0xf]
      %v289 = vld [vmem:[%s1 + $0x74] sm:$0xf]
      %v290 = vld [vmem:[%s1 + $0x78] sm:$0xf]
      %v291 = vld [vmem:[%s1 + $0x7c] sm:$0xf]
      %v292 = vld [vmem:[%s1 + $0x80] sm:$0xf]
      %v293 = vld [vmem:[%s1 + $0x84] sm:$0xf]
      %v294 = vld [vmem:[%s1 + $0x88] sm:$0xf]
      %v295 = vld [vmem:[%s1 + $0x8c] sm:$0xf]
      %v296 = vld [vmem:[%s1 + $0x90] sm:$0xf]
      %v297 = vld [vmem:[%s1 + $0x94] sm:$0xf]
      %v298 = vld [vmem:[%s1 + $0x98] sm:$0xf]
      %v299 = vld [vmem:[%s1 + $0x9c] sm:$0xf]
      %v300 = vld [vmem:[%s1 + $0xa0] sm:$0xf]
      %v301 = vld [vmem:[%s1 + $0xa4] sm:$0xf]
      %v302 = vld [vmem:[%s1 + $0xa8] sm:$0xf]
      %v303 = vld [vmem:[%s1 + $0xac] sm:$0xf]
      %v304 = vld [vmem:[%s1 + $0xb0] sm:$0xf]
      %v305 = vld [vmem:[%s1 + $0xb4] sm:$0xf]
      %v306 = vld [vmem:[%s1 + $0xb8] sm:$0xf]
      %v307 = vld [vmem:[%s1 + $0xbc] sm:$0xf]
      %v308 = vld [vmem:[%s1 + $0xc0] sm:$0xf]
      %v309 = vld [vmem:[%s1 + $0xc4] sm:$0xf]
      %v310 = vld [vmem:[%s1 + $0xc8] sm:$0xf]
      %v311 = vld [vmem:[%s1 + $0xcc] sm:$0xf]
      %v312 = vld [vmem:[%s1 + $0xd0] sm:$0xf]
      %v313 = vld [vmem:[%s1 + $0xd4] sm:$0xf]
      %v314 = vld [vmem:[%s1 + $0xd8] sm:$0xf]
      %v315 = vld [vmem:[%s1 + $0xdc] sm:$0xf]
      %v316 = vld [vmem:[%s1 + $0xe0] sm:$0xf]
      %v317 = vld [vmem:[%s1 + $0xe4] sm:$0xf]
      %v318 = vld [vmem:[%s1 + $0xe8] sm:$0xf]
      %v319 = vld [vmem:[%s1 + $0xec] sm:$0xf]
      %v320 = vld [vmem:[%s1 + $0xf0] sm:$0xf]
      %v321 = vld [vmem:[%s1 + $0xf4] sm:$0xf]
      %v322 = vld [vmem:[%s1 + $0xf8] sm:$0xf]
      %v323 = vld [vmem:[%s1 + $0xfc] sm:$0xf]
      %v324 = vld [vmem:[%s2] sm:$0x1]
      %v326 = vlaneseq
      %v327 = vshrl.u32 %v326, 7
      %v328 = vsub.s32 0, %v327
      %v329 = vrot.slane %v324, %v328
      %v413 = vunpack.c.l.b16 %v178
      %v414 = vunpack.c.h.b16 %v178
      %v415 = vunpack.c.l.b16 %v179
      %v416 = vunpack.c.h.b16 %v179
      %v417 = vunpack.c.l.b16 %v180
      %v418 = vunpack.c.h.b16 %v180
      %v419 = vunpack.c.l.b16 %v181
      %v420 = vunpack.c.h.b16 %v181
      %v421 = vunpack.c.l.b16 %v182
      %v422 = vunpack.c.h.b16 %v182
      %v423 = vunpack.c.l.b16 %v183
      %v424 = vunpack.c.h.b16 %v183
      %v425 = vunpack.c.l.b16 %v184
      %v426 = vunpack.c.h.b16 %v184
      %v427 = vunpack.c.l.b16 %v185
      %v428 = vunpack.c.h.b16 %v185
      %v429 = vunpack.c.l.b16 %v186
      %v430 = vunpack.c.h.b16 %v186
      %v431 = vunpack.c.l.b16 %v187
      %v432 = vunpack.c.h.b16 %v187
      %v433 = vunpack.c.l.b16 %v188
      %v434 = vunpack.c.h.b16 %v188
      %v435 = vunpack.c.l.b16 %v189
      %v436 = vunpack.c.h.b16 %v189
      %v437 = vunpack.c.l.b16 %v190
      %v438 = vunpack.c.h.b16 %v190
      %v439 = vunpack.c.l.b16 %v191
      %v440 = vunpack.c.h.b16 %v191
      %v441 = vunpack.c.l.b16 %v192
      %v442 = vunpack.c.h.b16 %v192
      %v443 = vunpack.c.l.b16 %v193
      %v444 = vunpack.c.h.b16 %v193
      %v445 = vunpack.c.l.b16 %v194
      %v446 = vunpack.c.h.b16 %v194
      %v447 = vunpack.c.l.b16 %v195
      %v448 = vunpack.c.h.b16 %v195
      %v449 = vunpack.c.l.b16 %v196
      %v450 = vunpack.c.h.b16 %v196
      %v451 = vunpack.c.l.b16 %v197
      %v452 = vunpack.c.h.b16 %v197
      %v453 = vunpack.c.l.b16 %v198
      %v454 = vunpack.c.h.b16 %v198
      %v455 = vunpack.c.l.b16 %v199
      %v456 = vunpack.c.h.b16 %v199
      %v457 = vunpack.c.l.b16 %v200
      %v458 = vunpack.c.h.b16 %v200
      %v459 = vunpack.c.l.b16 %v201
      %v460 = vunpack.c.h.b16 %v201
      %v461 = vunpack.c.l.b16 %v202
      %v462 = vunpack.c.h.b16 %v202
      %v463 = vunpack.c.l.b16 %v203
      %v464 = vunpack.c.h.b16 %v203
      %v465 = vunpack.c.l.b16 %v204
      %v466 = vunpack.c.h.b16 %v204
      %v467 = vunpack.c.l.b16 %v205
      %v468 = vunpack.c.h.b16 %v205
      %v469 = vunpack.c.l.b16 %v206
      %v470 = vunpack.c.h.b16 %v206
      %v471 = vunpack.c.l.b16 %v207
      %v472 = vunpack.c.h.b16 %v207
      %v473 = vunpack.c.l.b16 %v208
      %v474 = vunpack.c.h.b16 %v208
      %v475 = vunpack.c.l.b16 %v209
      %v476 = vunpack.c.h.b16 %v209
      %v477 = vunpack.c.l.b16 %v210
      %v478 = vunpack.c.h.b16 %v210
      %v479 = vunpack.c.l.b16 %v211
      %v480 = vunpack.c.h.b16 %v211
      %v481 = vunpack.c.l.b16 %v212
      %v482 = vunpack.c.h.b16 %v212
      %v483 = vunpack.c.l.b16 %v213
      %v484 = vunpack.c.h.b16 %v213
      %v485 = vunpack.c.l.b16 %v214
      %v486 = vunpack.c.h.b16 %v214
      %v487 = vunpack.c.l.b16 %v215
      %v488 = vunpack.c.h.b16 %v215
      %v489 = vunpack.c.l.b16 %v216
      %v490 = vunpack.c.h.b16 %v216
      %v491 = vunpack.c.l.b16 %v217
      %v492 = vunpack.c.h.b16 %v217
      %v493 = vunpack.c.l.b16 %v218
      %v494 = vunpack.c.h.b16 %v218
      %v495 = vunpack.c.l.b16 %v219
      %v496 = vunpack.c.h.b16 %v219
      %v497 = vunpack.c.l.b16 %v220
      %v498 = vunpack.c.h.b16 %v220
      %v499 = vunpack.c.l.b16 %v221
      %v500 = vunpack.c.h.b16 %v221
      %v501 = vunpack.c.l.b16 %v222
      %v502 = vunpack.c.h.b16 %v222
      %v503 = vunpack.c.l.b16 %v223
      %v504 = vunpack.c.h.b16 %v223
      %v505 = vunpack.c.l.b16 %v224
      %v506 = vunpack.c.h.b16 %v224
      %v507 = vunpack.c.l.b16 %v225
      %v508 = vunpack.c.h.b16 %v225
      %v509 = vunpack.c.l.b16 %v226
      %v510 = vunpack.c.h.b16 %v226
      %v511 = vunpack.c.l.b16 %v227
      %v512 = vunpack.c.h.b16 %v227
      %v513 = vunpack.c.l.b16 %v228
      %v514 = vunpack.c.h.b16 %v228
      %v515 = vunpack.c.l.b16 %v229
      %v516 = vunpack.c.h.b16 %v229
      %v517 = vunpack.c.l.b16 %v230
      %v518 = vunpack.c.h.b16 %v230
      %v519 = vunpack.c.l.b16 %v231
      %v520 = vunpack.c.h.b16 %v231
      %v521 = vunpack.c.l.b16 %v232
      %v522 = vunpack.c.h.b16 %v232
      %v523 = vunpack.c.l.b16 %v233
      %v524 = vunpack.c.h.b16 %v233
      %v525 = vunpack.c.l.b16 %v234
      %v526 = vunpack.c.h.b16 %v234
      %v527 = vunpack.c.l.b16 %v235
      %v528 = vunpack.c.h.b16 %v235
      %v529 = vunpack.c.l.b16 %v236
      %v530 = vunpack.c.h.b16 %v236
      %v531 = vunpack.c.l.b16 %v237
      %v532 = vunpack.c.h.b16 %v237
      %v533 = vunpack.c.l.b16 %v238
      %v534 = vunpack.c.h.b16 %v238
      %v535 = vunpack.c.l.b16 %v239
      %v536 = vunpack.c.h.b16 %v239
      %v537 = vunpack.c.l.b16 %v240
      %v538 = vunpack.c.h.b16 %v240
      %v539 = vunpack.c.l.b16 %v241
      %v540 = vunpack.c.h.b16 %v241
      %v541 = vunpack.c.l.b16 %v242
      %v542 = vunpack.c.h.b16 %v242
      %v543 = vunpack.c.l.b16 %v243
      %v544 = vunpack.c.h.b16 %v243
      %v545 = vunpack.c.l.b16 %v244
      %v546 = vunpack.c.h.b16 %v244
      %v547 = vunpack.c.l.b16 %v245
      %v548 = vunpack.c.h.b16 %v245
      %v549 = vunpack.c.l.b16 %v246
      %v550 = vunpack.c.h.b16 %v246
      %v551 = vunpack.c.l.b16 %v247
      %v552 = vunpack.c.h.b16 %v247
      %v553 = vunpack.c.l.b16 %v248
      %v554 = vunpack.c.h.b16 %v248
      %v555 = vunpack.c.l.b16 %v249
      %v556 = vunpack.c.h.b16 %v249
      %v557 = vunpack.c.l.b16 %v250
      %v558 = vunpack.c.h.b16 %v250
      %v559 = vunpack.c.l.b16 %v251
      %v560 = vunpack.c.h.b16 %v251
      %v561 = vunpack.c.l.b16 %v252
      %v562 = vunpack.c.h.b16 %v252
      %v563 = vunpack.c.l.b16 %v253
      %v564 = vunpack.c.h.b16 %v253
      %v565 = vunpack.c.l.b16 %v254
      %v566 = vunpack.c.h.b16 %v254
      %v567 = vunpack.c.l.b16 %v255
      %v568 = vunpack.c.h.b16 %v255
      %v569 = vunpack.c.l.b16 %v256
      %v570 = vunpack.c.h.b16 %v256
      %v571 = vunpack.c.l.b16 %v257
      %v572 = vunpack.c.h.b16 %v257
      %v573 = vunpack.c.l.b16 %v258
      %v574 = vunpack.c.h.b16 %v258
      %v575 = vunpack.c.l.b16 %v259
      %v576 = vunpack.c.h.b16 %v259
      %v577 = vpack.c.b16 %v417, %v413
      %v578 = vpack.c.b16 %v418, %v414
      %v579 = vpack.c.b16 %v419, %v415
      %v580 = vpack.c.b16 %v420, %v416
      %v581 = vpack.c.b16 %v425, %v421
      %v582 = vpack.c.b16 %v426, %v422
      %v583 = vpack.c.b16 %v427, %v423
      %v584 = vpack.c.b16 %v428, %v424
      %v585 = vpack.c.b16 %v433, %v429
      %v586 = vpack.c.b16 %v434, %v430
      %v587 = vpack.c.b16 %v435, %v431
      %v588 = vpack.c.b16 %v436, %v432
      %v589 = vpack.c.b16 %v441, %v437
      %v590 = vpack.c.b16 %v442, %v438
      %v591 = vpack.c.b16 %v443, %v439
      %v592 = vpack.c.b16 %v444, %v440
      %v593 = vpack.c.b16 %v449, %v445
      %v594 = vpack.c.b16 %v450, %v446
      %v595 = vpack.c.b16 %v451, %v447
      %v596 = vpack.c.b16 %v452, %v448
      %v597 = vpack.c.b16 %v457, %v453
      %v598 = vpack.c.b16 %v458, %v454
      %v599 = vpack.c.b16 %v459, %v455
      %v600 = vpack.c.b16 %v460, %v456
      %v601 = vpack.c.b16 %v465, %v461
      %v602 = vpack.c.b16 %v466, %v462
      %v603 = vpack.c.b16 %v467, %v463
      %v604 = vpack.c.b16 %v468, %v464
      %v605 = vpack.c.b16 %v473, %v469
      %v606 = vpack.c.b16 %v474, %v470
      %v607 = vpack.c.b16 %v475, %v471
      %v608 = vpack.c.b16 %v476, %v472
      %v609 = vpack.c.b16 %v481, %v477
      %v610 = vpack.c.b16 %v482, %v478
      %v611 = vpack.c.b16 %v483, %v479
      %v612 = vpack.c.b16 %v484, %v480
      %v613 = vpack.c.b16 %v489, %v485
      %v614 = vpack.c.b16 %v490, %v486
      %v615 = vpack.c.b16 %v491, %v487
      %v616 = vpack.c.b16 %v492, %v488
      %v617 = vpack.c.b16 %v497, %v493
      %v618 = vpack.c.b16 %v498, %v494
      %v619 = vpack.c.b16 %v499, %v495
      %v620 = vpack.c.b16 %v500, %v496
      %v621 = vpack.c.b16 %v505, %v501
      %v622 = vpack.c.b16 %v506, %v502
      %v623 = vpack.c.b16 %v507, %v503
      %v624 = vpack.c.b16 %v508, %v504
      %v625 = vpack.c.b16 %v513, %v509
      %v626 = vpack.c.b16 %v514, %v510
      %v627 = vpack.c.b16 %v515, %v511
      %v628 = vpack.c.b16 %v516, %v512
      %v629 = vpack.c.b16 %v521, %v517
      %v630 = vpack.c.b16 %v522, %v518
      %v631 = vpack.c.b16 %v523, %v519
      %v632 = vpack.c.b16 %v524, %v520
      %v633 = vpack.c.b16 %v529, %v525
      %v634 = vpack.c.b16 %v530, %v526
      %v635 = vpack.c.b16 %v531, %v527
      %v636 = vpack.c.b16 %v532, %v528
      %v637 = vpack.c.b16 %v537, %v533
      %v638 = vpack.c.b16 %v538, %v534
      %v639 = vpack.c.b16 %v539, %v535
      %v640 = vpack.c.b16 %v540, %v536
      %v641 = vpack.c.b16 %v545, %v541
      %v642 = vpack.c.b16 %v546, %v542
      %v643 = vpack.c.b16 %v547, %v543
      %v644 = vpack.c.b16 %v548, %v544
      %v645 = vpack.c.b16 %v553, %v549
      %v646 = vpack.c.b16 %v554, %v550
      %v647 = vpack.c.b16 %v555, %v551
      %v648 = vpack.c.b16 %v556, %v552
      %v649 = vpack.c.b16 %v561, %v557
      %v650 = vpack.c.b16 %v562, %v558
      %v651 = vpack.c.b16 %v563, %v559
      %v652 = vpack.c.b16 %v564, %v560
      %v653 = vpack.c.b16 %v569, %v565
      %v654 = vpack.c.b16 %v570, %v566
      %v655 = vpack.c.b16 %v571, %v567
      %v656 = vpack.c.b16 %v572, %v568
      %v657 = vpack.c.b16 %v573, %v573
      %v658 = vpack.c.b16 %v574, %v574
      %v659 = vpack.c.b16 %v575, %v575
      %v660 = vpack.c.b16 %v576, %v576
      %v809 = vunpack.c.l.b16 %v260
      %v810 = vunpack.c.l.b16 %v261
      %v811 = vunpack.c.l.b16 %v262
      %v812 = vunpack.c.l.b16 %v263
      %v813 = vunpack.c.l.b16 %v264
      %v814 = vunpack.c.l.b16 %v265
      %v815 = vunpack.c.l.b16 %v266
      %v816 = vunpack.c.l.b16 %v267
      %v817 = vunpack.c.l.b16 %v268
      %v818 = vunpack.c.l.b16 %v269
      %v819 = vunpack.c.l.b16 %v270
      %v820 = vunpack.c.l.b16 %v271
      %v821 = vunpack.c.l.b16 %v272
      %v822 = vunpack.c.l.b16 %v273
      %v823 = vunpack.c.l.b16 %v274
      %v824 = vunpack.c.l.b16 %v275
      %v825 = vunpack.c.l.b16 %v276
      %v826 = vunpack.c.l.b16 %v277
      %v827 = vunpack.c.l.b16 %v278
      %v828 = vunpack.c.l.b16 %v279
      %v829 = vunpack.c.l.b16 %v280
      %v830 = vunpack.c.l.b16 %v281
      %v831 = vunpack.c.l.b16 %v282
      %v832 = vunpack.c.l.b16 %v283
      %v833 = vunpack.c.l.b16 %v284
      %v834 = vunpack.c.l.b16 %v285
      %v835 = vunpack.c.l.b16 %v286
      %v836 = vunpack.c.l.b16 %v287
      %v837 = vunpack.c.l.b16 %v288
      %v838 = vunpack.c.l.b16 %v289
      %v839 = vunpack.c.l.b16 %v290
      %v840 = vunpack.c.l.b16 %v291
      %v841 = vunpack.c.l.b16 %v292
      %v842 = vunpack.c.l.b16 %v293
      %v843 = vunpack.c.l.b16 %v294
      %v844 = vunpack.c.l.b16 %v295
      %v845 = vunpack.c.l.b16 %v296
      %v846 = vunpack.c.l.b16 %v297
      %v847 = vunpack.c.l.b16 %v298
      %v848 = vunpack.c.l.b16 %v299
      %v849 = vunpack.c.l.b16 %v300
      %v850 = vunpack.c.l.b16 %v301
      %v851 = vunpack.c.l.b16 %v302
      %v852 = vunpack.c.l.b16 %v303
      %v853 = vunpack.c.l.b16 %v304
      %v854 = vunpack.c.l.b16 %v305
      %v855 = vunpack.c.l.b16 %v306
      %v856 = vunpack.c.l.b16 %v307
      %v857 = vunpack.c.l.b16 %v308
      %v858 = vunpack.c.l.b16 %v309
      %v859 = vunpack.c.l.b16 %v310
      %v860 = vunpack.c.l.b16 %v311
      %v861 = vunpack.c.l.b16 %v312
      %v862 = vunpack.c.l.b16 %v313
      %v863 = vunpack.c.l.b16 %v314
      %v864 = vunpack.c.l.b16 %v315
      %v865 = vunpack.c.l.b16 %v316
      %v866 = vunpack.c.l.b16 %v317
      %v867 = vunpack.c.l.b16 %v318
      %v868 = vunpack.c.l.b16 %v319
      %v869 = vunpack.c.l.b16 %v320
      %v870 = vunpack.c.l.b16 %v321
      %v871 = vunpack.c.l.b16 %v322
      %v872 = vunpack.c.l.b16 %v323
      %v873 = vpack.c.b16 %v810, %v809
      %v874 = vpack.c.b16 %v812, %v811
      %v875 = vpack.c.b16 %v814, %v813
      %v876 = vpack.c.b16 %v816, %v815
      %v877 = vpack.c.b16 %v818, %v817
      %v878 = vpack.c.b16 %v820, %v819
      %v879 = vpack.c.b16 %v822, %v821
      %v880 = vpack.c.b16 %v824, %v823
      %v881 = vpack.c.b16 %v826, %v825
      %v882 = vpack.c.b16 %v828, %v827
      %v883 = vpack.c.b16 %v830, %v829
      %v884 = vpack.c.b16 %v832, %v831
      %v885 = vpack.c.b16 %v834, %v833
      %v886 = vpack.c.b16 %v836, %v835
      %v887 = vpack.c.b16 %v838, %v837
      %v888 = vpack.c.b16 %v840, %v839
      %v889 = vpack.c.b16 %v842, %v841
      %v890 = vpack.c.b16 %v844, %v843
      %v891 = vpack.c.b16 %v846, %v845
      %v892 = vpack.c.b16 %v848, %v847
      %v893 = vpack.c.b16 %v850, %v849
      %v894 = vpack.c.b16 %v852, %v851
      %v895 = vpack.c.b16 %v854, %v853
      %v896 = vpack.c.b16 %v856, %v855
      %v897 = vpack.c.b16 %v858, %v857
      %v898 = vpack.c.b16 %v860, %v859
      %v899 = vpack.c.b16 %v862, %v861
      %v900 = vpack.c.b16 %v864, %v863
      %v901 = vpack.c.b16 %v866, %v865
      %v902 = vpack.c.b16 %v868, %v867
      %v903 = vpack.c.b16 %v870, %v869
      %v904 = vpack.c.b16 %v872, %v871
      %937 = vmatprep.subr.bf16.mxu0 0
      %938 = vmatpush1.bf16.msra.mxu0 %v873
      %939 = vmatprep.subr.bf16.mxu0 0
      %940 = vmatpush1.bf16.msra.mxu0 %v874
      %941 = vmatprep.subr.bf16.mxu0 0
      %942 = vmatpush1.bf16.msra.mxu0 %v875
      %943 = vmatprep.subr.bf16.mxu0 0
      %944 = vmatpush1.bf16.msra.mxu0 %v876
      %945 = vmatprep.subr.bf16.mxu0 0
      %946 = vmatpush1.bf16.msra.mxu0 %v877
      %947 = vmatprep.subr.bf16.mxu0 0
      %948 = vmatpush1.bf16.msra.mxu0 %v878
      %949 = vmatprep.subr.bf16.mxu0 0
      %950 = vmatpush1.bf16.msra.mxu0 %v879
      %951 = vmatprep.subr.bf16.mxu0 0
      %952 = vmatpush1.bf16.msra.mxu0 %v880
      %953 = vmatprep.subr.bf16.mxu0 0
      %954 = vmatpush1.bf16.msra.mxu0 %v881
      %955 = vmatprep.subr.bf16.mxu0 0
      %956 = vmatpush1.bf16.msra.mxu0 %v882
      %957 = vmatprep.subr.bf16.mxu0 0
      %958 = vmatpush1.bf16.msra.mxu0 %v883
      %959 = vmatprep.subr.bf16.mxu0 0
      %960 = vmatpush1.bf16.msra.mxu0 %v884
      %961 = vmatprep.subr.bf16.mxu0 0
      %962 = vmatpush1.bf16.msra.mxu0 %v885
      %963 = vmatprep.subr.bf16.mxu0 0
      %964 = vmatpush1.bf16.msra.mxu0 %v886
      %965 = vmatprep.subr.bf16.mxu0 0
      %966 = vmatpush1.bf16.msra.mxu0 %v887
      %967 = vmatprep.subr.bf16.mxu0 0
      %968 = vmatpush1.bf16.msra.mxu0 %v888
      %969 = vmatprep.mubr.bf16.mxu0 %v578
      %970 = vmatmul.mubr.bf16.gmra.mrb[0].mxu0 %v577
      %v971 = vpop.f32.mrb[0].mxu0
      %v972 = vadd.f32 %v329, %v971
      %v973 = vpop.f32.mrb[0].mxu0
      %v974 = vpop.f32.mrb[0].mxu0
      %v975 = vadd.f32 %v329, %v974
      %v976 = vpop.f32.mrb[0].mxu0
      %977 = vmatprep.mubr.bf16.mxu0 %v582
      %978 = vmatmul.mubr.bf16.gmra.mrb[0].mxu0 %v581
      %v979 = vpop.f32.mrb[0].mxu0
      %v980 = vadd.f32 %v329, %v979
      %v981 = vpop.f32.mrb[0].mxu0
      %v982 = vpop.f32.mrb[0].mxu0
      %v983 = vadd.f32 %v329, %v982
      %v984 = vpop.f32.mrb[0].mxu0
      %985 = vmatprep.mubr.bf16.mxu0 %v586
      %986 = vmatmul.mubr.bf16.gmra.mrb[0].mxu0 %v585
      %v987 = vpop.f32.mrb[0].mxu0
      %v988 = vadd.f32 %v329, %v987
      %v989 = vpop.f32.mrb[0].mxu0
      %v990 = vpop.f32.mrb[0].mxu0
      %v991 = vadd.f32 %v329, %v990
      %v992 = vpop.f32.mrb[0].mxu0
      %993 = vmatprep.mubr.bf16.mxu0 %v590
      %994 = vmatmul.mubr.bf16.gmra.mrb[0].mxu0 %v589
      %v995 = vpop.f32.mrb[0].mxu0
      %v996 = vadd.f32 %v329, %v995
      %v997 = vpop.f32.mrb[0].mxu0
      %v998 = vpop.f32.mrb[0].mxu0
      %v999 = vadd.f32 %v329, %v998
      %v1000 = vpop.f32.mrb[0].mxu0
      %1001 = vmatprep.mubr.bf16.mxu0 %v594
      %1002 = vmatmul.mubr.bf16.gmra.mrb[0].mxu0 %v593
      %v1003 = vpop.f32.mrb[0].mxu0
      %v1004 = vadd.f32 %v329, %v1003
      %v1005 = vpop.f32.mrb[0].mxu0
      %v1006 = vpop.f32.mrb[0].mxu0
      %v1007 = vadd.f32 %v329, %v1006
      %v1008 = vpop.f32.mrb[0].mxu0
      %1009 = vmatprep.mubr.bf16.mxu0 %v598
      %1010 = vmatmul.mubr.bf16.gmra.mrb[0].mxu0 %v597
      %v1011 = vpop.f32.mrb[0].mxu0
      %v1012 = vadd.f32 %v329, %v1011
      %v1013 = vpop.f32.mrb[0].mxu0
      %v1014 = vpop.f32.mrb[0].mxu0
      %v1015 = vadd.f32 %v329, %v1014
      %v1016 = vpop.f32.mrb[0].mxu0
      %1017 = vmatprep.mubr.bf16.mxu0 %v602
      %1018 = vmatmul.mubr.bf16.gmra.mrb[0].mxu0 %v601
      %v1019 = vpop.f32.mrb[0].mxu0
      %v1020 = vadd.f32 %v329, %v1019
      %v1021 = vpop.f32.mrb[0].mxu0
      %v1022 = vpop.f32.mrb[0].mxu0
      %v1023 = vadd.f32 %v329, %v1022
      %v1024 = vpop.f32.mrb[0].mxu0
      %1025 = vmatprep.mubr.bf16.mxu0 %v606
      %1026 = vmatmul.mubr.bf16.gmra.mrb[0].mxu0 %v605
      %v1027 = vpop.f32.mrb[0].mxu0
      %v1028 = vadd.f32 %v329, %v1027
      %v1029 = vpop.f32.mrb[0].mxu0
      %v1030 = vpop.f32.mrb[0].mxu0
      %v1031 = vadd.f32 %v329, %v1030
      %v1032 = vpop.f32.mrb[0].mxu0
      %1033 = vmatprep.mubr.bf16.mxu0 %v610
      %1034 = vmatmul.mubr.bf16.gmra.mrb[0].mxu0 %v609
      %v1035 = vpop.f32.mrb[0].mxu0
      %v1036 = vadd.f32 %v329, %v1035
      %v1037 = vpop.f32.mrb[0].mxu0
      %v1038 = vpop.f32.mrb[0].mxu0
      %v1039 = vadd.f32 %v329, %v1038
      %v1040 = vpop.f32.mrb[0].mxu0
      %1041 = vmatprep.mubr.bf16.mxu0 %v614
      %1042 = vmatmul.mubr.bf16.gmra.mrb[0].mxu0 %v613
      %v1043 = vpop.f32.mrb[0].mxu0
      %v1044 = vadd.f32 %v329, %v1043
      %v1045 = vpop.f32.mrb[0].mxu0
      %v1046 = vpop.f32.mrb[0].mxu0
      %v1047 = vadd.f32 %v329, %v1046
      %v1048 = vpop.f32.mrb[0].mxu0
      %1049 = vmatprep.mubr.bf16.mxu0 %v618
      %1050 = vmatmul.mubr.bf16.gmra.mrb[0].mxu0 %v617
      %v1051 = vpop.f32.mrb[0].mxu0
      %v1052 = vadd.f32 %v329, %v1051
      %v1053 = vpop.f32.mrb[0].mxu0
      %v1054 = vpop.f32.mrb[0].mxu0
      %v1055 = vadd.f32 %v329, %v1054
      %v1056 = vpop.f32.mrb[0].mxu0
      %1057 = vmatprep.mubr.bf16.mxu0 %v622
      %1058 = vmatmul.mubr.bf16.gmra.mrb[0].mxu0 %v621
      %v1059 = vpop.f32.mrb[0].mxu0
      %v1060 = vadd.f32 %v329, %v1059
      %v1061 = vpop.f32.mrb[0].mxu0
      %v1062 = vpop.f32.mrb[0].mxu0
      %v1063 = vadd.f32 %v329, %v1062
      %v1064 = vpop.f32.mrb[0].mxu0
      %1065 = vmatprep.mubr.bf16.mxu0 %v626
      %1066 = vmatmul.mubr.bf16.gmra.mrb[0].mxu0 %v625
      %v1067 = vpop.f32.mrb[0].mxu0
      %v1068 = vadd.f32 %v329, %v1067
      %v1069 = vpop.f32.mrb[0].mxu0
      %v1070 = vpop.f32.mrb[0].mxu0
      %v1071 = vadd.f32 %v329, %v1070
      %v1072 = vpop.f32.mrb[0].mxu0
      %1073 = vmatprep.mubr.bf16.mxu0 %v630
      %1074 = vmatmul.mubr.bf16.gmra.mrb[0].mxu0 %v629
      %v1075 = vpop.f32.mrb[0].mxu0
      %v1076 = vadd.f32 %v329, %v1075
      %v1077 = vpop.f32.mrb[0].mxu0
      %v1078 = vpop.f32.mrb[0].mxu0
      %v1079 = vadd.f32 %v329, %v1078
      %v1080 = vpop.f32.mrb[0].mxu0
      %1081 = vmatprep.mubr.bf16.mxu0 %v634
      %1082 = vmatmul.mubr.bf16.gmra.mrb[0].mxu0 %v633
      %v1083 = vpop.f32.mrb[0].mxu0
      %v1084 = vadd.f32 %v329, %v1083
      %v1085 = vpop.f32.mrb[0].mxu0
      %v1086 = vpop.f32.mrb[0].mxu0
      %v1087 = vadd.f32 %v329, %v1086
      %v1088 = vpop.f32.mrb[0].mxu0
      %1089 = vmatprep.mubr.bf16.mxu0 %v638
      %1090 = vmatmul.mubr.bf16.gmra.mrb[0].mxu0 %v637
      %v1091 = vpop.f32.mrb[0].mxu0
      %v1092 = vadd.f32 %v329, %v1091
      %v1093 = vpop.f32.mrb[0].mxu0
      %v1094 = vpop.f32.mrb[0].mxu0
      %v1095 = vadd.f32 %v329, %v1094
      %v1096 = vpop.f32.mrb[0].mxu0
      %1097 = vmatprep.mubr.bf16.mxu0 %v642
      %1098 = vmatmul.mubr.bf16.gmra.mrb[0].mxu0 %v641
      %v1099 = vpop.f32.mrb[0].mxu0
      %v1100 = vadd.f32 %v329, %v1099
      %v1101 = vpop.f32.mrb[0].mxu0
      %v1102 = vpop.f32.mrb[0].mxu0
      %v1103 = vadd.f32 %v329, %v1102
      %v1104 = vpop.f32.mrb[0].mxu0
      %1105 = vmatprep.mubr.bf16.mxu0 %v646
      %1106 = vmatmul.mubr.bf16.gmra.mrb[0].mxu0 %v645
      %v1107 = vpop.f32.mrb[0].mxu0
      %v1108 = vadd.f32 %v329, %v1107
      %v1109 = vpop.f32.mrb[0].mxu0
      %v1110 = vpop.f32.mrb[0].mxu0
      %v1111 = vadd.f32 %v329, %v1110
      %v1112 = vpop.f32.mrb[0].mxu0
      %1113 = vmatprep.mubr.bf16.mxu0 %v650
      %1114 = vmatmul.mubr.bf16.gmra.mrb[0].mxu0 %v649
      %v1115 = vpop.f32.mrb[0].mxu0
      %v1116 = vadd.f32 %v329, %v1115
      %v1117 = vpop.f32.mrb[0].mxu0
      %v1118 = vpop.f32.mrb[0].mxu0
      %v1119 = vadd.f32 %v329, %v1118
      %v1120 = vpop.f32.mrb[0].mxu0
      %1121 = vmatprep.mubr.bf16.mxu0 %v654
      %1122 = vmatmul.mubr.bf16.gmra.mrb[0].mxu0 %v653
      %v1123 = vpop.f32.mrb[0].mxu0
      %v1124 = vadd.f32 %v329, %v1123
      %v1125 = vpop.f32.mrb[0].mxu0
      %v1126 = vpop.f32.mrb[0].mxu0
      %v1127 = vadd.f32 %v329, %v1126
      %v1128 = vpop.f32.mrb[0].mxu0
      %1129 = vmatprep.mubr.bf16.mxu0 %v658
      %1130 = vmatmul.mubr.bf16.gmra.mrb[0].mxu0 %v657
      %v1131 = vpop.f32.mrb[0].mxu0
      %v1132 = vadd.f32 %v329, %v1131
      %v1133 = vpop.f32.mrb[0].mxu0
      %v1134 = vpop.f32.mrb[0].mxu0
      %v1135 = vpop.f32.mrb[0].mxu0
      %1136 = vdwg.mxu0
      %1137 = vmatprep.subr.bf16.mxu0 0
      %1138 = vmatpush1.bf16.msra.mxu0 %v889
      %1139 = vmatprep.subr.bf16.mxu0 0
      %1140 = vmatpush1.bf16.msra.mxu0 %v890
      %1141 = vmatprep.subr.bf16.mxu0 0
      %1142 = vmatpush1.bf16.msra.mxu0 %v891
      %1143 = vmatprep.subr.bf16.mxu0 0
      %1144 = vmatpush1.bf16.msra.mxu0 %v892
      %1145 = vmatprep.subr.bf16.mxu0 0
      %1146 = vmatpush1.bf16.msra.mxu0 %v893
      %1147 = vmatprep.subr.bf16.mxu0 0
      %1148 = vmatpush1.bf16.msra.mxu0 %v894
      %1149 = vmatprep.subr.bf16.mxu0 0
      %1150 = vmatpush1.bf16.msra.mxu0 %v895
      %1151 = vmatprep.subr.bf16.mxu0 0
      %1152 = vmatpush1.bf16.msra.mxu0 %v896
      %1153 = vmatprep.subr.bf16.mxu0 0
      %1154 = vmatpush1.bf16.msra.mxu0 %v897
      %1155 = vmatprep.subr.bf16.mxu0 0
      %1156 = vmatpush1.bf16.msra.mxu0 %v898
      %1157 = vmatprep.subr.bf16.mxu0 0
      %1158 = vmatpush1.bf16.msra.mxu0 %v899
      %1159 = vmatprep.subr.bf16.mxu0 0
      %1160 = vmatpush1.bf16.msra.mxu0 %v900
      %1161 = vmatprep.subr.bf16.mxu0 0
      %1162 = vmatpush1.bf16.msra.mxu0 %v901
      %1163 = vmatprep.subr.bf16.mxu0 0
      %1164 = vmatpush1.bf16.msra.mxu0 %v902
      %1165 = vmatprep.subr.bf16.mxu0 0
      %1166 = vmatpush1.bf16.msra.mxu0 %v903
      %1167 = vmatprep.subr.bf16.mxu0 0
      %1168 = vmatpush1.bf16.msra.mxu0 %v904
      %1169 = vmatprep.mubr.bf16.mxu0 %v580
      %1170 = vmatmul.mubr.bf16.gmra.mrb[0].mxu0 %v579
      %v1171 = vpop.f32.mrb[0].mxu0
      %v1172 = vadd.f32 %v972, %v1171
      %v1173 = vpop.f32.mrb[0].mxu0
      %v1174 = vpop.f32.mrb[0].mxu0
      %v1175 = vadd.f32 %v975, %v1174
      %v1176 = vpop.f32.mrb[0].mxu0
      %1177 = vmatprep.mubr.bf16.mxu0 %v584
      %1178 = vmatmul.mubr.bf16.gmra.mrb[0].mxu0 %v583
      %v1179 = vpop.f32.mrb[0].mxu0
      %v1180 = vadd.f32 %v980, %v1179
      %v1181 = vpop.f32.mrb[0].mxu0
      %v1182 = vpop.f32.mrb[0].mxu0
      %v1183 = vadd.f32 %v983, %v1182
      %v1184 = vpop.f32.mrb[0].mxu0
      %1185 = vmatprep.mubr.bf16.mxu0 %v588
      %1186 = vmatmul.mubr.bf16.gmra.mrb[0].mxu0 %v587
      %v1187 = vpop.f32.mrb[0].mxu0
      %v1188 = vadd.f32 %v988, %v1187
      %v1189 = vpop.f32.mrb[0].mxu0
      %v1190 = vpop.f32.mrb[0].mxu0
      %v1191 = vadd.f32 %v991, %v1190
      %v1192 = vpop.f32.mrb[0].mxu0
      %1193 = vmatprep.mubr.bf16.mxu0 %v592
      %1194 = vmatmul.mubr.bf16.gmra.mrb[0].mxu0 %v591
      %v1195 = vpop.f32.mrb[0].mxu0
      %v1196 = vadd.f32 %v996, %v1195
      %v1197 = vpop.f32.mrb[0].mxu0
      %v1198 = vpop.f32.mrb[0].mxu0
      %v1199 = vadd.f32 %v999, %v1198
      %v1200 = vpop.f32.mrb[0].mxu0
      %1201 = vmatprep.mubr.bf16.mxu0 %v596
      %1202 = vmatmul.mubr.bf16.gmra.mrb[0].mxu0 %v595
      %v1203 = vpop.f32.mrb[0].mxu0
      %v1204 = vadd.f32 %v1004, %v1203
      %v1205 = vpop.f32.mrb[0].mxu0
      %v1206 = vpop.f32.mrb[0].mxu0
      %v1207 = vadd.f32 %v1007, %v1206
      %v1208 = vpop.f32.mrb[0].mxu0
      %1209 = vmatprep.mubr.bf16.mxu0 %v600
      %1210 = vmatmul.mubr.bf16.gmra.mrb[0].mxu0 %v599
      %v1211 = vpop.f32.mrb[0].mxu0
      %v1212 = vadd.f32 %v1012, %v1211
      %v1213 = vpop.f32.mrb[0].mxu0
      %v1214 = vpop.f32.mrb[0].mxu0
      %v1215 = vadd.f32 %v1015, %v1214
      %v1216 = vpop.f32.mrb[0].mxu0
      %1217 = vmatprep.mubr.bf16.mxu0 %v604
      %1218 = vmatmul.mubr.bf16.gmra.mrb[0].mxu0 %v603
      %v1219 = vpop.f32.mrb[0].mxu0
      %v1220 = vadd.f32 %v1020, %v1219
      %v1221 = vpop.f32.mrb[0].mxu0
      %v1222 = vpop.f32.mrb[0].mxu0
      %v1223 = vadd.f32 %v1023, %v1222
      %v1224 = vpop.f32.mrb[0].mxu0
      %1225 = vmatprep.mubr.bf16.mxu0 %v608
      %1226 = vmatmul.mubr.bf16.gmra.mrb[0].mxu0 %v607
      %v1227 = vpop.f32.mrb[0].mxu0
      %v1228 = vadd.f32 %v1028, %v1227
      %v1229 = vpop.f32.mrb[0].mxu0
      %v1230 = vpop.f32.mrb[0].mxu0
      %v1231 = vadd.f32 %v1031, %v1230
      %v1232 = vpop.f32.mrb[0].mxu0
      %1233 = vmatprep.mubr.bf16.mxu0 %v612
      %1234 = vmatmul.mubr.bf16.gmra.mrb[0].mxu0 %v611
      %v1235 = vpop.f32.mrb[0].mxu0
      %v1236 = vadd.f32 %v1036, %v1235
      %v1237 = vpop.f32.mrb[0].mxu0
      %v1238 = vpop.f32.mrb[0].mxu0
      %v1239 = vadd.f32 %v1039, %v1238
      %v1240 = vpop.f32.mrb[0].mxu0
      %1241 = vmatprep.mubr.bf16.mxu0 %v616
      %1242 = vmatmul.mubr.bf16.gmra.mrb[0].mxu0 %v615
      %v1243 = vpop.f32.mrb[0].mxu0
      %v1244 = vadd.f32 %v1044, %v1243
      %v1245 = vpop.f32.mrb[0].mxu0
      %v1246 = vpop.f32.mrb[0].mxu0
      %v1247 = vadd.f32 %v1047, %v1246
      %v1248 = vpop.f32.mrb[0].mxu0
      %1249 = vmatprep.mubr.bf16.mxu0 %v620
      %1250 = vmatmul.mubr.bf16.gmra.mrb[0].mxu0 %v619
      %v1251 = vpop.f32.mrb[0].mxu0
      %v1252 = vadd.f32 %v1052, %v1251
      %v1253 = vpop.f32.mrb[0].mxu0
      %v1254 = vpop.f32.mrb[0].mxu0
      %v1255 = vadd.f32 %v1055, %v1254
      %v1256 = vpop.f32.mrb[0].mxu0
      %1257 = vmatprep.mubr.bf16.mxu0 %v624
      %1258 = vmatmul.mubr.bf16.gmra.mrb[0].mxu0 %v623
      %v1259 = vpop.f32.mrb[0].mxu0
      %v1260 = vadd.f32 %v1060, %v1259
      %v1261 = vpop.f32.mrb[0].mxu0
      %v1262 = vpop.f32.mrb[0].mxu0
      %v1263 = vadd.f32 %v1063, %v1262
      %v1264 = vpop.f32.mrb[0].mxu0
      %1265 = vmatprep.mubr.bf16.mxu0 %v628
      %1266 = vmatmul.mubr.bf16.gmra.mrb[0].mxu0 %v627
      %v1267 = vpop.f32.mrb[0].mxu0
      %v1268 = vadd.f32 %v1068, %v1267
      %v1269 = vpop.f32.mrb[0].mxu0
      %v1270 = vpop.f32.mrb[0].mxu0
      %v1271 = vadd.f32 %v1071, %v1270
      %v1272 = vpop.f32.mrb[0].mxu0
      %1273 = vmatprep.mubr.bf16.mxu0 %v632
      %1274 = vmatmul.mubr.bf16.gmra.mrb[0].mxu0 %v631
      %v1275 = vpop.f32.mrb[0].mxu0
      %v1276 = vadd.f32 %v1076, %v1275
      %v1277 = vpop.f32.mrb[0].mxu0
      %v1278 = vpop.f32.mrb[0].mxu0
      %v1279 = vadd.f32 %v1079, %v1278
      %v1280 = vpop.f32.mrb[0].mxu0
      %1281 = vmatprep.mubr.bf16.mxu0 %v636
      %1282 = vmatmul.mubr.bf16.gmra.mrb[0].mxu0 %v635
      %v1283 = vpop.f32.mrb[0].mxu0
      %v1284 = vadd.f32 %v1084, %v1283
      %v1285 = vpop.f32.mrb[0].mxu0
      %v1286 = vpop.f32.mrb[0].mxu0
      %v1287 = vadd.f32 %v1087, %v1286
      %v1288 = vpop.f32.mrb[0].mxu0
      %1289 = vmatprep.mubr.bf16.mxu0 %v640
      %1290 = vmatmul.mubr.bf16.gmra.mrb[0].mxu0 %v639
      %v1291 = vpop.f32.mrb[0].mxu0
      %v1292 = vadd.f32 %v1092, %v1291
      %v1293 = vpop.f32.mrb[0].mxu0
      %v1294 = vpop.f32.mrb[0].mxu0
      %v1295 = vadd.f32 %v1095, %v1294
      %v1296 = vpop.f32.mrb[0].mxu0
      %1297 = vmatprep.mubr.bf16.mxu0 %v644
      %1298 = vmatmul.mubr.bf16.gmra.mrb[0].mxu0 %v643
      %v1299 = vpop.f32.mrb[0].mxu0
      %v1300 = vadd.f32 %v1100, %v1299
      %v1301 = vpop.f32.mrb[0].mxu0
      %v1302 = vpop.f32.mrb[0].mxu0
      %v1303 = vadd.f32 %v1103, %v1302
      %v1304 = vpop.f32.mrb[0].mxu0
      %1305 = vmatprep.mubr.bf16.mxu0 %v648
      %1306 = vmatmul.mubr.bf16.gmra.mrb[0].mxu0 %v647
      %v1307 = vpop.f32.mrb[0].mxu0
      %v1308 = vadd.f32 %v1108, %v1307
      %v1309 = vpop.f32.mrb[0].mxu0
      %v1310 = vpop.f32.mrb[0].mxu0
      %v1311 = vadd.f32 %v1111, %v1310
      %v1312 = vpop.f32.mrb[0].mxu0
      %1313 = vmatprep.mubr.bf16.mxu0 %v652
      %1314 = vmatmul.mubr.bf16.gmra.mrb[0].mxu0 %v651
      %v1315 = vpop.f32.mrb[0].mxu0
      %v1316 = vadd.f32 %v1116, %v1315
      %v1317 = vpop.f32.mrb[0].mxu0
      %v1318 = vpop.f32.mrb[0].mxu0
      %v1319 = vadd.f32 %v1119, %v1318
      %v1320 = vpop.f32.mrb[0].mxu0
      %1321 = vmatprep.mubr.bf16.mxu0 %v656
      %1322 = vmatmul.mubr.bf16.gmra.mrb[0].mxu0 %v655
      %v1323 = vpop.f32.mrb[0].mxu0
      %v1324 = vadd.f32 %v1124, %v1323
      %v1325 = vpop.f32.mrb[0].mxu0
      %v1326 = vpop.f32.mrb[0].mxu0
      %v1327 = vadd.f32 %v1127, %v1326
      %v1328 = vpop.f32.mrb[0].mxu0
      %1329 = vmatprep.mubr.bf16.mxu0 %v660
      %1330 = vmatmul.mubr.bf16.gmra.mrb[0].mxu0 %v659
      %v1331 = vpop.f32.mrb[0].mxu0
      %v1332 = vadd.f32 %v1132, %v1331
      %v1333 = vpop.f32.mrb[0].mxu0
      %v1334 = vpop.f32.mrb[0].mxu0
      %v1335 = vpop.f32.mrb[0].mxu0
      %1336 = vdwg.mxu0
      %v1337 = vmax.f32 %v1172, 0.0
      %v1338 = vmax.f32 %v1175, 0.0
      %v1339 = vmax.f32 %v1180, 0.0
      %v1340 = vmax.f32 %v1183, 0.0
      %v1341 = vmax.f32 %v1188, 0.0
      %v1342 = vmax.f32 %v1191, 0.0
      %v1343 = vmax.f32 %v1196, 0.0
      %v1344 = vmax.f32 %v1199, 0.0
      %v1345 = vmax.f32 %v1204, 0.0
      %v1346 = vmax.f32 %v1207, 0.0
      %v1347 = vmax.f32 %v1212, 0.0
      %v1348 = vmax.f32 %v1215, 0.0
      %v1349 = vmax.f32 %v1220, 0.0
      %v1350 = vmax.f32 %v1223, 0.0
      %v1351 = vmax.f32 %v1228, 0.0
      %v1352 = vmax.f32 %v1231, 0.0
      %v1353 = vmax.f32 %v1236, 0.0
      %v1354 = vmax.f32 %v1239, 0.0
      %v1355 = vmax.f32 %v1244, 0.0
      %v1356 = vmax.f32 %v1247, 0.0
      %v1357 = vmax.f32 %v1252, 0.0
      %v1358 = vmax.f32 %v1255, 0.0
      %v1359 = vmax.f32 %v1260, 0.0
      %v1360 = vmax.f32 %v1263, 0.0
      %v1361 = vmax.f32 %v1268, 0.0
      %v1362 = vmax.f32 %v1271, 0.0
      %v1363 = vmax.f32 %v1276, 0.0
      %v1364 = vmax.f32 %v1279, 0.0
      %v1365 = vmax.f32 %v1284, 0.0
      %v1366 = vmax.f32 %v1287, 0.0
      %v1367 = vmax.f32 %v1292, 0.0
      %v1368 = vmax.f32 %v1295, 0.0
      %v1369 = vmax.f32 %v1300, 0.0
      %v1370 = vmax.f32 %v1303, 0.0
      %v1371 = vmax.f32 %v1308, 0.0
      %v1372 = vmax.f32 %v1311, 0.0
      %v1373 = vmax.f32 %v1316, 0.0
      %v1374 = vmax.f32 %v1319, 0.0
      %v1375 = vmax.f32 %v1324, 0.0
      %v1376 = vmax.f32 %v1327, 0.0
      %v1377 = vmax.f32 %v1332, 0.0
      %v1378 = vpack.c.bf16 %v1338, %v1337
      %v1379 = vpack.c.bf16 %v1340, %v1339
      %v1380 = vpack.c.bf16 %v1342, %v1341
      %v1381 = vpack.c.bf16 %v1344, %v1343
      %v1382 = vpack.c.bf16 %v1346, %v1345
      %v1383 = vpack.c.bf16 %v1348, %v1347
      %v1384 = vpack.c.bf16 %v1350, %v1349
      %v1385 = vpack.c.bf16 %v1352, %v1351
      %v1386 = vpack.c.bf16 %v1354, %v1353
      %v1387 = vpack.c.bf16 %v1356, %v1355
      %v1388 = vpack.c.bf16 %v1358, %v1357
      %v1389 = vpack.c.bf16 %v1360, %v1359
      %v1390 = vpack.c.bf16 %v1362, %v1361
      %v1391 = vpack.c.bf16 %v1364, %v1363
      %v1392 = vpack.c.bf16 %v1366, %v1365
      %v1393 = vpack.c.bf16 %v1368, %v1367
      %v1394 = vpack.c.bf16 %v1370, %v1369
      %v1395 = vpack.c.bf16 %v1372, %v1371
      %v1396 = vpack.c.bf16 %v1374, %v1373
      %v1397 = vpack.c.bf16 %v1376, %v1375
      %v1398 = vpack.c.bf16 %v1377, %v1377
      %v1420 = vunpack.c.l.b16 %v1378
      %v1421 = vunpack.c.h.b16 %v1378
      %v1422 = vunpack.c.l.b16 %v1379
      %v1423 = vunpack.c.h.b16 %v1379
      %v1424 = vunpack.c.l.b16 %v1380
      %v1425 = vunpack.c.h.b16 %v1380
      %v1426 = vunpack.c.l.b16 %v1381
      %v1427 = vunpack.c.h.b16 %v1381
      %v1428 = vunpack.c.l.b16 %v1382
      %v1429 = vunpack.c.h.b16 %v1382
      %v1430 = vunpack.c.l.b16 %v1383
      %v1431 = vunpack.c.h.b16 %v1383
      %v1432 = vunpack.c.l.b16 %v1384
      %v1433 = vunpack.c.h.b16 %v1384
      %v1434 = vunpack.c.l.b16 %v1385
      %v1435 = vunpack.c.h.b16 %v1385
      %v1436 = vunpack.c.l.b16 %v1386
      %v1437 = vunpack.c.h.b16 %v1386
      %v1438 = vunpack.c.l.b16 %v1387
      %v1439 = vunpack.c.h.b16 %v1387
      %v1440 = vunpack.c.l.b16 %v1388
      %v1441 = vunpack.c.h.b16 %v1388
      %v1442 = vunpack.c.l.b16 %v1389
      %v1443 = vunpack.c.h.b16 %v1389
      %v1444 = vunpack.c.l.b16 %v1390
      %v1445 = vunpack.c.h.b16 %v1390
      %v1446 = vunpack.c.l.b16 %v1391
      %v1447 = vunpack.c.h.b16 %v1391
      %v1448 = vunpack.c.l.b16 %v1392
      %v1449 = vunpack.c.h.b16 %v1392
      %v1450 = vunpack.c.l.b16 %v1393
      %v1451 = vunpack.c.h.b16 %v1393
      %v1452 = vunpack.c.l.b16 %v1394
      %v1453 = vunpack.c.h.b16 %v1394
      %v1454 = vunpack.c.l.b16 %v1395
      %v1455 = vunpack.c.h.b16 %v1395
      %v1456 = vunpack.c.l.b16 %v1396
      %v1457 = vunpack.c.h.b16 %v1396
      %v1458 = vunpack.c.l.b16 %v1397
      %v1459 = vunpack.c.h.b16 %v1397
      %v1460 = vunpack.c.l.b16 %v1398
      %v1461 = vpack.c.b16 %v1420, %v1420
      %v1462 = vpack.c.b16 %v1421, %v1421
      %v1463 = vpack.c.b16 %v1422, %v1422
      %v1464 = vpack.c.b16 %v1423, %v1423
      %v1465 = vpack.c.b16 %v1424, %v1424
      %v1466 = vpack.c.b16 %v1425, %v1425
      %v1467 = vpack.c.b16 %v1426, %v1426
      %v1468 = vpack.c.b16 %v1427, %v1427
      %v1469 = vpack.c.b16 %v1428, %v1428
      %v1470 = vpack.c.b16 %v1429, %v1429
      %v1471 = vpack.c.b16 %v1430, %v1430
      %v1472 = vpack.c.b16 %v1431, %v1431
      %v1473 = vpack.c.b16 %v1432, %v1432
      %v1474 = vpack.c.b16 %v1433, %v1433
      %v1475 = vpack.c.b16 %v1434, %v1434
      %v1476 = vpack.c.b16 %v1435, %v1435
      %v1477 = vpack.c.b16 %v1436, %v1436
      %v1478 = vpack.c.b16 %v1437, %v1437
      %v1479 = vpack.c.b16 %v1438, %v1438
      %v1480 = vpack.c.b16 %v1439, %v1439
      %v1481 = vpack.c.b16 %v1440, %v1440
      %v1482 = vpack.c.b16 %v1441, %v1441
      %v1483 = vpack.c.b16 %v1442, %v1442
      %v1484 = vpack.c.b16 %v1443, %v1443
      %v1485 = vpack.c.b16 %v1444, %v1444
      %v1486 = vpack.c.b16 %v1445, %v1445
      %v1487 = vpack.c.b16 %v1446, %v1446
      %v1488 = vpack.c.b16 %v1447, %v1447
      %v1489 = vpack.c.b16 %v1448, %v1448
      %v1490 = vpack.c.b16 %v1449, %v1449
      %v1491 = vpack.c.b16 %v1450, %v1450
      %v1492 = vpack.c.b16 %v1451, %v1451
      %v1493 = vpack.c.b16 %v1452, %v1452
      %v1494 = vpack.c.b16 %v1453, %v1453
      %v1495 = vpack.c.b16 %v1454, %v1454
      %v1496 = vpack.c.b16 %v1455, %v1455
      %v1497 = vpack.c.b16 %v1456, %v1456
      %v1498 = vpack.c.b16 %v1457, %v1457
      %v1499 = vpack.c.b16 %v1458, %v1458
      %v1500 = vpack.c.b16 %v1459, %v1459
      %v1501 = vpack.c.b16 %v1460, %v1460
      %1543 = vst [vmem:[%s175] sm:$0xf] %v1461
      %1544 = vst [vmem:[%s175 + $0x4] sm:$0xf] %v1462
      %1545 = vst [vmem:[%s175 + $0x8] sm:$0xf] %v1463
      %1546 = vst [vmem:[%s175 + $0xc] sm:$0xf] %v1464
      %1547 = vst [vmem:[%s175 + $0x10] sm:$0xf] %v1465
      %1548 = vst [vmem:[%s175 + $0x14] sm:$0xf] %v1466
      %1549 = vst [vmem:[%s175 + $0x18] sm:$0xf] %v1467
      %1550 = vst [vmem:[%s175 + $0x1c] sm:$0xf] %v1468
      %1551 = vst [vmem:[%s175 + $0x20] sm:$0xf] %v1469
      %1552 = vst [vmem:[%s175 + $0x24] sm:$0xf] %v1470
      %1553 = vst [vmem:[%s175 + $0x28] sm:$0xf] %v1471
      %1554 = vst [vmem:[%s175 + $0x2c] sm:$0xf] %v1472
      %1555 = vst [vmem:[%s175 + $0x30] sm:$0xf] %v1473
      %1556 = vst [vmem:[%s175 + $0x34] sm:$0xf] %v1474
      %1557 = vst [vmem:[%s175 + $0x38] sm:$0xf] %v1475
      %1558 = vst [vmem:[%s175 + $0x3c] sm:$0xf] %v1476
      %1559 = vst [vmem:[%s175 + $0x40] sm:$0xf] %v1477
      %1560 = vst [vmem:[%s175 + $0x44] sm:$0xf] %v1478
      %1561 = vst [vmem:[%s175 + $0x48] sm:$0xf] %v1479
      %1562 = vst [vmem:[%s175 + $0x4c] sm:$0xf] %v1480
      %1563 = vst [vmem:[%s175 + $0x50] sm:$0xf] %v1481
      %1564 = vst [vmem:[%s175 + $0x54] sm:$0xf] %v1482
      %1565 = vst [vmem:[%s175 + $0x58] sm:$0xf] %v1483
      %1566 = vst [vmem:[%s175 + $0x5c] sm:$0xf] %v1484
      %1567 = vst [vmem:[%s175 + $0x60] sm:$0xf] %v1485
      %1568 = vst [vmem:[%s175 + $0x64] sm:$0xf] %v1486
      %1569 = vst [vmem:[%s175 + $0x68] sm:$0xf] %v1487
      %1570 = vst [vmem:[%s175 + $0x6c] sm:$0xf] %v1488
      %1571 = vst [vmem:[%s175 + $0x70] sm:$0xf] %v1489
      %1572 = vst [vmem:[%s175 + $0x74] sm:$0xf] %v1490
      %1573 = vst [vmem:[%s175 + $0x78] sm:$0xf] %v1491
      %1574 = vst [vmem:[%s175 + $0x7c] sm:$0xf] %v1492
      %1575 = vst [vmem:[%s175 + $0x80] sm:$0xf] %v1493
      %1576 = vst [vmem:[%s175 + $0x84] sm:$0xf] %v1494
      %1577 = vst [vmem:[%s175 + $0x88] sm:$0xf] %v1495
      %1578 = vst [vmem:[%s175 + $0x8c] sm:$0xf] %v1496
      %1579 = vst [vmem:[%s175 + $0x90] sm:$0xf] %v1497
      %1580 = vst [vmem:[%s175 + $0x94] sm:$0xf] %v1498
      %1581 = vst [vmem:[%s175 + $0x98] sm:$0xf] %v1499
      %1582 = vst [vmem:[%s175 + $0x9c] sm:$0xf] %v1500
      %1583 = vst [vmem:[%s175 + $0xa0] sm:$0xf] %v1501
      %s1584 = smul.u32 41, %s14
      %p1585 = scmp.lt.s32.totalorder %s1584, 81
      %s1586 = scalar_select %p1585, %s1584, 81
      %s1587 = smul.addr %s1586, 4
      %s1588 = scalar_lea.vmem %s3, %s1587
      // Predicated region
      $region33: #{lstm_conv_forward.7} parent=31 // pred_check
        %p1589 = pneg %p100
      $region34: #{lstm_conv_forward.7} parent=31 // pred_check_branch
        %1591 = sbr.rel (%p1589) target = $region36
      $region35: #{lstm_conv_forward.7} parent=31 // pred_region
        %s1592 = smul.u32 41, %s14
      $region36: #{lstm_conv_forward.7} parent=31 // pred_fallthru
        _
    $region32: #{lstm_conv_forward.7} parent=5 // pred_fallthru
      _
    %p1593 = scmp.le.s32.totalorder 2, %s9
    // Predicated region
    $region37: #{lstm_conv_forward.7} parent=5 // pred_check
      %p1594 = pneg %p1593
    $region38: #{lstm_conv_forward.7} parent=5 // pred_check_branch
      %1596 = sbr.rel (%p1594) target = $region40
    $region39: #{lstm_conv_forward.7} parent=5 // pred_region
      %s1597 = ssub.s32 %s9, 2
      // Predicated region
      $region41: #{lstm_conv_forward.7} parent=39 // pred_check
        %p1598 = pneg %p106
      $region42: #{lstm_conv_forward.7} parent=39 // pred_check_branch
        %1600 = sbr.rel (%p1598) target = $region44
      $region43: #{lstm_conv_forward.7} parent=39 // pred_region
        %s1601 = smul.u32 41, %s15
        %p1602 = scmp.lt.s32.totalorder %s1601, 81
        %s1603 = scalar_select %p1602, %s1601, 81
        %s1604 = smul.addr %s1603, 4
        %s1605 = scalar_lea.vmem %s3, %s1604
      $region44: #{lstm_conv_forward.7} parent=39 // pred_fallthru
        _
    $region40: #{lstm_conv_forward.7} parent=5 // pred_fallthru
      _
  $region6: #{lstm_conv_forward.7} parent=0 // loop_footer
    %s13 = sadd.s32 1, %s9
  $region7: #{lstm_conv_forward.7} parent=0 // loop_footer_branch
    %8 = sbr.rel target = $region3
  $region8: #{lstm_conv_forward.7} parent=0 // loop_exit
    _

// kernel: lstm_conv_forward.8
$region0: #{lstm_conv_forward.8}
  #allocation0 [shape = 'u32[]', space=smem, size = 0x4, offset = 0x4, fixed_abs, tag = 'smem constant byte address 0x4 - core index']
  #allocation1 [shape = 'u32[144,128]{1,0:T(1,128)}', space=vmem, size = 0x12000, scoped, tag = 'internal scratch']
  %s0 = inlined_call_operand.vmem [shape: bf16[400,576], index: 0, kind: input, shape index: {}]
  %s1 = inlined_call_operand.vmem [shape: bf16[576,128], index: 1, kind: input, shape index: {}]
  %s2 = inlined_call_operand.vmem [shape: f32[1,128], index: 2, kind: input, shape index: {}]
  %s3 = inlined_call_operand.vmem [shape: bf16[400,128], index: 3, kind: output, shape index: {}]
  %s4 = sld [smem:[#allocation0]]
  $region45: #{lstm_conv_forward.8} parent=0
    _
  %s6 = ssub.s32 1, %s4
  %s7 = scalar_select 0, %s6, %s4
  loop: start=0, step=1, limit=4
  $region2: #{lstm_conv_forward.8} parent=0 // loop_pre_header
    _
  $region3: #{lstm_conv_forward.8} parent=0 // loop_header
    %s9 = sphi 0, %s13
    %p10 = scmp.ge.s32.totalorder %s9, 4
    %s19 = sphi 0, %s21
    %s22 = sphi 0, %s19
    %s23 = sphi 0, %s22
    %s39 = sphi 0, %s23
    %s43 = sphi 0, %s43
    %s45 = sphi 0, %s43
    %s46 = sphi 0, %s45
    %s60 = sphi 0, %s46
    %s64 = sphi 0, %s64
    %s66 = sphi 0, %s64
    %s67 = sphi 0, %s66
    %s81 = sphi 0, %s67
    %s87 = sphi 0, %s89
    %s90 = sphi 0, %s87
    %s91 = sphi 0, %s90
    %s107 = sphi 0, %s91
  $region4: #{lstm_conv_forward.8} parent=0 // loop_header_branch
    %12 = sbr.rel (%p10) target = $region8
  $region5: #{lstm_conv_forward.8} parent=0 // loop_body
    %s14 = ssub.s32 %s9, 1
    %s15 = ssub.s32 %s9, 2
    %s16 = sadd.s32 %s9, 1
    %s17 = ssub.s32 %s9, %s16
    %p18 = scmp.eq.s32.totalorder %s17, 0
    %s20 = sadd.s32 %s19, 1
    %s21 = scalar_select %p18, %s19, %s20
    %p24 = pneg %p18
    %p25 = scmp.eq.s32.totalorder %s9, 1
    %p26 = por %p24, %p25
    %p27 = scmp.ne.s32.totalorder %s19, %s22
    %p28 = scmp.eq.s32.totalorder %s9, 0
    %p29 = por %p27, %p28
    %p30 = scmp.ne.s32.totalorder %s19, %s22
    %p31 = scmp.eq.s32.totalorder %s14, 1
    %p32 = por %p30, %p31
    %p33 = scmp.ne.s32.totalorder %s22, %s23
    %p34 = scmp.eq.s32.totalorder %s14, 0
    %p35 = por %p33, %p34
    %p36 = scmp.ne.s32.totalorder %s22, %s23
    %p37 = scmp.eq.s32.totalorder %s15, 1
    %p38 = por %p36, %p37
    %p40 = scmp.ne.s32.totalorder %s23, %s39
    %p41 = scmp.eq.s32.totalorder %s15, 0
    %p42 = por %p40, %p41
    %s44 = sadd.s32 %s43, 1
    %p47 = scmp.eq.s32.totalorder %s9, 1
    %p48 = scmp.ne.s32.totalorder %s43, %s45
    %p49 = scmp.eq.s32.totalorder %s9, 0
    %p50 = por %p48, %p49
    %p51 = scmp.ne.s32.totalorder %s43, %s45
    %p52 = scmp.eq.s32.totalorder %s14, 1
    %p53 = por %p51, %p52
    %p54 = scmp.ne.s32.totalorder %s45, %s46
    %p55 = scmp.eq.s32.totalorder %s14, 0
    %p56 = por %p54, %p55
    %p57 = scmp.ne.s32.totalorder %s45, %s46
    %p58 = scmp.eq.s32.totalorder %s15, 1
    %p59 = por %p57, %p58
    %p61 = scmp.ne.s32.totalorder %s46, %s60
    %p62 = scmp.eq.s32.totalorder %s15, 0
    %p63 = por %p61, %p62
    %s65 = sadd.s32 %s64, 1
    %p68 = scmp.eq.s32.totalorder %s9, 1
    %p69 = scmp.ne.s32.totalorder %s64, %s66
    %p70 = scmp.eq.s32.totalorder %s9, 0
    %p71 = por %p69, %p70
    %p72 = scmp.ne.s32.totalorder %s64, %s66
    %p73 = scmp.eq.s32.totalorder %s14, 1
    %p74 = por %p72, %p73
    %p75 = scmp.ne.s32.totalorder %s66, %s67
    %p76 = scmp.eq.s32.totalorder %s14, 0
    %p77 = por %p75, %p76
    %p78 = scmp.ne.s32.totalorder %s66, %s67
    %p79 = scmp.eq.s32.totalorder %s15, 1
    %p80 = por %p78, %p79
    %p82 = scmp.ne.s32.totalorder %s67, %s81
    %p83 = scmp.eq.s32.totalorder %s15, 0
    %p84 = por %p82, %p83
    %s85 = ssub.s32 %s9, %s16
    %p86 = scmp.eq.s32.totalorder %s85, 0
    %s88 = sadd.s32 %s87, 1
    %s89 = scalar_select %p86, %s87, %s88
    %p92 = pneg %p86
    %p93 = scmp.eq.s32.totalorder %s9, 1
    %p94 = por %p92, %p93
    %p95 = scmp.ne.s32.totalorder %s87, %s90
    %p96 = scmp.eq.s32.totalorder %s9, 0
    %p97 = por %p95, %p96
    %p98 = scmp.ne.s32.totalorder %s87, %s90
    %p99 = scmp.eq.s32.totalorder %s14, 1
    %p100 = por %p98, %p99
    %p101 = scmp.ne.s32.totalorder %s90, %s91
    %p102 = scmp.eq.s32.totalorder %s14, 0
    %p103 = por %p101, %p102
    %p104 = scmp.ne.s32.totalorder %s90, %s91
    %p105 = scmp.eq.s32.totalorder %s15, 1
    %p106 = por %p104, %p105
    %p108 = scmp.ne.s32.totalorder %s91, %s107
    %p109 = scmp.eq.s32.totalorder %s15, 0
    %p110 = por %p108, %p109
    %p111 = scmp.le.s32.totalorder 1, %s9
    %p112 = scmp.lt.s32.totalorder %s9, 3
    %p113 = pnand %p111, %p112
    %p114 = pneg %p113
    // Predicated region
    $region9: #{lstm_conv_forward.8} parent=5 // pred_check
      _
    $region10: #{lstm_conv_forward.8} parent=5 // pred_check_branch
      %116 = sbr.rel (%p113) target = $region12
    $region11: #{lstm_conv_forward.8} parent=5 // pred_region
      %s117 = ssub.s32 %s9, 1
      // Predicated region
      $region13: #{lstm_conv_forward.8} parent=11 // pred_check
        %p118 = pneg %p56
      $region14: #{lstm_conv_forward.8} parent=11 // pred_check_branch
        %120 = sbr.rel (%p118) target = $region16
      $region15: #{lstm_conv_forward.8} parent=11 // pred_region
        _
      $region16: #{lstm_conv_forward.8} parent=11 // pred_fallthru
        _
      // Predicated region
      $region17: #{lstm_conv_forward.8} parent=11 // pred_check
        %p121 = pneg %p77
      $region18: #{lstm_conv_forward.8} parent=11 // pred_check_branch
        %123 = sbr.rel (%p121) target = $region20
      $region19: #{lstm_conv_forward.8} parent=11 // pred_region
        _
      $region20: #{lstm_conv_forward.8} parent=11 // pred_fallthru
        _
    $region12: #{lstm_conv_forward.8} parent=5 // pred_fallthru
      _
    %p124 = scmp.lt.s32.totalorder %s9, 2
    // Predicated region
    $region21: #{lstm_conv_forward.8} parent=5 // pred_check
      %p125 = pneg %p124
    $region22: #{lstm_conv_forward.8} parent=5 // pred_check_branch
      %127 = sbr.rel (%p125) target = $region24
    $region23: #{lstm_conv_forward.8} parent=5 // pred_region
      // Predicated region
      $region25: #{lstm_conv_forward.8} parent=23 // pred_check
        %p128 = pneg %p29
      $region26: #{lstm_conv_forward.8} parent=23 // pred_check_branch
        %130 = sbr.rel (%p128) target = $region28
      $region27: #{lstm_conv_forward.8} parent=23 // pred_region
        %s131 = smul.u32 25, %s9
        %p132 = scmp.lt.s32.totalorder %s131, 49
        %s133 = scalar_select %p132, %s131, 49
        %s134 = smul.addr %s133, 5
        %s135 = smul.addr %s134, 4
        %s136 = scalar_lea.vmem %s0, %s135
        %s137 = smul.u32 25, %s9
      $region28: #{lstm_conv_forward.8} parent=23 // pred_fallthru
        _
    $region24: #{lstm_conv_forward.8} parent=5 // pred_fallthru
      _
    %p138 = scmp.le.s32.totalorder 1, %s9
    %p139 = scmp.lt.s32.totalorder %s9, 3
    %p140 = pnand %p138, %p139
    %p141 = pneg %p140
    // Predicated region
    $region29: #{lstm_conv_forward.8} parent=5 // pred_check
      _
    $region30: #{lstm_conv_forward.8} parent=5 // pred_check_branch
      %143 = sbr.rel (%p140) target = $region32
    $region31: #{lstm_conv_forward.8} parent=5 // pred_region
      %s144 = ssub.s32 %s9, 1
      %s145 = smul.u32 25, %s14
      %p146 = scmp.lt.s32.totalorder %s145, 49
      %s147 = scalar_select %p146, %s145, 49
      %s148 = smul.addr %s147, 5
      %s149 = smul.addr %s148, 4
      %s150 = scalar_lea.vmem %s0, %s149
      %p151 = pneg %p35
      %p152 = pneg %p32
      %p153 = pneg %p56
      %p154 = pneg %p53
      %p155 = pneg %p77
      %p156 = pneg %p74
      %p157 = pneg %p103
      %p158 = pneg %p100
      %s159 = smul.u32 25, %s14
      %p160 = scmp.lt.s32.totalorder %s159, 49
      %s161 = scalar_select %p160, %s159, 49
      %s162 = smul.addr %s161, 4
      %s163 = scalar_lea.vmem %s3, %s162
      %s164 = smul.u32 25, %s14
      %p165 = scmp.lt.s32.totalorder %s164, 49
      %s166 = scalar_select %p165, %s164, 49
      %s167 = smul.addr %s166, 5
      %s168 = smul.addr %s167, 4
      %s169 = scalar_lea.vmem %s0, %s168
      %s170 = smul.u32 25, %s14
      %s171 = smul.u32 25, %s14
      %p172 = scmp.lt.s32.totalorder %s171, 49
      %s173 = scalar_select %p172, %s171, 49
      %s174 = smul.addr %s173, 4
      %s175 = scalar_lea.vmem %s3, %s174
      %s176 = smul.u32 25, %s14
      %v178 = vld [vmem:[%s169] sm:$0xff]
      %v179 = vld [vmem:[%s169 + $0x8] sm:$0xff]
      %v180 = vld [vmem:[%s169 + $0x10] sm:$0xf]
      %v181 = vld [vmem:[%s169 + $0x14] sm:$0xff]
      %v182 = vld [vmem:[%s169 + $0x1c] sm:$0xff]
      %v183 = vld [vmem:[%s169 + $0x24] sm:$0xf]
      %v184 = vld [vmem:[%s169 + $0x28] sm:$0xff]
      %v185 = vld [vmem:[%s169 + $0x30] sm:$0xff]
      %v186 = vld [vmem:[%s169 + $0x38] sm:$0xf]
      %v187 = vld [vmem:[%s169 + $0x3c] sm:$0xff]
      %v188 = vld [vmem:[%s169 + $0x44] sm:$0xff]
      %v189 = vld [vmem:[%s169 + $0x4c] sm:$0xf]
      %v190 = vld [vmem:[%s169 + $0x50] sm:$0xff]
      %v191 = vld [vmem:[%s169 + $0x58] sm:$0xff]
      %v192 = vld [vmem:[%s169 + $0x60] sm:$0xf]
      %v193 = vld [vmem:[%s169 + $0x64] sm:$0xff]
      %v194 = vld [vmem:[%s169 + $0x6c] sm:$0xff]
      %v195 = vld [vmem:[%s169 + $0x74] sm:$0xf]
      %v196 = vld [vmem:[%s169 + $0x78] sm:$0xff]
      %v197 = vld [vmem:[%s169 + $0x80] sm:$0xff]
      %v198 = vld [vmem:[%s169 + $0x88] sm:$0xf]
      %v199 = vld [vmem:[%s169 + $0x8c] sm:$0xff]
      %v200 = vld [vmem:[%s169 + $0x94] sm:$0xff]
      %v201 = vld [vmem:[%s169 + $0x9c] sm:$0xf]
      %v202 = vld [vmem:[%s169 + $0xa0] sm:$0xff]
      %v203 = vld [vmem:[%s169 + $0xa8] sm:$0xff]
      %v204 = vld [vmem:[%s169 + $0xb0] sm:$0xf]
      %v205 = vld [vmem:[%s169 + $0xb4] sm:$0xff]
      %v206 = vld [vmem:[%s169 + $0xbc] sm:$0xff]
      %v207 = vld [vmem:[%s169 + $0xc4] sm:$0xf]
      %v208 = vld [vmem:[%s169 + $0xc8] sm:$0xff]
      %v209 = vld [vmem:[%s169 + $0xd0] sm:$0xff]
      %v210 = vld [vmem:[%s169 + $0xd8] sm:$0xf]
      %v211 = vld [vmem:[%s169 + $0xdc] sm:$0xff]
      %v212 = vld [vmem:[%s169 + $0xe4] sm:$0xff]
      %v213 = vld [vmem:[%s169 + $0xec] sm:$0xf]
      %v214 = vld [vmem:[%s169 + $0xf0] sm:$0xff]
      %v215 = vld [vmem:[%s169 + $0xf8] sm:$0xff]
      %v216 = vld [vmem:[%s169 + $0x100] sm:$0xf]
      %v217 = vld [vmem:[%s169 + $0x104] sm:$0xff]
      %v218 = vld [vmem:[%s169 + $0x10c] sm:$0xff]
      %v219 = vld [vmem:[%s169 + $0x114] sm:$0xf]
      %v220 = vld [vmem:[%s169 + $0x118] sm:$0xff]
      %v221 = vld [vmem:[%s169 + $0x120] sm:$0xff]
      %v222 = vld [vmem:[%s169 + $0x128] sm:$0xf]
      %v223 = vld [vmem:[%s169 + $0x12c] sm:$0xff]
      %v224 = vld [vmem:[%s169 + $0x134] sm:$0xff]
      %v225 = vld [vmem:[%s169 + $0x13c] sm:$0xf]
      %v226 = vld [vmem:[%s169 + $0x140] sm:$0xff]
      %v227 = vld [vmem:[%s169 + $0x148] sm:$0xff]
      %v228 = vld [vmem:[%s169 + $0x150] sm:$0xf]
      %v229 = vld [vmem:[%s169 + $0x154] sm:$0xff]
      %v230 = vld [vmem:[%s169 + $0x15c] sm:$0xff]
      %v231 = vld [vmem:[%s169 + $0x164] sm:$0xf]
      %v232 = vld [vmem:[%s169 + $0x168] sm:$0xff]
      %v233 = vld [vmem:[%s169 + $0x170] sm:$0xff]
      %v234 = vld [vmem:[%s169 + $0x178] sm:$0xf]
      %v235 = vld [vmem:[%s169 + $0x17c] sm:$0xff]
      %v236 = vld [vmem:[%s169 + $0x184] sm:$0xff]
      %v237 = vld [vmem:[%s169 + $0x18c] sm:$0xf]
      %v238 = vld [vmem:[%s169 + $0x190] sm:$0xff]
      %v239 = vld [vmem:[%s169 + $0x198] sm:$0xff]
      %v240 = vld [vmem:[%s169 + $0x1a0] sm:$0xf]
      %v241 = vld [vmem:[%s169 + $0x1a4] sm:$0xff]
      %v242 = vld [vmem:[%s169 + $0x1ac] sm:$0xff]
      %v243 = vld [vmem:[%s169 + $0x1b4] sm:$0xf]
      %v244 = vld [vmem:[%s169 + $0x1b8] sm:$0xff]
      %v245 = vld [vmem:[%s169 + $0x1c0] sm:$0xff]
      %v246 = vld [vmem:[%s169 + $0x1c8] sm:$0xf]
      %v247 = vld [vmem:[%s169 + $0x1cc] sm:$0xff]
      %v248 = vld [vmem:[%s169 + $0x1d4] sm:$0xff]
      %v249 = vld [vmem:[%s169 + $0x1dc] sm:$0xf]
      %v250 = vld [vmem:[%s169 + $0x1e0] sm:$0xff]
      %v251 = vld [vmem:[%s169 + $0x1e8] sm:$0xff]
      %v252 = vld [vmem:[%s169 + $0x1f0] sm:$0xf]
      %v253 = vld [vmem:[%s1] sm:$0xf]
      %v254 = vld [vmem:[%s1 + $0x4] sm:$0xf]
      %v255 = vld [vmem:[%s1 + $0x8] sm:$0xf]
      %v256 = vld [vmem:[%s1 + $0xc] sm:$0xf]
      %v257 = vld [vmem:[%s1 + $0x10] sm:$0xf]
      %v258 = vld [vmem:[%s1 + $0x14] sm:$0xf]
      %v259 = vld [vmem:[%s1 + $0x18] sm:$0xf]
      %v260 = vld [vmem:[%s1 + $0x1c] sm:$0xf]
      %v261 = vld [vmem:[%s1 + $0x20] sm:$0xf]
      %v262 = vld [vmem:[%s1 + $0x24] sm:$0xf]
      %v263 = vld [vmem:[%s1 + $0x28] sm:$0xf]
      %v264 = vld [vmem:[%s1 + $0x2c] sm:$0xf]
      %v265 = vld [vmem:[%s1 + $0x30] sm:$0xf]
      %v266 = vld [vmem:[%s1 + $0x34] sm:$0xf]
      %v267 = vld [vmem:[%s1 + $0x38] sm:$0xf]
      %v268 = vld [vmem:[%s1 + $0x3c] sm:$0xf]
      %v269 = vld [vmem:[%s1 + $0x40] sm:$0xf]
      %v270 = vld [vmem:[%s1 + $0x44] sm:$0xf]
      %v271 = vld [vmem:[%s1 + $0x48] sm:$0xf]
      %v272 = vld [vmem:[%s1 + $0x4c] sm:$0xf]
      %v273 = vld [vmem:[%s1 + $0x50] sm:$0xf]
      %v274 = vld [vmem:[%s1 + $0x54] sm:$0xf]
      %v275 = vld [vmem:[%s1 + $0x58] sm:$0xf]
      %v276 = vld [vmem:[%s1 + $0x5c] sm:$0xf]
      %v277 = vld [vmem:[%s1 + $0x60] sm:$0xf]
      %v278 = vld [vmem:[%s1 + $0x64] sm:$0xf]
      %v279 = vld [vmem:[%s1 + $0x68] sm:$0xf]
      %v280 = vld [vmem:[%s1 + $0x6c] sm:$0xf]
      %v281 = vld [vmem:[%s1 + $0x70] sm:$0xf]
      %v282 = vld [vmem:[%s1 + $0x74] sm:$0xf]
      %v283 = vld [vmem:[%s1 + $0x78] sm:$0xf]
      %v284 = vld [vmem:[%s1 + $0x7c] sm:$0xf]
      %v285 = vld [vmem:[%s1 + $0x80] sm:$0xf]
      %v286 = vld [vmem:[%s1 + $0x84] sm:$0xf]
      %v287 = vld [vmem:[%s1 + $0x88] sm:$0xf]
      %v288 = vld [vmem:[%s1 + $0x8c] sm:$0xf]
      %v289 = vld [vmem:[%s1 + $0x90] sm:$0xf]
      %v290 = vld [vmem:[%s1 + $0x94] sm:$0xf]
      %v291 = vld [vmem:[%s1 + $0x98] sm:$0xf]
      %v292 = vld [vmem:[%s1 + $0x9c] sm:$0xf]
      %v293 = vld [vmem:[%s1 + $0xa0] sm:$0xf]
      %v294 = vld [vmem:[%s1 + $0xa4] sm:$0xf]
      %v295 = vld [vmem:[%s1 + $0xa8] sm:$0xf]
      %v296 = vld [vmem:[%s1 + $0xac] sm:$0xf]
      %v297 = vld [vmem:[%s1 + $0xb0] sm:$0xf]
      %v298 = vld [vmem:[%s1 + $0xb4] sm:$0xf]
      %v299 = vld [vmem:[%s1 + $0xb8] sm:$0xf]
      %v300 = vld [vmem:[%s1 + $0xbc] sm:$0xf]
      %v301 = vld [vmem:[%s1 + $0xc0] sm:$0xf]
      %v302 = vld [vmem:[%s1 + $0xc4] sm:$0xf]
      %v303 = vld [vmem:[%s1 + $0xc8] sm:$0xf]
      %v304 = vld [vmem:[%s1 + $0xcc] sm:$0xf]
      %v305 = vld [vmem:[%s1 + $0xd0] sm:$0xf]
      %v306 = vld [vmem:[%s1 + $0xd4] sm:$0xf]
      %v307 = vld [vmem:[%s1 + $0xd8] sm:$0xf]
      %v308 = vld [vmem:[%s1 + $0xdc] sm:$0xf]
      %v309 = vld [vmem:[%s1 + $0xe0] sm:$0xf]
      %v310 = vld [vmem:[%s1 + $0xe4] sm:$0xf]
      %v311 = vld [vmem:[%s1 + $0xe8] sm:$0xf]
      %v312 = vld [vmem:[%s1 + $0xec] sm:$0xf]
      %v313 = vld [vmem:[%s1 + $0xf0] sm:$0xf]
      %v314 = vld [vmem:[%s1 + $0xf4] sm:$0xf]
      %v315 = vld [vmem:[%s1 + $0xf8] sm:$0xf]
      %v316 = vld [vmem:[%s1 + $0xfc] sm:$0xf]
      %v317 = vld [vmem:[%s1 + $0x100] sm:$0xf]
      %v318 = vld [vmem:[%s1 + $0x104] sm:$0xf]
      %v319 = vld [vmem:[%s1 + $0x108] sm:$0xf]
      %v320 = vld [vmem:[%s1 + $0x10c] sm:$0xf]
      %v321 = vld [vmem:[%s1 + $0x110] sm:$0xf]
      %v322 = vld [vmem:[%s1 + $0x114] sm:$0xf]
      %v323 = vld [vmem:[%s1 + $0x118] sm:$0xf]
      %v324 = vld [vmem:[%s1 + $0x11c] sm:$0xf]
      %v325 = vld [vmem:[%s2] sm:$0x1]
      %v327 = vlaneseq
      %v328 = vshrl.u32 %v327, 7
      %v329 = vsub.s32 0, %v328
      %v330 = vrot.slane %v325, %v329
      %v407 = vunpack.c.l.b16 %v178
      %v408 = vunpack.c.h.b16 %v178
      %v409 = vunpack.c.l.b16 %v179
      %v410 = vunpack.c.h.b16 %v179
      %v411 = vunpack.c.l.b16 %v180
      %v412 = vunpack.c.l.b16 %v181
      %v413 = vunpack.c.h.b16 %v181
      %v414 = vunpack.c.l.b16 %v182
      %v415 = vunpack.c.h.b16 %v182
      %v416 = vunpack.c.l.b16 %v183
      %v417 = vunpack.c.l.b16 %v184
      %v418 = vunpack.c.h.b16 %v184
      %v419 = vunpack.c.l.b16 %v185
      %v420 = vunpack.c.h.b16 %v185
      %v421 = vunpack.c.l.b16 %v186
      %v422 = vunpack.c.l.b16 %v187
      %v423 = vunpack.c.h.b16 %v187
      %v424 = vunpack.c.l.b16 %v188
      %v425 = vunpack.c.h.b16 %v188
      %v426 = vunpack.c.l.b16 %v189
      %v427 = vunpack.c.l.b16 %v190
      %v428 = vunpack.c.h.b16 %v190
      %v429 = vunpack.c.l.b16 %v191
      %v430 = vunpack.c.h.b16 %v191
      %v431 = vunpack.c.l.b16 %v192
      %v432 = vunpack.c.l.b16 %v193
      %v433 = vunpack.c.h.b16 %v193
      %v434 = vunpack.c.l.b16 %v194
      %v435 = vunpack.c.h.b16 %v194
      %v436 = vunpack.c.l.b16 %v195
      %v437 = vunpack.c.l.b16 %v196
      %v438 = vunpack.c.h.b16 %v196
      %v439 = vunpack.c.l.b16 %v197
      %v440 = vunpack.c.h.b16 %v197
      %v441 = vunpack.c.l.b16 %v198
      %v442 = vunpack.c.l.b16 %v199
      %v443 = vunpack.c.h.b16 %v199
      %v444 = vunpack.c.l.b16 %v200
      %v445 = vunpack.c.h.b16 %v200
      %v446 = vunpack.c.l.b16 %v201
      %v447 = vunpack.c.l.b16 %v202
      %v448 = vunpack.c.h.b16 %v202
      %v449 = vunpack.c.l.b16 %v203
      %v450 = vunpack.c.h.b16 %v203
      %v451 = vunpack.c.l.b16 %v204
      %v452 = vunpack.c.l.b16 %v205
      %v453 = vunpack.c.h.b16 %v205
      %v454 = vunpack.c.l.b16 %v206
      %v455 = vunpack.c.h.b16 %v206
      %v456 = vunpack.c.l.b16 %v207
      %v457 = vunpack.c.l.b16 %v208
      %v458 = vunpack.c.h.b16 %v208
      %v459 = vunpack.c.l.b16 %v209
      %v460 = vunpack.c.h.b16 %v209
      %v461 = vunpack.c.l.b16 %v210
      %v462 = vunpack.c.l.b16 %v211
      %v463 = vunpack.c.h.b16 %v211
      %v464 = vunpack.c.l.b16 %v212
      %v465 = vunpack.c.h.b16 %v212
      %v466 = vunpack.c.l.b16 %v213
      %v467 = vunpack.c.l.b16 %v214
      %v468 = vunpack.c.h.b16 %v214
      %v469 = vunpack.c.l.b16 %v215
      %v470 = vunpack.c.h.b16 %v215
      %v471 = vunpack.c.l.b16 %v216
      %v472 = vunpack.c.l.b16 %v217
      %v473 = vunpack.c.h.b16 %v217
      %v474 = vunpack.c.l.b16 %v218
      %v475 = vunpack.c.h.b16 %v218
      %v476 = vunpack.c.l.b16 %v219
      %v477 = vunpack.c.l.b16 %v220
      %v478 = vunpack.c.h.b16 %v220
      %v479 = vunpack.c.l.b16 %v221
      %v480 = vunpack.c.h.b16 %v221
      %v481 = vunpack.c.l.b16 %v222
      %v482 = vunpack.c.l.b16 %v223
      %v483 = vunpack.c.h.b16 %v223
      %v484 = vunpack.c.l.b16 %v224
      %v485 = vunpack.c.h.b16 %v224
      %v486 = vunpack.c.l.b16 %v225
      %v487 = vunpack.c.l.b16 %v226
      %v488 = vunpack.c.h.b16 %v226
      %v489 = vunpack.c.l.b16 %v227
      %v490 = vunpack.c.h.b16 %v227
      %v491 = vunpack.c.l.b16 %v228
      %v492 = vunpack.c.l.b16 %v229
      %v493 = vunpack.c.h.b16 %v229
      %v494 = vunpack.c.l.b16 %v230
      %v495 = vunpack.c.h.b16 %v230
      %v496 = vunpack.c.l.b16 %v231
      %v497 = vunpack.c.l.b16 %v232
      %v498 = vunpack.c.h.b16 %v232
      %v499 = vunpack.c.l.b16 %v233
      %v500 = vunpack.c.h.b16 %v233
      %v501 = vunpack.c.l.b16 %v234
      %v502 = vunpack.c.l.b16 %v235
      %v503 = vunpack.c.h.b16 %v235
      %v504 = vunpack.c.l.b16 %v236
      %v505 = vunpack.c.h.b16 %v236
      %v506 = vunpack.c.l.b16 %v237
      %v507 = vunpack.c.l.b16 %v238
      %v508 = vunpack.c.h.b16 %v238
      %v509 = vunpack.c.l.b16 %v239
      %v510 = vunpack.c.h.b16 %v239
      %v511 = vunpack.c.l.b16 %v240
      %v512 = vunpack.c.l.b16 %v241
      %v513 = vunpack.c.h.b16 %v241
      %v514 = vunpack.c.l.b16 %v242
      %v515 = vunpack.c.h.b16 %v242
      %v516 = vunpack.c.l.b16 %v243
      %v517 = vunpack.c.l.b16 %v244
      %v518 = vunpack.c.h.b16 %v244
      %v519 = vunpack.c.l.b16 %v245
      %v520 = vunpack.c.h.b16 %v245
      %v521 = vunpack.c.l.b16 %v246
      %v522 = vunpack.c.l.b16 %v247
      %v523 = vunpack.c.h.b16 %v247
      %v524 = vunpack.c.l.b16 %v248
      %v525 = vunpack.c.h.b16 %v248
      %v526 = vunpack.c.l.b16 %v249
      %v527 = vunpack.c.l.b16 %v250
      %v528 = vunpack.c.h.b16 %v250
      %v529 = vunpack.c.l.b16 %v251
      %v530 = vunpack.c.h.b16 %v251
      %v531 = vunpack.c.l.b16 %v252
      %v532 = vpack.c.b16 %v412, %v407
      %v533 = vpack.c.b16 %v413, %v408
      %v534 = vpack.c.b16 %v414, %v409
      %v535 = vpack.c.b16 %v415, %v410
      %v536 = vpack.c.b16 %v416, %v411
      %v537 = vpack.c.b16 %v422, %v417
      %v538 = vpack.c.b16 %v423, %v418
      %v539 = vpack.c.b16 %v424, %v419
      %v540 = vpack.c.b16 %v425, %v420
      %v541 = vpack.c.b16 %v426, %v421
      %v542 = vpack.c.b16 %v432, %v427
      %v543 = vpack.c.b16 %v433, %v428
      %v544 = vpack.c.b16 %v434, %v429
      %v545 = vpack.c.b16 %v435, %v430
      %v546 = vpack.c.b16 %v436, %v431
      %v547 = vpack.c.b16 %v442, %v437
      %v548 = vpack.c.b16 %v443, %v438
      %v549 = vpack.c.b16 %v444, %v439
      %v550 = vpack.c.b16 %v445, %v440
      %v551 = vpack.c.b16 %v446, %v441
      %v552 = vpack.c.b16 %v452, %v447
      %v553 = vpack.c.b16 %v453, %v448
      %v554 = vpack.c.b16 %v454, %v449
      %v555 = vpack.c.b16 %v455, %v450
      %v556 = vpack.c.b16 %v456, %v451
      %v557 = vpack.c.b16 %v462, %v457
      %v558 = vpack.c.b16 %v463, %v458
      %v559 = vpack.c.b16 %v464, %v459
      %v560 = vpack.c.b16 %v465, %v460
      %v561 = vpack.c.b16 %v466, %v461
      %v562 = vpack.c.b16 %v472, %v467
      %v563 = vpack.c.b16 %v473, %v468
      %v564 = vpack.c.b16 %v474, %v469
      %v565 = vpack.c.b16 %v475, %v470
      %v566 = vpack.c.b16 %v476, %v471
      %v567 = vpack.c.b16 %v482, %v477
      %v568 = vpack.c.b16 %v483, %v478
      %v569 = vpack.c.b16 %v484, %v479
      %v570 = vpack.c.b16 %v485, %v480
      %v571 = vpack.c.b16 %v486, %v481
      %v572 = vpack.c.b16 %v492, %v487
      %v573 = vpack.c.b16 %v493, %v488
      %v574 = vpack.c.b16 %v494, %v489
      %v575 = vpack.c.b16 %v495, %v490
      %v576 = vpack.c.b16 %v496, %v491
      %v577 = vpack.c.b16 %v502, %v497
      %v578 = vpack.c.b16 %v503, %v498
      %v579 = vpack.c.b16 %v504, %v499
      %v580 = vpack.c.b16 %v505, %v500
      %v581 = vpack.c.b16 %v506, %v501
      %v582 = vpack.c.b16 %v512, %v507
      %v583 = vpack.c.b16 %v513, %v508
      %v584 = vpack.c.b16 %v514, %v509
      %v585 = vpack.c.b16 %v515, %v510
      %v586 = vpack.c.b16 %v516, %v511
      %v587 = vpack.c.b16 %v522, %v517
      %v588 = vpack.c.b16 %v523, %v518
      %v589 = vpack.c.b16 %v524, %v519
      %v590 = vpack.c.b16 %v525, %v520
      %v591 = vpack.c.b16 %v526, %v521
      %v592 = vpack.c.b16 %v527, %v527
      %v593 = vpack.c.b16 %v528, %v528
      %v594 = vpack.c.b16 %v529, %v529
      %v595 = vpack.c.b16 %v530, %v530
      %v596 = vpack.c.b16 %v531, %v531
      %v721 = vunpack.c.l.b16 %v253
      %v722 = vunpack.c.l.b16 %v254
      %v723 = vunpack.c.l.b16 %v255
      %v724 = vunpack.c.l.b16 %v256
      %v725 = vunpack.c.l.b16 %v257
      %v726 = vunpack.c.l.b16 %v258
      %v727 = vunpack.c.l.b16 %v259
      %v728 = vunpack.c.l.b16 %v260
      %v729 = vunpack.c.l.b16 %v261
      %v730 = vunpack.c.l.b16 %v262
      %v731 = vunpack.c.l.b16 %v263
      %v732 = vunpack.c.l.b16 %v264
      %v733 = vunpack.c.l.b16 %v265
      %v734 = vunpack.c.l.b16 %v266
      %v735 = vunpack.c.l.b16 %v267
      %v736 = vunpack.c.l.b16 %v268
      %v737 = vunpack.c.l.b16 %v269
      %v738 = vunpack.c.l.b16 %v270
      %v739 = vunpack.c.l.b16 %v271
      %v740 = vunpack.c.l.b16 %v272
      %v741 = vunpack.c.l.b16 %v273
      %v742 = vunpack.c.l.b16 %v274
      %v743 = vunpack.c.l.b16 %v275
      %v744 = vunpack.c.l.b16 %v276
      %v745 = vunpack.c.l.b16 %v277
      %v746 = vunpack.c.l.b16 %v278
      %v747 = vunpack.c.l.b16 %v279
      %v748 = vunpack.c.l.b16 %v280
      %v749 = vunpack.c.l.b16 %v281
      %v750 = vunpack.c.l.b16 %v282
      %v751 = vunpack.c.l.b16 %v283
      %v752 = vunpack.c.l.b16 %v284
      %v753 = vunpack.c.l.b16 %v285
      %v754 = vunpack.c.l.b16 %v286
      %v755 = vunpack.c.l.b16 %v287
      %v756 = vunpack.c.l.b16 %v288
      %v757 = vunpack.c.l.b16 %v289
      %v758 = vunpack.c.l.b16 %v290
      %v759 = vunpack.c.l.b16 %v291
      %v760 = vunpack.c.l.b16 %v292
      %v761 = vunpack.c.l.b16 %v293
      %v762 = vunpack.c.l.b16 %v294
      %v763 = vunpack.c.l.b16 %v295
      %v764 = vunpack.c.l.b16 %v296
      %v765 = vunpack.c.l.b16 %v297
      %v766 = vunpack.c.l.b16 %v298
      %v767 = vunpack.c.l.b16 %v299
      %v768 = vunpack.c.l.b16 %v300
      %v769 = vunpack.c.l.b16 %v301
      %v770 = vunpack.c.l.b16 %v302
      %v771 = vunpack.c.l.b16 %v303
      %v772 = vunpack.c.l.b16 %v304
      %v773 = vunpack.c.l.b16 %v305
      %v774 = vunpack.c.l.b16 %v306
      %v775 = vunpack.c.l.b16 %v307
      %v776 = vunpack.c.l.b16 %v308
      %v777 = vunpack.c.l.b16 %v309
      %v778 = vunpack.c.l.b16 %v310
      %v779 = vunpack.c.l.b16 %v311
      %v780 = vunpack.c.l.b16 %v312
      %v781 = vunpack.c.l.b16 %v313
      %v782 = vunpack.c.l.b16 %v314
      %v783 = vunpack.c.l.b16 %v315
      %v784 = vunpack.c.l.b16 %v316
      %v785 = vunpack.c.l.b16 %v317
      %v786 = vunpack.c.l.b16 %v318
      %v787 = vunpack.c.l.b16 %v319
      %v788 = vunpack.c.l.b16 %v320
      %v789 = vunpack.c.l.b16 %v321
      %v790 = vunpack.c.l.b16 %v322
      %v791 = vunpack.c.l.b16 %v323
      %v792 = vunpack.c.l.b16 %v324
      %v793 = vpack.c.b16 %v722, %v721
      %v794 = vpack.c.b16 %v724, %v723
      %v795 = vpack.c.b16 %v726, %v725
      %v796 = vpack.c.b16 %v728, %v727
      %v797 = vpack.c.b16 %v730, %v729
      %v798 = vpack.c.b16 %v732, %v731
      %v799 = vpack.c.b16 %v734, %v733
      %v800 = vpack.c.b16 %v736, %v735
      %v801 = vpack.c.b16 %v738, %v737
      %v802 = vpack.c.b16 %v740, %v739
      %v803 = vpack.c.b16 %v742, %v741
      %v804 = vpack.c.b16 %v744, %v743
      %v805 = vpack.c.b16 %v746, %v745
      %v806 = vpack.c.b16 %v748, %v747
      %v807 = vpack.c.b16 %v750, %v749
      %v808 = vpack.c.b16 %v752, %v751
      %v809 = vpack.c.b16 %v754, %v753
      %v810 = vpack.c.b16 %v756, %v755
      %v811 = vpack.c.b16 %v758, %v757
      %v812 = vpack.c.b16 %v760, %v759
      %v813 = vpack.c.b16 %v762, %v761
      %v814 = vpack.c.b16 %v764, %v763
      %v815 = vpack.c.b16 %v766, %v765
      %v816 = vpack.c.b16 %v768, %v767
      %v817 = vpack.c.b16 %v770, %v769
      %v818 = vpack.c.b16 %v772, %v771
      %v819 = vpack.c.b16 %v774, %v773
      %v820 = vpack.c.b16 %v776, %v775
      %v821 = vpack.c.b16 %v778, %v777
      %v822 = vpack.c.b16 %v780, %v779
      %v823 = vpack.c.b16 %v782, %v781
      %v824 = vpack.c.b16 %v784, %v783
      %v825 = vpack.c.b16 %v786, %v785
      %v826 = vpack.c.b16 %v788, %v787
      %v827 = vpack.c.b16 %v790, %v789
      %v828 = vpack.c.b16 %v792, %v791
      %vm865 = vcmask 523264
      %v867 = vsel %vm865, %v536, 0
      %v870 = vsel %vm865, %v541, 0
      %v873 = vsel %vm865, %v546, 0
      %v876 = vsel %vm865, %v551, 0
      %v879 = vsel %vm865, %v556, 0
      %v882 = vsel %vm865, %v561, 0
      %v885 = vsel %vm865, %v566, 0
      %v888 = vsel %vm865, %v571, 0
      %v891 = vsel %vm865, %v576, 0
      %v894 = vsel %vm865, %v581, 0
      %v897 = vsel %vm865, %v586, 0
      %v900 = vsel %vm865, %v591, 0
      %v903 = vsel %vm865, %v596, 0
      %905 = vmatprep.subr.bf16.mxu0 0
      %906 = vmatpush1.bf16.msra.mxu0 %v793
      %907 = vmatprep.subr.bf16.mxu0 0
      %908 = vmatpush1.bf16.msra.mxu0 %v794
      %909 = vmatprep.subr.bf16.mxu0 0
      %910 = vmatpush1.bf16.msra.mxu0 %v795
      %911 = vmatprep.subr.bf16.mxu0 0
      %912 = vmatpush1.bf16.msra.mxu0 %v796
      %913 = vmatprep.subr.bf16.mxu0 0
      %914 = vmatpush1.bf16.msra.mxu0 %v797
      %915 = vmatprep.subr.bf16.mxu0 0
      %916 = vmatpush1.bf16.msra.mxu0 %v798
      %917 = vmatprep.subr.bf16.mxu0 0
      %918 = vmatpush1.bf16.msra.mxu0 %v799
      %919 = vmatprep.subr.bf16.mxu0 0
      %920 = vmatpush1.bf16.msra.mxu0 %v800
      %921 = vmatprep.subr.bf16.mxu0 0
      %922 = vmatpush1.bf16.msra.mxu0 %v801
      %923 = vmatprep.subr.bf16.mxu0 0
      %924 = vmatpush1.bf16.msra.mxu0 %v802
      %925 = vmatprep.subr.bf16.mxu0 0
      %926 = vmatpush1.bf16.msra.mxu0 %v803
      %927 = vmatprep.subr.bf16.mxu0 0
      %928 = vmatpush1.bf16.msra.mxu0 %v804
      %929 = vmatprep.subr.bf16.mxu0 0
      %930 = vmatpush1.bf16.msra.mxu0 %v805
      %931 = vmatprep.subr.bf16.mxu0 0
      %932 = vmatpush1.bf16.msra.mxu0 %v806
      %933 = vmatprep.subr.bf16.mxu0 0
      %934 = vmatpush1.bf16.msra.mxu0 %v807
      %935 = vmatprep.subr.bf16.mxu0 0
      %936 = vmatpush1.bf16.msra.mxu0 %v808
      %937 = vmatprep.mubr.bf16.mxu0 %v533
      %938 = vmatmul.mubr.bf16.gmra.mrb[0].mxu0 %v532
      %v939 = vpop.f32.mrb[0].mxu0
      %v940 = vadd.f32 %v330, %v939
      %v941 = vpop.f32.mrb[0].mxu0
      %v942 = vpop.f32.mrb[0].mxu0
      %v943 = vadd.f32 %v330, %v942
      %v944 = vpop.f32.mrb[0].mxu0
      %945 = vmatprep.mubr.bf16.mxu0 %v538
      %946 = vmatmul.mubr.bf16.gmra.mrb[0].mxu0 %v537
      %v947 = vpop.f32.mrb[0].mxu0
      %v948 = vadd.f32 %v330, %v947
      %v949 = vpop.f32.mrb[0].mxu0
      %v950 = vpop.f32.mrb[0].mxu0
      %v951 = vadd.f32 %v330, %v950
      %v952 = vpop.f32.mrb[0].mxu0
      %953 = vmatprep.mubr.bf16.mxu0 %v543
      %954 = vmatmul.mubr.bf16.gmra.mrb[0].mxu0 %v542
      %v955 = vpop.f32.mrb[0].mxu0
      %v956 = vadd.f32 %v330, %v955
      %v957 = vpop.f32.mrb[0].mxu0
      %v958 = vpop.f32.mrb[0].mxu0
      %v959 = vadd.f32 %v330, %v958
      %v960 = vpop.f32.mrb[0].mxu0
      %961 = vmatprep.mubr.bf16.mxu0 %v548
      %962 = vmatmul.mubr.bf16.gmra.mrb[0].mxu0 %v547
      %v963 = vpop.f32.mrb[0].mxu0
      %v964 = vadd.f32 %v330, %v963
      %v965 = vpop.f32.mrb[0].mxu0
      %v966 = vpop.f32.mrb[0].mxu0
      %v967 = vadd.f32 %v330, %v966
      %v968 = vpop.f32.mrb[0].mxu0
      %969 = vmatprep.mubr.bf16.mxu0 %v553
      %970 = vmatmul.mubr.bf16.gmra.mrb[0].mxu0 %v552
      %v971 = vpop.f32.mrb[0].mxu0
      %v972 = vadd.f32 %v330, %v971
      %v973 = vpop.f32.mrb[0].mxu0
      %v974 = vpop.f32.mrb[0].mxu0
      %v975 = vadd.f32 %v330, %v974
      %v976 = vpop.f32.mrb[0].mxu0
      %977 = vmatprep.mubr.bf16.mxu0 %v558
      %978 = vmatmul.mubr.bf16.gmra.mrb[0].mxu0 %v557
      %v979 = vpop.f32.mrb[0].mxu0
      %v980 = vadd.f32 %v330, %v979
      %v981 = vpop.f32.mrb[0].mxu0
      %v982 = vpop.f32.mrb[0].mxu0
      %v983 = vadd.f32 %v330, %v982
      %v984 = vpop.f32.mrb[0].mxu0
      %985 = vmatprep.mubr.bf16.mxu0 %v563
      %986 = vmatmul.mubr.bf16.gmra.mrb[0].mxu0 %v562
      %v987 = vpop.f32.mrb[0].mxu0
      %v988 = vadd.f32 %v330, %v987
      %v989 = vpop.f32.mrb[0].mxu0
      %v990 = vpop.f32.mrb[0].mxu0
      %v991 = vadd.f32 %v330, %v990
      %v992 = vpop.f32.mrb[0].mxu0
      %993 = vmatprep.mubr.bf16.mxu0 %v568
      %994 = vmatmul.mubr.bf16.gmra.mrb[0].mxu0 %v567
      %v995 = vpop.f32.mrb[0].mxu0
      %v996 = vadd.f32 %v330, %v995
      %v997 = vpop.f32.mrb[0].mxu0
      %v998 = vpop.f32.mrb[0].mxu0
      %v999 = vadd.f32 %v330, %v998
      %v1000 = vpop.f32.mrb[0].mxu0
      %1001 = vmatprep.mubr.bf16.mxu0 %v573
      %1002 = vmatmul.mubr.bf16.gmra.mrb[0].mxu0 %v572
      %v1003 = vpop.f32.mrb[0].mxu0
      %v1004 = vadd.f32 %v330, %v1003
      %v1005 = vpop.f32.mrb[0].mxu0
      %v1006 = vpop.f32.mrb[0].mxu0
      %v1007 = vadd.f32 %v330, %v1006
      %v1008 = vpop.f32.mrb[0].mxu0
      %1009 = vmatprep.mubr.bf16.mxu0 %v578
      %1010 = vmatmul.mubr.bf16.gmra.mrb[0].mxu0 %v577
      %v1011 = vpop.f32.mrb[0].mxu0
      %v1012 = vadd.f32 %v330, %v1011
      %v1013 = vpop.f32.mrb[0].mxu0
      %v1014 = vpop.f32.mrb[0].mxu0
      %v1015 = vadd.f32 %v330, %v1014
      %v1016 = vpop.f32.mrb[0].mxu0
      %1017 = vmatprep.mubr.bf16.mxu0 %v583
      %1018 = vmatmul.mubr.bf16.gmra.mrb[0].mxu0 %v582
      %v1019 = vpop.f32.mrb[0].mxu0
      %v1020 = vadd.f32 %v330, %v1019
      %v1021 = vpop.f32.mrb[0].mxu0
      %v1022 = vpop.f32.mrb[0].mxu0
      %v1023 = vadd.f32 %v330, %v1022
      %v1024 = vpop.f32.mrb[0].mxu0
      %1025 = vmatprep.mubr.bf16.mxu0 %v588
      %1026 = vmatmul.mubr.bf16.gmra.mrb[0].mxu0 %v587
      %v1027 = vpop.f32.mrb[0].mxu0
      %v1028 = vadd.f32 %v330, %v1027
      %v1029 = vpop.f32.mrb[0].mxu0
      %v1030 = vpop.f32.mrb[0].mxu0
      %v1031 = vadd.f32 %v330, %v1030
      %v1032 = vpop.f32.mrb[0].mxu0
      %1033 = vmatprep.mubr.bf16.mxu0 %v593
      %1034 = vmatmul.mubr.bf16.gmra.mrb[0].mxu0 %v592
      %v1035 = vpop.f32.mrb[0].mxu0
      %v1036 = vadd.f32 %v330, %v1035
      %v1037 = vpop.f32.mrb[0].mxu0
      %v1038 = vpop.f32.mrb[0].mxu0
      %v1039 = vpop.f32.mrb[0].mxu0
      %1040 = vdwg.mxu0
      %1041 = vmatprep.subr.bf16.mxu0 0
      %1042 = vmatpush1.bf16.msra.mxu0 %v809
      %1043 = vmatprep.subr.bf16.mxu0 0
      %1044 = vmatpush1.bf16.msra.mxu0 %v810
      %1045 = vmatprep.subr.bf16.mxu0 0
      %1046 = vmatpush1.bf16.msra.mxu0 %v811
      %1047 = vmatprep.subr.bf16.mxu0 0
      %1048 = vmatpush1.bf16.msra.mxu0 %v812
      %1049 = vmatprep.subr.bf16.mxu0 0
      %1050 = vmatpush1.bf16.msra.mxu0 %v813
      %1051 = vmatprep.subr.bf16.mxu0 0
      %1052 = vmatpush1.bf16.msra.mxu0 %v814
      %1053 = vmatprep.subr.bf16.mxu0 0
      %1054 = vmatpush1.bf16.msra.mxu0 %v815
      %1055 = vmatprep.subr.bf16.mxu0 0
      %1056 = vmatpush1.bf16.msra.mxu0 %v816
      %1057 = vmatprep.subr.bf16.mxu0 0
      %1058 = vmatpush1.bf16.msra.mxu0 %v817
      %1059 = vmatprep.subr.bf16.mxu0 0
      %1060 = vmatpush1.bf16.msra.mxu0 %v818
      %1061 = vmatprep.subr.bf16.mxu0 0
      %1062 = vmatpush1.bf16.msra.mxu0 %v819
      %1063 = vmatprep.subr.bf16.mxu0 0
      %1064 = vmatpush1.bf16.msra.mxu0 %v820
      %1065 = vmatprep.subr.bf16.mxu0 0
      %1066 = vmatpush1.bf16.msra.mxu0 %v821
      %1067 = vmatprep.subr.bf16.mxu0 0
      %1068 = vmatpush1.bf16.msra.mxu0 %v822
      %1069 = vmatprep.subr.bf16.mxu0 0
      %1070 = vmatpush1.bf16.msra.mxu0 %v823
      %1071 = vmatprep.subr.bf16.mxu0 0
      %1072 = vmatpush1.bf16.msra.mxu0 %v824
      %1073 = vmatprep.mubr.bf16.mxu0 %v535
      %1074 = vmatmul.mubr.bf16.gmra.mrb[0].mxu0 %v534
      %v1075 = vpop.f32.mrb[0].mxu0
      %v1076 = vadd.f32 %v940, %v1075
      %v1077 = vpop.f32.mrb[0].mxu0
      %v1078 = vpop.f32.mrb[0].mxu0
      %v1079 = vadd.f32 %v943, %v1078
      %v1080 = vpop.f32.mrb[0].mxu0
      %1081 = vmatprep.mubr.bf16.mxu0 %v540
      %1082 = vmatmul.mubr.bf16.gmra.mrb[0].mxu0 %v539
      %v1083 = vpop.f32.mrb[0].mxu0
      %v1084 = vadd.f32 %v948, %v1083
      %v1085 = vpop.f32.mrb[0].mxu0
      %v1086 = vpop.f32.mrb[0].mxu0
      %v1087 = vadd.f32 %v951, %v1086
      %v1088 = vpop.f32.mrb[0].mxu0
      %1089 = vmatprep.mubr.bf16.mxu0 %v545
      %1090 = vmatmul.mubr.bf16.gmra.mrb[0].mxu0 %v544
      %v1091 = vpop.f32.mrb[0].mxu0
      %v1092 = vadd.f32 %v956, %v1091
      %v1093 = vpop.f32.mrb[0].mxu0
      %v1094 = vpop.f32.mrb[0].mxu0
      %v1095 = vadd.f32 %v959, %v1094
      %v1096 = vpop.f32.mrb[0].mxu0
      %1097 = vmatprep.mubr.bf16.mxu0 %v550
      %1098 = vmatmul.mubr.bf16.gmra.mrb[0].mxu0 %v549
      %v1099 = vpop.f32.mrb[0].mxu0
      %v1100 = vadd.f32 %v964, %v1099
      %v1101 = vpop.f32.mrb[0].mxu0
      %v1102 = vpop.f32.mrb[0].mxu0
      %v1103 = vadd.f32 %v967, %v1102
      %v1104 = vpop.f32.mrb[0].mxu0
      %1105 = vmatprep.mubr.bf16.mxu0 %v555
      %1106 = vmatmul.mubr.bf16.gmra.mrb[0].mxu0 %v554
      %v1107 = vpop.f32.mrb[0].mxu0
      %v1108 = vadd.f32 %v972, %v1107
      %v1109 = vpop.f32.mrb[0].mxu0
      %v1110 = vpop.f32.mrb[0].mxu0
      %v1111 = vadd.f32 %v975, %v1110
      %v1112 = vpop.f32.mrb[0].mxu0
      %1113 = vmatprep.mubr.bf16.mxu0 %v560
      %1114 = vmatmul.mubr.bf16.gmra.mrb[0].mxu0 %v559
      %v1115 = vpop.f32.mrb[0].mxu0
      %v1116 = vadd.f32 %v980, %v1115
      %v1117 = vpop.f32.mrb[0].mxu0
      %v1118 = vpop.f32.mrb[0].mxu0
      %v1119 = vadd.f32 %v983, %v1118
      %v1120 = vpop.f32.mrb[0].mxu0
      %1121 = vmatprep.mubr.bf16.mxu0 %v565
      %1122 = vmatmul.mubr.bf16.gmra.mrb[0].mxu0 %v564
      %v1123 = vpop.f32.mrb[0].mxu0
      %v1124 = vadd.f32 %v988, %v1123
      %v1125 = vpop.f32.mrb[0].mxu0
      %v1126 = vpop.f32.mrb[0].mxu0
      %v1127 = vadd.f32 %v991, %v1126
      %v1128 = vpop.f32.mrb[0].mxu0
      %1129 = vmatprep.mubr.bf16.mxu0 %v570
      %1130 = vmatmul.mubr.bf16.gmra.mrb[0].mxu0 %v569
      %v1131 = vpop.f32.mrb[0].mxu0
      %v1132 = vadd.f32 %v996, %v1131
      %v1133 = vpop.f32.mrb[0].mxu0
      %v1134 = vpop.f32.mrb[0].mxu0
      %v1135 = vadd.f32 %v999, %v1134
      %v1136 = vpop.f32.mrb[0].mxu0
      %1137 = vmatprep.mubr.bf16.mxu0 %v575
      %1138 = vmatmul.mubr.bf16.gmra.mrb[0].mxu0 %v574
      %v1139 = vpop.f32.mrb[0].mxu0
      %v1140 = vadd.f32 %v1004, %v1139
      %v1141 = vpop.f32.mrb[0].mxu0
      %v1142 = vpop.f32.mrb[0].mxu0
      %v1143 = vadd.f32 %v1007, %v1142
      %v1144 = vpop.f32.mrb[0].mxu0
      %1145 = vmatprep.mubr.bf16.mxu0 %v580
      %1146 = vmatmul.mubr.bf16.gmra.mrb[0].mxu0 %v579
      %v1147 = vpop.f32.mrb[0].mxu0
      %v1148 = vadd.f32 %v1012, %v1147
      %v1149 = vpop.f32.mrb[0].mxu0
      %v1150 = vpop.f32.mrb[0].mxu0
      %v1151 = vadd.f32 %v1015, %v1150
      %v1152 = vpop.f32.mrb[0].mxu0
      %1153 = vmatprep.mubr.bf16.mxu0 %v585
      %1154 = vmatmul.mubr.bf16.gmra.mrb[0].mxu0 %v584
      %v1155 = vpop.f32.mrb[0].mxu0
      %v1156 = vadd.f32 %v1020, %v1155
      %v1157 = vpop.f32.mrb[0].mxu0
      %v1158 = vpop.f32.mrb[0].mxu0
      %v1159 = vadd.f32 %v1023, %v1158
      %v1160 = vpop.f32.mrb[0].mxu0
      %1161 = vmatprep.mubr.bf16.mxu0 %v590
      %1162 = vmatmul.mubr.bf16.gmra.mrb[0].mxu0 %v589
      %v1163 = vpop.f32.mrb[0].mxu0
      %v1164 = vadd.f32 %v1028, %v1163
      %v1165 = vpop.f32.mrb[0].mxu0
      %v1166 = vpop.f32.mrb[0].mxu0
      %v1167 = vadd.f32 %v1031, %v1166
      %v1168 = vpop.f32.mrb[0].mxu0
      %1169 = vmatprep.mubr.bf16.mxu0 %v595
      %1170 = vmatmul.mubr.bf16.gmra.mrb[0].mxu0 %v594
      %v1171 = vpop.f32.mrb[0].mxu0
      %v1172 = vadd.f32 %v1036, %v1171
      %v1173 = vpop.f32.mrb[0].mxu0
      %v1174 = vpop.f32.mrb[0].mxu0
      %v1175 = vpop.f32.mrb[0].mxu0
      %1176 = vdwg.mxu0
      %1177 = vmatprep.subr.bf16.mxu0 0
      %1178 = vmatpush1.bf16.msra.mxu0 %v825
      %1179 = vmatprep.subr.bf16.mxu0 0
      %1180 = vmatpush1.bf16.msra.mxu0 %v826
      %1181 = vmatprep.subr.bf16.mxu0 0
      %1182 = vmatpush1.bf16.msra.mxu0 %v827
      %1183 = vmatprep.subr.bf16.mxu0 0
      %1184 = vmatpush1.bf16.msra.mxu0 %v828
      %1185 = vmatprep.subr.bf16.mxu0 0
      %1186 = vmatpush1.bf16.msra.mxu0 0
      %1187 = vmatprep.subr.bf16.mxu0 0
      %1188 = vmatpush1.bf16.msra.mxu0 0
      %1189 = vmatprep.subr.bf16.mxu0 0
      %1190 = vmatpush1.bf16.msra.mxu0 0
      %1191 = vmatprep.subr.bf16.mxu0 0
      %1192 = vmatpush1.bf16.msra.mxu0 0
      %1193 = vmatprep.subr.bf16.mxu0 0
      %1194 = vmatpush1.bf16.msra.mxu0 0
      %1195 = vmatprep.subr.bf16.mxu0 0
      %1196 = vmatpush1.bf16.msra.mxu0 0
      %1197 = vmatprep.subr.bf16.mxu0 0
      %1198 = vmatpush1.bf16.msra.mxu0 0
      %1199 = vmatprep.subr.bf16.mxu0 0
      %1200 = vmatpush1.bf16.msra.mxu0 0
      %1201 = vmatprep.subr.bf16.mxu0 0
      %1202 = vmatpush1.bf16.msra.mxu0 0
      %1203 = vmatprep.subr.bf16.mxu0 0
      %1204 = vmatpush1.bf16.msra.mxu0 0
      %1205 = vmatprep.subr.bf16.mxu0 0
      %1206 = vmatpush1.bf16.msra.mxu0 0
      %1207 = vmatprep.subr.bf16.mxu0 0
      %1208 = vmatpush1.bf16.msra.mxu0 0
      %1209 = vmatprep.mubr.bf16.mxu0 0
      %1210 = vmatmul.mubr.bf16.gmra.mrb[0].mxu0 %v867
      %v1211 = vpop.f32.mrb[0].mxu0
      %v1212 = vadd.f32 %v1076, %v1211
      %v1213 = vpop.f32.mrb[0].mxu0
      %v1214 = vpop.f32.mrb[0].mxu0
      %v1215 = vadd.f32 %v1079, %v1214
      %v1216 = vpop.f32.mrb[0].mxu0
      %1217 = vmatprep.mubr.bf16.mxu0 0
      %1218 = vmatmul.mubr.bf16.gmra.mrb[0].mxu0 %v870
      %v1219 = vpop.f32.mrb[0].mxu0
      %v1220 = vadd.f32 %v1084, %v1219
      %v1221 = vpop.f32.mrb[0].mxu0
      %v1222 = vpop.f32.mrb[0].mxu0
      %v1223 = vadd.f32 %v1087, %v1222
      %v1224 = vpop.f32.mrb[0].mxu0
      %1225 = vmatprep.mubr.bf16.mxu0 0
      %1226 = vmatmul.mubr.bf16.gmra.mrb[0].mxu0 %v873
      %v1227 = vpop.f32.mrb[0].mxu0
      %v1228 = vadd.f32 %v1092, %v1227
      %v1229 = vpop.f32.mrb[0].mxu0
      %v1230 = vpop.f32.mrb[0].mxu0
      %v1231 = vadd.f32 %v1095, %v1230
      %v1232 = vpop.f32.mrb[0].mxu0
      %1233 = vmatprep.mubr.bf16.mxu0 0
      %1234 = vmatmul.mubr.bf16.gmra.mrb[0].mxu0 %v876
      %v1235 = vpop.f32.mrb[0].mxu0
      %v1236 = vadd.f32 %v1100, %v1235
      %v1237 = vpop.f32.mrb[0].mxu0
      %v1238 = vpop.f32.mrb[0].mxu0
      %v1239 = vadd.f32 %v1103, %v1238
      %v1240 = vpop.f32.mrb[0].mxu0
      %1241 = vmatprep.mubr.bf16.mxu0 0
      %1242 = vmatmul.mubr.bf16.gmra.mrb[0].mxu0 %v879
      %v1243 = vpop.f32.mrb[0].mxu0
      %v1244 = vadd.f32 %v1108, %v1243
      %v1245 = vpop.f32.mrb[0].mxu0
      %v1246 = vpop.f32.mrb[0].mxu0
      %v1247 = vadd.f32 %v1111, %v1246
      %v1248 = vpop.f32.mrb[0].mxu0
      %1249 = vmatprep.mubr.bf16.mxu0 0
      %1250 = vmatmul.mubr.bf16.gmra.mrb[0].mxu0 %v882
      %v1251 = vpop.f32.mrb[0].mxu0
      %v1252 = vadd.f32 %v1116, %v1251
      %v1253 = vpop.f32.mrb[0].mxu0
      %v1254 = vpop.f32.mrb[0].mxu0
      %v1255 = vadd.f32 %v1119, %v1254
      %v1256 = vpop.f32.mrb[0].mxu0
      %1257 = vmatprep.mubr.bf16.mxu0 0
      %1258 = vmatmul.mubr.bf16.gmra.mrb[0].mxu0 %v885
      %v1259 = vpop.f32.mrb[0].mxu0
      %v1260 = vadd.f32 %v1124, %v1259
      %v1261 = vpop.f32.mrb[0].mxu0
      %v1262 = vpop.f32.mrb[0].mxu0
      %v1263 = vadd.f32 %v1127, %v1262
      %v1264 = vpop.f32.mrb[0].mxu0
      %1265 = vmatprep.mubr.bf16.mxu0 0
      %1266 = vmatmul.mubr.bf16.gmra.mrb[0].mxu0 %v888
      %v1267 = vpop.f32.mrb[0].mxu0
      %v1268 = vadd.f32 %v1132, %v1267
      %v1269 = vpop.f32.mrb[0].mxu0
      %v1270 = vpop.f32.mrb[0].mxu0
      %v1271 = vadd.f32 %v1135, %v1270
      %v1272 = vpop.f32.mrb[0].mxu0
      %1273 = vmatprep.mubr.bf16.mxu0 0
      %1274 = vmatmul.mubr.bf16.gmra.mrb[0].mxu0 %v891
      %v1275 = vpop.f32.mrb[0].mxu0
      %v1276 = vadd.f32 %v1140, %v1275
      %v1277 = vpop.f32.mrb[0].mxu0
      %v1278 = vpop.f32.mrb[0].mxu0
      %v1279 = vadd.f32 %v1143, %v1278
      %v1280 = vpop.f32.mrb[0].mxu0
      %1281 = vmatprep.mubr.bf16.mxu0 0
      %1282 = vmatmul.mubr.bf16.gmra.mrb[0].mxu0 %v894
      %v1283 = vpop.f32.mrb[0].mxu0
      %v1284 = vadd.f32 %v1148, %v1283
      %v1285 = vpop.f32.mrb[0].mxu0
      %v1286 = vpop.f32.mrb[0].mxu0
      %v1287 = vadd.f32 %v1151, %v1286
      %v1288 = vpop.f32.mrb[0].mxu0
      %1289 = vmatprep.mubr.bf16.mxu0 0
      %1290 = vmatmul.mubr.bf16.gmra.mrb[0].mxu0 %v897
      %v1291 = vpop.f32.mrb[0].mxu0
      %v1292 = vadd.f32 %v1156, %v1291
      %v1293 = vpop.f32.mrb[0].mxu0
      %v1294 = vpop.f32.mrb[0].mxu0
      %v1295 = vadd.f32 %v1159, %v1294
      %v1296 = vpop.f32.mrb[0].mxu0
      %1297 = vmatprep.mubr.bf16.mxu0 0
      %1298 = vmatmul.mubr.bf16.gmra.mrb[0].mxu0 %v900
      %v1299 = vpop.f32.mrb[0].mxu0
      %v1300 = vadd.f32 %v1164, %v1299
      %v1301 = vpop.f32.mrb[0].mxu0
      %v1302 = vpop.f32.mrb[0].mxu0
      %v1303 = vadd.f32 %v1167, %v1302
      %v1304 = vpop.f32.mrb[0].mxu0
      %1305 = vmatprep.mubr.bf16.mxu0 0
      %1306 = vmatmul.mubr.bf16.gmra.mrb[0].mxu0 %v903
      %v1307 = vpop.f32.mrb[0].mxu0
      %v1308 = vadd.f32 %v1172, %v1307
      %v1309 = vpop.f32.mrb[0].mxu0
      %v1310 = vpop.f32.mrb[0].mxu0
      %v1311 = vpop.f32.mrb[0].mxu0
      %1312 = vdwg.mxu0
      %v1313 = vmax.f32 %v1212, 0.0
      %v1314 = vmax.f32 %v1215, 0.0
      %v1315 = vmax.f32 %v1220, 0.0
      %v1316 = vmax.f32 %v1223, 0.0
      %v1317 = vmax.f32 %v1228, 0.0
      %v1318 = vmax.f32 %v1231, 0.0
      %v1319 = vmax.f32 %v1236, 0.0
      %v1320 = vmax.f32 %v1239, 0.0
      %v1321 = vmax.f32 %v1244, 0.0
      %v1322 = vmax.f32 %v1247, 0.0
      %v1323 = vmax.f32 %v1252, 0.0
      %v1324 = vmax.f32 %v1255, 0.0
      %v1325 = vmax.f32 %v1260, 0.0
      %v1326 = vmax.f32 %v1263, 0.0
      %v1327 = vmax.f32 %v1268, 0.0
      %v1328 = vmax.f32 %v1271, 0.0
      %v1329 = vmax.f32 %v1276, 0.0
      %v1330 = vmax.f32 %v1279, 0.0
      %v1331 = vmax.f32 %v1284, 0.0
      %v1332 = vmax.f32 %v1287, 0.0
      %v1333 = vmax.f32 %v1292, 0.0
      %v1334 = vmax.f32 %v1295, 0.0
      %v1335 = vmax.f32 %v1300, 0.0
      %v1336 = vmax.f32 %v1303, 0.0
      %v1337 = vmax.f32 %v1308, 0.0
      %v1338 = vpack.c.bf16 %v1314, %v1313
      %v1339 = vpack.c.bf16 %v1316, %v1315
      %v1340 = vpack.c.bf16 %v1318, %v1317
      %v1341 = vpack.c.bf16 %v1320, %v1319
      %v1342 = vpack.c.bf16 %v1322, %v1321
      %v1343 = vpack.c.bf16 %v1324, %v1323
      %v1344 = vpack.c.bf16 %v1326, %v1325
      %v1345 = vpack.c.bf16 %v1328, %v1327
      %v1346 = vpack.c.bf16 %v1330, %v1329
      %v1347 = vpack.c.bf16 %v1332, %v1331
      %v1348 = vpack.c.bf16 %v1334, %v1333
      %v1349 = vpack.c.bf16 %v1336, %v1335
      %v1350 = vpack.c.bf16 %v1337, %v1337
      %v1364 = vunpack.c.l.b16 %v1338
      %v1365 = vunpack.c.h.b16 %v1338
      %v1366 = vunpack.c.l.b16 %v1339
      %v1367 = vunpack.c.h.b16 %v1339
      %v1368 = vunpack.c.l.b16 %v1340
      %v1369 = vunpack.c.h.b16 %v1340
      %v1370 = vunpack.c.l.b16 %v1341
      %v1371 = vunpack.c.h.b16 %v1341
      %v1372 = vunpack.c.l.b16 %v1342
      %v1373 = vunpack.c.h.b16 %v1342
      %v1374 = vunpack.c.l.b16 %v1343
      %v1375 = vunpack.c.h.b16 %v1343
      %v1376 = vunpack.c.l.b16 %v1344
      %v1377 = vunpack.c.h.b16 %v1344
      %v1378 = vunpack.c.l.b16 %v1345
      %v1379 = vunpack.c.h.b16 %v1345
      %v1380 = vunpack.c.l.b16 %v1346
      %v1381 = vunpack.c.h.b16 %v1346
      %v1382 = vunpack.c.l.b16 %v1347
      %v1383 = vunpack.c.h.b16 %v1347
      %v1384 = vunpack.c.l.b16 %v1348
      %v1385 = vunpack.c.h.b16 %v1348
      %v1386 = vunpack.c.l.b16 %v1349
      %v1387 = vunpack.c.h.b16 %v1349
      %v1388 = vunpack.c.l.b16 %v1350
      %v1389 = vpack.c.b16 %v1364, %v1364
      %v1390 = vpack.c.b16 %v1365, %v1365
      %v1391 = vpack.c.b16 %v1366, %v1366
      %v1392 = vpack.c.b16 %v1367, %v1367
      %v1393 = vpack.c.b16 %v1368, %v1368
      %v1394 = vpack.c.b16 %v1369, %v1369
      %v1395 = vpack.c.b16 %v1370, %v1370
      %v1396 = vpack.c.b16 %v1371, %v1371
      %v1397 = vpack.c.b16 %v1372, %v1372
      %v1398 = vpack.c.b16 %v1373, %v1373
      %v1399 = vpack.c.b16 %v1374, %v1374
      %v1400 = vpack.c.b16 %v1375, %v1375
      %v1401 = vpack.c.b16 %v1376, %v1376
      %v1402 = vpack.c.b16 %v1377, %v1377
      %v1403 = vpack.c.b16 %v1378, %v1378
      %v1404 = vpack.c.b16 %v1379, %v1379
      %v1405 = vpack.c.b16 %v1380, %v1380
      %v1406 = vpack.c.b16 %v1381, %v1381
      %v1407 = vpack.c.b16 %v1382, %v1382
      %v1408 = vpack.c.b16 %v1383, %v1383
      %v1409 = vpack.c.b16 %v1384, %v1384
      %v1410 = vpack.c.b16 %v1385, %v1385
      %v1411 = vpack.c.b16 %v1386, %v1386
      %v1412 = vpack.c.b16 %v1387, %v1387
      %v1413 = vpack.c.b16 %v1388, %v1388
      %1439 = vst [vmem:[%s175] sm:$0xf] %v1389
      %1440 = vst [vmem:[%s175 + $0x4] sm:$0xf] %v1390
      %1441 = vst [vmem:[%s175 + $0x8] sm:$0xf] %v1391
      %1442 = vst [vmem:[%s175 + $0xc] sm:$0xf] %v1392
      %1443 = vst [vmem:[%s175 + $0x10] sm:$0xf] %v1393
      %1444 = vst [vmem:[%s175 + $0x14] sm:$0xf] %v1394
      %1445 = vst [vmem:[%s175 + $0x18] sm:$0xf] %v1395
      %1446 = vst [vmem:[%s175 + $0x1c] sm:$0xf] %v1396
      %1447 = vst [vmem:[%s175 + $0x20] sm:$0xf] %v1397
      %1448 = vst [vmem:[%s175 + $0x24] sm:$0xf] %v1398
      %1449 = vst [vmem:[%s175 + $0x28] sm:$0xf] %v1399
      %1450 = vst [vmem:[%s175 + $0x2c] sm:$0xf] %v1400
      %1451 = vst [vmem:[%s175 + $0x30] sm:$0xf] %v1401
      %1452 = vst [vmem:[%s175 + $0x34] sm:$0xf] %v1402
      %1453 = vst [vmem:[%s175 + $0x38] sm:$0xf] %v1403
      %1454 = vst [vmem:[%s175 + $0x3c] sm:$0xf] %v1404
      %1455 = vst [vmem:[%s175 + $0x40] sm:$0xf] %v1405
      %1456 = vst [vmem:[%s175 + $0x44] sm:$0xf] %v1406
      %1457 = vst [vmem:[%s175 + $0x48] sm:$0xf] %v1407
      %1458 = vst [vmem:[%s175 + $0x4c] sm:$0xf] %v1408
      %1459 = vst [vmem:[%s175 + $0x50] sm:$0xf] %v1409
      %1460 = vst [vmem:[%s175 + $0x54] sm:$0xf] %v1410
      %1461 = vst [vmem:[%s175 + $0x58] sm:$0xf] %v1411
      %1462 = vst [vmem:[%s175 + $0x5c] sm:$0xf] %v1412
      %1463 = vst [vmem:[%s175 + $0x60] sm:$0xf] %v1413
      %s1464 = smul.u32 25, %s14
      %p1465 = scmp.lt.s32.totalorder %s1464, 49
      %s1466 = scalar_select %p1465, %s1464, 49
      %s1467 = smul.addr %s1466, 4
      %s1468 = scalar_lea.vmem %s3, %s1467
      // Predicated region
      $region33: #{lstm_conv_forward.8} parent=31 // pred_check
        %p1469 = pneg %p100
      $region34: #{lstm_conv_forward.8} parent=31 // pred_check_branch
        %1471 = sbr.rel (%p1469) target = $region36
      $region35: #{lstm_conv_forward.8} parent=31 // pred_region
        %s1472 = smul.u32 25, %s14
      $region36: #{lstm_conv_forward.8} parent=31 // pred_fallthru
        _
    $region32: #{lstm_conv_forward.8} parent=5 // pred_fallthru
      _
    %p1473 = scmp.le.s32.totalorder 2, %s9
    // Predicated region
    $region37: #{lstm_conv_forward.8} parent=5 // pred_check
      %p1474 = pneg %p1473
    $region38: #{lstm_conv_forward.8} parent=5 // pred_check_branch
      %1476 = sbr.rel (%p1474) target = $region40
    $region39: #{lstm_conv_forward.8} parent=5 // pred_region
      %s1477 = ssub.s32 %s9, 2
      // Predicated region
      $region41: #{lstm_conv_forward.8} parent=39 // pred_check
        %p1478 = pneg %p106
      $region42: #{lstm_conv_forward.8} parent=39 // pred_check_branch
        %1480 = sbr.rel (%p1478) target = $region44
      $region43: #{lstm_conv_forward.8} parent=39 // pred_region
        %s1481 = smul.u32 25, %s15
        %p1482 = scmp.lt.s32.totalorder %s1481, 49
        %s1483 = scalar_select %p1482, %s1481, 49
        %s1484 = smul.addr %s1483, 4
        %s1485 = scalar_lea.vmem %s3, %s1484
      $region44: #{lstm_conv_forward.8} parent=39 // pred_fallthru
        _
    $region40: #{lstm_conv_forward.8} parent=5 // pred_fallthru
      _
  $region6: #{lstm_conv_forward.8} parent=0 // loop_footer
    %s13 = sadd.s32 1, %s9
  $region7: #{lstm_conv_forward.8} parent=0 // loop_footer_branch
    %8 = sbr.rel target = $region3
  $region8: #{lstm_conv_forward.8} parent=0 // loop_exit
    _

// kernel: lstm_conv_forward.10
$region0: #{lstm_conv_forward.10}
  #allocation0 [shape = 'u32[]', space=smem, size = 0x4, offset = 0x4, fixed_abs, tag = 'smem constant byte address 0x4 - core index']
  #allocation1 [shape = 'u32[144,128]{1,0:T(1,128)}', space=vmem, size = 0x12000, scoped, tag = 'internal scratch']
  %s0 = inlined_call_operand.vmem [shape: f32[4,2,512], index: 0, kind: input, shape index: {}]
  %s1 = inlined_call_operand.vmem [shape: f32[4,2,1], index: 1, kind: input, shape index: {}]
  %s2 = inlined_call_operand.vmem [shape: f32[2,128], index: 2, kind: input, shape index: {}]
  %s3 = inlined_call_operand.vmem [shape: f32[2,128], index: 3, kind: input, shape index: {}]
  %s4 = inlined_call_operand.vmem [shape: bf16[128,512], index: 4, kind: input, shape index: {}]
  %s5 = inlined_call_operand.vmem [shape: f32[4,2,128], index: 5, kind: output, shape index: {0}]
  %s6 = inlined_call_operand.hbm [shape: f32[2,128], index: 6, kind: output, shape index: {1}]
  %s7 = inlined_call_operand.hbm [shape: f32[2,128], index: 7, kind: output, shape index: {2}]
  %8 = xla_tuple %s5, %s6, %s7
  %s9 = sld [smem:[#allocation0]]
  $region46: #{lstm_conv_forward.10} parent=0
    _
  %s11 = ssub.s32 1, %s9
  %s12 = scalar_select 0, %s11, %s9
  $region1: #{lstm_conv_forward.10} parent=0
    #allocation2 [shape = 'u8[1024]{0}', space=vmem, size = 0x400, scoped, tag = 'output window, operand 1, single buffered']
    #allocation3 [shape = 's32[1]{0}', space=sflag, size = 0x4, scoped, tag = 'scoped memory for lstm_conv_forward.10']
    #allocation4 [shape = 'u8[1024]{0}', space=vmem, size = 0x400, scoped, tag = 'output window, operand 2, single buffered']
    #allocation5 [shape = 's32[1]{0}', space=sflag, size = 0x4, scoped, tag = 'scoped memory for lstm_conv_forward.10']
    %13 = vsyncpa [#allocation3], 0
    %14 = vsyncpa [#allocation5], 0
    // Predicated region
    $region2: #{lstm_conv_forward.10} parent=1 // pred_check
      _
    $region3: #{lstm_conv_forward.10} parent=1 // pred_check_branch
      %16 = sbr.rel (0) target = $region5
    $region4: #{lstm_conv_forward.10} parent=1 // pred_region
      _
    $region5: #{lstm_conv_forward.10} parent=1 // pred_fallthru
      _
    // Predicated region
    $region6: #{lstm_conv_forward.10} parent=1 // pred_check
      _
    $region7: #{lstm_conv_forward.10} parent=1 // pred_check_branch
      %18 = sbr.rel (0) target = $region9
    $region8: #{lstm_conv_forward.10} parent=1 // pred_region
      _
    $region9: #{lstm_conv_forward.10} parent=1 // pred_fallthru
      _
    // Predicated region
    $region10: #{lstm_conv_forward.10} parent=1 // pred_check
      _
    $region11: #{lstm_conv_forward.10} parent=1 // pred_check_branch
      %20 = sbr.rel (0) target = $region13
    $region12: #{lstm_conv_forward.10} parent=1 // pred_region
      _
    $region13: #{lstm_conv_forward.10} parent=1 // pred_fallthru
      _
    // Predicated region
    $region14: #{lstm_conv_forward.10} parent=1 // pred_check
      _
    $region15: #{lstm_conv_forward.10} parent=1 // pred_check_branch
      %22 = sbr.rel (0) target = $region17
    $region16: #{lstm_conv_forward.10} parent=1 // pred_region
      _
    $region17: #{lstm_conv_forward.10} parent=1 // pred_fallthru
      _
    // Predicated region
    $region18: #{lstm_conv_forward.10} parent=1 // pred_check
      _
    $region19: #{lstm_conv_forward.10} parent=1 // pred_check_branch
      %24 = sbr.rel (0) target = $region21
    $region20: #{lstm_conv_forward.10} parent=1 // pred_region
      _
    $region21: #{lstm_conv_forward.10} parent=1 // pred_fallthru
      _
    %v26 = vld [vmem:[%s4] sm:$0xff]
    %v27 = vld [vmem:[%s4 + $0x8] sm:$0xff]
    %v28 = vld [vmem:[%s4 + $0x10] sm:$0xff]
    %v29 = vld [vmem:[%s4 + $0x18] sm:$0xff]
    %v30 = vld [vmem:[%s4 + $0x20] sm:$0xff]
    %v31 = vld [vmem:[%s4 + $0x28] sm:$0xff]
    %v32 = vld [vmem:[%s4 + $0x30] sm:$0xff]
    %v33 = vld [vmem:[%s4 + $0x38] sm:$0xff]
    %v34 = vld [vmem:[%s4 + $0x40] sm:$0xff]
    %v35 = vld [vmem:[%s4 + $0x48] sm:$0xff]
    %v36 = vld [vmem:[%s4 + $0x50] sm:$0xff]
    %v37 = vld [vmem:[%s4 + $0x58] sm:$0xff]
    %v38 = vld [vmem:[%s4 + $0x60] sm:$0xff]
    %v39 = vld [vmem:[%s4 + $0x68] sm:$0xff]
    %v40 = vld [vmem:[%s4 + $0x70] sm:$0xff]
    %v41 = vld [vmem:[%s4 + $0x78] sm:$0xff]
    %v42 = vld [vmem:[%s4 + $0x80] sm:$0xff]
    %v43 = vld [vmem:[%s4 + $0x88] sm:$0xff]
    %v44 = vld [vmem:[%s4 + $0x90] sm:$0xff]
    %v45 = vld [vmem:[%s4 + $0x98] sm:$0xff]
    %v46 = vld [vmem:[%s4 + $0xa0] sm:$0xff]
    %v47 = vld [vmem:[%s4 + $0xa8] sm:$0xff]
    %v48 = vld [vmem:[%s4 + $0xb0] sm:$0xff]
    %v49 = vld [vmem:[%s4 + $0xb8] sm:$0xff]
    %v50 = vld [vmem:[%s4 + $0xc0] sm:$0xff]
    %v51 = vld [vmem:[%s4 + $0xc8] sm:$0xff]
    %v52 = vld [vmem:[%s4 + $0xd0] sm:$0xff]
    %v53 = vld [vmem:[%s4 + $0xd8] sm:$0xff]
    %v54 = vld [vmem:[%s4 + $0xe0] sm:$0xff]
    %v55 = vld [vmem:[%s4 + $0xe8] sm:$0xff]
    %v56 = vld [vmem:[%s4 + $0xf0] sm:$0xff]
    %v57 = vld [vmem:[%s4 + $0xf8] sm:$0xff]
    %v58 = vld [vmem:[%s2] sm:$0x3]
    %v59 = vld [vmem:[%s3] sm:$0x3]
    %v60 = vld [vmem:[%s1] sm:$0x3]
    %62 = vset.pattern.permute.xlu0 0
    %63 = vperm.xlu0 %62, %v60
    %v64 = vpop.permute.xlu0 %63
    %v66 = vmul.f32 %v58, %v64
    %v67 = vmul.f32 %v59, %v64
    %v68 = vld [vmem:[%s0] sm:$0xff]
    %v69 = vpack.c.bf16 %v66, %v66
    %v102 = vunpack.c.l.b16 %v26
    %v103 = vunpack.c.h.b16 %v26
    %v104 = vunpack.c.l.b16 %v27
    %v105 = vunpack.c.h.b16 %v27
    %v106 = vunpack.c.l.b16 %v28
    %v107 = vunpack.c.h.b16 %v28
    %v108 = vunpack.c.l.b16 %v29
    %v109 = vunpack.c.h.b16 %v29
    %v110 = vunpack.c.l.b16 %v30
    %v111 = vunpack.c.h.b16 %v30
    %v112 = vunpack.c.l.b16 %v31
    %v113 = vunpack.c.h.b16 %v31
    %v114 = vunpack.c.l.b16 %v32
    %v115 = vunpack.c.h.b16 %v32
    %v116 = vunpack.c.l.b16 %v33
    %v117 = vunpack.c.h.b16 %v33
    %v118 = vunpack.c.l.b16 %v34
    %v119 = vunpack.c.h.b16 %v34
    %v120 = vunpack.c.l.b16 %v35
    %v121 = vunpack.c.h.b16 %v35
    %v122 = vunpack.c.l.b16 %v36
    %v123 = vunpack.c.h.b16 %v36
    %v124 = vunpack.c.l.b16 %v37
    %v125 = vunpack.c.h.b16 %v37
    %v126 = vunpack.c.l.b16 %v38
    %v127 = vunpack.c.h.b16 %v38
    %v128 = vunpack.c.l.b16 %v39
    %v129 = vunpack.c.h.b16 %v39
    %v130 = vunpack.c.l.b16 %v40
    %v131 = vunpack.c.h.b16 %v40
    %v132 = vunpack.c.l.b16 %v41
    %v133 = vunpack.c.h.b16 %v41
    %v134 = vunpack.c.l.b16 %v42
    %v135 = vunpack.c.h.b16 %v42
    %v136 = vunpack.c.l.b16 %v43
    %v137 = vunpack.c.h.b16 %v43
    %v138 = vunpack.c.l.b16 %v44
    %v139 = vunpack.c.h.b16 %v44
    %v140 = vunpack.c.l.b16 %v45
    %v141 = vunpack.c.h.b16 %v45
    %v142 = vunpack.c.l.b16 %v46
    %v143 = vunpack.c.h.b16 %v46
    %v144 = vunpack.c.l.b16 %v47
    %v145 = vunpack.c.h.b16 %v47
    %v146 = vunpack.c.l.b16 %v48
    %v147 = vunpack.c.h.b16 %v48
    %v148 = vunpack.c.l.b16 %v49
    %v149 = vunpack.c.h.b16 %v49
    %v150 = vunpack.c.l.b16 %v50
    %v151 = vunpack.c.h.b16 %v50
    %v152 = vunpack.c.l.b16 %v51
    %v153 = vunpack.c.h.b16 %v51
    %v154 = vunpack.c.l.b16 %v52
    %v155 = vunpack.c.h.b16 %v52
    %v156 = vunpack.c.l.b16 %v53
    %v157 = vunpack.c.h.b16 %v53
    %v158 = vunpack.c.l.b16 %v54
    %v159 = vunpack.c.h.b16 %v54
    %v160 = vunpack.c.l.b16 %v55
    %v161 = vunpack.c.h.b16 %v55
    %v162 = vunpack.c.l.b16 %v56
    %v163 = vunpack.c.h.b16 %v56
    %v164 = vunpack.c.l.b16 %v57
    %v165 = vunpack.c.h.b16 %v57
    %v166 = vpack.c.b16 %v106, %v102
    %v167 = vpack.c.b16 %v107, %v103
    %v168 = vpack.c.b16 %v108, %v104
    %v169 = vpack.c.b16 %v109, %v105
    %v170 = vpack.c.b16 %v114, %v110
    %v171 = vpack.c.b16 %v115, %v111
    %v172 = vpack.c.b16 %v116, %v112
    %v173 = vpack.c.b16 %v117, %v113
    %v174 = vpack.c.b16 %v122, %v118
    %v175 = vpack.c.b16 %v123, %v119
    %v176 = vpack.c.b16 %v124, %v120
    %v177 = vpack.c.b16 %v125, %v121
    %v178 = vpack.c.b16 %v130, %v126
    %v179 = vpack.c.b16 %v131, %v127
    %v180 = vpack.c.b16 %v132, %v128
    %v181 = vpack.c.b16 %v133, %v129
    %v182 = vpack.c.b16 %v138, %v134
    %v183 = vpack.c.b16 %v139, %v135
    %v184 = vpack.c.b16 %v140, %v136
    %v185 = vpack.c.b16 %v141, %v137
    %v186 = vpack.c.b16 %v146, %v142
    %v187 = vpack.c.b16 %v147, %v143
    %v188 = vpack.c.b16 %v148, %v144
    %v189 = vpack.c.b16 %v149, %v145
    %v190 = vpack.c.b16 %v154, %v150
    %v191 = vpack.c.b16 %v155, %v151
    %v192 = vpack.c.b16 %v156, %v152
    %v193 = vpack.c.b16 %v157, %v153
    %v194 = vpack.c.b16 %v162, %v158
    %v195 = vpack.c.b16 %v163, %v159
    %v196 = vpack.c.b16 %v164, %v160
    %v197 = vpack.c.b16 %v165, %v161
    %230 = vmatprep.subr.bf16.mxu0 %v167
    %231 = vmatpush1.bf16.msra.mxu0 %v166
    %232 = vmatprep.subr.bf16.mxu0 %v171
    %233 = vmatpush1.bf16.msra.mxu0 %v170
    %234 = vmatprep.subr.bf16.mxu0 %v175
    %235 = vmatpush1.bf16.msra.mxu0 %v174
    %236 = vmatprep.subr.bf16.mxu0 %v179
    %237 = vmatpush1.bf16.msra.mxu0 %v178
    %238 = vmatprep.subr.bf16.mxu0 %v183
    %239 = vmatpush1.bf16.msra.mxu0 %v182
    %240 = vmatprep.subr.bf16.mxu0 %v187
    %241 = vmatpush1.bf16.msra.mxu0 %v186
    %242 = vmatprep.subr.bf16.mxu0 %v191
    %243 = vmatpush1.bf16.msra.mxu0 %v190
    %244 = vmatprep.subr.bf16.mxu0 %v195
    %245 = vmatpush1.bf16.msra.mxu0 %v194
    %246 = vmatprep.subr.bf16.mxu0 0
    %247 = vmatpush1.bf16.msra.mxu0 0
    %248 = vmatprep.subr.bf16.mxu0 0
    %249 = vmatpush1.bf16.msra.mxu0 0
    %250 = vmatprep.subr.bf16.mxu0 0
    %251 = vmatpush1.bf16.msra.mxu0 0
    %252 = vmatprep.subr.bf16.mxu0 0
    %253 = vmatpush1.bf16.msra.mxu0 0
    %254 = vmatprep.subr.bf16.mxu0 0
    %255 = vmatpush1.bf16.msra.mxu0 0
    %256 = vmatprep.subr.bf16.mxu0 0
    %257 = vmatpush1.bf16.msra.mxu0 0
    %258 = vmatprep.subr.bf16.mxu0 0
    %259 = vmatpush1.bf16.msra.mxu0 0
    %260 = vmatprep.subr.bf16.mxu0 0
    %261 = vmatpush1.bf16.msra.mxu0 0
    %262 = vmatprep.mubr.bf16.mxu0 0
    %263 = vmatmul.mubr.bf16.gmra.mrb[0].mxu0 %v69
    %v264 = vpop.f32.mrb[0].mxu0
    %v265 = vadd.f32 0.0, %v264
    %v266 = vpop.f32.mrb[0].mxu0
    %v267 = vadd.f32 0.0, %v266
    %v268 = vpop.f32.mrb[0].mxu0
    %v269 = vpop.f32.mrb[0].mxu0
    %270 = vdwg.mxu0
    %271 = vmatprep.subr.bf16.mxu0 %v169
    %272 = vmatpush1.bf16.msra.mxu0 %v168
    %273 = vmatprep.subr.bf16.mxu0 %v173
    %274 = vmatpush1.bf16.msra.mxu0 %v172
    %275 = vmatprep.subr.bf16.mxu0 %v177
    %276 = vmatpush1.bf16.msra.mxu0 %v176
    %277 = vmatprep.subr.bf16.mxu0 %v181
    %278 = vmatpush1.bf16.msra.mxu0 %v180
    %279 = vmatprep.subr.bf16.mxu0 %v185
    %280 = vmatpush1.bf16.msra.mxu0 %v184
    %281 = vmatprep.subr.bf16.mxu0 %v189
    %282 = vmatpush1.bf16.msra.mxu0 %v188
    %283 = vmatprep.subr.bf16.mxu0 %v193
    %284 = vmatpush1.bf16.msra.mxu0 %v192
    %285 = vmatprep.subr.bf16.mxu0 %v197
    %286 = vmatpush1.bf16.msra.mxu0 %v196
    %287 = vmatprep.subr.bf16.mxu0 0
    %288 = vmatpush1.bf16.msra.mxu0 0
    %289 = vmatprep.subr.bf16.mxu0 0
    %290 = vmatpush1.bf16.msra.mxu0 0
    %291 = vmatprep.subr.bf16.mxu0 0
    %292 = vmatpush1.bf16.msra.mxu0 0
    %293 = vmatprep.subr.bf16.mxu0 0
    %294 = vmatpush1.bf16.msra.mxu0 0
    %295 = vmatprep.subr.bf16.mxu0 0
    %296 = vmatpush1.bf16.msra.mxu0 0
    %297 = vmatprep.subr.bf16.mxu0 0
    %298 = vmatpush1.bf16.msra.mxu0 0
    %299 = vmatprep.subr.bf16.mxu0 0
    %300 = vmatpush1.bf16.msra.mxu0 0
    %301 = vmatprep.subr.bf16.mxu0 0
    %302 = vmatpush1.bf16.msra.mxu0 0
    %303 = vmatprep.mubr.bf16.mxu0 0
    %304 = vmatmul.mubr.bf16.gmra.mrb[0].mxu0 %v69
    %v305 = vpop.f32.mrb[0].mxu0
    %v306 = vadd.f32 0.0, %v305
    %v307 = vpop.f32.mrb[0].mxu0
    %v308 = vadd.f32 0.0, %v307
    %v309 = vpop.f32.mrb[0].mxu0
    %v310 = vpop.f32.mrb[0].mxu0
    %311 = vdwg.mxu0
    %v316 = vcombine.low %v265, %v267
    %v317 = vcombine.low %v306, %v308
    %v319 = vunpack.c.l.s4 1983009808
    %v320 = vunpack.c.0.s8 %v319
    %v321 = vlaneseq
    %v322 = vshrl.u32 %v321, 7
    %v323 = vsub.s32 %v320, %v322
    %v324 = vrot.slane %v316, %v323
    %v326 = vunpack.c.l.s4 1983009808
    %v327 = vunpack.c.0.s8 %v326
    %v328 = vlaneseq
    %v329 = vshrl.u32 %v328, 7
    %v330 = vsub.s32 %v327, %v329
    %v331 = vrot.slane %v317, %v330
    %v332 = vcombine.low %v324, %v331
    %v334 = vadd.f32 %v68, %v332
    %v335 = vxor.u32 %v334, 2147483648
    %v336 = vmul.f32 %v335, 1.442695
    %v337 = vpow.pop %v336
    %v338 = vadd.f32 %v337, 1.0
    %v339 = vrcp.pop %v338
    %v340 = vmul.f32 1.0, %v339
    %v342 = vrot.slane %v334, 2
    %v344 = vxor.u32 %v342, 2147483648
    %v345 = vmul.f32 %v344, 1.442695
    %v346 = vpow.pop %v345
    %v347 = vadd.f32 %v346, 1.0
    %v348 = vrcp.pop %v347
    %v349 = vmul.f32 1.0, %v348
    %v350 = vrot.slane %v334, 4
    %v352 = vtanh.pop %v350
    %v353 = vrot.slane %v334, 6
    %v355 = vxor.u32 %v353, 2147483648
    %v356 = vmul.f32 %v355, 1.442695
    %v357 = vpow.pop %v356
    %v358 = vadd.f32 %v357, 1.0
    %v359 = vrcp.pop %v358
    %v360 = vmul.f32 1.0, %v359
    %v361 = vmul.f32 %v349, %v67
    %v362 = vmul.f32 %v340, %v352
    %v363 = vadd.f32 %v361, %v362
    %v364 = vtanh.pop %v363
    %v365 = vmul.f32 %v360, %v364
    %366 = vst [vmem:[%s5] sm:$0x3] %v365
    %s367 = scalar_lea.vmem %s1, 2
    %v368 = vld [vmem:[%s367] sm:$0x3]
    %370 = vset.pattern.permute.xlu0 0
    %371 = vperm.xlu0 %370, %v368
    %v372 = vpop.permute.xlu0 %371
    %v374 = vmul.f32 %v365, %v372
    %v375 = vmul.f32 %v363, %v372
    %s376 = scalar_lea.vmem %s0, 8
    %v377 = vld [vmem:[%s376] sm:$0xff]
    %v378 = vpack.c.bf16 %v374, %v374
    %379 = vmatprep.subr.bf16.mxu0 %v167
    %380 = vmatpush1.bf16.msra.mxu0 %v166
    %381 = vmatprep.subr.bf16.mxu0 %v171
    %382 = vmatpush1.bf16.msra.mxu0 %v170
    %383 = vmatprep.subr.bf16.mxu0 %v175
    %384 = vmatpush1.bf16.msra.mxu0 %v174
    %385 = vmatprep.subr.bf16.mxu0 %v179
    %386 = vmatpush1.bf16.msra.mxu0 %v178
    %387 = vmatprep.subr.bf16.mxu0 %v183
    %388 = vmatpush1.bf16.msra.mxu0 %v182
    %389 = vmatprep.subr.bf16.mxu0 %v187
    %390 = vmatpush1.bf16.msra.mxu0 %v186
    %391 = vmatprep.subr.bf16.mxu0 %v191
    %392 = vmatpush1.bf16.msra.mxu0 %v190
    %393 = vmatprep.subr.bf16.mxu0 %v195
    %394 = vmatpush1.bf16.msra.mxu0 %v194
    %395 = vmatprep.subr.bf16.mxu0 0
    %396 = vmatpush1.bf16.msra.mxu0 0
    %397 = vmatprep.subr.bf16.mxu0 0
    %398 = vmatpush1.bf16.msra.mxu0 0
    %399 = vmatprep.subr.bf16.mxu0 0
    %400 = vmatpush1.bf16.msra.mxu0 0
    %401 = vmatprep.subr.bf16.mxu0 0
    %402 = vmatpush1.bf16.msra.mxu0 0
    %403 = vmatprep.subr.bf16.mxu0 0
    %404 = vmatpush1.bf16.msra.mxu0 0
    %405 = vmatprep.subr.bf16.mxu0 0
    %406 = vmatpush1.bf16.msra.mxu0 0
    %407 = vmatprep.subr.bf16.mxu0 0
    %408 = vmatpush1.bf16.msra.mxu0 0
    %409 = vmatprep.subr.bf16.mxu0 0
    %410 = vmatpush1.bf16.msra.mxu0 0
    %411 = vmatprep.mubr.bf16.mxu0 0
    %412 = vmatmul.mubr.bf16.gmra.mrb[0].mxu0 %v378
    %v413 = vpop.f32.mrb[0].mxu0
    %v414 = vadd.f32 0.0, %v413
    %v415 = vpop.f32.mrb[0].mxu0
    %v416 = vadd.f32 0.0, %v415
    %v417 = vpop.f32.mrb[0].mxu0
    %v418 = vpop.f32.mrb[0].mxu0
    %419 = vdwg.mxu0
    %420 = vmatprep.subr.bf16.mxu0 %v169
    %421 = vmatpush1.bf16.msra.mxu0 %v168
    %422 = vmatprep.subr.bf16.mxu0 %v173
    %423 = vmatpush1.bf16.msra.mxu0 %v172
    %424 = vmatprep.subr.bf16.mxu0 %v177
    %425 = vmatpush1.bf16.msra.mxu0 %v176
    %426 = vmatprep.subr.bf16.mxu0 %v181
    %427 = vmatpush1.bf16.msra.mxu0 %v180
    %428 = vmatprep.subr.bf16.mxu0 %v185
    %429 = vmatpush1.bf16.msra.mxu0 %v184
    %430 = vmatprep.subr.bf16.mxu0 %v189
    %431 = vmatpush1.bf16.msra.mxu0 %v188
    %432 = vmatprep.subr.bf16.mxu0 %v193
    %433 = vmatpush1.bf16.msra.mxu0 %v192
    %434 = vmatprep.subr.bf16.mxu0 %v197
    %435 = vmatpush1.bf16.msra.mxu0 %v196
    %436 = vmatprep.subr.bf16.mxu0 0
    %437 = vmatpush1.bf16.msra.mxu0 0
    %438 = vmatprep.subr.bf16.mxu0 0
    %439 = vmatpush1.bf16.msra.mxu0 0
    %440 = vmatprep.subr.bf16.mxu0 0
    %441 = vmatpush1.bf16.msra.mxu0 0
    %442 = vmatprep.subr.bf16.mxu0 0
    %443 = vmatpush1.bf16.msra.mxu0 0
    %444 = vmatprep.subr.bf16.mxu0 0
    %445 = vmatpush1.bf16.msra.mxu0 0
    %446 = vmatprep.subr.bf16.mxu0 0
    %447 = vmatpush1.bf16.msra.mxu0 0
    %448 = vmatprep.subr.bf16.mxu0 0
    %449 = vmatpush1.bf16.msra.mxu0 0
    %450 = vmatprep.subr.bf16.mxu0 0
    %451 = vmatpush1.bf16.msra.mxu0 0
    %452 = vmatprep.mubr.bf16.mxu0 0
    %453 = vmatmul.mubr.bf16.gmra.mrb[0].mxu0 %v378
    %v454 = vpop.f32.mrb[0].mxu0
    %v455 = vadd.f32 0.0, %v454
    %v456 = vpop.f32.mrb[0].mxu0
    %v457 = vadd.f32 0.0, %v456
    %v458 = vpop.f32.mrb[0].mxu0
    %v459 = vpop.f32.mrb[0].mxu0
    %460 = vdwg.mxu0
    %v465 = vcombine.low %v414, %v416
    %v466 = vcombine.low %v455, %v457
    %v468 = vunpack.c.l.s4 1983009808
    %v469 = vunpack.c.0.s8 %v468
    %v470 = vlaneseq
    %v471 = vshrl.u32 %v470, 7
    %v472 = vsub.s32 %v469, %v471
    %v473 = vrot.slane %v465, %v472
    %v475 = vunpack.c.l.s4 1983009808
    %v476 = vunpack.c.0.s8 %v475
    %v477 = vlaneseq
    %v478 = vshrl.u32 %v477, 7
    %v479 = vsub.s32 %v476, %v478
    %v480 = vrot.slane %v466, %v479
    %v481 = vcombine.low %v473, %v480
    %v483 = vadd.f32 %v377, %v481
    %v484 = vxor.u32 %v483, 2147483648
    %v485 = vmul.f32 %v484, 1.442695
    %v486 = vpow.pop %v485
    %v487 = vadd.f32 %v486, 1.0
    %v488 = vrcp.pop %v487
    %v489 = vmul.f32 1.0, %v488
    %v491 = vrot.slane %v483, 2
    %v493 = vxor.u32 %v491, 2147483648
    %v494 = vmul.f32 %v493, 1.442695
    %v495 = vpow.pop %v494
    %v496 = vadd.f32 %v495, 1.0
    %v497 = vrcp.pop %v496
    %v498 = vmul.f32 1.0, %v497
    %v499 = vrot.slane %v483, 4
    %v501 = vtanh.pop %v499
    %v502 = vrot.slane %v483, 6
    %v504 = vxor.u32 %v502, 2147483648
    %v505 = vmul.f32 %v504, 1.442695
    %v506 = vpow.pop %v505
    %v507 = vadd.f32 %v506, 1.0
    %v508 = vrcp.pop %v507
    %v509 = vmul.f32 1.0, %v508
    %v510 = vmul.f32 %v498, %v375
    %v511 = vmul.f32 %v489, %v501
    %v512 = vadd.f32 %v510, %v511
    %v513 = vtanh.pop %v512
    %v514 = vmul.f32 %v509, %v513
    %s515 = scalar_lea.vmem %s5, 2
    %516 = vst [vmem:[%s515] sm:$0x3] %v514
    %s517 = scalar_lea.vmem %s1, 4
    %v518 = vld [vmem:[%s517] sm:$0x3]
    %520 = vset.pattern.permute.xlu0 0
    %521 = vperm.xlu0 %520, %v518
    %v522 = vpop.permute.xlu0 %521
    %v524 = vmul.f32 %v514, %v522
    %v525 = vmul.f32 %v512, %v522
    %s526 = scalar_lea.vmem %s0, 16
    %v527 = vld [vmem:[%s526] sm:$0xff]
    %v528 = vpack.c.bf16 %v524, %v524
    %529 = vmatprep.subr.bf16.mxu0 %v167
    %530 = vmatpush1.bf16.msra.mxu0 %v166
    %531 = vmatprep.subr.bf16.mxu0 %v171
    %532 = vmatpush1.bf16.msra.mxu0 %v170
    %533 = vmatprep.subr.bf16.mxu0 %v175
    %534 = vmatpush1.bf16.msra.mxu0 %v174
    %535 = vmatprep.subr.bf16.mxu0 %v179
    %536 = vmatpush1.bf16.msra.mxu0 %v178
    %537 = vmatprep.subr.bf16.mxu0 %v183
    %538 = vmatpush1.bf16.msra.mxu0 %v182
    %539 = vmatprep.subr.bf16.mxu0 %v187
    %540 = vmatpush1.bf16.msra.mxu0 %v186
    %541 = vmatprep.subr.bf16.mxu0 %v191
    %542 = vmatpush1.bf16.msra.mxu0 %v190
    %543 = vmatprep.subr.bf16.mxu0 %v195
    %544 = vmatpush1.bf16.msra.mxu0 %v194
    %545 = vmatprep.subr.bf16.mxu0 0
    %546 = vmatpush1.bf16.msra.mxu0 0
    %547 = vmatprep.subr.bf16.mxu0 0
    %548 = vmatpush1.bf16.msra.mxu0 0
    %549 = vmatprep.subr.bf16.mxu0 0
    %550 = vmatpush1.bf16.msra.mxu0 0
    %551 = vmatprep.subr.bf16.mxu0 0
    %552 = vmatpush1.bf16.msra.mxu0 0
    %553 = vmatprep.subr.bf16.mxu0 0
    %554 = vmatpush1.bf16.msra.mxu0 0
    %555 = vmatprep.subr.bf16.mxu0 0
    %556 = vmatpush1.bf16.msra.mxu0 0
    %557 = vmatprep.subr.bf16.mxu0 0
    %558 = vmatpush1.bf16.msra.mxu0 0
    %559 = vmatprep.subr.bf16.mxu0 0
    %560 = vmatpush1.bf16.msra.mxu0 0
    %561 = vmatprep.mubr.bf16.mxu0 0
    %562 = vmatmul.mubr.bf16.gmra.mrb[0].mxu0 %v528
    %v563 = vpop.f32.mrb[0].mxu0
    %v564 = vadd.f32 0.0, %v563
    %v565 = vpop.f32.mrb[0].mxu0
    %v566 = vadd.f32 0.0, %v565
    %v567 = vpop.f32.mrb[0].mxu0
    %v568 = vpop.f32.mrb[0].mxu0
    %569 = vdwg.mxu0
    %570 = vmatprep.subr.bf16.mxu0 %v169
    %571 = vmatpush1.bf16.msra.mxu0 %v168
    %572 = vmatprep.subr.bf16.mxu0 %v173
    %573 = vmatpush1.bf16.msra.mxu0 %v172
    %574 = vmatprep.subr.bf16.mxu0 %v177
    %575 = vmatpush1.bf16.msra.mxu0 %v176
    %576 = vmatprep.subr.bf16.mxu0 %v181
    %577 = vmatpush1.bf16.msra.mxu0 %v180
    %578 = vmatprep.subr.bf16.mxu0 %v185
    %579 = vmatpush1.bf16.msra.mxu0 %v184
    %580 = vmatprep.subr.bf16.mxu0 %v189
    %581 = vmatpush1.bf16.msra.mxu0 %v188
    %582 = vmatprep.subr.bf16.mxu0 %v193
    %583 = vmatpush1.bf16.msra.mxu0 %v192
    %584 = vmatprep.subr.bf16.mxu0 %v197
    %585 = vmatpush1.bf16.msra.mxu0 %v196
    %586 = vmatprep.subr.bf16.mxu0 0
    %587 = vmatpush1.bf16.msra.mxu0 0
    %588 = vmatprep.subr.bf16.mxu0 0
    %589 = vmatpush1.bf16.msra.mxu0 0
    %590 = vmatprep.subr.bf16.mxu0 0
    %591 = vmatpush1.bf16.msra.mxu0 0
    %592 = vmatprep.subr.bf16.mxu0 0
    %593 = vmatpush1.bf16.msra.mxu0 0
    %594 = vmatprep.subr.bf16.mxu0 0
    %595 = vmatpush1.bf16.msra.mxu0 0
    %596 = vmatprep.subr.bf16.mxu0 0
    %597 = vmatpush1.bf16.msra.mxu0 0
    %598 = vmatprep.subr.bf16.mxu0 0
    %599 = vmatpush1.bf16.msra.mxu0 0
    %600 = vmatprep.subr.bf16.mxu0 0
    %601 = vmatpush1.bf16.msra.mxu0 0
    %602 = vmatprep.mubr.bf16.mxu0 0
    %603 = vmatmul.mubr.bf16.gmra.mrb[0].mxu0 %v528
    %v604 = vpop.f32.mrb[0].mxu0
    %v605 = vadd.f32 0.0, %v604
    %v606 = vpop.f32.mrb[0].mxu0
    %v607 = vadd.f32 0.0, %v606
    %v608 = vpop.f32.mrb[0].mxu0
    %v609 = vpop.f32.mrb[0].mxu0
    %610 = vdwg.mxu0
    %v615 = vcombine.low %v564, %v566
    %v616 = vcombine.low %v605, %v607
    %v618 = vunpack.c.l.s4 1983009808
    %v619 = vunpack.c.0.s8 %v618
    %v620 = vlaneseq
    %v621 = vshrl.u32 %v620, 7
    %v622 = vsub.s32 %v619, %v621
    %v623 = vrot.slane %v615, %v622
    %v625 = vunpack.c.l.s4 1983009808
    %v626 = vunpack.c.0.s8 %v625
    %v627 = vlaneseq
    %v628 = vshrl.u32 %v627, 7
    %v629 = vsub.s32 %v626, %v628
    %v630 = vrot.slane %v616, %v629
    %v631 = vcombine.low %v623, %v630
    %v633 = vadd.f32 %v527, %v631
    %v634 = vxor.u32 %v633, 2147483648
    %v635 = vmul.f32 %v634, 1.442695
    %v636 = vpow.pop %v635
    %v637 = vadd.f32 %v636, 1.0
    %v638 = vrcp.pop %v637
    %v639 = vmul.f32 1.0, %v638
    %v641 = vrot.slane %v633, 2
    %v643 = vxor.u32 %v641, 2147483648
    %v644 = vmul.f32 %v643, 1.442695
    %v645 = vpow.pop %v644
    %v646 = vadd.f32 %v645, 1.0
    %v647 = vrcp.pop %v646
    %v648 = vmul.f32 1.0, %v647
    %v649 = vrot.slane %v633, 4
    %v651 = vtanh.pop %v649
    %v652 = vrot.slane %v633, 6
    %v654 = vxor.u32 %v652, 2147483648
    %v655 = vmul.f32 %v654, 1.442695
    %v656 = vpow.pop %v655
    %v657 = vadd.f32 %v656, 1.0
    %v658 = vrcp.pop %v657
    %v659 = vmul.f32 1.0, %v658
    %v660 = vmul.f32 %v648, %v525
    %v661 = vmul.f32 %v639, %v651
    %v662 = vadd.f32 %v660, %v661
    %v663 = vtanh.pop %v662
    %v664 = vmul.f32 %v659, %v663
    %s665 = scalar_lea.vmem %s5, 4
    %666 = vst [vmem:[%s665] sm:$0x3] %v664
    %s667 = scalar_lea.vmem %s1, 6
    %v668 = vld [vmem:[%s667] sm:$0x3]
    %670 = vset.pattern.permute.xlu0 0
    %671 = vperm.xlu0 %670, %v668
    %v672 = vpop.permute.xlu0 %671
    %v674 = vmul.f32 %v664, %v672
    %v675 = vmul.f32 %v662, %v672
    %s676 = scalar_lea.vmem %s0, 24
    %v677 = vld [vmem:[%s676] sm:$0xff]
    %v678 = vpack.c.bf16 %v674, %v674
    %679 = vmatprep.subr.bf16.mxu0 %v167
    %680 = vmatpush1.bf16.msra.mxu0 %v166
    %681 = vmatprep.subr.bf16.mxu0 %v171
    %682 = vmatpush1.bf16.msra.mxu0 %v170
    %683 = vmatprep.subr.bf16.mxu0 %v175
    %684 = vmatpush1.bf16.msra.mxu0 %v174
    %685 = vmatprep.subr.bf16.mxu0 %v179
    %686 = vmatpush1.bf16.msra.mxu0 %v178
    %687 = vmatprep.subr.bf16.mxu0 %v183
    %688 = vmatpush1.bf16.msra.mxu0 %v182
    %689 = vmatprep.subr.bf16.mxu0 %v187
    %690 = vmatpush1.bf16.msra.mxu0 %v186
    %691 = vmatprep.subr.bf16.mxu0 %v191
    %692 = vmatpush1.bf16.msra.mxu0 %v190
    %693 = vmatprep.subr.bf16.mxu0 %v195
    %694 = vmatpush1.bf16.msra.mxu0 %v194
    %695 = vmatprep.subr.bf16.mxu0 0
    %696 = vmatpush1.bf16.msra.mxu0 0
    %697 = vmatprep.subr.bf16.mxu0 0
    %698 = vmatpush1.bf16.msra.mxu0 0
    %699 = vmatprep.subr.bf16.mxu0 0
    %700 = vmatpush1.bf16.msra.mxu0 0
    %701 = vmatprep.subr.bf16.mxu0 0
    %702 = vmatpush1.bf16.msra.mxu0 0
    %703 = vmatprep.subr.bf16.mxu0 0
    %704 = vmatpush1.bf16.msra.mxu0 0
    %705 = vmatprep.subr.bf16.mxu0 0
    %706 = vmatpush1.bf16.msra.mxu0 0
    %707 = vmatprep.subr.bf16.mxu0 0
    %708 = vmatpush1.bf16.msra.mxu0 0
    %709 = vmatprep.subr.bf16.mxu0 0
    %710 = vmatpush1.bf16.msra.mxu0 0
    %711 = vmatprep.mubr.bf16.mxu0 0
    %712 = vmatmul.mubr.bf16.gmra.mrb[0].mxu0 %v678
    %v713 = vpop.f32.mrb[0].mxu0
    %v714 = vadd.f32 0.0, %v713
    %v715 = vpop.f32.mrb[0].mxu0
    %v716 = vadd.f32 0.0, %v715
    %v717 = vpop.f32.mrb[0].mxu0
    %v718 = vpop.f32.mrb[0].mxu0
    %719 = vdwg.mxu0
    %720 = vmatprep.subr.bf16.mxu0 %v169
    %721 = vmatpush1.bf16.msra.mxu0 %v168
    %722 = vmatprep.subr.bf16.mxu0 %v173
    %723 = vmatpush1.bf16.msra.mxu0 %v172
    %724 = vmatprep.subr.bf16.mxu0 %v177
    %725 = vmatpush1.bf16.msra.mxu0 %v176
    %726 = vmatprep.subr.bf16.mxu0 %v181
    %727 = vmatpush1.bf16.msra.mxu0 %v180
    %728 = vmatprep.subr.bf16.mxu0 %v185
    %729 = vmatpush1.bf16.msra.mxu0 %v184
    %730 = vmatprep.subr.bf16.mxu0 %v189
    %731 = vmatpush1.bf16.msra.mxu0 %v188
    %732 = vmatprep.subr.bf16.mxu0 %v193
    %733 = vmatpush1.bf16.msra.mxu0 %v192
    %734 = vmatprep.subr.bf16.mxu0 %v197
    %735 = vmatpush1.bf16.msra.mxu0 %v196
    %736 = vmatprep.subr.bf16.mxu0 0
    %737 = vmatpush1.bf16.msra.mxu0 0
    %738 = vmatprep.subr.bf16.mxu0 0
    %739 = vmatpush1.bf16.msra.mxu0 0
    %740 = vmatprep.subr.bf16.mxu0 0
    %741 = vmatpush1.bf16.msra.mxu0 0
    %742 = vmatprep.subr.bf16.mxu0 0
    %743 = vmatpush1.bf16.msra.mxu0 0
    %744 = vmatprep.subr.bf16.mxu0 0
    %745 = vmatpush1.bf16.msra.mxu0 0
    %746 = vmatprep.subr.bf16.mxu0 0
    %747 = vmatpush1.bf16.msra.mxu0 0
    %748 = vmatprep.subr.bf16.mxu0 0
    %749 = vmatpush1.bf16.msra.mxu0 0
    %750 = vmatprep.subr.bf16.mxu0 0
    %751 = vmatpush1.bf16.msra.mxu0 0
    %752 = vmatprep.mubr.bf16.mxu0 0
    %753 = vmatmul.mubr.bf16.gmra.mrb[0].mxu0 %v678
    %v754 = vpop.f32.mrb[0].mxu0
    %v755 = vadd.f32 0.0, %v754
    %v756 = vpop.f32.mrb[0].mxu0
    %v757 = vadd.f32 0.0, %v756
    %v758 = vpop.f32.mrb[0].mxu0
    %v759 = vpop.f32.mrb[0].mxu0
    %760 = vdwg.mxu0
    %v765 = vcombine.low %v714, %v716
    %v766 = vcombine.low %v755, %v757
    %v768 = vunpack.c.l.s4 1983009808
    %v769 = vunpack.c.0.s8 %v768
    %v770 = vlaneseq
    %v771 = vshrl.u32 %v770, 7
    %v772 = vsub.s32 %v769, %v771
    %v773 = vrot.slane %v765, %v772
    %v775 = vunpack.c.l.s4 1983009808
    %v776 = vunpack.c.0.s8 %v775
    %v777 = vlaneseq
    %v778 = vshrl.u32 %v777, 7
    %v779 = vsub.s32 %v776, %v778
    %v780 = vrot.slane %v766, %v779
    %v781 = vcombine.low %v773, %v780
    %v783 = vadd.f32 %v677, %v781
    %v784 = vxor.u32 %v783, 2147483648
    %v785 = vmul.f32 %v784, 1.442695
    %v786 = vpow.pop %v785
    %v787 = vadd.f32 %v786, 1.0
    %v788 = vrcp.pop %v787
    %v789 = vmul.f32 1.0, %v788
    %v791 = vrot.slane %v783, 2
    %v793 = vxor.u32 %v791, 2147483648
    %v794 = vmul.f32 %v793, 1.442695
    %v795 = vpow.pop %v794
    %v796 = vadd.f32 %v795, 1.0
    %v797 = vrcp.pop %v796
    %v798 = vmul.f32 1.0, %v797
    %v799 = vrot.slane %v783, 4
    %v801 = vtanh.pop %v799
    %v802 = vrot.slane %v783, 6
    %v804 = vxor.u32 %v802, 2147483648
    %v805 = vmul.f32 %v804, 1.442695
    %v806 = vpow.pop %v805
    %v807 = vadd.f32 %v806, 1.0
    %v808 = vrcp.pop %v807
    %v809 = vmul.f32 1.0, %v808
    %v810 = vmul.f32 %v798, %v675
    %v811 = vmul.f32 %v789, %v801
    %v812 = vadd.f32 %v810, %v811
    %v813 = vtanh.pop %v812
    %v814 = vmul.f32 %v809, %v813
    %s815 = scalar_lea.vmem %s5, 6
    %816 = vst [vmem:[%s815] sm:$0x3] %v814
    %817 = vst [vmem:[#allocation2] sm:$0x3] %v814
    %818 = vst [vmem:[#allocation4] sm:$0x3] %v812
    // Predicated region
    $region22: #{lstm_conv_forward.10} parent=1 // pred_check
      _
    $region23: #{lstm_conv_forward.10} parent=1 // pred_check_branch
      %820 = sbr.rel (0) target = $region25
    $region24: #{lstm_conv_forward.10} parent=1 // pred_region
      _
    $region25: #{lstm_conv_forward.10} parent=1 // pred_fallthru
      _
    // Predicated region
    $region26: #{lstm_conv_forward.10} parent=1 // pred_check
      _
    $region27: #{lstm_conv_forward.10} parent=1 // pred_check_branch
      %822 = sbr.rel (0) target = $region29
    $region28: #{lstm_conv_forward.10} parent=1 // pred_region
      %s824 = ssub.s32 32, 32
      %825 = vsyncadd [#allocation3], %s824
      %s827 = sshll.u32 [#allocation2], 4
      %s828 = int_to_ptr.vmem [resolvable:$true] %s827
      %830 = dma.vmem_to_hbm [thread:$0]  %s828, 32, %s6, [#allocation3]
    $region29: #{lstm_conv_forward.10} parent=1 // pred_fallthru
      _
    // Predicated region
    $region30: #{lstm_conv_forward.10} parent=1 // pred_check
      _
    $region31: #{lstm_conv_forward.10} parent=1 // pred_check_branch
      %832 = sbr.rel (0) target = $region33
    $region32: #{lstm_conv_forward.10} parent=1 // pred_region
      %s834 = ssub.s32 32, 32
      %835 = vsyncadd [#allocation5], %s834
      %s837 = sshll.u32 [#allocation4], 4
      %s838 = int_to_ptr.vmem [resolvable:$true] %s837
      %840 = dma.vmem_to_hbm [thread:$0]  %s838, 32, %s7, [#allocation5]
    $region33: #{lstm_conv_forward.10} parent=1 // pred_fallthru
      _
    // Predicated region
    $region34: #{lstm_conv_forward.10} parent=1 // pred_check
      _
    $region35: #{lstm_conv_forward.10} parent=1 // pred_check_branch
      %842 = sbr.rel (0) target = $region37
    $region36: #{lstm_conv_forward.10} parent=1 // pred_region
      _
    $region37: #{lstm_conv_forward.10} parent=1 // pred_fallthru
      _
    // Predicated region
    $region38: #{lstm_conv_forward.10} parent=1 // pred_check
      _
    $region39: #{lstm_conv_forward.10} parent=1 // pred_check_branch
      %844 = sbr.rel (0) target = $region41
    $region40: #{lstm_conv_forward.10} parent=1 // pred_region
      %845 = dma.done [#allocation3], 32
    $region41: #{lstm_conv_forward.10} parent=1 // pred_fallthru
      _
    // Predicated region
    $region42: #{lstm_conv_forward.10} parent=1 // pred_check
      _
    $region43: #{lstm_conv_forward.10} parent=1 // pred_check_branch
      %847 = sbr.rel (0) target = $region45
    $region44: #{lstm_conv_forward.10} parent=1 // pred_region
      %848 = dma.done [#allocation5], 32
    $region45: #{lstm_conv_forward.10} parent=1 // pred_fallthru
      _
    %849 = vsyncpa [#allocation3], 1
    %850 = vsyncpa [#allocation5], 1

// kernel: lstm_conv_forward.11
$region0: #{lstm_conv_forward.11}
  #allocation0 [shape = 'u32[]', space=smem, size = 0x4, offset = 0x4, fixed_abs, tag = 'smem constant byte address 0x4 - core index']
  #allocation1 [shape = 'u32[144,128]{1,0:T(1,128)}', space=vmem, size = 0x12000, scoped, tag = 'internal scratch']
  %s0 = inlined_call_operand.vmem [shape: bf16[16,128], index: 0, kind: input, shape index: {}]
  %s1 = inlined_call_operand.vmem [shape: bf16[128,128], index: 1, kind: input, shape index: {}]
  %s2 = inlined_call_operand.vmem [shape: f32[1,128], index: 2, kind: input, shape index: {}]
  %s3 = inlined_call_operand.vmem [shape: f32[16,128], index: 3, kind: output, shape index: {}]
  %s4 = sld [smem:[#allocation0]]
  $region45: #{lstm_conv_forward.11} parent=0
    _
  %s6 = ssub.s32 1, %s4
  %s7 = scalar_select 0, %s6, %s4
  loop: start=0, step=1, limit=4
  $region2: #{lstm_conv_forward.11} parent=0 // loop_pre_header
    _
  $region3: #{lstm_conv_forward.11} parent=0 // loop_header
    %s9 = sphi 0, %s13
    %p10 = scmp.ge.s32.totalorder %s9, 4
    %s19 = sphi 0, %s21
    %s22 = sphi 0, %s19
    %s23 = sphi 0, %s22
    %s39 = sphi 0, %s23
    %s43 = sphi 0, %s43
    %s45 = sphi 0, %s43
    %s46 = sphi 0, %s45
    %s60 = sphi 0, %s46
    %s64 = sphi 0, %s64
    %s66 = sphi 0, %s64
    %s67 = sphi 0, %s66
    %s81 = sphi 0, %s67
    %s87 = sphi 0, %s89
    %s90 = sphi 0, %s87
    %s91 = sphi 0, %s90
    %s107 = sphi 0, %s91
  $region4: #{lstm_conv_forward.11} parent=0 // loop_header_branch
    %12 = sbr.rel (%p10) target = $region8
  $region5: #{lstm_conv_forward.11} parent=0 // loop_body
    %s14 = ssub.s32 %s9, 1
    %s15 = ssub.s32 %s9, 2
    %s16 = sadd.s32 %s9, 1
    %s17 = ssub.s32 %s9, %s16
    %p18 = scmp.eq.s32.totalorder %s17, 0
    %s20 = sadd.s32 %s19, 1
    %s21 = scalar_select %p18, %s19, %s20
    %p24 = pneg %p18
    %p25 = scmp.eq.s32.totalorder %s9, 1
    %p26 = por %p24, %p25
    %p27 = scmp.ne.s32.totalorder %s19, %s22
    %p28 = scmp.eq.s32.totalorder %s9, 0
    %p29 = por %p27, %p28
    %p30 = scmp.ne.s32.totalorder %s19, %s22
    %p31 = scmp.eq.s32.totalorder %s14, 1
    %p32 = por %p30, %p31
    %p33 = scmp.ne.s32.totalorder %s22, %s23
    %p34 = scmp.eq.s32.totalorder %s14, 0
    %p35 = por %p33, %p34
    %p36 = scmp.ne.s32.totalorder %s22, %s23
    %p37 = scmp.eq.s32.totalorder %s15, 1
    %p38 = por %p36, %p37
    %p40 = scmp.ne.s32.totalorder %s23, %s39
    %p41 = scmp.eq.s32.totalorder %s15, 0
    %p42 = por %p40, %p41
    %s44 = sadd.s32 %s43, 1
    %p47 = scmp.eq.s32.totalorder %s9, 1
    %p48 = scmp.ne.s32.totalorder %s43, %s45
    %p49 = scmp.eq.s32.totalorder %s9, 0
    %p50 = por %p48, %p49
    %p51 = scmp.ne.s32.totalorder %s43, %s45
    %p52 = scmp.eq.s32.totalorder %s14, 1
    %p53 = por %p51, %p52
    %p54 = scmp.ne.s32.totalorder %s45, %s46
    %p55 = scmp.eq.s32.totalorder %s14, 0
    %p56 = por %p54, %p55
    %p57 = scmp.ne.s32.totalorder %s45, %s46
    %p58 = scmp.eq.s32.totalorder %s15, 1
    %p59 = por %p57, %p58
    %p61 = scmp.ne.s32.totalorder %s46, %s60
    %p62 = scmp.eq.s32.totalorder %s15, 0
    %p63 = por %p61, %p62
    %s65 = sadd.s32 %s64, 1
    %p68 = scmp.eq.s32.totalorder %s9, 1
    %p69 = scmp.ne.s32.totalorder %s64, %s66
    %p70 = scmp.eq.s32.totalorder %s9, 0
    %p71 = por %p69, %p70
    %p72 = scmp.ne.s32.totalorder %s64, %s66
    %p73 = scmp.eq.s32.totalorder %s14, 1
    %p74 = por %p72, %p73
    %p75 = scmp.ne.s32.totalorder %s66, %s67
    %p76 = scmp.eq.s32.totalorder %s14, 0
    %p77 = por %p75, %p76
    %p78 = scmp.ne.s32.totalorder %s66, %s67
    %p79 = scmp.eq.s32.totalorder %s15, 1
    %p80 = por %p78, %p79
    %p82 = scmp.ne.s32.totalorder %s67, %s81
    %p83 = scmp.eq.s32.totalorder %s15, 0
    %p84 = por %p82, %p83
    %s85 = ssub.s32 %s9, %s16
    %p86 = scmp.eq.s32.totalorder %s85, 0
    %s88 = sadd.s32 %s87, 1
    %s89 = scalar_select %p86, %s87, %s88
    %p92 = pneg %p86
    %p93 = scmp.eq.s32.totalorder %s9, 1
    %p94 = por %p92, %p93
    %p95 = scmp.ne.s32.totalorder %s87, %s90
    %p96 = scmp.eq.s32.totalorder %s9, 0
    %p97 = por %p95, %p96
    %p98 = scmp.ne.s32.totalorder %s87, %s90
    %p99 = scmp.eq.s32.totalorder %s14, 1
    %p100 = por %p98, %p99
    %p101 = scmp.ne.s32.totalorder %s90, %s91
    %p102 = scmp.eq.s32.totalorder %s14, 0
    %p103 = por %p101, %p102
    %p104 = scmp.ne.s32.totalorder %s90, %s91
    %p105 = scmp.eq.s32.totalorder %s15, 1
    %p106 = por %p104, %p105
    %p108 = scmp.ne.s32.totalorder %s91, %s107
    %p109 = scmp.eq.s32.totalorder %s15, 0
    %p110 = por %p108, %p109
    %p111 = scmp.le.s32.totalorder 1, %s9
    %p112 = scmp.lt.s32.totalorder %s9, 3
    %p113 = pnand %p111, %p112
    %p114 = pneg %p113
    // Predicated region
    $region9: #{lstm_conv_forward.11} parent=5 // pred_check
      _
    $region10: #{lstm_conv_forward.11} parent=5 // pred_check_branch
      %116 = sbr.rel (%p113) target = $region12
    $region11: #{lstm_conv_forward.11} parent=5 // pred_region
      %s117 = ssub.s32 %s9, 1
      // Predicated region
      $region13: #{lstm_conv_forward.11} parent=11 // pred_check
        %p118 = pneg %p56
      $region14: #{lstm_conv_forward.11} parent=11 // pred_check_branch
        %120 = sbr.rel (%p118) target = $region16
      $region15: #{lstm_conv_forward.11} parent=11 // pred_region
        _
      $region16: #{lstm_conv_forward.11} parent=11 // pred_fallthru
        _
      // Predicated region
      $region17: #{lstm_conv_forward.11} parent=11 // pred_check
        %p121 = pneg %p77
      $region18: #{lstm_conv_forward.11} parent=11 // pred_check_branch
        %123 = sbr.rel (%p121) target = $region20
      $region19: #{lstm_conv_forward.11} parent=11 // pred_region
        _
      $region20: #{lstm_conv_forward.11} parent=11 // pred_fallthru
        _
    $region12: #{lstm_conv_forward.11} parent=5 // pred_fallthru
      _
    %p124 = scmp.lt.s32.totalorder %s9, 2
    // Predicated region
    $region21: #{lstm_conv_forward.11} parent=5 // pred_check
      %p125 = pneg %p124
    $region22: #{lstm_conv_forward.11} parent=5 // pred_check_branch
      %127 = sbr.rel (%p125) target = $region24
    $region23: #{lstm_conv_forward.11} parent=5 // pred_region
      // Predicated region
      $region25: #{lstm_conv_forward.11} parent=23 // pred_check
        %p128 = pneg %p29
      $region26: #{lstm_conv_forward.11} parent=23 // pred_check_branch
        %130 = sbr.rel (%p128) target = $region28
      $region27: #{lstm_conv_forward.11} parent=23 // pred_region
        %p131 = scmp.lt.s32.totalorder %s9, 1
        %s132 = scalar_select %p131, %s9, 1
        %s133 = smul.addr %s132, 4
        %s134 = scalar_lea.vmem %s0, %s133
      $region28: #{lstm_conv_forward.11} parent=23 // pred_fallthru
        _
    $region24: #{lstm_conv_forward.11} parent=5 // pred_fallthru
      _
    %p135 = scmp.le.s32.totalorder 1, %s9
    %p136 = scmp.lt.s32.totalorder %s9, 3
    %p137 = pnand %p135, %p136
    %p138 = pneg %p137
    // Predicated region
    $region29: #{lstm_conv_forward.11} parent=5 // pred_check
      _
    $region30: #{lstm_conv_forward.11} parent=5 // pred_check_branch
      %140 = sbr.rel (%p137) target = $region32
    $region31: #{lstm_conv_forward.11} parent=5 // pred_region
      %s141 = ssub.s32 %s9, 1
      %p142 = scmp.lt.s32.totalorder %s14, 1
      %s143 = scalar_select %p142, %s14, 1
      %s144 = smul.addr %s143, 4
      %s145 = scalar_lea.vmem %s0, %s144
      %p146 = pneg %p35
      %p147 = pneg %p32
      %p148 = pneg %p56
      %p149 = pneg %p53
      %p150 = pneg %p77
      %p151 = pneg %p74
      %p152 = pneg %p103
      %p153 = pneg %p100
      %p154 = scmp.lt.s32.totalorder %s14, 1
      %s155 = scalar_select %p154, %s14, 1
      %s156 = smul.addr %s155, 8
      %s157 = scalar_lea.vmem %s3, %s156
      %p158 = scmp.lt.s32.totalorder %s14, 1
      %s159 = scalar_select %p158, %s14, 1
      %s160 = smul.addr %s159, 4
      %s161 = scalar_lea.vmem %s0, %s160
      %p162 = scmp.lt.s32.totalorder %s14, 1
      %s163 = scalar_select %p162, %s14, 1
      %s164 = smul.addr %s163, 8
      %s165 = scalar_lea.vmem %s3, %s164
      %v167 = vld [vmem:[%s161] sm:$0xf]
      %v168 = vld [vmem:[%s1] sm:$0xf]
      %v169 = vld [vmem:[%s1 + $0x4] sm:$0xf]
      %v170 = vld [vmem:[%s1 + $0x8] sm:$0xf]
      %v171 = vld [vmem:[%s1 + $0xc] sm:$0xf]
      %v172 = vld [vmem:[%s1 + $0x10] sm:$0xf]
      %v173 = vld [vmem:[%s1 + $0x14] sm:$0xf]
      %v174 = vld [vmem:[%s1 + $0x18] sm:$0xf]
      %v175 = vld [vmem:[%s1 + $0x1c] sm:$0xf]
      %v176 = vld [vmem:[%s1 + $0x20] sm:$0xf]
      %v177 = vld [vmem:[%s1 + $0x24] sm:$0xf]
      %v178 = vld [vmem:[%s1 + $0x28] sm:$0xf]
      %v179 = vld [vmem:[%s1 + $0x2c] sm:$0xf]
      %v180 = vld [vmem:[%s1 + $0x30] sm:$0xf]
      %v181 = vld [vmem:[%s1 + $0x34] sm:$0xf]
      %v182 = vld [vmem:[%s1 + $0x38] sm:$0xf]
      %v183 = vld [vmem:[%s1 + $0x3c] sm:$0xf]
      %v184 = vld [vmem:[%s2] sm:$0x1]
      %v186 = vlaneseq
      %v187 = vshrl.u32 %v186, 7
      %v188 = vsub.s32 0, %v187
      %v189 = vrot.slane %v184, %v188
      %v207 = vunpack.c.l.b16 %v168
      %v208 = vunpack.c.l.b16 %v169
      %v209 = vunpack.c.l.b16 %v170
      %v210 = vunpack.c.l.b16 %v171
      %v211 = vunpack.c.l.b16 %v172
      %v212 = vunpack.c.l.b16 %v173
      %v213 = vunpack.c.l.b16 %v174
      %v214 = vunpack.c.l.b16 %v175
      %v215 = vunpack.c.l.b16 %v176
      %v216 = vunpack.c.l.b16 %v177
      %v217 = vunpack.c.l.b16 %v178
      %v218 = vunpack.c.l.b16 %v179
      %v219 = vunpack.c.l.b16 %v180
      %v220 = vunpack.c.l.b16 %v181
      %v221 = vunpack.c.l.b16 %v182
      %v222 = vunpack.c.l.b16 %v183
      %v223 = vpack.c.b16 %v208, %v207
      %v224 = vpack.c.b16 %v210, %v209
      %v225 = vpack.c.b16 %v212, %v211
      %v226 = vpack.c.b16 %v214, %v213
      %v227 = vpack.c.b16 %v216, %v215
      %v228 = vpack.c.b16 %v218, %v217
      %v229 = vpack.c.b16 %v220, %v219
      %v230 = vpack.c.b16 %v222, %v221
      %239 = vmatprep.subr.bf16.mxu0 0
      %240 = vmatpush1.bf16.msra.mxu0 %v223
      %241 = vmatprep.subr.bf16.mxu0 0
      %242 = vmatpush1.bf16.msra.mxu0 %v224
      %243 = vmatprep.subr.bf16.mxu0 0
      %244 = vmatpush1.bf16.msra.mxu0 %v225
      %245 = vmatprep.subr.bf16.mxu0 0
      %246 = vmatpush1.bf16.msra.mxu0 %v226
      %247 = vmatprep.subr.bf16.mxu0 0
      %248 = vmatpush1.bf16.msra.mxu0 %v227
      %249 = vmatprep.subr.bf16.mxu0 0
      %250 = vmatpush1.bf16.msra.mxu0 %v228
      %251 = vmatprep.subr.bf16.mxu0 0
      %252 = vmatpush1.bf16.msra.mxu0 %v229
      %253 = vmatprep.subr.bf16.mxu0 0
      %254 = vmatpush1.bf16.msra.mxu0 %v230
      %255 = vmatprep.subr.bf16.mxu0 0
      %256 = vmatpush1.bf16.msra.mxu0 0
      %257 = vmatprep.subr.bf16.mxu0 0
      %258 = vmatpush1.bf16.msra.mxu0 0
      %259 = vmatprep.subr.bf16.mxu0 0
      %260 = vmatpush1.bf16.msra.mxu0 0
      %261 = vmatprep.subr.bf16.mxu0 0
      %262 = vmatpush1.bf16.msra.mxu0 0
      %263 = vmatprep.subr.bf16.mxu0 0
      %264 = vmatpush1.bf16.msra.mxu0 0
      %265 = vmatprep.subr.bf16.mxu0 0
      %266 = vmatpush1.bf16.msra.mxu0 0
      %267 = vmatprep.subr.bf16.mxu0 0
      %268 = vmatpush1.bf16.msra.mxu0 0
      %269 = vmatprep.subr.bf16.mxu0 0
      %270 = vmatpush1.bf16.msra.mxu0 0
      %271 = vmatprep.mubr.bf16.mxu0 0
      %272 = vmatmul.mubr.bf16.gmra.mrb[0].mxu0 %v167
      %v273 = vpop.f32.mrb[0].mxu0
      %v274 = vadd.f32 %v189, %v273
      %v275 = vpop.f32.mrb[0].mxu0
      %v276 = vpop.f32.mrb[0].mxu0
      %v277 = vpop.f32.mrb[0].mxu0
      %278 = vdwg.mxu0
      %279 = vst [vmem:[%s165] sm:$0xff] %v274
      %p280 = scmp.lt.s32.totalorder %s14, 1
      %s281 = scalar_select %p280, %s14, 1
      %s282 = smul.addr %s281, 8
      %s283 = scalar_lea.vmem %s3, %s282
      // Predicated region
      $region33: #{lstm_conv_forward.11} parent=31 // pred_check
        %p284 = pneg %p100
      $region34: #{lstm_conv_forward.11} parent=31 // pred_check_branch
        %286 = sbr.rel (%p284) target = $region36
      $region35: #{lstm_conv_forward.11} parent=31 // pred_region
        _
      $region36: #{lstm_conv_forward.11} parent=31 // pred_fallthru
        _
    $region32: #{lstm_conv_forward.11} parent=5 // pred_fallthru
      _
    %p287 = scmp.le.s32.totalorder 2, %s9
    // Predicated region
    $region37: #{lstm_conv_forward.11} parent=5 // pred_check
      %p288 = pneg %p287
    $region38: #{lstm_conv_forward.11} parent=5 // pred_check_branch
      %290 = sbr.rel (%p288) target = $region40
    $region39: #{lstm_conv_forward.11} parent=5 // pred_region
      %s291 = ssub.s32 %s9, 2
      // Predicated region
      $region41: #{lstm_conv_forward.11} parent=39 // pred_check
        %p292 = pneg %p106
      $region42: #{lstm_conv_forward.11} parent=39 // pred_check_branch
        %294 = sbr.rel (%p292) target = $region44
      $region43: #{lstm_conv_forward.11} parent=39 // pred_region
        %p295 = scmp.lt.s32.totalorder %s15, 1
        %s296 = scalar_select %p295, %s15, 1
        %s297 = smul.addr %s296, 8
        %s298 = scalar_lea.vmem %s3, %s297
      $region44: #{lstm_conv_forward.11} parent=39 // pred_fallthru
        _
    $region40: #{lstm_conv_forward.11} parent=5 // pred_fallthru
      _
  $region6: #{lstm_conv_forward.11} parent=0 // loop_footer
    %s13 = sadd.s32 1, %s9
  $region7: #{lstm_conv_forward.11} parent=0 // loop_footer_branch
    %8 = sbr.rel target = $region3
  $region8: #{lstm_conv_forward.11} parent=0 // loop_exit
    _

// kernel: lstm_conv_forward.9
$region0: #{lstm_conv_forward.9}
  #allocation0 [shape = 'u32[]', space=smem, size = 0x4, offset = 0x4, fixed_abs, tag = 'smem constant byte address 0x4 - core index']
  #allocation1 [shape = 'u32[144,128]{1,0:T(1,128)}', space=vmem, size = 0x12000, scoped, tag = 'internal scratch']
  %s0 = inlined_call_operand.vmem [shape: bf16[16,1568], index: 0, kind: input, shape index: {}]
  %s1 = inlined_call_operand.vmem [shape: bf16[1568,512], index: 1, kind: input, shape index: {}]
  %s2 = inlined_call_operand.vmem [shape: f32[1,512], index: 2, kind: input, shape index: {}]
  %s3 = inlined_call_operand.vmem [shape: bf16[512,512], index: 3, kind: input, shape index: {}]
  %s4 = inlined_call_operand.vmem [shape: f32[1,512], index: 4, kind: input, shape index: {}]
  %s5 = inlined_call_operand.vmem [shape: f32[16,512], index: 5, kind: output, shape index: {}]
  %s6 = sld [smem:[#allocation0]]
  $region53: #{lstm_conv_forward.9} parent=0
    _
  %s8 = ssub.s32 1, %s6
  %s9 = scalar_select 0, %s8, %s6
  loop: start=0, step=1, limit=4
  $region2: #{lstm_conv_forward.9} parent=0 // loop_pre_header
    _
  $region3: #{lstm_conv_forward.9} parent=0 // loop_header
    %s11 = sphi 0, %s15
    %p12 = scmp.ge.s32.totalorder %s11, 4
    %s21 = sphi 0, %s23
    %s24 = sphi 0, %s21
    %s25 = sphi 0, %s24
    %s41 = sphi 0, %s25
    %s45 = sphi 0, %s45
    %s47 = sphi 0, %s45
    %s48 = sphi 0, %s47
    %s62 = sphi 0, %s48
    %s66 = sphi 0, %s66
    %s68 = sphi 0, %s66
    %s69 = sphi 0, %s68
    %s83 = sphi 0, %s69
    %s87 = sphi 0, %s87
    %s89 = sphi 0, %s87
    %s90 = sphi 0, %s89
    %s104 = sphi 0, %s90
    %s108 = sphi 0, %s108
    %s110 = sphi 0, %s108
    %s111 = sphi 0, %s110
    %s125 = sphi 0, %s111
    %s131 = sphi 0, %s133
    %s134 = sphi 0, %s131
    %s135 = sphi 0, %s134
    %s151 = sphi 0, %s135
  $region4: #{lstm_conv_forward.9} parent=0 // loop_header_branch
    %14 = sbr.rel (%p12) target = $region8
  $region5: #{lstm_conv_forward.9} parent=0 // loop_body
    %s16 = ssub.s32 %s11, 1
    %s17 = ssub.s32 %s11, 2
    %s18 = sadd.s32 %s11, 1
    %s19 = ssub.s32 %s11, %s18
    %p20 = scmp.eq.s32.totalorder %s19, 0
    %s22 = sadd.s32 %s21, 1
    %s23 = scalar_select %p20, %s21, %s22
    %p26 = pneg %p20
    %p27 = scmp.eq.s32.totalorder %s11, 1
    %p28 = por %p26, %p27
    %p29 = scmp.ne.s32.totalorder %s21, %s24
    %p30 = scmp.eq.s32.totalorder %s11, 0
    %p31 = por %p29, %p30
    %p32 = scmp.ne.s32.totalorder %s21, %s24
    %p33 = scmp.eq.s32.totalorder %s16, 1
    %p34 = por %p32, %p33
    %p35 = scmp.ne.s32.totalorder %s24, %s25
    %p36 = scmp.eq.s32.totalorder %s16, 0
    %p37 = por %p35, %p36
    %p38 = scmp.ne.s32.totalorder %s24, %s25
    %p39 = scmp.eq.s32.totalorder %s17, 1
    %p40 = por %p38, %p39
    %p42 = scmp.ne.s32.totalorder %s25, %s41
    %p43 = scmp.eq.s32.totalorder %s17, 0
    %p44 = por %p42, %p43
    %s46 = sadd.s32 %s45, 1
    %p49 = scmp.eq.s32.totalorder %s11, 1
    %p50 = scmp.ne.s32.totalorder %s45, %s47
    %p51 = scmp.eq.s32.totalorder %s11, 0
    %p52 = por %p50, %p51
    %p53 = scmp.ne.s32.totalorder %s45, %s47
    %p54 = scmp.eq.s32.totalorder %s16, 1
    %p55 = por %p53, %p54
    %p56 = scmp.ne.s32.totalorder %s47, %s48
    %p57 = scmp.eq.s32.totalorder %s16, 0
    %p58 = por %p56, %p57
    %p59 = scmp.ne.s32.totalorder %s47, %s48
    %p60 = scmp.eq.s32.totalorder %s17, 1
    %p61 = por %p59, %p60
    %p63 = scmp.ne.s32.totalorder %s48, %s62
    %p64 = scmp.eq.s32.totalorder %s17, 0
    %p65 = por %p63, %p64
    %s67 = sadd.s32 %s66, 1
    %p70 = scmp.eq.s32.totalorder %s11, 1
    %p71 = scmp.ne.s32.totalorder %s66, %s68
    %p72 = scmp.eq.s32.totalorder %s11, 0
    %p73 = por %p71, %p72
    %p74 = scmp.ne.s32.totalorder %s66, %s68
    %p75 = scmp.eq.s32.totalorder %s16, 1
    %p76 = por %p74, %p75
    %p77 = scmp.ne.s32.totalorder %s68, %s69
    %p78 = scmp.eq.s32.totalorder %s16, 0
    %p79 = por %p77, %p78
    %p80 = scmp.ne.s32.totalorder %s68, %s69
    %p81 = scmp.eq.s32.totalorder %s17, 1
    %p82 = por %p80, %p81
    %p84 = scmp.ne.s32.totalorder %s69, %s83
    %p85 = scmp.eq.s32.totalorder %s17, 0
    %p86 = por %p84, %p85
    %s88 = sadd.s32 %s87, 1
    %p91 = scmp.eq.s32.totalorder %s11, 1
    %p92 = scmp.ne.s32.totalorder %s87, %s89
    %p93 = scmp.eq.s32.totalorder %s11, 0
    %p94 = por %p92, %p93
    %p95 = scmp.ne.s32.totalorder %s87, %s89
    %p96 = scmp.eq.s32.totalorder %s16, 1
    %p97 = por %p95, %p96
    %p98 = scmp.ne.s32.totalorder %s89, %s90
    %p99 = scmp.eq.s32.totalorder %s16, 0
    %p100 = por %p98, %p99
    %p101 = scmp.ne.s32.totalorder %s89, %s90
    %p102 = scmp.eq.s32.totalorder %s17, 1
    %p103 = por %p101, %p102
    %p105 = scmp.ne.s32.totalorder %s90, %s104
    %p106 = scmp.eq.s32.totalorder %s17, 0
    %p107 = por %p105, %p106
    %s109 = sadd.s32 %s108, 1
    %p112 = scmp.eq.s32.totalorder %s11, 1
    %p113 = scmp.ne.s32.totalorder %s108, %s110
    %p114 = scmp.eq.s32.totalorder %s11, 0
    %p115 = por %p113, %p114
    %p116 = scmp.ne.s32.totalorder %s108, %s110
    %p117 = scmp.eq.s32.totalorder %s16, 1
    %p118 = por %p116, %p117
    %p119 = scmp.ne.s32.totalorder %s110, %s111
    %p120 = scmp.eq.s32.totalorder %s16, 0
    %p121 = por %p119, %p120
    %p122 = scmp.ne.s32.totalorder %s110, %s111
    %p123 = scmp.eq.s32.totalorder %s17, 1
    %p124 = por %p122, %p123
    %p126 = scmp.ne.s32.totalorder %s111, %s125
    %p127 = scmp.eq.s32.totalorder %s17, 0
    %p128 = por %p126, %p127
    %s129 = ssub.s32 %s11, %s18
    %p130 = scmp.eq.s32.totalorder %s129, 0
    %s132 = sadd.s32 %s131, 1
    %s133 = scalar_select %p130, %s131, %s132
    %p136 = pneg %p130
    %p137 = scmp.eq.s32.totalorder %s11, 1
    %p138 = por %p136, %p137
    %p139 = scmp.ne.s32.totalorder %s131, %s134
    %p140 = scmp.eq.s32.totalorder %s11, 0
    %p141 = por %p139, %p140
    %p142 = scmp.ne.s32.totalorder %s131, %s134
    %p143 = scmp.eq.s32.totalorder %s16, 1
    %p144 = por %p142, %p143
    %p145 = scmp.ne.s32.totalorder %s134, %s135
    %p146 = scmp.eq.s32.totalorder %s16, 0
    %p147 = por %p145, %p146
    %p148 = scmp.ne.s32.totalorder %s134, %s135
    %p149 = scmp.eq.s32.totalorder %s17, 1
    %p150 = por %p148, %p149
    %p152 = scmp.ne.s32.totalorder %s135, %s151
    %p153 = scmp.eq.s32.totalorder %s17, 0
    %p154 = por %p152, %p153
    %p155 = scmp.le.s32.totalorder 1, %s11
    %p156 = scmp.lt.s32.totalorder %s11, 3
    %p157 = pnand %p155, %p156
    %p158 = pneg %p157
    // Predicated region
    $region9: #{lstm_conv_forward.9} parent=5 // pred_check
      _
    $region10: #{lstm_conv_forward.9} parent=5 // pred_check_branch
      %160 = sbr.rel (%p157) target = $region12
    $region11: #{lstm_conv_forward.9} parent=5 // pred_region
      %s161 = ssub.s32 %s11, 1
      // Predicated region
      $region13: #{lstm_conv_forward.9} parent=11 // pred_check
        %p162 = pneg %p58
      $region14: #{lstm_conv_forward.9} parent=11 // pred_check_branch
        %164 = sbr.rel (%p162) target = $region16
      $region15: #{lstm_conv_forward.9} parent=11 // pred_region
        _
      $region16: #{lstm_conv_forward.9} parent=11 // pred_fallthru
        _
      // Predicated region
      $region17: #{lstm_conv_forward.9} parent=11 // pred_check
        %p165 = pneg %p79
      $region18: #{lstm_conv_forward.9} parent=11 // pred_check_branch
        %167 = sbr.rel (%p165) target = $region20
      $region19: #{lstm_conv_forward.9} parent=11 // pred_region
        _
      $region20: #{lstm_conv_forward.9} parent=11 // pred_fallthru
        _
      // Predicated region
      $region21: #{lstm_conv_forward.9} parent=11 // pred_check
        %p168 = pneg %p100
      $region22: #{lstm_conv_forward.9} parent=11 // pred_check_branch
        %170 = sbr.rel (%p168) target = $region24
      $region23: #{lstm_conv_forward.9} parent=11 // pred_region
        _
      $region24: #{lstm_conv_forward.9} parent=11 // pred_fallthru
        _
      // Predicated region
      $region25: #{lstm_conv_forward.9} parent=11 // pred_check
        %p171 = pneg %p121
      $region26: #{lstm_conv_forward.9} parent=11 // pred_check_branch
        %173 = sbr.rel (%p171) target = $region28
      $region27: #{lstm_conv_forward.9} parent=11 // pred_region
        _
      $region28: #{lstm_conv_forward.9} parent=11 // pred_fallthru
        _
    $region12: #{lstm_conv_forward.9} parent=5 // pred_fallthru
      _
    %p174 = scmp.lt.s32.totalorder %s11, 2
    // Predicated region
    $region29: #{lstm_conv_forward.9} parent=5 // pred_check
      %p175 = pneg %p174
    $region30: #{lstm_conv_forward.9} parent=5 // pred_check_branch
      %177 = sbr.rel (%p175) target = $region32
    $region31: #{lstm_conv_forward.9} parent=5 // pred_region
      // Predicated region
      $region33: #{lstm_conv_forward.9} parent=31 // pred_check
        %p178 = pneg %p31
      $region34: #{lstm_conv_forward.9} parent=31 // pred_check_branch
        %180 = sbr.rel (%p178) target = $region36
      $region35: #{lstm_conv_forward.9} parent=31 // pred_region
        %p181 = scmp.lt.s32.totalorder %s11, 1
        %s182 = scalar_select %p181, %s11, 1
        %s183 = smul.addr %s182, 13
        %s184 = smul.addr %s183, 4
        %s185 = scalar_lea.vmem %s0, %s184
      $region36: #{lstm_conv_forward.9} parent=31 // pred_fallthru
        _
    $region32: #{lstm_conv_forward.9} parent=5 // pred_fallthru
      _
    %p186 = scmp.le.s32.totalorder 1, %s11
    %p187 = scmp.lt.s32.totalorder %s11, 3
    %p188 = pnand %p186, %p187
    %p189 = pneg %p188
    // Predicated region
    $region37: #{lstm_conv_forward.9} parent=5 // pred_check
      _
    $region38: #{lstm_conv_forward.9} parent=5 // pred_check_branch
      %191 = sbr.rel (%p188) target = $region40
    $region39: #{lstm_conv_forward.9} parent=5 // pred_region
      %s192 = ssub.s32 %s11, 1
      %p193 = scmp.lt.s32.totalorder %s16, 1
      %s194 = scalar_select %p193, %s16, 1
      %s195 = smul.addr %s194, 13
      %s196 = smul.addr %s195, 4
      %s197 = scalar_lea.vmem %s0, %s196
      %p198 = pneg %p37
      %p199 = pneg %p34
      %p200 = pneg %p58
      %p201 = pneg %p55
      %p202 = pneg %p79
      %p203 = pneg %p76
      %p204 = pneg %p100
      %p205 = pneg %p97
      %p206 = pneg %p121
      %p207 = pneg %p118
      %p208 = pneg %p147
      %p209 = pneg %p144
      %p210 = scmp.lt.s32.totalorder %s16, 1
      %s211 = scalar_select %p210, %s16, 1
      %s212 = smul.addr %s211, 4
      %s213 = smul.addr %s212, 8
      %s214 = scalar_lea.vmem %s5, %s213
      %p215 = scmp.lt.s32.totalorder %s16, 1
      %s216 = scalar_select %p215, %s16, 1
      %s217 = smul.addr %s216, 13
      %s218 = smul.addr %s217, 4
      %s219 = scalar_lea.vmem %s0, %s218
      %p220 = scmp.lt.s32.totalorder %s16, 1
      %s221 = scalar_select %p220, %s16, 1
      %s222 = smul.addr %s221, 4
      %s223 = smul.addr %s222, 8
      %s224 = scalar_lea.vmem %s5, %s223
      %v226 = vld [vmem:[%s219] sm:$0xff]
      %v227 = vld [vmem:[%s219 + $0x8] sm:$0xff]
      %v228 = vld [vmem:[%s219 + $0x10] sm:$0xff]
      %v229 = vld [vmem:[%s219 + $0x18] sm:$0xff]
      %v230 = vld [vmem:[%s219 + $0x20] sm:$0xff]
      %v231 = vld [vmem:[%s219 + $0x28] sm:$0xff]
      %v232 = vld [vmem:[%s219 + $0x30] sm:$0xf]
      %v233 = vld [vmem:[%s1] sm:$0xff]
      %v234 = vld [vmem:[%s1 + $0x8] sm:$0xff]
      %v235 = vld [vmem:[%s1 + $0x10] sm:$0xff]
      %v236 = vld [vmem:[%s1 + $0x18] sm:$0xff]
      %v237 = vld [vmem:[%s1 + $0x20] sm:$0xff]
      %v238 = vld [vmem:[%s1 + $0x28] sm:$0xff]
      %v239 = vld [vmem:[%s1 + $0x30] sm:$0xff]
      %v240 = vld [vmem:[%s1 + $0x38] sm:$0xff]
      %v241 = vld [vmem:[%s1 + $0x40] sm:$0xff]
      %v242 = vld [vmem:[%s1 + $0x48] sm:$0xff]
      %v243 = vld [vmem:[%s1 + $0x50] sm:$0xff]
      %v244 = vld [vmem:[%s1 + $0x58] sm:$0xff]
      %v245 = vld [vmem:[%s1 + $0x60] sm:$0xff]
      %v246 = vld [vmem:[%s1 + $0x68] sm:$0xff]
      %v247 = vld [vmem:[%s1 + $0x70] sm:$0xff]
      %v248 = vld [vmem:[%s1 + $0x78] sm:$0xff]
      %v249 = vld [vmem:[%s1 + $0x80] sm:$0xff]
      %v250 = vld [vmem:[%s1 + $0x88] sm:$0xff]
      %v251 = vld [vmem:[%s1 + $0x90] sm:$0xff]
      %v252 = vld [vmem:[%s1 + $0x98] sm:$0xff]
      %v253 = vld [vmem:[%s1 + $0xa0] sm:$0xff]
      %v254 = vld [vmem:[%s1 + $0xa8] sm:$0xff]
      %v255 = vld [vmem:[%s1 + $0xb0] sm:$0xff]
      %v256 = vld [vmem:[%s1 + $0xb8] sm:$0xff]
      %v257 = vld [vmem:[%s1 + $0xc0] sm:$0xff]
      %v258 = vld [vmem:[%s1 + $0xc8] sm:$0xff]
      %v259 = vld [vmem:[%s1 + $0xd0] sm:$0xff]
      %v260 = vld [vmem:[%s1 + $0xd8] sm:$0xff]
      %v261 = vld [vmem:[%s1 + $0xe0] sm:$0xff]
      %v262 = vld [vmem:[%s1 + $0xe8] sm:$0xff]
      %v263 = vld [vmem:[%s1 + $0xf0] sm:$0xff]
      %v264 = vld [vmem:[%s1 + $0xf8] sm:$0xff]
      %v265 = vld [vmem:[%s1 + $0x100] sm:$0xff]
      %v266 = vld [vmem:[%s1 + $0x108] sm:$0xff]
      %v267 = vld [vmem:[%s1 + $0x110] sm:$0xff]
      %v268 = vld [vmem:[%s1 + $0x118] sm:$0xff]
      %v269 = vld [vmem:[%s1 + $0x120] sm:$0xff]
      %v270 = vld [vmem:[%s1 + $0x128] sm:$0xff]
      %v271 = vld [vmem:[%s1 + $0x130] sm:$0xff]
      %v272 = vld [vmem:[%s1 + $0x138] sm:$0xff]
      %v273 = vld [vmem:[%s1 + $0x140] sm:$0xff]
      %v274 = vld [vmem:[%s1 + $0x148] sm:$0xff]
      %v275 = vld [vmem:[%s1 + $0x150] sm:$0xff]
      %v276 = vld [vmem:[%s1 + $0x158] sm:$0xff]
      %v277 = vld [vmem:[%s1 + $0x160] sm:$0xff]
      %v278 = vld [vmem:[%s1 + $0x168] sm:$0xff]
      %v279 = vld [vmem:[%s1 + $0x170] sm:$0xff]
      %v280 = vld [vmem:[%s1 + $0x178] sm:$0xff]
      %v281 = vld [vmem:[%s1 + $0x180] sm:$0xff]
      %v282 = vld [vmem:[%s1 + $0x188] sm:$0xff]
      %v283 = vld [vmem:[%s1 + $0x190] sm:$0xff]
      %v284 = vld [vmem:[%s1 + $0x198] sm:$0xff]
      %v285 = vld [vmem:[%s1 + $0x1a0] sm:$0xff]
      %v286 = vld [vmem:[%s1 + $0x1a8] sm:$0xff]
      %v287 = vld [vmem:[%s1 + $0x1b0] sm:$0xff]
      %v288 = vld [vmem:[%s1 + $0x1b8] sm:$0xff]
      %v289 = vld [vmem:[%s1 + $0x1c0] sm:$0xff]
      %v290 = vld [vmem:[%s1 + $0x1c8] sm:$0xff]
      %v291 = vld [vmem:[%s1 + $0x1d0] sm:$0xff]
      %v292 = vld [vmem:[%s1 + $0x1d8] sm:$0xff]
      %v293 = vld [vmem:[%s1 + $0x1e0] sm:$0xff]
      %v294 = vld [vmem:[%s1 + $0x1e8] sm:$0xff]
      %v295 = vld [vmem:[%s1 + $0x1f0] sm:$0xff]
      %v296 = vld [vmem:[%s1 + $0x1f8] sm:$0xff]
      %v297 = vld [vmem:[%s1 + $0x200] sm:$0xff]
      %v298 = vld [vmem:[%s1 + $0x208] sm:$0xff]
      %v299 = vld [vmem:[%s1 + $0x210] sm:$0xff]
      %v300 = vld [vmem:[%s1 + $0x218] sm:$0xff]
      %v301 = vld [vmem:[%s1 + $0x220] sm:$0xff]
      %v302 = vld [vmem:[%s1 + $0x228] sm:$0xff]
      %v303 = vld [vmem:[%s1 + $0x230] sm:$0xff]
      %v304 = vld [vmem:[%s1 + $0x238] sm:$0xff]
      %v305 = vld [vmem:[%s1 + $0x240] sm:$0xff]
      %v306 = vld [vmem:[%s1 + $0x248] sm:$0xff]
      %v307 = vld [vmem:[%s1 + $0x250] sm:$0xff]
      %v308 = vld [vmem:[%s1 + $0x258] sm:$0xff]
      %v309 = vld [vmem:[%s1 + $0x260] sm:$0xff]
      %v310 = vld [vmem:[%s1 + $0x268] sm:$0xff]
      %v311 = vld [vmem:[%s1 + $0x270] sm:$0xff]
      %v312 = vld [vmem:[%s1 + $0x278] sm:$0xff]
      %v313 = vld [vmem:[%s1 + $0x280] sm:$0xff]
      %v314 = vld [vmem:[%s1 + $0x288] sm:$0xff]
      %v315 = vld [vmem:[%s1 + $0x290] sm:$0xff]
      %v316 = vld [vmem:[%s1 + $0x298] sm:$0xff]
      %v317 = vld [vmem:[%s1 + $0x2a0] sm:$0xff]
      %v318 = vld [vmem:[%s1 + $0x2a8] sm:$0xff]
      %v319 = vld [vmem:[%s1 + $0x2b0] sm:$0xff]
      %v320 = vld [vmem:[%s1 + $0x2b8] sm:$0xff]
      %v321 = vld [vmem:[%s1 + $0x2c0] sm:$0xff]
      %v322 = vld [vmem:[%s1 + $0x2c8] sm:$0xff]
      %v323 = vld [vmem:[%s1 + $0x2d0] sm:$0xff]
      %v324 = vld [vmem:[%s1 + $0x2d8] sm:$0xff]
      %v325 = vld [vmem:[%s1 + $0x2e0] sm:$0xff]
      %v326 = vld [vmem:[%s1 + $0x2e8] sm:$0xff]
      %v327 = vld [vmem:[%s1 + $0x2f0] sm:$0xff]
      %v328 = vld [vmem:[%s1 + $0x2f8] sm:$0xff]
      %v329 = vld [vmem:[%s1 + $0x300] sm:$0xff]
      %v330 = vld [vmem:[%s1 + $0x308] sm:$0xff]
      %v331 = vld [vmem:[%s1 + $0x310] sm:$0xff]
      %v332 = vld [vmem:[%s1 + $0x318] sm:$0xff]
      %v333 = vld [vmem:[%s1 + $0x320] sm:$0xff]
      %v334 = vld [vmem:[%s1 + $0x328] sm:$0xff]
      %v335 = vld [vmem:[%s1 + $0x330] sm:$0xff]
      %v336 = vld [vmem:[%s1 + $0x338] sm:$0xff]
      %v337 = vld [vmem:[%s1 + $0x340] sm:$0xff]
      %v338 = vld [vmem:[%s1 + $0x348] sm:$0xff]
      %v339 = vld [vmem:[%s1 + $0x350] sm:$0xff]
      %v340 = vld [vmem:[%s1 + $0x358] sm:$0xff]
      %v341 = vld [vmem:[%s1 + $0x360] sm:$0xff]
      %v342 = vld [vmem:[%s1 + $0x368] sm:$0xff]
      %v343 = vld [vmem:[%s1 + $0x370] sm:$0xff]
      %v344 = vld [vmem:[%s1 + $0x378] sm:$0xff]
      %v345 = vld [vmem:[%s1 + $0x380] sm:$0xff]
      %v346 = vld [vmem:[%s1 + $0x388] sm:$0xff]
      %v347 = vld [vmem:[%s1 + $0x390] sm:$0xff]
      %v348 = vld [vmem:[%s1 + $0x398] sm:$0xff]
      %v349 = vld [vmem:[%s1 + $0x3a0] sm:$0xff]
      %v350 = vld [vmem:[%s1 + $0x3a8] sm:$0xff]
      %v351 = vld [vmem:[%s1 + $0x3b0] sm:$0xff]
      %v352 = vld [vmem:[%s1 + $0x3b8] sm:$0xff]
      %v353 = vld [vmem:[%s1 + $0x3c0] sm:$0xff]
      %v354 = vld [vmem:[%s1 + $0x3c8] sm:$0xff]
      %v355 = vld [vmem:[%s1 + $0x3d0] sm:$0xff]
      %v356 = vld [vmem:[%s1 + $0x3d8] sm:$0xff]
      %v357 = vld [vmem:[%s1 + $0x3e0] sm:$0xff]
      %v358 = vld [vmem:[%s1 + $0x3e8] sm:$0xff]
      %v359 = vld [vmem:[%s1 + $0x3f0] sm:$0xff]
      %v360 = vld [vmem:[%s1 + $0x3f8] sm:$0xff]
      %v361 = vld [vmem:[%s1 + $0x400] sm:$0xff]
      %v362 = vld [vmem:[%s1 + $0x408] sm:$0xff]
      %v363 = vld [vmem:[%s1 + $0x410] sm:$0xff]
      %v364 = vld [vmem:[%s1 + $0x418] sm:$0xff]
      %v365 = vld [vmem:[%s1 + $0x420] sm:$0xff]
      %v366 = vld [vmem:[%s1 + $0x428] sm:$0xff]
      %v367 = vld [vmem:[%s1 + $0x430] sm:$0xff]
      %v368 = vld [vmem:[%s1 + $0x438] sm:$0xff]
      %v369 = vld [vmem:[%s1 + $0x440] sm:$0xff]
      %v370 = vld [vmem:[%s1 + $0x448] sm:$0xff]
      %v371 = vld [vmem:[%s1 + $0x450] sm:$0xff]
      %v372 = vld [vmem:[%s1 + $0x458] sm:$0xff]
      %v373 = vld [vmem:[%s1 + $0x460] sm:$0xff]
      %v374 = vld [vmem:[%s1 + $0x468] sm:$0xff]
      %v375 = vld [vmem:[%s1 + $0x470] sm:$0xff]
      %v376 = vld [vmem:[%s1 + $0x478] sm:$0xff]
      %v377 = vld [vmem:[%s1 + $0x480] sm:$0xff]
      %v378 = vld [vmem:[%s1 + $0x488] sm:$0xff]
      %v379 = vld [vmem:[%s1 + $0x490] sm:$0xff]
      %v380 = vld [vmem:[%s1 + $0x498] sm:$0xff]
      %v381 = vld [vmem:[%s1 + $0x4a0] sm:$0xff]
      %v382 = vld [vmem:[%s1 + $0x4a8] sm:$0xff]
      %v383 = vld [vmem:[%s1 + $0x4b0] sm:$0xff]
      %v384 = vld [vmem:[%s1 + $0x4b8] sm:$0xff]
      %v385 = vld [vmem:[%s1 + $0x4c0] sm:$0xff]
      %v386 = vld [vmem:[%s1 + $0x4c8] sm:$0xff]
      %v387 = vld [vmem:[%s1 + $0x4d0] sm:$0xff]
      %v388 = vld [vmem:[%s1 + $0x4d8] sm:$0xff]
      %v389 = vld [vmem:[%s1 + $0x4e0] sm:$0xff]
      %v390 = vld [vmem:[%s1 + $0x4e8] sm:$0xff]
      %v391 = vld [vmem:[%s1 + $0x4f0] sm:$0xff]
      %v392 = vld [vmem:[%s1 + $0x4f8] sm:$0xff]
      %v393 = vld [vmem:[%s1 + $0x500] sm:$0xff]
      %v394 = vld [vmem:[%s1 + $0x508] sm:$0xff]
      %v395 = vld [vmem:[%s1 + $0x510] sm:$0xff]
      %v396 = vld [vmem:[%s1 + $0x518] sm:$0xff]
      %v397 = vld [vmem:[%s1 + $0x520] sm:$0xff]
      %v398 = vld [vmem:[%s1 + $0x528] sm:$0xff]
      %v399 = vld [vmem:[%s1 + $0x530] sm:$0xff]
      %v400 = vld [vmem:[%s1 + $0x538] sm:$0xff]
      %v401 = vld [vmem:[%s1 + $0x540] sm:$0xff]
      %v402 = vld [vmem:[%s1 + $0x548] sm:$0xff]
      %v403 = vld [vmem:[%s1 + $0x550] sm:$0xff]
      %v404 = vld [vmem:[%s1 + $0x558] sm:$0xff]
      %v405 = vld [vmem:[%s1 + $0x560] sm:$0xff]
      %v406 = vld [vmem:[%s1 + $0x568] sm:$0xff]
      %v407 = vld [vmem:[%s1 + $0x570] sm:$0xff]
      %v408 = vld [vmem:[%s1 + $0x578] sm:$0xff]
      %v409 = vld [vmem:[%s1 + $0x580] sm:$0xff]
      %v410 = vld [vmem:[%s1 + $0x588] sm:$0xff]
      %v411 = vld [vmem:[%s1 + $0x590] sm:$0xff]
      %v412 = vld [vmem:[%s1 + $0x598] sm:$0xff]
      %v413 = vld [vmem:[%s1 + $0x5a0] sm:$0xff]
      %v414 = vld [vmem:[%s1 + $0x5a8] sm:$0xff]
      %v415 = vld [vmem:[%s1 + $0x5b0] sm:$0xff]
      %v416 = vld [vmem:[%s1 + $0x5b8] sm:$0xff]
      %v417 = vld [vmem:[%s1 + $0x5c0] sm:$0xff]
      %v418 = vld [vmem:[%s1 + $0x5c8] sm:$0xff]
      %v419 = vld [vmem:[%s1 + $0x5d0] sm:$0xff]
      %v420 = vld [vmem:[%s1 + $0x5d8] sm:$0xff]
      %v421 = vld [vmem:[%s1 + $0x5e0] sm:$0xff]
      %v422 = vld [vmem:[%s1 + $0x5e8] sm:$0xff]
      %v423 = vld [vmem:[%s1 + $0x5f0] sm:$0xff]
      %v424 = vld [vmem:[%s1 + $0x5f8] sm:$0xff]
      %v425 = vld [vmem:[%s1 + $0x600] sm:$0xff]
      %v426 = vld [vmem:[%s1 + $0x608] sm:$0xff]
      %v427 = vld [vmem:[%s1 + $0x610] sm:$0xff]
      %v428 = vld [vmem:[%s1 + $0x618] sm:$0xff]
      %v429 = vld [vmem:[%s1 + $0x620] sm:$0xff]
      %v430 = vld [vmem:[%s1 + $0x628] sm:$0xff]
      %v431 = vld [vmem:[%s1 + $0x630] sm:$0xff]
      %v432 = vld [vmem:[%s1 + $0x638] sm:$0xff]
      %v433 = vld [vmem:[%s1 + $0x640] sm:$0xff]
      %v434 = vld [vmem:[%s1 + $0x648] sm:$0xff]
      %v435 = vld [vmem:[%s1 + $0x650] sm:$0xff]
      %v436 = vld [vmem:[%s1 + $0x658] sm:$0xff]
      %v437 = vld [vmem:[%s1 + $0x660] sm:$0xff]
      %v438 = vld [vmem:[%s1 + $0x668] sm:$0xff]
      %v439 = vld [vmem:[%s1 + $0x670] sm:$0xff]
      %v440 = vld [vmem:[%s1 + $0x678] sm:$0xff]
      %v441 = vld [vmem:[%s1 + $0x680] sm:$0xff]
      %v442 = vld [vmem:[%s1 + $0x688] sm:$0xff]
      %v443 = vld [vmem:[%s1 + $0x690] sm:$0xff]
      %v444 = vld [vmem:[%s1 + $0x698] sm:$0xff]
      %v445 = vld [vmem:[%s1 + $0x6a0] sm:$0xff]
      %v446 = vld [vmem:[%s1 + $0x6a8] sm:$0xff]
      %v447 = vld [vmem:[%s1 + $0x6b0] sm:$0xff]
      %v448 = vld [vmem:[%s1 + $0x6b8] sm:$0xff]
      %v449 = vld [vmem:[%s1 + $0x6c0] sm:$0xff]
      %v450 = vld [vmem:[%s1 + $0x6c8] sm:$0xff]
      %v451 = vld [vmem:[%s1 + $0x6d0] sm:$0xff]
      %v452 = vld [vmem:[%s1 + $0x6d8] sm:$0xff]
      %v453 = vld [vmem:[%s1 + $0x6e0] sm:$0xff]
      %v454 = vld [vmem:[%s1 + $0x6e8] sm:$0xff]
      %v455 = vld [vmem:[%s1 + $0x6f0] sm:$0xff]
      %v456 = vld [vmem:[%s1 + $0x6f8] sm:$0xff]
      %v457 = vld [vmem:[%s1 + $0x700] sm:$0xff]
      %v458 = vld [vmem:[%s1 + $0x708] sm:$0xff]
      %v459 = vld [vmem:[%s1 + $0x710] sm:$0xff]
      %v460 = vld [vmem:[%s1 + $0x718] sm:$0xff]
      %v461 = vld [vmem:[%s1 + $0x720] sm:$0xff]
      %v462 = vld [vmem:[%s1 + $0x728] sm:$0xff]
      %v463 = vld [vmem:[%s1 + $0x730] sm:$0xff]
      %v464 = vld [vmem:[%s1 + $0x738] sm:$0xff]
      %v465 = vld [vmem:[%s1 + $0x740] sm:$0xff]
      %v466 = vld [vmem:[%s1 + $0x748] sm:$0xff]
      %v467 = vld [vmem:[%s1 + $0x750] sm:$0xff]
      %v468 = vld [vmem:[%s1 + $0x758] sm:$0xff]
      %v469 = vld [vmem:[%s1 + $0x760] sm:$0xff]
      %v470 = vld [vmem:[%s1 + $0x768] sm:$0xff]
      %v471 = vld [vmem:[%s1 + $0x770] sm:$0xff]
      %v472 = vld [vmem:[%s1 + $0x778] sm:$0xff]
      %v473 = vld [vmem:[%s1 + $0x780] sm:$0xff]
      %v474 = vld [vmem:[%s1 + $0x788] sm:$0xff]
      %v475 = vld [vmem:[%s1 + $0x790] sm:$0xff]
      %v476 = vld [vmem:[%s1 + $0x798] sm:$0xff]
      %v477 = vld [vmem:[%s1 + $0x7a0] sm:$0xff]
      %v478 = vld [vmem:[%s1 + $0x7a8] sm:$0xff]
      %v479 = vld [vmem:[%s1 + $0x7b0] sm:$0xff]
      %v480 = vld [vmem:[%s1 + $0x7b8] sm:$0xff]
      %v481 = vld [vmem:[%s1 + $0x7c0] sm:$0xff]
      %v482 = vld [vmem:[%s1 + $0x7c8] sm:$0xff]
      %v483 = vld [vmem:[%s1 + $0x7d0] sm:$0xff]
      %v484 = vld [vmem:[%s1 + $0x7d8] sm:$0xff]
      %v485 = vld [vmem:[%s1 + $0x7e0] sm:$0xff]
      %v486 = vld [vmem:[%s1 + $0x7e8] sm:$0xff]
      %v487 = vld [vmem:[%s1 + $0x7f0] sm:$0xff]
      %v488 = vld [vmem:[%s1 + $0x7f8] sm:$0xff]
      %v489 = vld [vmem:[%s1 + $0x800] sm:$0xff]
      %v490 = vld [vmem:[%s1 + $0x808] sm:$0xff]
      %v491 = vld [vmem:[%s1 + $0x810] sm:$0xff]
      %v492 = vld [vmem:[%s1 + $0x818] sm:$0xff]
      %v493 = vld [vmem:[%s1 + $0x820] sm:$0xff]
      %v494 = vld [vmem:[%s1 + $0x828] sm:$0xff]
      %v495 = vld [vmem:[%s1 + $0x830] sm:$0xff]
      %v496 = vld [vmem:[%s1 + $0x838] sm:$0xff]
      %v497 = vld [vmem:[%s1 + $0x840] sm:$0xff]
      %v498 = vld [vmem:[%s1 + $0x848] sm:$0xff]
      %v499 = vld [vmem:[%s1 + $0x850] sm:$0xff]
      %v500 = vld [vmem:[%s1 + $0x858] sm:$0xff]
      %v501 = vld [vmem:[%s1 + $0x860] sm:$0xff]
      %v502 = vld [vmem:[%s1 + $0x868] sm:$0xff]
      %v503 = vld [vmem:[%s1 + $0x870] sm:$0xff]
      %v504 = vld [vmem:[%s1 + $0x878] sm:$0xff]
      %v505 = vld [vmem:[%s1 + $0x880] sm:$0xff]
      %v506 = vld [vmem:[%s1 + $0x888] sm:$0xff]
      %v507 = vld [vmem:[%s1 + $0x890] sm:$0xff]
      %v508 = vld [vmem:[%s1 + $0x898] sm:$0xff]
      %v509 = vld [vmem:[%s1 + $0x8a0] sm:$0xff]
      %v510 = vld [vmem:[%s1 + $0x8a8] sm:$0xff]
      %v511 = vld [vmem:[%s1 + $0x8b0] sm:$0xff]
      %v512 = vld [vmem:[%s1 + $0x8b8] sm:$0xff]
      %v513 = vld [vmem:[%s1 + $0x8c0] sm:$0xff]
      %v514 = vld [vmem:[%s1 + $0x8c8] sm:$0xff]
      %v515 = vld [vmem:[%s1 + $0x8d0] sm:$0xff]
      %v516 = vld [vmem:[%s1 + $0x8d8] sm:$0xff]
      %v517 = vld [vmem:[%s1 + $0x8e0] sm:$0xff]
      %v518 = vld [vmem:[%s1 + $0x8e8] sm:$0xff]
      %v519 = vld [vmem:[%s1 + $0x8f0] sm:$0xff]
      %v520 = vld [vmem:[%s1 + $0x8f8] sm:$0xff]
      %v521 = vld [vmem:[%s1 + $0x900] sm:$0xff]
      %v522 = vld [vmem:[%s1 + $0x908] sm:$0xff]
      %v523 = vld [vmem:[%s1 + $0x910] sm:$0xff]
      %v524 = vld [vmem:[%s1 + $0x918] sm:$0xff]
      %v525 = vld [vmem:[%s1 + $0x920] sm:$0xff]
      %v526 = vld [vmem:[%s1 + $0x928] sm:$0xff]
      %v527 = vld [vmem:[%s1 + $0x930] sm:$0xff]
      %v528 = vld [vmem:[%s1 + $0x938] sm:$0xff]
      %v529 = vld [vmem:[%s1 + $0x940] sm:$0xff]
      %v530 = vld [vmem:[%s1 + $0x948] sm:$0xff]
      %v531 = vld [vmem:[%s1 + $0x950] sm:$0xff]
      %v532 = vld [vmem:[%s1 + $0x958] sm:$0xff]
      %v533 = vld [vmem:[%s1 + $0x960] sm:$0xff]
      %v534 = vld [vmem:[%s1 + $0x968] sm:$0xff]
      %v535 = vld [vmem:[%s1 + $0x970] sm:$0xff]
      %v536 = vld [vmem:[%s1 + $0x978] sm:$0xff]
      %v537 = vld [vmem:[%s1 + $0x980] sm:$0xff]
      %v538 = vld [vmem:[%s1 + $0x988] sm:$0xff]
      %v539 = vld [vmem:[%s1 + $0x990] sm:$0xff]
      %v540 = vld [vmem:[%s1 + $0x998] sm:$0xff]
      %v541 = vld [vmem:[%s1 + $0x9a0] sm:$0xff]
      %v542 = vld [vmem:[%s1 + $0x9a8] sm:$0xff]
      %v543 = vld [vmem:[%s1 + $0x9b0] sm:$0xff]
      %v544 = vld [vmem:[%s1 + $0x9b8] sm:$0xff]
      %v545 = vld [vmem:[%s1 + $0x9c0] sm:$0xff]
      %v546 = vld [vmem:[%s1 + $0x9c8] sm:$0xff]
      %v547 = vld [vmem:[%s1 + $0x9d0] sm:$0xff]
      %v548 = vld [vmem:[%s1 + $0x9d8] sm:$0xff]
      %v549 = vld [vmem:[%s1 + $0x9e0] sm:$0xff]
      %v550 = vld [vmem:[%s1 + $0x9e8] sm:$0xff]
      %v551 = vld [vmem:[%s1 + $0x9f0] sm:$0xff]
      %v552 = vld [vmem:[%s1 + $0x9f8] sm:$0xff]
      %v553 = vld [vmem:[%s1 + $0xa00] sm:$0xff]
      %v554 = vld [vmem:[%s1 + $0xa08] sm:$0xff]
      %v555 = vld [vmem:[%s1 + $0xa10] sm:$0xff]
      %v556 = vld [vmem:[%s1 + $0xa18] sm:$0xff]
      %v557 = vld [vmem:[%s1 + $0xa20] sm:$0xff]
      %v558 = vld [vmem:[%s1 + $0xa28] sm:$0xff]
      %v559 = vld [vmem:[%s1 + $0xa30] sm:$0xff]
      %v560 = vld [vmem:[%s1 + $0xa38] sm:$0xff]
      %v561 = vld [vmem:[%s1 + $0xa40] sm:$0xff]
      %v562 = vld [vmem:[%s1 + $0xa48] sm:$0xff]
      %v563 = vld [vmem:[%s1 + $0xa50] sm:$0xff]
      %v564 = vld [vmem:[%s1 + $0xa58] sm:$0xff]
      %v565 = vld [vmem:[%s1 + $0xa60] sm:$0xff]
      %v566 = vld [vmem:[%s1 + $0xa68] sm:$0xff]
      %v567 = vld [vmem:[%s1 + $0xa70] sm:$0xff]
      %v568 = vld [vmem:[%s1 + $0xa78] sm:$0xff]
      %v569 = vld [vmem:[%s1 + $0xa80] sm:$0xff]
      %v570 = vld [vmem:[%s1 + $0xa88] sm:$0xff]
      %v571 = vld [vmem:[%s1 + $0xa90] sm:$0xff]
      %v572 = vld [vmem:[%s1 + $0xa98] sm:$0xff]
      %v573 = vld [vmem:[%s1 + $0xaa0] sm:$0xff]
      %v574 = vld [vmem:[%s1 + $0xaa8] sm:$0xff]
      %v575 = vld [vmem:[%s1 + $0xab0] sm:$0xff]
      %v576 = vld [vmem:[%s1 + $0xab8] sm:$0xff]
      %v577 = vld [vmem:[%s1 + $0xac0] sm:$0xff]
      %v578 = vld [vmem:[%s1 + $0xac8] sm:$0xff]
      %v579 = vld [vmem:[%s1 + $0xad0] sm:$0xff]
      %v580 = vld [vmem:[%s1 + $0xad8] sm:$0xff]
      %v581 = vld [vmem:[%s1 + $0xae0] sm:$0xff]
      %v582 = vld [vmem:[%s1 + $0xae8] sm:$0xff]
      %v583 = vld [vmem:[%s1 + $0xaf0] sm:$0xff]
      %v584 = vld [vmem:[%s1 + $0xaf8] sm:$0xff]
      %v585 = vld [vmem:[%s1 + $0xb00] sm:$0xff]
      %v586 = vld [vmem:[%s1 + $0xb08] sm:$0xff]
      %v587 = vld [vmem:[%s1 + $0xb10] sm:$0xff]
      %v588 = vld [vmem:[%s1 + $0xb18] sm:$0xff]
      %v589 = vld [vmem:[%s1 + $0xb20] sm:$0xff]
      %v590 = vld [vmem:[%s1 + $0xb28] sm:$0xff]
      %v591 = vld [vmem:[%s1 + $0xb30] sm:$0xff]
      %v592 = vld [vmem:[%s1 + $0xb38] sm:$0xff]
      %v593 = vld [vmem:[%s1 + $0xb40] sm:$0xff]
      %v594 = vld [vmem:[%s1 + $0xb48] sm:$0xff]
      %v595 = vld [vmem:[%s1 + $0xb50] sm:$0xff]
      %v596 = vld [vmem:[%s1 + $0xb58] sm:$0xff]
      %v597 = vld [vmem:[%s1 + $0xb60] sm:$0xff]
      %v598 = vld [vmem:[%s1 + $0xb68] sm:$0xff]
      %v599 = vld [vmem:[%s1 + $0xb70] sm:$0xff]
      %v600 = vld [vmem:[%s1 + $0xb78] sm:$0xff]
      %v601 = vld [vmem:[%s1 + $0xb80] sm:$0xff]
      %v602 = vld [vmem:[%s1 + $0xb88] sm:$0xff]
      %v603 = vld [vmem:[%s1 + $0xb90] sm:$0xff]
      %v604 = vld [vmem:[%s1 + $0xb98] sm:$0xff]
      %v605 = vld [vmem:[%s1 + $0xba0] sm:$0xff]
      %v606 = vld [vmem:[%s1 + $0xba8] sm:$0xff]
      %v607 = vld [vmem:[%s1 + $0xbb0] sm:$0xff]
      %v608 = vld [vmem:[%s1 + $0xbb8] sm:$0xff]
      %v609 = vld [vmem:[%s1 + $0xbc0] sm:$0xff]
      %v610 = vld [vmem:[%s1 + $0xbc8] sm:$0xff]
      %v611 = vld [vmem:[%s1 + $0xbd0] sm:$0xff]
      %v612 = vld [vmem:[%s1 + $0xbd8] sm:$0xff]
      %v613 = vld [vmem:[%s1 + $0xbe0] sm:$0xff]
      %v614 = vld [vmem:[%s1 + $0xbe8] sm:$0xff]
      %v615 = vld [vmem:[%s1 + $0xbf0] sm:$0xff]
      %v616 = vld [vmem:[%s1 + $0xbf8] sm:$0xff]
      %v617 = vld [vmem:[%s1 + $0xc00] sm:$0xff]
      %v618 = vld [vmem:[%s1 + $0xc08] sm:$0xff]
      %v619 = vld [vmem:[%s1 + $0xc10] sm:$0xff]
      %v620 = vld [vmem:[%s1 + $0xc18] sm:$0xff]
      %v621 = vld [vmem:[%s1 + $0xc20] sm:$0xff]
      %v622 = vld [vmem:[%s1 + $0xc28] sm:$0xff]
      %v623 = vld [vmem:[%s1 + $0xc30] sm:$0xff]
      %v624 = vld [vmem:[%s1 + $0xc38] sm:$0xff]
      %v625 = vld [vmem:[%s2] sm:$0xf]
      %v627 = vlaneseq
      %v628 = vshrl.u32 %v627, 7
      %v629 = vsub.s32 0, %v628
      %v630 = vrot.slane %v625, %v629
      %v631 = vlaneseq
      %v632 = vshrl.u32 %v631, 7
      %v633 = vsub.s32 1, %v632
      %v634 = vrot.slane %v625, %v633
      %v635 = vlaneseq
      %v636 = vshrl.u32 %v635, 7
      %v637 = vsub.s32 2, %v636
      %v638 = vrot.slane %v625, %v637
      %v639 = vlaneseq
      %v640 = vshrl.u32 %v639, 7
      %v641 = vsub.s32 3, %v640
      %v642 = vrot.slane %v625, %v641
      %v654 = vunpack.c.l.b16 %v226
      %v655 = vunpack.c.h.b16 %v226
      %v656 = vunpack.c.l.b16 %v227
      %v657 = vunpack.c.h.b16 %v227
      %v658 = vunpack.c.l.b16 %v228
      %v659 = vunpack.c.h.b16 %v228
      %v660 = vunpack.c.l.b16 %v229
      %v661 = vunpack.c.h.b16 %v229
      %v662 = vunpack.c.l.b16 %v230
      %v663 = vunpack.c.h.b16 %v230
      %v664 = vunpack.c.l.b16 %v231
      %v665 = vunpack.c.h.b16 %v231
      %v666 = vunpack.c.l.b16 %v232
      %v667 = vpack.c.b16 %v654, %v654
      %v668 = vpack.c.b16 %v655, %v655
      %v669 = vpack.c.b16 %v656, %v656
      %v670 = vpack.c.b16 %v657, %v657
      %v671 = vpack.c.b16 %v658, %v658
      %v672 = vpack.c.b16 %v659, %v659
      %v673 = vpack.c.b16 %v660, %v660
      %v674 = vpack.c.b16 %v661, %v661
      %v675 = vpack.c.b16 %v662, %v662
      %v676 = vpack.c.b16 %v663, %v663
      %v677 = vpack.c.b16 %v664, %v664
      %v678 = vpack.c.b16 %v665, %v665
      %v679 = vpack.c.b16 %v666, %v666
      %v1084 = vunpack.c.l.b16 %v233
      %v1085 = vunpack.c.h.b16 %v233
      %v1086 = vunpack.c.l.b16 %v234
      %v1087 = vunpack.c.h.b16 %v234
      %v1088 = vunpack.c.l.b16 %v235
      %v1089 = vunpack.c.h.b16 %v235
      %v1090 = vunpack.c.l.b16 %v236
      %v1091 = vunpack.c.h.b16 %v236
      %v1092 = vunpack.c.l.b16 %v237
      %v1093 = vunpack.c.h.b16 %v237
      %v1094 = vunpack.c.l.b16 %v238
      %v1095 = vunpack.c.h.b16 %v238
      %v1096 = vunpack.c.l.b16 %v239
      %v1097 = vunpack.c.h.b16 %v239
      %v1098 = vunpack.c.l.b16 %v240
      %v1099 = vunpack.c.h.b16 %v240
      %v1100 = vunpack.c.l.b16 %v241
      %v1101 = vunpack.c.h.b16 %v241
      %v1102 = vunpack.c.l.b16 %v242
      %v1103 = vunpack.c.h.b16 %v242
      %v1104 = vunpack.c.l.b16 %v243
      %v1105 = vunpack.c.h.b16 %v243
      %v1106 = vunpack.c.l.b16 %v244
      %v1107 = vunpack.c.h.b16 %v244
      %v1108 = vunpack.c.l.b16 %v245
      %v1109 = vunpack.c.h.b16 %v245
      %v1110 = vunpack.c.l.b16 %v246
      %v1111 = vunpack.c.h.b16 %v246
      %v1112 = vunpack.c.l.b16 %v247
      %v1113 = vunpack.c.h.b16 %v247
      %v1114 = vunpack.c.l.b16 %v248
      %v1115 = vunpack.c.h.b16 %v248
      %v1116 = vunpack.c.l.b16 %v249
      %v1117 = vunpack.c.h.b16 %v249
      %v1118 = vunpack.c.l.b16 %v250
      %v1119 = vunpack.c.h.b16 %v250
      %v1120 = vunpack.c.l.b16 %v251
      %v1121 = vunpack.c.h.b16 %v251
      %v1122 = vunpack.c.l.b16 %v252
      %v1123 = vunpack.c.h.b16 %v252
      %v1124 = vunpack.c.l.b16 %v253
      %v1125 = vunpack.c.h.b16 %v253
      %v1126 = vunpack.c.l.b16 %v254
      %v1127 = vunpack.c.h.b16 %v254
      %v1128 = vunpack.c.l.b16 %v255
      %v1129 = vunpack.c.h.b16 %v255
      %v1130 = vunpack.c.l.b16 %v256
      %v1131 = vunpack.c.h.b16 %v256
      %v1132 = vunpack.c.l.b16 %v257
      %v1133 = vunpack.c.h.b16 %v257
      %v1134 = vunpack.c.l.b16 %v258
      %v1135 = vunpack.c.h.b16 %v258
      %v1136 = vunpack.c.l.b16 %v259
      %v1137 = vunpack.c.h.b16 %v259
      %v1138 = vunpack.c.l.b16 %v260
      %v1139 = vunpack.c.h.b16 %v260
      %v1140 = vunpack.c.l.b16 %v261
      %v1141 = vunpack.c.h.b16 %v261
      %v1142 = vunpack.c.l.b16 %v262
      %v1143 = vunpack.c.h.b16 %v262
      %v1144 = vunpack.c.l.b16 %v263
      %v1145 = vunpack.c.h.b16 %v263
      %v1146 = vunpack.c.l.b16 %v264
      %v1147 = vunpack.c.h.b16 %v264
      %v1148 = vunpack.c.l.b16 %v265
      %v1149 = vunpack.c.h.b16 %v265
      %v1150 = vunpack.c.l.b16 %v266
      %v1151 = vunpack.c.h.b16 %v266
      %v1152 = vunpack.c.l.b16 %v267
      %v1153 = vunpack.c.h.b16 %v267
      %v1154 = vunpack.c.l.b16 %v268
      %v1155 = vunpack.c.h.b16 %v268
      %v1156 = vunpack.c.l.b16 %v269
      %v1157 = vunpack.c.h.b16 %v269
      %v1158 = vunpack.c.l.b16 %v270
      %v1159 = vunpack.c.h.b16 %v270
      %v1160 = vunpack.c.l.b16 %v271
      %v1161 = vunpack.c.h.b16 %v271
      %v1162 = vunpack.c.l.b16 %v272
      %v1163 = vunpack.c.h.b16 %v272
      %v1164 = vunpack.c.l.b16 %v273
      %v1165 = vunpack.c.h.b16 %v273
      %v1166 = vunpack.c.l.b16 %v274
      %v1167 = vunpack.c.h.b16 %v274
      %v1168 = vunpack.c.l.b16 %v275
      %v1169 = vunpack.c.h.b16 %v275
      %v1170 = vunpack.c.l.b16 %v276
      %v1171 = vunpack.c.h.b16 %v276
      %v1172 = vunpack.c.l.b16 %v277
      %v1173 = vunpack.c.h.b16 %v277
      %v1174 = vunpack.c.l.b16 %v278
      %v1175 = vunpack.c.h.b16 %v278
      %v1176 = vunpack.c.l.b16 %v279
      %v1177 = vunpack.c.h.b16 %v279
      %v1178 = vunpack.c.l.b16 %v280
      %v1179 = vunpack.c.h.b16 %v280
      %v1180 = vunpack.c.l.b16 %v281
      %v1181 = vunpack.c.h.b16 %v281
      %v1182 = vunpack.c.l.b16 %v282
      %v1183 = vunpack.c.h.b16 %v282
      %v1184 = vunpack.c.l.b16 %v283
      %v1185 = vunpack.c.h.b16 %v283
      %v1186 = vunpack.c.l.b16 %v284
      %v1187 = vunpack.c.h.b16 %v284
      %v1188 = vunpack.c.l.b16 %v285
      %v1189 = vunpack.c.h.b16 %v285
      %v1190 = vunpack.c.l.b16 %v286
      %v1191 = vunpack.c.h.b16 %v286
      %v1192 = vunpack.c.l.b16 %v287
      %v1193 = vunpack.c.h.b16 %v287
      %v1194 = vunpack.c.l.b16 %v288
      %v1195 = vunpack.c.h.b16 %v288
      %v1196 = vunpack.c.l.b16 %v289
      %v1197 = vunpack.c.h.b16 %v289
      %v1198 = vunpack.c.l.b16 %v290
      %v1199 = vunpack.c.h.b16 %v290
      %v1200 = vunpack.c.l.b16 %v291
      %v1201 = vunpack.c.h.b16 %v291
      %v1202 = vunpack.c.l.b16 %v292
      %v1203 = vunpack.c.h.b16 %v292
      %v1204 = vunpack.c.l.b16 %v293
      %v1205 = vunpack.c.h.b16 %v293
      %v1206 = vunpack.c.l.b16 %v294
      %v1207 = vunpack.c.h.b16 %v294
      %v1208 = vunpack.c.l.b16 %v295
      %v1209 = vunpack.c.h.b16 %v295
      %v1210 = vunpack.c.l.b16 %v296
      %v1211 = vunpack.c.h.b16 %v296
      %v1212 = vunpack.c.l.b16 %v297
      %v1213 = vunpack.c.h.b16 %v297
      %v1214 = vunpack.c.l.b16 %v298
      %v1215 = vunpack.c.h.b16 %v298
      %v1216 = vunpack.c.l.b16 %v299
      %v1217 = vunpack.c.h.b16 %v299
      %v1218 = vunpack.c.l.b16 %v300
      %v1219 = vunpack.c.h.b16 %v300
      %v1220 = vunpack.c.l.b16 %v301
      %v1221 = vunpack.c.h.b16 %v301
      %v1222 = vunpack.c.l.b16 %v302
      %v1223 = vunpack.c.h.b16 %v302
      %v1224 = vunpack.c.l.b16 %v303
      %v1225 = vunpack.c.h.b16 %v303
      %v1226 = vunpack.c.l.b16 %v304
      %v1227 = vunpack.c.h.b16 %v304
      %v1228 = vunpack.c.l.b16 %v305
      %v1229 = vunpack.c.h.b16 %v305
      %v1230 = vunpack.c.l.b16 %v306
      %v1231 = vunpack.c.h.b16 %v306
      %v1232 = vunpack.c.l.b16 %v307
      %v1233 = vunpack.c.h.b16 %v307
      %v1234 = vunpack.c.l.b16 %v308
      %v1235 = vunpack.c.h.b16 %v308
      %v1236 = vunpack.c.l.b16 %v309
      %v1237 = vunpack.c.h.b16 %v309
      %v1238 = vunpack.c.l.b16 %v310
      %v1239 = vunpack.c.h.b16 %v310
      %v1240 = vunpack.c.l.b16 %v311
      %v1241 = vunpack.c.h.b16 %v311
      %v1242 = vunpack.c.l.b16 %v312
      %v1243 = vunpack.c.h.b16 %v312
      %v1244 = vunpack.c.l.b16 %v313
      %v1245 = vunpack.c.h.b16 %v313
      %v1246 = vunpack.c.l.b16 %v314
      %v1247 = vunpack.c.h.b16 %v314
      %v1248 = vunpack.c.l.b16 %v315
      %v1249 = vunpack.c.h.b16 %v315
      %v1250 = vunpack.c.l.b16 %v316
      %v1251 = vunpack.c.h.b16 %v316
      %v1252 = vunpack.c.l.b16 %v317
      %v1253 = vunpack.c.h.b16 %v317
      %v1254 = vunpack.c.l.b16 %v318
      %v1255 = vunpack.c.h.b16 %v318
      %v1256 = vunpack.c.l.b16 %v319
      %v1257 = vunpack.c.h.b16 %v319
      %v1258 = vunpack.c.l.b16 %v320
      %v1259 = vunpack.c.h.b16 %v320
      %v1260 = vunpack.c.l.b16 %v321
      %v1261 = vunpack.c.h.b16 %v321
      %v1262 = vunpack.c.l.b16 %v322
      %v1263 = vunpack.c.h.b16 %v322
      %v1264 = vunpack.c.l.b16 %v323
      %v1265 = vunpack.c.h.b16 %v323
      %v1266 = vunpack.c.l.b16 %v324
      %v1267 = vunpack.c.h.b16 %v324
      %v1268 = vunpack.c.l.b16 %v325
      %v1269 = vunpack.c.h.b16 %v325
      %v1270 = vunpack.c.l.b16 %v326
      %v1271 = vunpack.c.h.b16 %v326
      %v1272 = vunpack.c.l.b16 %v327
      %v1273 = vunpack.c.h.b16 %v327
      %v1274 = vunpack.c.l.b16 %v328
      %v1275 = vunpack.c.h.b16 %v328
      %v1276 = vunpack.c.l.b16 %v329
      %v1277 = vunpack.c.h.b16 %v329
      %v1278 = vunpack.c.l.b16 %v330
      %v1279 = vunpack.c.h.b16 %v330
      %v1280 = vunpack.c.l.b16 %v331
      %v1281 = vunpack.c.h.b16 %v331
      %v1282 = vunpack.c.l.b16 %v332
      %v1283 = vunpack.c.h.b16 %v332
      %v1284 = vunpack.c.l.b16 %v333
      %v1285 = vunpack.c.h.b16 %v333
      %v1286 = vunpack.c.l.b16 %v334
      %v1287 = vunpack.c.h.b16 %v334
      %v1288 = vunpack.c.l.b16 %v335
      %v1289 = vunpack.c.h.b16 %v335
      %v1290 = vunpack.c.l.b16 %v336
      %v1291 = vunpack.c.h.b16 %v336
      %v1292 = vunpack.c.l.b16 %v337
      %v1293 = vunpack.c.h.b16 %v337
      %v1294 = vunpack.c.l.b16 %v338
      %v1295 = vunpack.c.h.b16 %v338
      %v1296 = vunpack.c.l.b16 %v339
      %v1297 = vunpack.c.h.b16 %v339
      %v1298 = vunpack.c.l.b16 %v340
      %v1299 = vunpack.c.h.b16 %v340
      %v1300 = vunpack.c.l.b16 %v341
      %v1301 = vunpack.c.h.b16 %v341
      %v1302 = vunpack.c.l.b16 %v342
      %v1303 = vunpack.c.h.b16 %v342
      %v1304 = vunpack.c.l.b16 %v343
      %v1305 = vunpack.c.h.b16 %v343
      %v1306 = vunpack.c.l.b16 %v344
      %v1307 = vunpack.c.h.b16 %v344
      %v1308 = vunpack.c.l.b16 %v345
      %v1309 = vunpack.c.h.b16 %v345
      %v1310 = vunpack.c.l.b16 %v346
      %v1311 = vunpack.c.h.b16 %v346
      %v1312 = vunpack.c.l.b16 %v347
      %v1313 = vunpack.c.h.b16 %v347
      %v1314 = vunpack.c.l.b16 %v348
      %v1315 = vunpack.c.h.b16 %v348
      %v1316 = vunpack.c.l.b16 %v349
      %v1317 = vunpack.c.h.b16 %v349
      %v1318 = vunpack.c.l.b16 %v350
      %v1319 = vunpack.c.h.b16 %v350
      %v1320 = vunpack.c.l.b16 %v351
      %v1321 = vunpack.c.h.b16 %v351
      %v1322 = vunpack.c.l.b16 %v352
      %v1323 = vunpack.c.h.b16 %v352
      %v1324 = vunpack.c.l.b16 %v353
      %v1325 = vunpack.c.h.b16 %v353
      %v1326 = vunpack.c.l.b16 %v354
      %v1327 = vunpack.c.h.b16 %v354
      %v1328 = vunpack.c.l.b16 %v355
      %v1329 = vunpack.c.h.b16 %v355
      %v1330 = vunpack.c.l.b16 %v356
      %v1331 = vunpack.c.h.b16 %v356
      %v1332 = vunpack.c.l.b16 %v357
      %v1333 = vunpack.c.h.b16 %v357
      %v1334 = vunpack.c.l.b16 %v358
      %v1335 = vunpack.c.h.b16 %v358
      %v1336 = vunpack.c.l.b16 %v359
      %v1337 = vunpack.c.h.b16 %v359
      %v1338 = vunpack.c.l.b16 %v360
      %v1339 = vunpack.c.h.b16 %v360
      %v1340 = vunpack.c.l.b16 %v361
      %v1341 = vunpack.c.h.b16 %v361
      %v1342 = vunpack.c.l.b16 %v362
      %v1343 = vunpack.c.h.b16 %v362
      %v1344 = vunpack.c.l.b16 %v363
      %v1345 = vunpack.c.h.b16 %v363
      %v1346 = vunpack.c.l.b16 %v364
      %v1347 = vunpack.c.h.b16 %v364
      %v1348 = vunpack.c.l.b16 %v365
      %v1349 = vunpack.c.h.b16 %v365
      %v1350 = vunpack.c.l.b16 %v366
      %v1351 = vunpack.c.h.b16 %v366
      %v1352 = vunpack.c.l.b16 %v367
      %v1353 = vunpack.c.h.b16 %v367
      %v1354 = vunpack.c.l.b16 %v368
      %v1355 = vunpack.c.h.b16 %v368
      %v1356 = vunpack.c.l.b16 %v369
      %v1357 = vunpack.c.h.b16 %v369
      %v1358 = vunpack.c.l.b16 %v370
      %v1359 = vunpack.c.h.b16 %v370
      %v1360 = vunpack.c.l.b16 %v371
      %v1361 = vunpack.c.h.b16 %v371
      %v1362 = vunpack.c.l.b16 %v372
      %v1363 = vunpack.c.h.b16 %v372
      %v1364 = vunpack.c.l.b16 %v373
      %v1365 = vunpack.c.h.b16 %v373
      %v1366 = vunpack.c.l.b16 %v374
      %v1367 = vunpack.c.h.b16 %v374
      %v1368 = vunpack.c.l.b16 %v375
      %v1369 = vunpack.c.h.b16 %v375
      %v1370 = vunpack.c.l.b16 %v376
      %v1371 = vunpack.c.h.b16 %v376
      %v1372 = vunpack.c.l.b16 %v377
      %v1373 = vunpack.c.h.b16 %v377
      %v1374 = vunpack.c.l.b16 %v378
      %v1375 = vunpack.c.h.b16 %v378
      %v1376 = vunpack.c.l.b16 %v379
      %v1377 = vunpack.c.h.b16 %v379
      %v1378 = vunpack.c.l.b16 %v380
      %v1379 = vunpack.c.h.b16 %v380
      %v1380 = vunpack.c.l.b16 %v381
      %v1381 = vunpack.c.h.b16 %v381
      %v1382 = vunpack.c.l.b16 %v382
      %v1383 = vunpack.c.h.b16 %v382
      %v1384 = vunpack.c.l.b16 %v383
      %v1385 = vunpack.c.h.b16 %v383
      %v1386 = vunpack.c.l.b16 %v384
      %v1387 = vunpack.c.h.b16 %v384
      %v1388 = vunpack.c.l.b16 %v385
      %v1389 = vunpack.c.h.b16 %v385
      %v1390 = vunpack.c.l.b16 %v386
      %v1391 = vunpack.c.h.b16 %v386
      %v1392 = vunpack.c.l.b16 %v387
      %v1393 = vunpack.c.h.b16 %v387
      %v1394 = vunpack.c.l.b16 %v388
      %v1395 = vunpack.c.h.b16 %v388
      %v1396 = vunpack.c.l.b16 %v389
      %v1397 = vunpack.c.h.b16 %v389
      %v1398 = vunpack.c.l.b16 %v390
      %v1399 = vunpack.c.h.b16 %v390
      %v1400 = vunpack.c.l.b16 %v391
      %v1401 = vunpack.c.h.b16 %v391
      %v1402 = vunpack.c.l.b16 %v392
      %v1403 = vunpack.c.h.b16 %v392
      %v1404 = vunpack.c.l.b16 %v393
      %v1405 = vunpack.c.h.b16 %v393
      %v1406 = vunpack.c.l.b16 %v394
      %v1407 = vunpack.c.h.b16 %v394
      %v1408 = vunpack.c.l.b16 %v395
      %v1409 = vunpack.c.h.b16 %v395
      %v1410 = vunpack.c.l.b16 %v396
      %v1411 = vunpack.c.h.b16 %v396
      %v1412 = vunpack.c.l.b16 %v397
      %v1413 = vunpack.c.h.b16 %v397
      %v1414 = vunpack.c.l.b16 %v398
      %v1415 = vunpack.c.h.b16 %v398
      %v1416 = vunpack.c.l.b16 %v399
      %v1417 = vunpack.c.h.b16 %v399
      %v1418 = vunpack.c.l.b16 %v400
      %v1419 = vunpack.c.h.b16 %v400
      %v1420 = vunpack.c.l.b16 %v401
      %v1421 = vunpack.c.h.b16 %v401
      %v1422 = vunpack.c.l.b16 %v402
      %v1423 = vunpack.c.h.b16 %v402
      %v1424 = vunpack.c.l.b16 %v403
      %v1425 = vunpack.c.h.b16 %v403
      %v1426 = vunpack.c.l.b16 %v404
      %v1427 = vunpack.c.h.b16 %v404
      %v1428 = vunpack.c.l.b16 %v405
      %v1429 = vunpack.c.h.b16 %v405
      %v1430 = vunpack.c.l.b16 %v406
      %v1431 = vunpack.c.h.b16 %v406
      %v1432 = vunpack.c.l.b16 %v407
      %v1433 = vunpack.c.h.b16 %v407
      %v1434 = vunpack.c.l.b16 %v408
      %v1435 = vunpack.c.h.b16 %v408
      %v1436 = vunpack.c.l.b16 %v409
      %v1437 = vunpack.c.h.b16 %v409
      %v1438 = vunpack.c.l.b16 %v410
      %v1439 = vunpack.c.h.b16 %v410
      %v1440 = vunpack.c.l.b16 %v411
      %v1441 = vunpack.c.h.b16 %v411
      %v1442 = vunpack.c.l.b16 %v412
      %v1443 = vunpack.c.h.b16 %v412
      %v1444 = vunpack.c.l.b16 %v413
      %v1445 = vunpack.c.h.b16 %v413
      %v1446 = vunpack.c.l.b16 %v414
      %v1447 = vunpack.c.h.b16 %v414
      %v1448 = vunpack.c.l.b16 %v415
      %v1449 = vunpack.c.h.b16 %v415
      %v1450 = vunpack.c.l.b16 %v416
      %v1451 = vunpack.c.h.b16 %v416
      %v1452 = vunpack.c.l.b16 %v417
      %v1453 = vunpack.c.h.b16 %v417
      %v1454 = vunpack.c.l.b16 %v418
      %v1455 = vunpack.c.h.b16 %v418
      %v1456 = vunpack.c.l.b16 %v419
      %v1457 = vunpack.c.h.b16 %v419
      %v1458 = vunpack.c.l.b16 %v420
      %v1459 = vunpack.c.h.b16 %v420
      %v1460 = vunpack.c.l.b16 %v421
      %v1461 = vunpack.c.h.b16 %v421
      %v1462 = vunpack.c.l.b16 %v422
      %v1463 = vunpack.c.h.b16 %v422
      %v1464 = vunpack.c.l.b16 %v423
      %v1465 = vunpack.c.h.b16 %v423
      %v1466 = vunpack.c.l.b16 %v424
      %v1467 = vunpack.c.h.b16 %v424
      %v1468 = vunpack.c.l.b16 %v425
      %v1469 = vunpack.c.h.b16 %v425
      %v1470 = vunpack.c.l.b16 %v426
      %v1471 = vunpack.c.h.b16 %v426
      %v1472 = vunpack.c.l.b16 %v427
      %v1473 = vunpack.c.h.b16 %v427
      %v1474 = vunpack.c.l.b16 %v428
      %v1475 = vunpack.c.h.b16 %v428
      %v1476 = vunpack.c.l.b16 %v429
      %v1477 = vunpack.c.h.b16 %v429
      %v1478 = vunpack.c.l.b16 %v430
      %v1479 = vunpack.c.h.b16 %v430
      %v1480 = vunpack.c.l.b16 %v431
      %v1481 = vunpack.c.h.b16 %v431
      %v1482 = vunpack.c.l.b16 %v432
      %v1483 = vunpack.c.h.b16 %v432
      %v1484 = vunpack.c.l.b16 %v433
      %v1485 = vunpack.c.h.b16 %v433
      %v1486 = vunpack.c.l.b16 %v434
      %v1487 = vunpack.c.h.b16 %v434
      %v1488 = vunpack.c.l.b16 %v435
      %v1489 = vunpack.c.h.b16 %v435
      %v1490 = vunpack.c.l.b16 %v436
      %v1491 = vunpack.c.h.b16 %v436
      %v1492 = vunpack.c.l.b16 %v437
      %v1493 = vunpack.c.h.b16 %v437
      %v1494 = vunpack.c.l.b16 %v438
      %v1495 = vunpack.c.h.b16 %v438
      %v1496 = vunpack.c.l.b16 %v439
      %v1497 = vunpack.c.h.b16 %v439
      %v1498 = vunpack.c.l.b16 %v440
      %v1499 = vunpack.c.h.b16 %v440
      %v1500 = vunpack.c.l.b16 %v441
      %v1501 = vunpack.c.h.b16 %v441
      %v1502 = vunpack.c.l.b16 %v442
      %v1503 = vunpack.c.h.b16 %v442
      %v1504 = vunpack.c.l.b16 %v443
      %v1505 = vunpack.c.h.b16 %v443
      %v1506 = vunpack.c.l.b16 %v444
      %v1507 = vunpack.c.h.b16 %v444
      %v1508 = vunpack.c.l.b16 %v445
      %v1509 = vunpack.c.h.b16 %v445
      %v1510 = vunpack.c.l.b16 %v446
      %v1511 = vunpack.c.h.b16 %v446
      %v1512 = vunpack.c.l.b16 %v447
      %v1513 = vunpack.c.h.b16 %v447
      %v1514 = vunpack.c.l.b16 %v448
      %v1515 = vunpack.c.h.b16 %v448
      %v1516 = vunpack.c.l.b16 %v449
      %v1517 = vunpack.c.h.b16 %v449
      %v1518 = vunpack.c.l.b16 %v450
      %v1519 = vunpack.c.h.b16 %v450
      %v1520 = vunpack.c.l.b16 %v451
      %v1521 = vunpack.c.h.b16 %v451
      %v1522 = vunpack.c.l.b16 %v452
      %v1523 = vunpack.c.h.b16 %v452
      %v1524 = vunpack.c.l.b16 %v453
      %v1525 = vunpack.c.h.b16 %v453
      %v1526 = vunpack.c.l.b16 %v454
      %v1527 = vunpack.c.h.b16 %v454
      %v1528 = vunpack.c.l.b16 %v455
      %v1529 = vunpack.c.h.b16 %v455
      %v1530 = vunpack.c.l.b16 %v456
      %v1531 = vunpack.c.h.b16 %v456
      %v1532 = vunpack.c.l.b16 %v457
      %v1533 = vunpack.c.h.b16 %v457
      %v1534 = vunpack.c.l.b16 %v458
      %v1535 = vunpack.c.h.b16 %v458
      %v1536 = vunpack.c.l.b16 %v459
      %v1537 = vunpack.c.h.b16 %v459
      %v1538 = vunpack.c.l.b16 %v460
      %v1539 = vunpack.c.h.b16 %v460
      %v1540 = vunpack.c.l.b16 %v461
      %v1541 = vunpack.c.h.b16 %v461
      %v1542 = vunpack.c.l.b16 %v462
      %v1543 = vunpack.c.h.b16 %v462
      %v1544 = vunpack.c.l.b16 %v463
      %v1545 = vunpack.c.h.b16 %v463
      %v1546 = vunpack.c.l.b16 %v464
      %v1547 = vunpack.c.h.b16 %v464
      %v1548 = vunpack.c.l.b16 %v465
      %v1549 = vunpack.c.h.b16 %v465
      %v1550 = vunpack.c.l.b16 %v466
      %v1551 = vunpack.c.h.b16 %v466
      %v1552 = vunpack.c.l.b16 %v467
      %v1553 = vunpack.c.h.b16 %v467
      %v1554 = vunpack.c.l.b16 %v468
      %v1555 = vunpack.c.h.b16 %v468
      %v1556 = vunpack.c.l.b16 %v469
      %v1557 = vunpack.c.h.b16 %v469
      %v1558 = vunpack.c.l.b16 %v470
      %v1559 = vunpack.c.h.b16 %v470
      %v1560 = vunpack.c.l.b16 %v471
      %v1561 = vunpack.c.h.b16 %v471
      %v1562 = vunpack.c.l.b16 %v472
      %v1563 = vunpack.c.h.b16 %v472
      %v1564 = vunpack.c.l.b16 %v473
      %v1565 = vunpack.c.h.b16 %v473
      %v1566 = vunpack.c.l.b16 %v474
      %v1567 = vunpack.c.h.b16 %v474
      %v1568 = vunpack.c.l.b16 %v475
      %v1569 = vunpack.c.h.b16 %v475
      %v1570 = vunpack.c.l.b16 %v476
      %v1571 = vunpack.c.h.b16 %v476
      %v1572 = vunpack.c.l.b16 %v477
      %v1573 = vunpack.c.h.b16 %v477
      %v1574 = vunpack.c.l.b16 %v478
      %v1575 = vunpack.c.h.b16 %v478
      %v1576 = vunpack.c.l.b16 %v479
      %v1577 = vunpack.c.h.b16 %v479
      %v1578 = vunpack.c.l.b16 %v480
      %v1579 = vunpack.c.h.b16 %v480
      %v1580 = vunpack.c.l.b16 %v481
      %v1581 = vunpack.c.h.b16 %v481
      %v1582 = vunpack.c.l.b16 %v482
      %v1583 = vunpack.c.h.b16 %v482
      %v1584 = vunpack.c.l.b16 %v483
      %v1585 = vunpack.c.h.b16 %v483
      %v1586 = vunpack.c.l.b16 %v484
      %v1587 = vunpack.c.h.b16 %v484
      %v1588 = vunpack.c.l.b16 %v485
      %v1589 = vunpack.c.h.b16 %v485
      %v1590 = vunpack.c.l.b16 %v486
      %v1591 = vunpack.c.h.b16 %v486
      %v1592 = vunpack.c.l.b16 %v487
      %v1593 = vunpack.c.h.b16 %v487
      %v1594 = vunpack.c.l.b16 %v488
      %v1595 = vunpack.c.h.b16 %v488
      %v1596 = vunpack.c.l.b16 %v489
      %v1597 = vunpack.c.h.b16 %v489
      %v1598 = vunpack.c.l.b16 %v490
      %v1599 = vunpack.c.h.b16 %v490
      %v1600 = vunpack.c.l.b16 %v491
      %v1601 = vunpack.c.h.b16 %v491
      %v1602 = vunpack.c.l.b16 %v492
      %v1603 = vunpack.c.h.b16 %v492
      %v1604 = vunpack.c.l.b16 %v493
      %v1605 = vunpack.c.h.b16 %v493
      %v1606 = vunpack.c.l.b16 %v494
      %v1607 = vunpack.c.h.b16 %v494
      %v1608 = vunpack.c.l.b16 %v495
      %v1609 = vunpack.c.h.b16 %v495
      %v1610 = vunpack.c.l.b16 %v496
      %v1611 = vunpack.c.h.b16 %v496
      %v1612 = vunpack.c.l.b16 %v497
      %v1613 = vunpack.c.h.b16 %v497
      %v1614 = vunpack.c.l.b16 %v498
      %v1615 = vunpack.c.h.b16 %v498
      %v1616 = vunpack.c.l.b16 %v499
      %v1617 = vunpack.c.h.b16 %v499
      %v1618 = vunpack.c.l.b16 %v500
      %v1619 = vunpack.c.h.b16 %v500
      %v1620 = vunpack.c.l.b16 %v501
      %v1621 = vunpack.c.h.b16 %v501
      %v1622 = vunpack.c.l.b16 %v502
      %v1623 = vunpack.c.h.b16 %v502
      %v1624 = vunpack.c.l.b16 %v503
      %v1625 = vunpack.c.h.b16 %v503
      %v1626 = vunpack.c.l.b16 %v504
      %v1627 = vunpack.c.h.b16 %v504
      %v1628 = vunpack.c.l.b16 %v505
      %v1629 = vunpack.c.h.b16 %v505
      %v1630 = vunpack.c.l.b16 %v506
      %v1631 = vunpack.c.h.b16 %v506
      %v1632 = vunpack.c.l.b16 %v507
      %v1633 = vunpack.c.h.b16 %v507
      %v1634 = vunpack.c.l.b16 %v508
      %v1635 = vunpack.c.h.b16 %v508
      %v1636 = vunpack.c.l.b16 %v509
      %v1637 = vunpack.c.h.b16 %v509
      %v1638 = vunpack.c.l.b16 %v510
      %v1639 = vunpack.c.h.b16 %v510
      %v1640 = vunpack.c.l.b16 %v511
      %v1641 = vunpack.c.h.b16 %v511
      %v1642 = vunpack.c.l.b16 %v512
      %v1643 = vunpack.c.h.b16 %v512
      %v1644 = vunpack.c.l.b16 %v513
      %v1645 = vunpack.c.h.b16 %v513
      %v1646 = vunpack.c.l.b16 %v514
      %v1647 = vunpack.c.h.b16 %v514
      %v1648 = vunpack.c.l.b16 %v515
      %v1649 = vunpack.c.h.b16 %v515
      %v1650 = vunpack.c.l.b16 %v516
      %v1651 = vunpack.c.h.b16 %v516
      %v1652 = vunpack.c.l.b16 %v517
      %v1653 = vunpack.c.h.b16 %v517
      %v1654 = vunpack.c.l.b16 %v518
      %v1655 = vunpack.c.h.b16 %v518
      %v1656 = vunpack.c.l.b16 %v519
      %v1657 = vunpack.c.h.b16 %v519
      %v1658 = vunpack.c.l.b16 %v520
      %v1659 = vunpack.c.h.b16 %v520
      %v1660 = vunpack.c.l.b16 %v521
      %v1661 = vunpack.c.h.b16 %v521
      %v1662 = vunpack.c.l.b16 %v522
      %v1663 = vunpack.c.h.b16 %v522
      %v1664 = vunpack.c.l.b16 %v523
      %v1665 = vunpack.c.h.b16 %v523
      %v1666 = vunpack.c.l.b16 %v524
      %v1667 = vunpack.c.h.b16 %v524
      %v1668 = vunpack.c.l.b16 %v525
      %v1669 = vunpack.c.h.b16 %v525
      %v1670 = vunpack.c.l.b16 %v526
      %v1671 = vunpack.c.h.b16 %v526
      %v1672 = vunpack.c.l.b16 %v527
      %v1673 = vunpack.c.h.b16 %v527
      %v1674 = vunpack.c.l.b16 %v528
      %v1675 = vunpack.c.h.b16 %v528
      %v1676 = vunpack.c.l.b16 %v529
      %v1677 = vunpack.c.h.b16 %v529
      %v1678 = vunpack.c.l.b16 %v530
      %v1679 = vunpack.c.h.b16 %v530
      %v1680 = vunpack.c.l.b16 %v531
      %v1681 = vunpack.c.h.b16 %v531
      %v1682 = vunpack.c.l.b16 %v532
      %v1683 = vunpack.c.h.b16 %v532
      %v1684 = vunpack.c.l.b16 %v533
      %v1685 = vunpack.c.h.b16 %v533
      %v1686 = vunpack.c.l.b16 %v534
      %v1687 = vunpack.c.h.b16 %v534
      %v1688 = vunpack.c.l.b16 %v535
      %v1689 = vunpack.c.h.b16 %v535
      %v1690 = vunpack.c.l.b16 %v536
      %v1691 = vunpack.c.h.b16 %v536
      %v1692 = vunpack.c.l.b16 %v537
      %v1693 = vunpack.c.h.b16 %v537
      %v1694 = vunpack.c.l.b16 %v538
      %v1695 = vunpack.c.h.b16 %v538
      %v1696 = vunpack.c.l.b16 %v539
      %v1697 = vunpack.c.h.b16 %v539
      %v1698 = vunpack.c.l.b16 %v540
      %v1699 = vunpack.c.h.b16 %v540
      %v1700 = vunpack.c.l.b16 %v541
      %v1701 = vunpack.c.h.b16 %v541
      %v1702 = vunpack.c.l.b16 %v542
      %v1703 = vunpack.c.h.b16 %v542
      %v1704 = vunpack.c.l.b16 %v543
      %v1705 = vunpack.c.h.b16 %v543
      %v1706 = vunpack.c.l.b16 %v544
      %v1707 = vunpack.c.h.b16 %v544
      %v1708 = vunpack.c.l.b16 %v545
      %v1709 = vunpack.c.h.b16 %v545
      %v1710 = vunpack.c.l.b16 %v546
      %v1711 = vunpack.c.h.b16 %v546
      %v1712 = vunpack.c.l.b16 %v547
      %v1713 = vunpack.c.h.b16 %v547
      %v1714 = vunpack.c.l.b16 %v548
      %v1715 = vunpack.c.h.b16 %v548
      %v1716 = vunpack.c.l.b16 %v549
      %v1717 = vunpack.c.h.b16 %v549
      %v1718 = vunpack.c.l.b16 %v550
      %v1719 = vunpack.c.h.b16 %v550
      %v1720 = vunpack.c.l.b16 %v551
      %v1721 = vunpack.c.h.b16 %v551
      %v1722 = vunpack.c.l.b16 %v552
      %v1723 = vunpack.c.h.b16 %v552
      %v1724 = vunpack.c.l.b16 %v553
      %v1725 = vunpack.c.h.b16 %v553
      %v1726 = vunpack.c.l.b16 %v554
      %v1727 = vunpack.c.h.b16 %v554
      %v1728 = vunpack.c.l.b16 %v555
      %v1729 = vunpack.c.h.b16 %v555
      %v1730 = vunpack.c.l.b16 %v556
      %v1731 = vunpack.c.h.b16 %v556
      %v1732 = vunpack.c.l.b16 %v557
      %v1733 = vunpack.c.h.b16 %v557
      %v1734 = vunpack.c.l.b16 %v558
      %v1735 = vunpack.c.h.b16 %v558
      %v1736 = vunpack.c.l.b16 %v559
      %v1737 = vunpack.c.h.b16 %v559
      %v1738 = vunpack.c.l.b16 %v560
      %v1739 = vunpack.c.h.b16 %v560
      %v1740 = vunpack.c.l.b16 %v561
      %v1741 = vunpack.c.h.b16 %v561
      %v1742 = vunpack.c.l.b16 %v562
      %v1743 = vunpack.c.h.b16 %v562
      %v1744 = vunpack.c.l.b16 %v563
      %v1745 = vunpack.c.h.b16 %v563
      %v1746 = vunpack.c.l.b16 %v564
      %v1747 = vunpack.c.h.b16 %v564
      %v1748 = vunpack.c.l.b16 %v565
      %v1749 = vunpack.c.h.b16 %v565
      %v1750 = vunpack.c.l.b16 %v566
      %v1751 = vunpack.c.h.b16 %v566
      %v1752 = vunpack.c.l.b16 %v567
      %v1753 = vunpack.c.h.b16 %v567
      %v1754 = vunpack.c.l.b16 %v568
      %v1755 = vunpack.c.h.b16 %v568
      %v1756 = vunpack.c.l.b16 %v569
      %v1757 = vunpack.c.h.b16 %v569
      %v1758 = vunpack.c.l.b16 %v570
      %v1759 = vunpack.c.h.b16 %v570
      %v1760 = vunpack.c.l.b16 %v571
      %v1761 = vunpack.c.h.b16 %v571
      %v1762 = vunpack.c.l.b16 %v572
      %v1763 = vunpack.c.h.b16 %v572
      %v1764 = vunpack.c.l.b16 %v573
      %v1765 = vunpack.c.h.b16 %v573
      %v1766 = vunpack.c.l.b16 %v574
      %v1767 = vunpack.c.h.b16 %v574
      %v1768 = vunpack.c.l.b16 %v575
      %v1769 = vunpack.c.h.b16 %v575
      %v1770 = vunpack.c.l.b16 %v576
      %v1771 = vunpack.c.h.b16 %v576
      %v1772 = vunpack.c.l.b16 %v577
      %v1773 = vunpack.c.h.b16 %v577
      %v1774 = vunpack.c.l.b16 %v578
      %v1775 = vunpack.c.h.b16 %v578
      %v1776 = vunpack.c.l.b16 %v579
      %v1777 = vunpack.c.h.b16 %v579
      %v1778 = vunpack.c.l.b16 %v580
      %v1779 = vunpack.c.h.b16 %v580
      %v1780 = vunpack.c.l.b16 %v581
      %v1781 = vunpack.c.h.b16 %v581
      %v1782 = vunpack.c.l.b16 %v582
      %v1783 = vunpack.c.h.b16 %v582
      %v1784 = vunpack.c.l.b16 %v583
      %v1785 = vunpack.c.h.b16 %v583
      %v1786 = vunpack.c.l.b16 %v584
      %v1787 = vunpack.c.h.b16 %v584
      %v1788 = vunpack.c.l.b16 %v585
      %v1789 = vunpack.c.h.b16 %v585
      %v1790 = vunpack.c.l.b16 %v586
      %v1791 = vunpack.c.h.b16 %v586
      %v1792 = vunpack.c.l.b16 %v587
      %v1793 = vunpack.c.h.b16 %v587
      %v1794 = vunpack.c.l.b16 %v588
      %v1795 = vunpack.c.h.b16 %v588
      %v1796 = vunpack.c.l.b16 %v589
      %v1797 = vunpack.c.h.b16 %v589
      %v1798 = vunpack.c.l.b16 %v590
      %v1799 = vunpack.c.h.b16 %v590
      %v1800 = vunpack.c.l.b16 %v591
      %v1801 = vunpack.c.h.b16 %v591
      %v1802 = vunpack.c.l.b16 %v592
      %v1803 = vunpack.c.h.b16 %v592
      %v1804 = vunpack.c.l.b16 %v593
      %v1805 = vunpack.c.h.b16 %v593
      %v1806 = vunpack.c.l.b16 %v594
      %v1807 = vunpack.c.h.b16 %v594
      %v1808 = vunpack.c.l.b16 %v595
      %v1809 = vunpack.c.h.b16 %v595
      %v1810 = vunpack.c.l.b16 %v596
      %v1811 = vunpack.c.h.b16 %v596
      %v1812 = vunpack.c.l.b16 %v597
      %v1813 = vunpack.c.h.b16 %v597
      %v1814 = vunpack.c.l.b16 %v598
      %v1815 = vunpack.c.h.b16 %v598
      %v1816 = vunpack.c.l.b16 %v599
      %v1817 = vunpack.c.h.b16 %v599
      %v1818 = vunpack.c.l.b16 %v600
      %v1819 = vunpack.c.h.b16 %v600
      %v1820 = vunpack.c.l.b16 %v601
      %v1821 = vunpack.c.h.b16 %v601
      %v1822 = vunpack.c.l.b16 %v602
      %v1823 = vunpack.c.h.b16 %v602
      %v1824 = vunpack.c.l.b16 %v603
      %v1825 = vunpack.c.h.b16 %v603
      %v1826 = vunpack.c.l.b16 %v604
      %v1827 = vunpack.c.h.b16 %v604
      %v1828 = vunpack.c.l.b16 %v605
      %v1829 = vunpack.c.h.b16 %v605
      %v1830 = vunpack.c.l.b16 %v606
      %v1831 = vunpack.c.h.b16 %v606
      %v1832 = vunpack.c.l.b16 %v607
      %v1833 = vunpack.c.h.b16 %v607
      %v1834 = vunpack.c.l.b16 %v608
      %v1835 = vunpack.c.h.b16 %v608
      %v1836 = vunpack.c.l.b16 %v609
      %v1837 = vunpack.c.h.b16 %v609
      %v1838 = vunpack.c.l.b16 %v610
      %v1839 = vunpack.c.h.b16 %v610
      %v1840 = vunpack.c.l.b16 %v611
      %v1841 = vunpack.c.h.b16 %v611
      %v1842 = vunpack.c.l.b16 %v612
      %v1843 = vunpack.c.h.b16 %v612
      %v1844 = vunpack.c.l.b16 %v613
      %v1845 = vunpack.c.h.b16 %v613
      %v1846 = vunpack.c.l.b16 %v614
      %v1847 = vunpack.c.h.b16 %v614
      %v1848 = vunpack.c.l.b16 %v615
      %v1849 = vunpack.c.h.b16 %v615
      %v1850 = vunpack.c.l.b16 %v616
      %v1851 = vunpack.c.h.b16 %v616
      %v1852 = vunpack.c.l.b16 %v617
      %v1853 = vunpack.c.h.b16 %v617
      %v1854 = vunpack.c.l.b16 %v618
      %v1855 = vunpack.c.h.b16 %v618
      %v1856 = vunpack.c.l.b16 %v619
      %v1857 = vunpack.c.h.b16 %v619
      %v1858 = vunpack.c.l.b16 %v620
      %v1859 = vunpack.c.h.b16 %v620
      %v1860 = vunpack.c.l.b16 %v621
      %v1861 = vunpack.c.h.b16 %v621
      %v1862 = vunpack.c.l.b16 %v622
      %v1863 = vunpack.c.h.b16 %v622
      %v1864 = vunpack.c.l.b16 %v623
      %v1865 = vunpack.c.h.b16 %v623
      %v1866 = vunpack.c.l.b16 %v624
      %v1867 = vunpack.c.h.b16 %v624
      %v1868 = vpack.c.b16 %v1088, %v1084
      %v1869 = vpack.c.b16 %v1089, %v1085
      %v1870 = vpack.c.b16 %v1090, %v1086
      %v1871 = vpack.c.b16 %v1091, %v1087
      %v1872 = vpack.c.b16 %v1096, %v1092
      %v1873 = vpack.c.b16 %v1097, %v1093
      %v1874 = vpack.c.b16 %v1098, %v1094
      %v1875 = vpack.c.b16 %v1099, %v1095
      %v1876 = vpack.c.b16 %v1104, %v1100
      %v1877 = vpack.c.b16 %v1105, %v1101
      %v1878 = vpack.c.b16 %v1106, %v1102
      %v1879 = vpack.c.b16 %v1107, %v1103
      %v1880 = vpack.c.b16 %v1112, %v1108
      %v1881 = vpack.c.b16 %v1113, %v1109
      %v1882 = vpack.c.b16 %v1114, %v1110
      %v1883 = vpack.c.b16 %v1115, %v1111
      %v1884 = vpack.c.b16 %v1120, %v1116
      %v1885 = vpack.c.b16 %v1121, %v1117
      %v1886 = vpack.c.b16 %v1122, %v1118
      %v1887 = vpack.c.b16 %v1123, %v1119
      %v1888 = vpack.c.b16 %v1128, %v1124
      %v1889 = vpack.c.b16 %v1129, %v1125
      %v1890 = vpack.c.b16 %v1130, %v1126
      %v1891 = vpack.c.b16 %v1131, %v1127
      %v1892 = vpack.c.b16 %v1136, %v1132
      %v1893 = vpack.c.b16 %v1137, %v1133
      %v1894 = vpack.c.b16 %v1138, %v1134
      %v1895 = vpack.c.b16 %v1139, %v1135
      %v1896 = vpack.c.b16 %v1144, %v1140
      %v1897 = vpack.c.b16 %v1145, %v1141
      %v1898 = vpack.c.b16 %v1146, %v1142
      %v1899 = vpack.c.b16 %v1147, %v1143
      %v1900 = vpack.c.b16 %v1152, %v1148
      %v1901 = vpack.c.b16 %v1153, %v1149
      %v1902 = vpack.c.b16 %v1154, %v1150
      %v1903 = vpack.c.b16 %v1155, %v1151
      %v1904 = vpack.c.b16 %v1160, %v1156
      %v1905 = vpack.c.b16 %v1161, %v1157
      %v1906 = vpack.c.b16 %v1162, %v1158
      %v1907 = vpack.c.b16 %v1163, %v1159
      %v1908 = vpack.c.b16 %v1168, %v1164
      %v1909 = vpack.c.b16 %v1169, %v1165
      %v1910 = vpack.c.b16 %v1170, %v1166
      %v1911 = vpack.c.b16 %v1171, %v1167
      %v1912 = vpack.c.b16 %v1176, %v1172
      %v1913 = vpack.c.b16 %v1177, %v1173
      %v1914 = vpack.c.b16 %v1178, %v1174
      %v1915 = vpack.c.b16 %v1179, %v1175
      %v1916 = vpack.c.b16 %v1184, %v1180
      %v1917 = vpack.c.b16 %v1185, %v1181
      %v1918 = vpack.c.b16 %v1186, %v1182
      %v1919 = vpack.c.b16 %v1187, %v1183
      %v1920 = vpack.c.b16 %v1192, %v1188
      %v1921 = vpack.c.b16 %v1193, %v1189
      %v1922 = vpack.c.b16 %v1194, %v1190
      %v1923 = vpack.c.b16 %v1195, %v1191
      %v1924 = vpack.c.b16 %v1200, %v1196
      %v1925 = vpack.c.b16 %v1201, %v1197
      %v1926 = vpack.c.b16 %v1202, %v1198
      %v1927 = vpack.c.b16 %v1203, %v1199
      %v1928 = vpack.c.b16 %v1208, %v1204
      %v1929 = vpack.c.b16 %v1209, %v1205
      %v1930 = vpack.c.b16 %v1210, %v1206
      %v1931 = vpack.c.b16 %v1211, %v1207
      %v1932 = vpack.c.b16 %v1216, %v1212
      %v1933 = vpack.c.b16 %v1217, %v1213
      %v1934 = vpack.c.b16 %v1218, %v1214
      %v1935 = vpack.c.b16 %v1219, %v1215
      %v1936 = vpack.c.b16 %v1224, %v1220
      %v1937 = vpack.c.b16 %v1225, %v1221
      %v1938 = vpack.c.b16 %v1226, %v1222
      %v1939 = vpack.c.b16 %v1227, %v1223
      %v1940 = vpack.c.b16 %v1232, %v1228
      %v1941 = vpack.c.b16 %v1233, %v1229
      %v1942 = vpack.c.b16 %v1234, %v1230
      %v1943 = vpack.c.b16 %v1235, %v1231
      %v1944 = vpack.c.b16 %v1240, %v1236
      %v1945 = vpack.c.b16 %v1241, %v1237
      %v1946 = vpack.c.b16 %v1242, %v1238
      %v1947 = vpack.c.b16 %v1243, %v1239
      %v1948 = vpack.c.b16 %v1248, %v1244
      %v1949 = vpack.c.b16 %v1249, %v1245
      %v1950 = vpack.c.b16 %v1250, %v1246
      %v1951 = vpack.c.b16 %v1251, %v1247
      %v1952 = vpack.c.b16 %v1256, %v1252
      %v1953 = vpack.c.b16 %v1257, %v1253
      %v1954 = vpack.c.b16 %v1258, %v1254
      %v1955 = vpack.c.b16 %v1259, %v1255
      %v1956 = vpack.c.b16 %v1264, %v1260
      %v1957 = vpack.c.b16 %v1265, %v1261
      %v1958 = vpack.c.b16 %v1266, %v1262
      %v1959 = vpack.c.b16 %v1267, %v1263
      %v1960 = vpack.c.b16 %v1272, %v1268
      %v1961 = vpack.c.b16 %v1273, %v1269
      %v1962 = vpack.c.b16 %v1274, %v1270
      %v1963 = vpack.c.b16 %v1275, %v1271
      %v1964 = vpack.c.b16 %v1280, %v1276
      %v1965 = vpack.c.b16 %v1281, %v1277
      %v1966 = vpack.c.b16 %v1282, %v1278
      %v1967 = vpack.c.b16 %v1283, %v1279
      %v1968 = vpack.c.b16 %v1288, %v1284
      %v1969 = vpack.c.b16 %v1289, %v1285
      %v1970 = vpack.c.b16 %v1290, %v1286
      %v1971 = vpack.c.b16 %v1291, %v1287
      %v1972 = vpack.c.b16 %v1296, %v1292
      %v1973 = vpack.c.b16 %v1297, %v1293
      %v1974 = vpack.c.b16 %v1298, %v1294
      %v1975 = vpack.c.b16 %v1299, %v1295
      %v1976 = vpack.c.b16 %v1304, %v1300
      %v1977 = vpack.c.b16 %v1305, %v1301
      %v1978 = vpack.c.b16 %v1306, %v1302
      %v1979 = vpack.c.b16 %v1307, %v1303
      %v1980 = vpack.c.b16 %v1312, %v1308
      %v1981 = vpack.c.b16 %v1313, %v1309
      %v1982 = vpack.c.b16 %v1314, %v1310
      %v1983 = vpack.c.b16 %v1315, %v1311
      %v1984 = vpack.c.b16 %v1320, %v1316
      %v1985 = vpack.c.b16 %v1321, %v1317
      %v1986 = vpack.c.b16 %v1322, %v1318
      %v1987 = vpack.c.b16 %v1323, %v1319
      %v1988 = vpack.c.b16 %v1328, %v1324
      %v1989 = vpack.c.b16 %v1329, %v1325
      %v1990 = vpack.c.b16 %v1330, %v1326
      %v1991 = vpack.c.b16 %v1331, %v1327
      %v1992 = vpack.c.b16 %v1336, %v1332
      %v1993 = vpack.c.b16 %v1337, %v1333
      %v1994 = vpack.c.b16 %v1338, %v1334
      %v1995 = vpack.c.b16 %v1339, %v1335
      %v1996 = vpack.c.b16 %v1344, %v1340
      %v1997 = vpack.c.b16 %v1345, %v1341
      %v1998 = vpack.c.b16 %v1346, %v1342
      %v1999 = vpack.c.b16 %v1347, %v1343
      %v2000 = vpack.c.b16 %v1352, %v1348
      %v2001 = vpack.c.b16 %v1353, %v1349
      %v2002 = vpack.c.b16 %v1354, %v1350
      %v2003 = vpack.c.b16 %v1355, %v1351
      %v2004 = vpack.c.b16 %v1360, %v1356
      %v2005 = vpack.c.b16 %v1361, %v1357
      %v2006 = vpack.c.b16 %v1362, %v1358
      %v2007 = vpack.c.b16 %v1363, %v1359
      %v2008 = vpack.c.b16 %v1368, %v1364
      %v2009 = vpack.c.b16 %v1369, %v1365
      %v2010 = vpack.c.b16 %v1370, %v1366
      %v2011 = vpack.c.b16 %v1371, %v1367
      %v2012 = vpack.c.b16 %v1376, %v1372
      %v2013 = vpack.c.b16 %v1377, %v1373
      %v2014 = vpack.c.b16 %v1378, %v1374
      %v2015 = vpack.c.b16 %v1379, %v1375
      %v2016 = vpack.c.b16 %v1384, %v1380
      %v2017 = vpack.c.b16 %v1385, %v1381
      %v2018 = vpack.c.b16 %v1386, %v1382
      %v2019 = vpack.c.b16 %v1387, %v1383
      %v2020 = vpack.c.b16 %v1392, %v1388
      %v2021 = vpack.c.b16 %v1393, %v1389
      %v2022 = vpack.c.b16 %v1394, %v1390
      %v2023 = vpack.c.b16 %v1395, %v1391
      %v2024 = vpack.c.b16 %v1400, %v1396
      %v2025 = vpack.c.b16 %v1401, %v1397
      %v2026 = vpack.c.b16 %v1402, %v1398
      %v2027 = vpack.c.b16 %v1403, %v1399
      %v2028 = vpack.c.b16 %v1408, %v1404
      %v2029 = vpack.c.b16 %v1409, %v1405
      %v2030 = vpack.c.b16 %v1410, %v1406
      %v2031 = vpack.c.b16 %v1411, %v1407
      %v2032 = vpack.c.b16 %v1416, %v1412
      %v2033 = vpack.c.b16 %v1417, %v1413
      %v2034 = vpack.c.b16 %v1418, %v1414
      %v2035 = vpack.c.b16 %v1419, %v1415
      %v2036 = vpack.c.b16 %v1424, %v1420
      %v2037 = vpack.c.b16 %v1425, %v1421
      %v2038 = vpack.c.b16 %v1426, %v1422
      %v2039 = vpack.c.b16 %v1427, %v1423
      %v2040 = vpack.c.b16 %v1432, %v1428
      %v2041 = vpack.c.b16 %v1433, %v1429
      %v2042 = vpack.c.b16 %v1434, %v1430
      %v2043 = vpack.c.b16 %v1435, %v1431
      %v2044 = vpack.c.b16 %v1440, %v1436
      %v2045 = vpack.c.b16 %v1441, %v1437
      %v2046 = vpack.c.b16 %v1442, %v1438
      %v2047 = vpack.c.b16 %v1443, %v1439
      %v2048 = vpack.c.b16 %v1448, %v1444
      %v2049 = vpack.c.b16 %v1449, %v1445
      %v2050 = vpack.c.b16 %v1450, %v1446
      %v2051 = vpack.c.b16 %v1451, %v1447
      %v2052 = vpack.c.b16 %v1456, %v1452
      %v2053 = vpack.c.b16 %v1457, %v1453
      %v2054 = vpack.c.b16 %v1458, %v1454
      %v2055 = vpack.c.b16 %v1459, %v1455
      %v2056 = vpack.c.b16 %v1464, %v1460
      %v2057 = vpack.c.b16 %v1465, %v1461
      %v2058 = vpack.c.b16 %v1466, %v1462
      %v2059 = vpack.c.b16 %v1467, %v1463
      %v2060 = vpack.c.b16 %v1472, %v1468
      %v2061 = vpack.c.b16 %v1473, %v1469
      %v2062 = vpack.c.b16 %v1474, %v1470
      %v2063 = vpack.c.b16 %v1475, %v1471
      %v2064 = vpack.c.b16 %v1480, %v1476
      %v2065 = vpack.c.b16 %v1481, %v1477
      %v2066 = vpack.c.b16 %v1482, %v1478
      %v2067 = vpack.c.b16 %v1483, %v1479
      %v2068 = vpack.c.b16 %v1488, %v1484
      %v2069 = vpack.c.b16 %v1489, %v1485
      %v2070 = vpack.c.b16 %v1490, %v1486
      %v2071 = vpack.c.b16 %v1491, %v1487
      %v2072 = vpack.c.b16 %v1496, %v1492
      %v2073 = vpack.c.b16 %v1497, %v1493
      %v2074 = vpack.c.b16 %v1498, %v1494
      %v2075 = vpack.c.b16 %v1499, %v1495
      %v2076 = vpack.c.b16 %v1504, %v1500
      %v2077 = vpack.c.b16 %v1505, %v1501
      %v2078 = vpack.c.b16 %v1506, %v1502
      %v2079 = vpack.c.b16 %v1507, %v1503
      %v2080 = vpack.c.b16 %v1512, %v1508
      %v2081 = vpack.c.b16 %v1513, %v1509
      %v2082 = vpack.c.b16 %v1514, %v1510
      %v2083 = vpack.c.b16 %v1515, %v1511
      %v2084 = vpack.c.b16 %v1520, %v1516
      %v2085 = vpack.c.b16 %v1521, %v1517
      %v2086 = vpack.c.b16 %v1522, %v1518
      %v2087 = vpack.c.b16 %v1523, %v1519
      %v2088 = vpack.c.b16 %v1528, %v1524
      %v2089 = vpack.c.b16 %v1529, %v1525
      %v2090 = vpack.c.b16 %v1530, %v1526
      %v2091 = vpack.c.b16 %v1531, %v1527
      %v2092 = vpack.c.b16 %v1536, %v1532
      %v2093 = vpack.c.b16 %v1537, %v1533
      %v2094 = vpack.c.b16 %v1538, %v1534
      %v2095 = vpack.c.b16 %v1539, %v1535
      %v2096 = vpack.c.b16 %v1544, %v1540
      %v2097 = vpack.c.b16 %v1545, %v1541
      %v2098 = vpack.c.b16 %v1546, %v1542
      %v2099 = vpack.c.b16 %v1547, %v1543
      %v2100 = vpack.c.b16 %v1552, %v1548
      %v2101 = vpack.c.b16 %v1553, %v1549
      %v2102 = vpack.c.b16 %v1554, %v1550
      %v2103 = vpack.c.b16 %v1555, %v1551
      %v2104 = vpack.c.b16 %v1560, %v1556
      %v2105 = vpack.c.b16 %v1561, %v1557
      %v2106 = vpack.c.b16 %v1562, %v1558
      %v2107 = vpack.c.b16 %v1563, %v1559
      %v2108 = vpack.c.b16 %v1568, %v1564
      %v2109 = vpack.c.b16 %v1569, %v1565
      %v2110 = vpack.c.b16 %v1570, %v1566
      %v2111 = vpack.c.b16 %v1571, %v1567
      %v2112 = vpack.c.b16 %v1576, %v1572
      %v2113 = vpack.c.b16 %v1577, %v1573
      %v2114 = vpack.c.b16 %v1578, %v1574
      %v2115 = vpack.c.b16 %v1579, %v1575
      %v2116 = vpack.c.b16 %v1584, %v1580
      %v2117 = vpack.c.b16 %v1585, %v1581
      %v2118 = vpack.c.b16 %v1586, %v1582
      %v2119 = vpack.c.b16 %v1587, %v1583
      %v2120 = vpack.c.b16 %v1592, %v1588
      %v2121 = vpack.c.b16 %v1593, %v1589
      %v2122 = vpack.c.b16 %v1594, %v1590
      %v2123 = vpack.c.b16 %v1595, %v1591
      %v2124 = vpack.c.b16 %v1600, %v1596
      %v2125 = vpack.c.b16 %v1601, %v1597
      %v2126 = vpack.c.b16 %v1602, %v1598
      %v2127 = vpack.c.b16 %v1603, %v1599
      %v2128 = vpack.c.b16 %v1608, %v1604
      %v2129 = vpack.c.b16 %v1609, %v1605
      %v2130 = vpack.c.b16 %v1610, %v1606
      %v2131 = vpack.c.b16 %v1611, %v1607
      %v2132 = vpack.c.b16 %v1616, %v1612
      %v2133 = vpack.c.b16 %v1617, %v1613
      %v2134 = vpack.c.b16 %v1618, %v1614
      %v2135 = vpack.c.b16 %v1619, %v1615
      %v2136 = vpack.c.b16 %v1624, %v1620
      %v2137 = vpack.c.b16 %v1625, %v1621
      %v2138 = vpack.c.b16 %v1626, %v1622
      %v2139 = vpack.c.b16 %v1627, %v1623
      %v2140 = vpack.c.b16 %v1632, %v1628
      %v2141 = vpack.c.b16 %v1633, %v1629
      %v2142 = vpack.c.b16 %v1634, %v1630
      %v2143 = vpack.c.b16 %v1635, %v1631
      %v2144 = vpack.c.b16 %v1640, %v1636
      %v2145 = vpack.c.b16 %v1641, %v1637
      %v2146 = vpack.c.b16 %v1642, %v1638
      %v2147 = vpack.c.b16 %v1643, %v1639
      %v2148 = vpack.c.b16 %v1648, %v1644
      %v2149 = vpack.c.b16 %v1649, %v1645
      %v2150 = vpack.c.b16 %v1650, %v1646
      %v2151 = vpack.c.b16 %v1651, %v1647
      %v2152 = vpack.c.b16 %v1656, %v1652
      %v2153 = vpack.c.b16 %v1657, %v1653
      %v2154 = vpack.c.b16 %v1658, %v1654
      %v2155 = vpack.c.b16 %v1659, %v1655
      %v2156 = vpack.c.b16 %v1664, %v1660
      %v2157 = vpack.c.b16 %v1665, %v1661
      %v2158 = vpack.c.b16 %v1666, %v1662
      %v2159 = vpack.c.b16 %v1667, %v1663
      %v2160 = vpack.c.b16 %v1672, %v1668
      %v2161 = vpack.c.b16 %v1673, %v1669
      %v2162 = vpack.c.b16 %v1674, %v1670
      %v2163 = vpack.c.b16 %v1675, %v1671
      %v2164 = vpack.c.b16 %v1680, %v1676
      %v2165 = vpack.c.b16 %v1681, %v1677
      %v2166 = vpack.c.b16 %v1682, %v1678
      %v2167 = vpack.c.b16 %v1683, %v1679
      %v2168 = vpack.c.b16 %v1688, %v1684
      %v2169 = vpack.c.b16 %v1689, %v1685
      %v2170 = vpack.c.b16 %v1690, %v1686
      %v2171 = vpack.c.b16 %v1691, %v1687
      %v2172 = vpack.c.b16 %v1696, %v1692
      %v2173 = vpack.c.b16 %v1697, %v1693
      %v2174 = vpack.c.b16 %v1698, %v1694
      %v2175 = vpack.c.b16 %v1699, %v1695
      %v2176 = vpack.c.b16 %v1704, %v1700
      %v2177 = vpack.c.b16 %v1705, %v1701
      %v2178 = vpack.c.b16 %v1706, %v1702
      %v2179 = vpack.c.b16 %v1707, %v1703
      %v2180 = vpack.c.b16 %v1712, %v1708
      %v2181 = vpack.c.b16 %v1713, %v1709
      %v2182 = vpack.c.b16 %v1714, %v1710
      %v2183 = vpack.c.b16 %v1715, %v1711
      %v2184 = vpack.c.b16 %v1720, %v1716
      %v2185 = vpack.c.b16 %v1721, %v1717
      %v2186 = vpack.c.b16 %v1722, %v1718
      %v2187 = vpack.c.b16 %v1723, %v1719
      %v2188 = vpack.c.b16 %v1728, %v1724
      %v2189 = vpack.c.b16 %v1729, %v1725
      %v2190 = vpack.c.b16 %v1730, %v1726
      %v2191 = vpack.c.b16 %v1731, %v1727
      %v2192 = vpack.c.b16 %v1736, %v1732
      %v2193 = vpack.c.b16 %v1737, %v1733
      %v2194 = vpack.c.b16 %v1738, %v1734
      %v2195 = vpack.c.b16 %v1739, %v1735
      %v2196 = vpack.c.b16 %v1744, %v1740
      %v2197 = vpack.c.b16 %v1745, %v1741
      %v2198 = vpack.c.b16 %v1746, %v1742
      %v2199 = vpack.c.b16 %v1747, %v1743
      %v2200 = vpack.c.b16 %v1752, %v1748
      %v2201 = vpack.c.b16 %v1753, %v1749
      %v2202 = vpack.c.b16 %v1754, %v1750
      %v2203 = vpack.c.b16 %v1755, %v1751
      %v2204 = vpack.c.b16 %v1760, %v1756
      %v2205 = vpack.c.b16 %v1761, %v1757
      %v2206 = vpack.c.b16 %v1762, %v1758
      %v2207 = vpack.c.b16 %v1763, %v1759
      %v2208 = vpack.c.b16 %v1768, %v1764
      %v2209 = vpack.c.b16 %v1769, %v1765
      %v2210 = vpack.c.b16 %v1770, %v1766
      %v2211 = vpack.c.b16 %v1771, %v1767
      %v2212 = vpack.c.b16 %v1776, %v1772
      %v2213 = vpack.c.b16 %v1777, %v1773
      %v2214 = vpack.c.b16 %v1778, %v1774
      %v2215 = vpack.c.b16 %v1779, %v1775
      %v2216 = vpack.c.b16 %v1784, %v1780
      %v2217 = vpack.c.b16 %v1785, %v1781
      %v2218 = vpack.c.b16 %v1786, %v1782
      %v2219 = vpack.c.b16 %v1787, %v1783
      %v2220 = vpack.c.b16 %v1792, %v1788
      %v2221 = vpack.c.b16 %v1793, %v1789
      %v2222 = vpack.c.b16 %v1794, %v1790
      %v2223 = vpack.c.b16 %v1795, %v1791
      %v2224 = vpack.c.b16 %v1800, %v1796
      %v2225 = vpack.c.b16 %v1801, %v1797
      %v2226 = vpack.c.b16 %v1802, %v1798
      %v2227 = vpack.c.b16 %v1803, %v1799
      %v2228 = vpack.c.b16 %v1808, %v1804
      %v2229 = vpack.c.b16 %v1809, %v1805
      %v2230 = vpack.c.b16 %v1810, %v1806
      %v2231 = vpack.c.b16 %v1811, %v1807
      %v2232 = vpack.c.b16 %v1816, %v1812
      %v2233 = vpack.c.b16 %v1817, %v1813
      %v2234 = vpack.c.b16 %v1818, %v1814
      %v2235 = vpack.c.b16 %v1819, %v1815
      %v2236 = vpack.c.b16 %v1824, %v1820
      %v2237 = vpack.c.b16 %v1825, %v1821
      %v2238 = vpack.c.b16 %v1826, %v1822
      %v2239 = vpack.c.b16 %v1827, %v1823
      %v2240 = vpack.c.b16 %v1832, %v1828
      %v2241 = vpack.c.b16 %v1833, %v1829
      %v2242 = vpack.c.b16 %v1834, %v1830
      %v2243 = vpack.c.b16 %v1835, %v1831
      %v2244 = vpack.c.b16 %v1840, %v1836
      %v2245 = vpack.c.b16 %v1841, %v1837
      %v2246 = vpack.c.b16 %v1842, %v1838
      %v2247 = vpack.c.b16 %v1843, %v1839
      %v2248 = vpack.c.b16 %v1848, %v1844
      %v2249 = vpack.c.b16 %v1849, %v1845
      %v2250 = vpack.c.b16 %v1850, %v1846
      %v2251 = vpack.c.b16 %v1851, %v1847
      %v2252 = vpack.c.b16 %v1856, %v1852
      %v2253 = vpack.c.b16 %v1857, %v1853
      %v2254 = vpack.c.b16 %v1858, %v1854
      %v2255 = vpack.c.b16 %v1859, %v1855
      %v2256 = vpack.c.b16 %v1864, %v1860
      %v2257 = vpack.c.b16 %v1865, %v1861
      %v2258 = vpack.c.b16 %v1866, %v1862
      %v2259 = vpack.c.b16 %v1867, %v1863
      %vm2652 = vcmask 261120
      %v2654 = vsel %vm2652, %v679, 0
      %2656 = vmatprep.subr.bf16.mxu0 %v1869
      %2657 = vmatpush1.bf16.msra.mxu0 %v1868
      %2658 = vmatprep.subr.bf16.mxu0 %v1873
      %2659 = vmatpush1.bf16.msra.mxu0 %v1872
      %2660 = vmatprep.subr.bf16.mxu0 %v1877
      %2661 = vmatpush1.bf16.msra.mxu0 %v1876
      %2662 = vmatprep.subr.bf16.mxu0 %v1881
      %2663 = vmatpush1.bf16.msra.mxu0 %v1880
      %2664 = vmatprep.subr.bf16.mxu0 %v1885
      %2665 = vmatpush1.bf16.msra.mxu0 %v1884
      %2666 = vmatprep.subr.bf16.mxu0 %v1889
      %2667 = vmatpush1.bf16.msra.mxu0 %v1888
      %2668 = vmatprep.subr.bf16.mxu0 %v1893
      %2669 = vmatpush1.bf16.msra.mxu0 %v1892
      %2670 = vmatprep.subr.bf16.mxu0 %v1897
      %2671 = vmatpush1.bf16.msra.mxu0 %v1896
      %2672 = vmatprep.subr.bf16.mxu0 %v1901
      %2673 = vmatpush1.bf16.msra.mxu0 %v1900
      %2674 = vmatprep.subr.bf16.mxu0 %v1905
      %2675 = vmatpush1.bf16.msra.mxu0 %v1904
      %2676 = vmatprep.subr.bf16.mxu0 %v1909
      %2677 = vmatpush1.bf16.msra.mxu0 %v1908
      %2678 = vmatprep.subr.bf16.mxu0 %v1913
      %2679 = vmatpush1.bf16.msra.mxu0 %v1912
      %2680 = vmatprep.subr.bf16.mxu0 %v1917
      %2681 = vmatpush1.bf16.msra.mxu0 %v1916
      %2682 = vmatprep.subr.bf16.mxu0 %v1921
      %2683 = vmatpush1.bf16.msra.mxu0 %v1920
      %2684 = vmatprep.subr.bf16.mxu0 %v1925
      %2685 = vmatpush1.bf16.msra.mxu0 %v1924
      %2686 = vmatprep.subr.bf16.mxu0 %v1929
      %2687 = vmatpush1.bf16.msra.mxu0 %v1928
      %2688 = vmatprep.mubr.bf16.mxu0 %v668
      %2689 = vmatmul.mubr.bf16.gmra.mrb[0].mxu0 %v667
      %v2690 = vpop.f32.mrb[0].mxu0
      %v2691 = vadd.f32 %v630, %v2690
      %v2692 = vpop.f32.mrb[0].mxu0
      %v2693 = vadd.f32 %v634, %v2692
      %v2694 = vpop.f32.mrb[0].mxu0
      %v2695 = vpop.f32.mrb[0].mxu0
      %2696 = vdwg.mxu0
      %2697 = vmatprep.subr.bf16.mxu0 %v1933
      %2698 = vmatpush1.bf16.msra.mxu0 %v1932
      %2699 = vmatprep.subr.bf16.mxu0 %v1937
      %2700 = vmatpush1.bf16.msra.mxu0 %v1936
      %2701 = vmatprep.subr.bf16.mxu0 %v1941
      %2702 = vmatpush1.bf16.msra.mxu0 %v1940
      %2703 = vmatprep.subr.bf16.mxu0 %v1945
      %2704 = vmatpush1.bf16.msra.mxu0 %v1944
      %2705 = vmatprep.subr.bf16.mxu0 %v1949
      %2706 = vmatpush1.bf16.msra.mxu0 %v1948
      %2707 = vmatprep.subr.bf16.mxu0 %v1953
      %2708 = vmatpush1.bf16.msra.mxu0 %v1952
      %2709 = vmatprep.subr.bf16.mxu0 %v1957
      %2710 = vmatpush1.bf16.msra.mxu0 %v1956
      %2711 = vmatprep.subr.bf16.mxu0 %v1961
      %2712 = vmatpush1.bf16.msra.mxu0 %v1960
      %2713 = vmatprep.subr.bf16.mxu0 %v1965
      %2714 = vmatpush1.bf16.msra.mxu0 %v1964
      %2715 = vmatprep.subr.bf16.mxu0 %v1969
      %2716 = vmatpush1.bf16.msra.mxu0 %v1968
      %2717 = vmatprep.subr.bf16.mxu0 %v1973
      %2718 = vmatpush1.bf16.msra.mxu0 %v1972
      %2719 = vmatprep.subr.bf16.mxu0 %v1977
      %2720 = vmatpush1.bf16.msra.mxu0 %v1976
      %2721 = vmatprep.subr.bf16.mxu0 %v1981
      %2722 = vmatpush1.bf16.msra.mxu0 %v1980
      %2723 = vmatprep.subr.bf16.mxu0 %v1985
      %2724 = vmatpush1.bf16.msra.mxu0 %v1984
      %2725 = vmatprep.subr.bf16.mxu0 %v1989
      %2726 = vmatpush1.bf16.msra.mxu0 %v1988
      %2727 = vmatprep.subr.bf16.mxu0 %v1993
      %2728 = vmatpush1.bf16.msra.mxu0 %v1992
      %2729 = vmatprep.mubr.bf16.mxu0 %v670
      %2730 = vmatmul.mubr.bf16.gmra.mrb[0].mxu0 %v669
      %v2731 = vpop.f32.mrb[0].mxu0
      %v2732 = vadd.f32 %v2691, %v2731
      %v2733 = vpop.f32.mrb[0].mxu0
      %v2734 = vadd.f32 %v2693, %v2733
      %v2735 = vpop.f32.mrb[0].mxu0
      %v2736 = vpop.f32.mrb[0].mxu0
      %2737 = vdwg.mxu0
      %2738 = vmatprep.subr.bf16.mxu0 %v1997
      %2739 = vmatpush1.bf16.msra.mxu0 %v1996
      %2740 = vmatprep.subr.bf16.mxu0 %v2001
      %2741 = vmatpush1.bf16.msra.mxu0 %v2000
      %2742 = vmatprep.subr.bf16.mxu0 %v2005
      %2743 = vmatpush1.bf16.msra.mxu0 %v2004
      %2744 = vmatprep.subr.bf16.mxu0 %v2009
      %2745 = vmatpush1.bf16.msra.mxu0 %v2008
      %2746 = vmatprep.subr.bf16.mxu0 %v2013
      %2747 = vmatpush1.bf16.msra.mxu0 %v2012
      %2748 = vmatprep.subr.bf16.mxu0 %v2017
      %2749 = vmatpush1.bf16.msra.mxu0 %v2016
      %2750 = vmatprep.subr.bf16.mxu0 %v2021
      %2751 = vmatpush1.bf16.msra.mxu0 %v2020
      %2752 = vmatprep.subr.bf16.mxu0 %v2025
      %2753 = vmatpush1.bf16.msra.mxu0 %v2024
      %2754 = vmatprep.subr.bf16.mxu0 %v2029
      %2755 = vmatpush1.bf16.msra.mxu0 %v2028
      %2756 = vmatprep.subr.bf16.mxu0 %v2033
      %2757 = vmatpush1.bf16.msra.mxu0 %v2032
      %2758 = vmatprep.subr.bf16.mxu0 %v2037
      %2759 = vmatpush1.bf16.msra.mxu0 %v2036
      %2760 = vmatprep.subr.bf16.mxu0 %v2041
      %2761 = vmatpush1.bf16.msra.mxu0 %v2040
      %2762 = vmatprep.subr.bf16.mxu0 %v2045
      %2763 = vmatpush1.bf16.msra.mxu0 %v2044
      %2764 = vmatprep.subr.bf16.mxu0 %v2049
      %2765 = vmatpush1.bf16.msra.mxu0 %v2048
      %2766 = vmatprep.subr.bf16.mxu0 %v2053
      %2767 = vmatpush1.bf16.msra.mxu0 %v2052
      %2768 = vmatprep.subr.bf16.mxu0 %v2057
      %2769 = vmatpush1.bf16.msra.mxu0 %v2056
      %2770 = vmatprep.mubr.bf16.mxu0 %v672
      %2771 = vmatmul.mubr.bf16.gmra.mrb[0].mxu0 %v671
      %v2772 = vpop.f32.mrb[0].mxu0
      %v2773 = vadd.f32 %v2732, %v2772
      %v2774 = vpop.f32.mrb[0].mxu0
      %v2775 = vadd.f32 %v2734, %v2774
      %v2776 = vpop.f32.mrb[0].mxu0
      %v2777 = vpop.f32.mrb[0].mxu0
      %2778 = vdwg.mxu0
      %2779 = vmatprep.subr.bf16.mxu0 %v2061
      %2780 = vmatpush1.bf16.msra.mxu0 %v2060
      %2781 = vmatprep.subr.bf16.mxu0 %v2065
      %2782 = vmatpush1.bf16.msra.mxu0 %v2064
      %2783 = vmatprep.subr.bf16.mxu0 %v2069
      %2784 = vmatpush1.bf16.msra.mxu0 %v2068
      %2785 = vmatprep.subr.bf16.mxu0 %v2073
      %2786 = vmatpush1.bf16.msra.mxu0 %v2072
      %2787 = vmatprep.subr.bf16.mxu0 %v2077
      %2788 = vmatpush1.bf16.msra.mxu0 %v2076
      %2789 = vmatprep.subr.bf16.mxu0 %v2081
      %2790 = vmatpush1.bf16.msra.mxu0 %v2080
      %2791 = vmatprep.subr.bf16.mxu0 %v2085
      %2792 = vmatpush1.bf16.msra.mxu0 %v2084
      %2793 = vmatprep.subr.bf16.mxu0 %v2089
      %2794 = vmatpush1.bf16.msra.mxu0 %v2088
      %2795 = vmatprep.subr.bf16.mxu0 %v2093
      %2796 = vmatpush1.bf16.msra.mxu0 %v2092
      %2797 = vmatprep.subr.bf16.mxu0 %v2097
      %2798 = vmatpush1.bf16.msra.mxu0 %v2096
      %2799 = vmatprep.subr.bf16.mxu0 %v2101
      %2800 = vmatpush1.bf16.msra.mxu0 %v2100
      %2801 = vmatprep.subr.bf16.mxu0 %v2105
      %2802 = vmatpush1.bf16.msra.mxu0 %v2104
      %2803 = vmatprep.subr.bf16.mxu0 %v2109
      %2804 = vmatpush1.bf16.msra.mxu0 %v2108
      %2805 = vmatprep.subr.bf16.mxu0 %v2113
      %2806 = vmatpush1.bf16.msra.mxu0 %v2112
      %2807 = vmatprep.subr.bf16.mxu0 %v2117
      %2808 = vmatpush1.bf16.msra.mxu0 %v2116
      %2809 = vmatprep.subr.bf16.mxu0 %v2121
      %2810 = vmatpush1.bf16.msra.mxu0 %v2120
      %2811 = vmatprep.mubr.bf16.mxu0 %v674
      %2812 = vmatmul.mubr.bf16.gmra.mrb[0].mxu0 %v673
      %v2813 = vpop.f32.mrb[0].mxu0
      %v2814 = vadd.f32 %v2773, %v2813
      %v2815 = vpop.f32.mrb[0].mxu0
      %v2816 = vadd.f32 %v2775, %v2815
      %v2817 = vpop.f32.mrb[0].mxu0
      %v2818 = vpop.f32.mrb[0].mxu0
      %2819 = vdwg.mxu0
      %2820 = vmatprep.subr.bf16.mxu0 %v2125
      %2821 = vmatpush1.bf16.msra.mxu0 %v2124
      %2822 = vmatprep.subr.bf16.mxu0 %v2129
      %2823 = vmatpush1.bf16.msra.mxu0 %v2128
      %2824 = vmatprep.subr.bf16.mxu0 %v2133
      %2825 = vmatpush1.bf16.msra.mxu0 %v2132
      %2826 = vmatprep.subr.bf16.mxu0 %v2137
      %2827 = vmatpush1.bf16.msra.mxu0 %v2136
      %2828 = vmatprep.subr.bf16.mxu0 %v2141
      %2829 = vmatpush1.bf16.msra.mxu0 %v2140
      %2830 = vmatprep.subr.bf16.mxu0 %v2145
      %2831 = vmatpush1.bf16.msra.mxu0 %v2144
      %2832 = vmatprep.subr.bf16.mxu0 %v2149
      %2833 = vmatpush1.bf16.msra.mxu0 %v2148
      %2834 = vmatprep.subr.bf16.mxu0 %v2153
      %2835 = vmatpush1.bf16.msra.mxu0 %v2152
      %2836 = vmatprep.subr.bf16.mxu0 %v2157
      %2837 = vmatpush1.bf16.msra.mxu0 %v2156
      %2838 = vmatprep.subr.bf16.mxu0 %v2161
      %2839 = vmatpush1.bf16.msra.mxu0 %v2160
      %2840 = vmatprep.subr.bf16.mxu0 %v2165
      %2841 = vmatpush1.bf16.msra.mxu0 %v2164
      %2842 = vmatprep.subr.bf16.mxu0 %v2169
      %2843 = vmatpush1.bf16.msra.mxu0 %v2168
      %2844 = vmatprep.subr.bf16.mxu0 %v2173
      %2845 = vmatpush1.bf16.msra.mxu0 %v2172
      %2846 = vmatprep.subr.bf16.mxu0 %v2177
      %2847 = vmatpush1.bf16.msra.mxu0 %v2176
      %2848 = vmatprep.subr.bf16.mxu0 %v2181
      %2849 = vmatpush1.bf16.msra.mxu0 %v2180
      %2850 = vmatprep.subr.bf16.mxu0 %v2185
      %2851 = vmatpush1.bf16.msra.mxu0 %v2184
      %2852 = vmatprep.mubr.bf16.mxu0 %v676
      %2853 = vmatmul.mubr.bf16.gmra.mrb[0].mxu0 %v675
      %v2854 = vpop.f32.mrb[0].mxu0
      %v2855 = vadd.f32 %v2814, %v2854
      %v2856 = vpop.f32.mrb[0].mxu0
      %v2857 = vadd.f32 %v2816, %v2856
      %v2858 = vpop.f32.mrb[0].mxu0
      %v2859 = vpop.f32.mrb[0].mxu0
      %2860 = vdwg.mxu0
      %2861 = vmatprep.subr.bf16.mxu0 %v2189
      %2862 = vmatpush1.bf16.msra.mxu0 %v2188
      %2863 = vmatprep.subr.bf16.mxu0 %v2193
      %2864 = vmatpush1.bf16.msra.mxu0 %v2192
      %2865 = vmatprep.subr.bf16.mxu0 %v2197
      %2866 = vmatpush1.bf16.msra.mxu0 %v2196
      %2867 = vmatprep.subr.bf16.mxu0 %v2201
      %2868 = vmatpush1.bf16.msra.mxu0 %v2200
      %2869 = vmatprep.subr.bf16.mxu0 %v2205
      %2870 = vmatpush1.bf16.msra.mxu0 %v2204
      %2871 = vmatprep.subr.bf16.mxu0 %v2209
      %2872 = vmatpush1.bf16.msra.mxu0 %v2208
      %2873 = vmatprep.subr.bf16.mxu0 %v2213
      %2874 = vmatpush1.bf16.msra.mxu0 %v2212
      %2875 = vmatprep.subr.bf16.mxu0 %v2217
      %2876 = vmatpush1.bf16.msra.mxu0 %v2216
      %2877 = vmatprep.subr.bf16.mxu0 %v2221
      %2878 = vmatpush1.bf16.msra.mxu0 %v2220
      %2879 = vmatprep.subr.bf16.mxu0 %v2225
      %2880 = vmatpush1.bf16.msra.mxu0 %v2224
      %2881 = vmatprep.subr.bf16.mxu0 %v2229
      %2882 = vmatpush1.bf16.msra.mxu0 %v2228
      %2883 = vmatprep.subr.bf16.mxu0 %v2233
      %2884 = vmatpush1.bf16.msra.mxu0 %v2232
      %2885 = vmatprep.subr.bf16.mxu0 %v2237
      %2886 = vmatpush1.bf16.msra.mxu0 %v2236
      %2887 = vmatprep.subr.bf16.mxu0 %v2241
      %2888 = vmatpush1.bf16.msra.mxu0 %v2240
      %2889 = vmatprep.subr.bf16.mxu0 %v2245
      %2890 = vmatpush1.bf16.msra.mxu0 %v2244
      %2891 = vmatprep.subr.bf16.mxu0 %v2249
      %2892 = vmatpush1.bf16.msra.mxu0 %v2248
      %2893 = vmatprep.mubr.bf16.mxu0 %v678
      %2894 = vmatmul.mubr.bf16.gmra.mrb[0].mxu0 %v677
      %v2895 = vpop.f32.mrb[0].mxu0
      %v2896 = vadd.f32 %v2855, %v2895
      %v2897 = vpop.f32.mrb[0].mxu0
      %v2898 = vadd.f32 %v2857, %v2897
      %v2899 = vpop.f32.mrb[0].mxu0
      %v2900 = vpop.f32.mrb[0].mxu0
      %2901 = vdwg.mxu0
      %2902 = vmatprep.subr.bf16.mxu0 %v2253
      %2903 = vmatpush1.bf16.msra.mxu0 %v2252
      %2904 = vmatprep.subr.bf16.mxu0 %v2257
      %2905 = vmatpush1.bf16.msra.mxu0 %v2256
      %2906 = vmatprep.subr.bf16.mxu0 0
      %2907 = vmatpush1.bf16.msra.mxu0 0
      %2908 = vmatprep.subr.bf16.mxu0 0
      %2909 = vmatpush1.bf16.msra.mxu0 0
      %2910 = vmatprep.subr.bf16.mxu0 0
      %2911 = vmatpush1.bf16.msra.mxu0 0
      %2912 = vmatprep.subr.bf16.mxu0 0
      %2913 = vmatpush1.bf16.msra.mxu0 0
      %2914 = vmatprep.subr.bf16.mxu0 0
      %2915 = vmatpush1.bf16.msra.mxu0 0
      %2916 = vmatprep.subr.bf16.mxu0 0
      %2917 = vmatpush1.bf16.msra.mxu0 0
      %2918 = vmatprep.subr.bf16.mxu0 0
      %2919 = vmatpush1.bf16.msra.mxu0 0
      %2920 = vmatprep.subr.bf16.mxu0 0
      %2921 = vmatpush1.bf16.msra.mxu0 0
      %2922 = vmatprep.subr.bf16.mxu0 0
      %2923 = vmatpush1.bf16.msra.mxu0 0
      %2924 = vmatprep.subr.bf16.mxu0 0
      %2925 = vmatpush1.bf16.msra.mxu0 0
      %2926 = vmatprep.subr.bf16.mxu0 0
      %2927 = vmatpush1.bf16.msra.mxu0 0
      %2928 = vmatprep.subr.bf16.mxu0 0
      %2929 = vmatpush1.bf16.msra.mxu0 0
      %2930 = vmatprep.subr.bf16.mxu0 0
      %2931 = vmatpush1.bf16.msra.mxu0 0
      %2932 = vmatprep.subr.bf16.mxu0 0
      %2933 = vmatpush1.bf16.msra.mxu0 0
      %2934 = vmatprep.mubr.bf16.mxu0 0
      %2935 = vmatmul.mubr.bf16.gmra.mrb[0].mxu0 %v2654
      %v2936 = vpop.f32.mrb[0].mxu0
      %v2937 = vadd.f32 %v2896, %v2936
      %v2938 = vpop.f32.mrb[0].mxu0
      %v2939 = vadd.f32 %v2898, %v2938
      %v2940 = vpop.f32.mrb[0].mxu0
      %v2941 = vpop.f32.mrb[0].mxu0
      %2942 = vdwg.mxu0
      %2943 = vmatprep.subr.bf16.mxu0 %v1871
      %2944 = vmatpush1.bf16.msra.mxu0 %v1870
      %2945 = vmatprep.subr.bf16.mxu0 %v1875
      %2946 = vmatpush1.bf16.msra.mxu0 %v1874
      %2947 = vmatprep.subr.bf16.mxu0 %v1879
      %2948 = vmatpush1.bf16.msra.mxu0 %v1878
      %2949 = vmatprep.subr.bf16.mxu0 %v1883
      %2950 = vmatpush1.bf16.msra.mxu0 %v1882
      %2951 = vmatprep.subr.bf16.mxu0 %v1887
      %2952 = vmatpush1.bf16.msra.mxu0 %v1886
      %2953 = vmatprep.subr.bf16.mxu0 %v1891
      %2954 = vmatpush1.bf16.msra.mxu0 %v1890
      %2955 = vmatprep.subr.bf16.mxu0 %v1895
      %2956 = vmatpush1.bf16.msra.mxu0 %v1894
      %2957 = vmatprep.subr.bf16.mxu0 %v1899
      %2958 = vmatpush1.bf16.msra.mxu0 %v1898
      %2959 = vmatprep.subr.bf16.mxu0 %v1903
      %2960 = vmatpush1.bf16.msra.mxu0 %v1902
      %2961 = vmatprep.subr.bf16.mxu0 %v1907
      %2962 = vmatpush1.bf16.msra.mxu0 %v1906
      %2963 = vmatprep.subr.bf16.mxu0 %v1911
      %2964 = vmatpush1.bf16.msra.mxu0 %v1910
      %2965 = vmatprep.subr.bf16.mxu0 %v1915
      %2966 = vmatpush1.bf16.msra.mxu0 %v1914
      %2967 = vmatprep.subr.bf16.mxu0 %v1919
      %2968 = vmatpush1.bf16.msra.mxu0 %v1918
      %2969 = vmatprep.subr.bf16.mxu0 %v1923
      %2970 = vmatpush1.bf16.msra.mxu0 %v1922
      %2971 = vmatprep.subr.bf16.mxu0 %v1927
      %2972 = vmatpush1.bf16.msra.mxu0 %v1926
      %2973 = vmatprep.subr.bf16.mxu0 %v1931
      %2974 = vmatpush1.bf16.msra.mxu0 %v1930
      %2975 = vmatprep.mubr.bf16.mxu0 %v668
      %2976 = vmatmul.mubr.bf16.gmra.mrb[0].mxu0 %v667
      %v2977 = vpop.f32.mrb[0].mxu0
      %v2978 = vadd.f32 %v638, %v2977
      %v2979 = vpop.f32.mrb[0].mxu0
      %v2980 = vadd.f32 %v642, %v2979
      %v2981 = vpop.f32.mrb[0].mxu0
      %v2982 = vpop.f32.mrb[0].mxu0
      %2983 = vdwg.mxu0
      %2984 = vmatprep.subr.bf16.mxu0 %v1935
      %2985 = vmatpush1.bf16.msra.mxu0 %v1934
      %2986 = vmatprep.subr.bf16.mxu0 %v1939
      %2987 = vmatpush1.bf16.msra.mxu0 %v1938
      %2988 = vmatprep.subr.bf16.mxu0 %v1943
      %2989 = vmatpush1.bf16.msra.mxu0 %v1942
      %2990 = vmatprep.subr.bf16.mxu0 %v1947
      %2991 = vmatpush1.bf16.msra.mxu0 %v1946
      %2992 = vmatprep.subr.bf16.mxu0 %v1951
      %2993 = vmatpush1.bf16.msra.mxu0 %v1950
      %2994 = vmatprep.subr.bf16.mxu0 %v1955
      %2995 = vmatpush1.bf16.msra.mxu0 %v1954
      %2996 = vmatprep.subr.bf16.mxu0 %v1959
      %2997 = vmatpush1.bf16.msra.mxu0 %v1958
      %2998 = vmatprep.subr.bf16.mxu0 %v1963
      %2999 = vmatpush1.bf16.msra.mxu0 %v1962
      %3000 = vmatprep.subr.bf16.mxu0 %v1967
      %3001 = vmatpush1.bf16.msra.mxu0 %v1966
      %3002 = vmatprep.subr.bf16.mxu0 %v1971
      %3003 = vmatpush1.bf16.msra.mxu0 %v1970
      %3004 = vmatprep.subr.bf16.mxu0 %v1975
      %3005 = vmatpush1.bf16.msra.mxu0 %v1974
      %3006 = vmatprep.subr.bf16.mxu0 %v1979
      %3007 = vmatpush1.bf16.msra.mxu0 %v1978
      %3008 = vmatprep.subr.bf16.mxu0 %v1983
      %3009 = vmatpush1.bf16.msra.mxu0 %v1982
      %3010 = vmatprep.subr.bf16.mxu0 %v1987
      %3011 = vmatpush1.bf16.msra.mxu0 %v1986
      %3012 = vmatprep.subr.bf16.mxu0 %v1991
      %3013 = vmatpush1.bf16.msra.mxu0 %v1990
      %3014 = vmatprep.subr.bf16.mxu0 %v1995
      %3015 = vmatpush1.bf16.msra.mxu0 %v1994
      %3016 = vmatprep.mubr.bf16.mxu0 %v670
      %3017 = vmatmul.mubr.bf16.gmra.mrb[0].mxu0 %v669
      %v3018 = vpop.f32.mrb[0].mxu0
      %v3019 = vadd.f32 %v2978, %v3018
      %v3020 = vpop.f32.mrb[0].mxu0
      %v3021 = vadd.f32 %v2980, %v3020
      %v3022 = vpop.f32.mrb[0].mxu0
      %v3023 = vpop.f32.mrb[0].mxu0
      %3024 = vdwg.mxu0
      %3025 = vmatprep.subr.bf16.mxu0 %v1999
      %3026 = vmatpush1.bf16.msra.mxu0 %v1998
      %3027 = vmatprep.subr.bf16.mxu0 %v2003
      %3028 = vmatpush1.bf16.msra.mxu0 %v2002
      %3029 = vmatprep.subr.bf16.mxu0 %v2007
      %3030 = vmatpush1.bf16.msra.mxu0 %v2006
      %3031 = vmatprep.subr.bf16.mxu0 %v2011
      %3032 = vmatpush1.bf16.msra.mxu0 %v2010
      %3033 = vmatprep.subr.bf16.mxu0 %v2015
      %3034 = vmatpush1.bf16.msra.mxu0 %v2014
      %3035 = vmatprep.subr.bf16.mxu0 %v2019
      %3036 = vmatpush1.bf16.msra.mxu0 %v2018
      %3037 = vmatprep.subr.bf16.mxu0 %v2023
      %3038 = vmatpush1.bf16.msra.mxu0 %v2022
      %3039 = vmatprep.subr.bf16.mxu0 %v2027
      %3040 = vmatpush1.bf16.msra.mxu0 %v2026
      %3041 = vmatprep.subr.bf16.mxu0 %v2031
      %3042 = vmatpush1.bf16.msra.mxu0 %v2030
      %3043 = vmatprep.subr.bf16.mxu0 %v2035
      %3044 = vmatpush1.bf16.msra.mxu0 %v2034
      %3045 = vmatprep.subr.bf16.mxu0 %v2039
      %3046 = vmatpush1.bf16.msra.mxu0 %v2038
      %3047 = vmatprep.subr.bf16.mxu0 %v2043
      %3048 = vmatpush1.bf16.msra.mxu0 %v2042
      %3049 = vmatprep.subr.bf16.mxu0 %v2047
      %3050 = vmatpush1.bf16.msra.mxu0 %v2046
      %3051 = vmatprep.subr.bf16.mxu0 %v2051
      %3052 = vmatpush1.bf16.msra.mxu0 %v2050
      %3053 = vmatprep.subr.bf16.mxu0 %v2055
      %3054 = vmatpush1.bf16.msra.mxu0 %v2054
      %3055 = vmatprep.subr.bf16.mxu0 %v2059
      %3056 = vmatpush1.bf16.msra.mxu0 %v2058
      %3057 = vmatprep.mubr.bf16.mxu0 %v672
      %3058 = vmatmul.mubr.bf16.gmra.mrb[0].mxu0 %v671
      %v3059 = vpop.f32.mrb[0].mxu0
      %v3060 = vadd.f32 %v3019, %v3059
      %v3061 = vpop.f32.mrb[0].mxu0
      %v3062 = vadd.f32 %v3021, %v3061
      %v3063 = vpop.f32.mrb[0].mxu0
      %v3064 = vpop.f32.mrb[0].mxu0
      %3065 = vdwg.mxu0
      %3066 = vmatprep.subr.bf16.mxu0 %v2063
      %3067 = vmatpush1.bf16.msra.mxu0 %v2062
      %3068 = vmatprep.subr.bf16.mxu0 %v2067
      %3069 = vmatpush1.bf16.msra.mxu0 %v2066
      %3070 = vmatprep.subr.bf16.mxu0 %v2071
      %3071 = vmatpush1.bf16.msra.mxu0 %v2070
      %3072 = vmatprep.subr.bf16.mxu0 %v2075
      %3073 = vmatpush1.bf16.msra.mxu0 %v2074
      %3074 = vmatprep.subr.bf16.mxu0 %v2079
      %3075 = vmatpush1.bf16.msra.mxu0 %v2078
      %3076 = vmatprep.subr.bf16.mxu0 %v2083
      %3077 = vmatpush1.bf16.msra.mxu0 %v2082
      %3078 = vmatprep.subr.bf16.mxu0 %v2087
      %3079 = vmatpush1.bf16.msra.mxu0 %v2086
      %3080 = vmatprep.subr.bf16.mxu0 %v2091
      %3081 = vmatpush1.bf16.msra.mxu0 %v2090
      %3082 = vmatprep.subr.bf16.mxu0 %v2095
      %3083 = vmatpush1.bf16.msra.mxu0 %v2094
      %3084 = vmatprep.subr.bf16.mxu0 %v2099
      %3085 = vmatpush1.bf16.msra.mxu0 %v2098
      %3086 = vmatprep.subr.bf16.mxu0 %v2103
      %3087 = vmatpush1.bf16.msra.mxu0 %v2102
      %3088 = vmatprep.subr.bf16.mxu0 %v2107
      %3089 = vmatpush1.bf16.msra.mxu0 %v2106
      %3090 = vmatprep.subr.bf16.mxu0 %v2111
      %3091 = vmatpush1.bf16.msra.mxu0 %v2110
      %3092 = vmatprep.subr.bf16.mxu0 %v2115
      %3093 = vmatpush1.bf16.msra.mxu0 %v2114
      %3094 = vmatprep.subr.bf16.mxu0 %v2119
      %3095 = vmatpush1.bf16.msra.mxu0 %v2118
      %3096 = vmatprep.subr.bf16.mxu0 %v2123
      %3097 = vmatpush1.bf16.msra.mxu0 %v2122
      %3098 = vmatprep.mubr.bf16.mxu0 %v674
      %3099 = vmatmul.mubr.bf16.gmra.mrb[0].mxu0 %v673
      %v3100 = vpop.f32.mrb[0].mxu0
      %v3101 = vadd.f32 %v3060, %v3100
      %v3102 = vpop.f32.mrb[0].mxu0
      %v3103 = vadd.f32 %v3062, %v3102
      %v3104 = vpop.f32.mrb[0].mxu0
      %v3105 = vpop.f32.mrb[0].mxu0
      %3106 = vdwg.mxu0
      %3107 = vmatprep.subr.bf16.mxu0 %v2127
      %3108 = vmatpush1.bf16.msra.mxu0 %v2126
      %3109 = vmatprep.subr.bf16.mxu0 %v2131
      %3110 = vmatpush1.bf16.msra.mxu0 %v2130
      %3111 = vmatprep.subr.bf16.mxu0 %v2135
      %3112 = vmatpush1.bf16.msra.mxu0 %v2134
      %3113 = vmatprep.subr.bf16.mxu0 %v2139
      %3114 = vmatpush1.bf16.msra.mxu0 %v2138
      %3115 = vmatprep.subr.bf16.mxu0 %v2143
      %3116 = vmatpush1.bf16.msra.mxu0 %v2142
      %3117 = vmatprep.subr.bf16.mxu0 %v2147
      %3118 = vmatpush1.bf16.msra.mxu0 %v2146
      %3119 = vmatprep.subr.bf16.mxu0 %v2151
      %3120 = vmatpush1.bf16.msra.mxu0 %v2150
      %3121 = vmatprep.subr.bf16.mxu0 %v2155
      %3122 = vmatpush1.bf16.msra.mxu0 %v2154
      %3123 = vmatprep.subr.bf16.mxu0 %v2159
      %3124 = vmatpush1.bf16.msra.mxu0 %v2158
      %3125 = vmatprep.subr.bf16.mxu0 %v2163
      %3126 = vmatpush1.bf16.msra.mxu0 %v2162
      %3127 = vmatprep.subr.bf16.mxu0 %v2167
      %3128 = vmatpush1.bf16.msra.mxu0 %v2166
      %3129 = vmatprep.subr.bf16.mxu0 %v2171
      %3130 = vmatpush1.bf16.msra.mxu0 %v2170
      %3131 = vmatprep.subr.bf16.mxu0 %v2175
      %3132 = vmatpush1.bf16.msra.mxu0 %v2174
      %3133 = vmatprep.subr.bf16.mxu0 %v2179
      %3134 = vmatpush1.bf16.msra.mxu0 %v2178
      %3135 = vmatprep.subr.bf16.mxu0 %v2183
      %3136 = vmatpush1.bf16.msra.mxu0 %v2182
      %3137 = vmatprep.subr.bf16.mxu0 %v2187
      %3138 = vmatpush1.bf16.msra.mxu0 %v2186
      %3139 = vmatprep.mubr.bf16.mxu0 %v676
      %3140 = vmatmul.mubr.bf16.gmra.mrb[0].mxu0 %v675
      %v3141 = vpop.f32.mrb[0].mxu0
      %v3142 = vadd.f32 %v3101, %v3141
      %v3143 = vpop.f32.mrb[0].mxu0
      %v3144 = vadd.f32 %v3103, %v3143
      %v3145 = vpop.f32.mrb[0].mxu0
      %v3146 = vpop.f32.mrb[0].mxu0
      %3147 = vdwg.mxu0
      %3148 = vmatprep.subr.bf16.mxu0 %v2191
      %3149 = vmatpush1.bf16.msra.mxu0 %v2190
      %3150 = vmatprep.subr.bf16.mxu0 %v2195
      %3151 = vmatpush1.bf16.msra.mxu0 %v2194
      %3152 = vmatprep.subr.bf16.mxu0 %v2199
      %3153 = vmatpush1.bf16.msra.mxu0 %v2198
      %3154 = vmatprep.subr.bf16.mxu0 %v2203
      %3155 = vmatpush1.bf16.msra.mxu0 %v2202
      %3156 = vmatprep.subr.bf16.mxu0 %v2207
      %3157 = vmatpush1.bf16.msra.mxu0 %v2206
      %3158 = vmatprep.subr.bf16.mxu0 %v2211
      %3159 = vmatpush1.bf16.msra.mxu0 %v2210
      %3160 = vmatprep.subr.bf16.mxu0 %v2215
      %3161 = vmatpush1.bf16.msra.mxu0 %v2214
      %3162 = vmatprep.subr.bf16.mxu0 %v2219
      %3163 = vmatpush1.bf16.msra.mxu0 %v2218
      %3164 = vmatprep.subr.bf16.mxu0 %v2223
      %3165 = vmatpush1.bf16.msra.mxu0 %v2222
      %3166 = vmatprep.subr.bf16.mxu0 %v2227
      %3167 = vmatpush1.bf16.msra.mxu0 %v2226
      %3168 = vmatprep.subr.bf16.mxu0 %v2231
      %3169 = vmatpush1.bf16.msra.mxu0 %v2230
      %3170 = vmatprep.subr.bf16.mxu0 %v2235
      %3171 = vmatpush1.bf16.msra.mxu0 %v2234
      %3172 = vmatprep.subr.bf16.mxu0 %v2239
      %3173 = vmatpush1.bf16.msra.mxu0 %v2238
      %3174 = vmatprep.subr.bf16.mxu0 %v2243
      %3175 = vmatpush1.bf16.msra.mxu0 %v2242
      %3176 = vmatprep.subr.bf16.mxu0 %v2247
      %3177 = vmatpush1.bf16.msra.mxu0 %v2246
      %3178 = vmatprep.subr.bf16.mxu0 %v2251
      %3179 = vmatpush1.bf16.msra.mxu0 %v2250
      %3180 = vmatprep.mubr.bf16.mxu0 %v678
      %3181 = vmatmul.mubr.bf16.gmra.mrb[0].mxu0 %v677
      %v3182 = vpop.f32.mrb[0].mxu0
      %v3183 = vadd.f32 %v3142, %v3182
      %v3184 = vpop.f32.mrb[0].mxu0
      %v3185 = vadd.f32 %v3144, %v3184
      %v3186 = vpop.f32.mrb[0].mxu0
      %v3187 = vpop.f32.mrb[0].mxu0
      %3188 = vdwg.mxu0
      %3189 = vmatprep.subr.bf16.mxu0 %v2255
      %3190 = vmatpush1.bf16.msra.mxu0 %v2254
      %3191 = vmatprep.subr.bf16.mxu0 %v2259
      %3192 = vmatpush1.bf16.msra.mxu0 %v2258
      %3193 = vmatprep.subr.bf16.mxu0 0
      %3194 = vmatpush1.bf16.msra.mxu0 0
      %3195 = vmatprep.subr.bf16.mxu0 0
      %3196 = vmatpush1.bf16.msra.mxu0 0
      %3197 = vmatprep.subr.bf16.mxu0 0
      %3198 = vmatpush1.bf16.msra.mxu0 0
      %3199 = vmatprep.subr.bf16.mxu0 0
      %3200 = vmatpush1.bf16.msra.mxu0 0
      %3201 = vmatprep.subr.bf16.mxu0 0
      %3202 = vmatpush1.bf16.msra.mxu0 0
      %3203 = vmatprep.subr.bf16.mxu0 0
      %3204 = vmatpush1.bf16.msra.mxu0 0
      %3205 = vmatprep.subr.bf16.mxu0 0
      %3206 = vmatpush1.bf16.msra.mxu0 0
      %3207 = vmatprep.subr.bf16.mxu0 0
      %3208 = vmatpush1.bf16.msra.mxu0 0
      %3209 = vmatprep.subr.bf16.mxu0 0
      %3210 = vmatpush1.bf16.msra.mxu0 0
      %3211 = vmatprep.subr.bf16.mxu0 0
      %3212 = vmatpush1.bf16.msra.mxu0 0
      %3213 = vmatprep.subr.bf16.mxu0 0
      %3214 = vmatpush1.bf16.msra.mxu0 0
      %3215 = vmatprep.subr.bf16.mxu0 0
      %3216 = vmatpush1.bf16.msra.mxu0 0
      %3217 = vmatprep.subr.bf16.mxu0 0
      %3218 = vmatpush1.bf16.msra.mxu0 0
      %3219 = vmatprep.subr.bf16.mxu0 0
      %3220 = vmatpush1.bf16.msra.mxu0 0
      %3221 = vmatprep.mubr.bf16.mxu0 0
      %3222 = vmatmul.mubr.bf16.gmra.mrb[0].mxu0 %v2654
      %v3223 = vpop.f32.mrb[0].mxu0
      %v3224 = vadd.f32 %v3183, %v3223
      %v3225 = vpop.f32.mrb[0].mxu0
      %v3226 = vadd.f32 %v3185, %v3225
      %v3227 = vpop.f32.mrb[0].mxu0
      %v3228 = vpop.f32.mrb[0].mxu0
      %3229 = vdwg.mxu0
      %v3230 = vmax.f32 %v2937, 0.0
      %v3231 = vmax.f32 %v2939, 0.0
      %v3232 = vmax.f32 %v3224, 0.0
      %v3233 = vmax.f32 %v3226, 0.0
      %v3234 = vpack.c.bf16 %v3230, %v3230
      %v3235 = vpack.c.bf16 %v3231, %v3231
      %v3236 = vpack.c.bf16 %v3232, %v3232
      %v3237 = vpack.c.bf16 %v3233, %v3233
      %v3238 = vld [vmem:[%s3] sm:$0xff]
      %v3239 = vld [vmem:[%s3 + $0x8] sm:$0xff]
      %v3240 = vld [vmem:[%s3 + $0x10] sm:$0xff]
      %v3241 = vld [vmem:[%s3 + $0x18] sm:$0xff]
      %v3242 = vld [vmem:[%s3 + $0x20] sm:$0xff]
      %v3243 = vld [vmem:[%s3 + $0x28] sm:$0xff]
      %v3244 = vld [vmem:[%s3 + $0x30] sm:$0xff]
      %v3245 = vld [vmem:[%s3 + $0x38] sm:$0xff]
      %v3246 = vld [vmem:[%s3 + $0x40] sm:$0xff]
      %v3247 = vld [vmem:[%s3 + $0x48] sm:$0xff]
      %v3248 = vld [vmem:[%s3 + $0x50] sm:$0xff]
      %v3249 = vld [vmem:[%s3 + $0x58] sm:$0xff]
      %v3250 = vld [vmem:[%s3 + $0x60] sm:$0xff]
      %v3251 = vld [vmem:[%s3 + $0x68] sm:$0xff]
      %v3252 = vld [vmem:[%s3 + $0x70] sm:$0xff]
      %v3253 = vld [vmem:[%s3 + $0x78] sm:$0xff]
      %v3254 = vld [vmem:[%s3 + $0x80] sm:$0xff]
      %v3255 = vld [vmem:[%s3 + $0x88] sm:$0xff]
      %v3256 = vld [vmem:[%s3 + $0x90] sm:$0xff]
      %v3257 = vld [vmem:[%s3 + $0x98] sm:$0xff]
      %v3258 = vld [vmem:[%s3 + $0xa0] sm:$0xff]
      %v3259 = vld [vmem:[%s3 + $0xa8] sm:$0xff]
      %v3260 = vld [vmem:[%s3 + $0xb0] sm:$0xff]
      %v3261 = vld [vmem:[%s3 + $0xb8] sm:$0xff]
      %v3262 = vld [vmem:[%s3 + $0xc0] sm:$0xff]
      %v3263 = vld [vmem:[%s3 + $0xc8] sm:$0xff]
      %v3264 = vld [vmem:[%s3 + $0xd0] sm:$0xff]
      %v3265 = vld [vmem:[%s3 + $0xd8] sm:$0xff]
      %v3266 = vld [vmem:[%s3 + $0xe0] sm:$0xff]
      %v3267 = vld [vmem:[%s3 + $0xe8] sm:$0xff]
      %v3268 = vld [vmem:[%s3 + $0xf0] sm:$0xff]
      %v3269 = vld [vmem:[%s3 + $0xf8] sm:$0xff]
      %v3270 = vld [vmem:[%s3 + $0x100] sm:$0xff]
      %v3271 = vld [vmem:[%s3 + $0x108] sm:$0xff]
      %v3272 = vld [vmem:[%s3 + $0x110] sm:$0xff]
      %v3273 = vld [vmem:[%s3 + $0x118] sm:$0xff]
      %v3274 = vld [vmem:[%s3 + $0x120] sm:$0xff]
      %v3275 = vld [vmem:[%s3 + $0x128] sm:$0xff]
      %v3276 = vld [vmem:[%s3 + $0x130] sm:$0xff]
      %v3277 = vld [vmem:[%s3 + $0x138] sm:$0xff]
      %v3278 = vld [vmem:[%s3 + $0x140] sm:$0xff]
      %v3279 = vld [vmem:[%s3 + $0x148] sm:$0xff]
      %v3280 = vld [vmem:[%s3 + $0x150] sm:$0xff]
      %v3281 = vld [vmem:[%s3 + $0x158] sm:$0xff]
      %v3282 = vld [vmem:[%s3 + $0x160] sm:$0xff]
      %v3283 = vld [vmem:[%s3 + $0x168] sm:$0xff]
      %v3284 = vld [vmem:[%s3 + $0x170] sm:$0xff]
      %v3285 = vld [vmem:[%s3 + $0x178] sm:$0xff]
      %v3286 = vld [vmem:[%s3 + $0x180] sm:$0xff]
      %v3287 = vld [vmem:[%s3 + $0x188] sm:$0xff]
      %v3288 = vld [vmem:[%s3 + $0x190] sm:$0xff]
      %v3289 = vld [vmem:[%s3 + $0x198] sm:$0xff]
      %v3290 = vld [vmem:[%s3 + $0x1a0] sm:$0xff]
      %v3291 = vld [vmem:[%s3 + $0x1a8] sm:$0xff]
      %v3292 = vld [vmem:[%s3 + $0x1b0] sm:$0xff]
      %v3293 = vld [vmem:[%s3 + $0x1b8] sm:$0xff]
      %v3294 = vld [vmem:[%s3 + $0x1c0] sm:$0xff]
      %v3295 = vld [vmem:[%s3 + $0x1c8] sm:$0xff]
      %v3296 = vld [vmem:[%s3 + $0x1d0] sm:$0xff]
      %v3297 = vld [vmem:[%s3 + $0x1d8] sm:$0xff]
      %v3298 = vld [vmem:[%s3 + $0x1e0] sm:$0xff]
      %v3299 = vld [vmem:[%s3 + $0x1e8] sm:$0xff]
      %v3300 = vld [vmem:[%s3 + $0x1f0] sm:$0xff]
      %v3301 = vld [vmem:[%s3 + $0x1f8] sm:$0xff]
      %v3302 = vld [vmem:[%s3 + $0x200] sm:$0xff]
      %v3303 = vld [vmem:[%s3 + $0x208] sm:$0xff]
      %v3304 = vld [vmem:[%s3 + $0x210] sm:$0xff]
      %v3305 = vld [vmem:[%s3 + $0x218] sm:$0xff]
      %v3306 = vld [vmem:[%s3 + $0x220] sm:$0xff]
      %v3307 = vld [vmem:[%s3 + $0x228] sm:$0xff]
      %v3308 = vld [vmem:[%s3 + $0x230] sm:$0xff]
      %v3309 = vld [vmem:[%s3 + $0x238] sm:$0xff]
      %v3310 = vld [vmem:[%s3 + $0x240] sm:$0xff]
      %v3311 = vld [vmem:[%s3 + $0x248] sm:$0xff]
      %v3312 = vld [vmem:[%s3 + $0x250] sm:$0xff]
      %v3313 = vld [vmem:[%s3 + $0x258] sm:$0xff]
      %v3314 = vld [vmem:[%s3 + $0x260] sm:$0xff]
      %v3315 = vld [vmem:[%s3 + $0x268] sm:$0xff]
      %v3316 = vld [vmem:[%s3 + $0x270] sm:$0xff]
      %v3317 = vld [vmem:[%s3 + $0x278] sm:$0xff]
      %v3318 = vld [vmem:[%s3 + $0x280] sm:$0xff]
      %v3319 = vld [vmem:[%s3 + $0x288] sm:$0xff]
      %v3320 = vld [vmem:[%s3 + $0x290] sm:$0xff]
      %v3321 = vld [vmem:[%s3 + $0x298] sm:$0xff]
      %v3322 = vld [vmem:[%s3 + $0x2a0] sm:$0xff]
      %v3323 = vld [vmem:[%s3 + $0x2a8] sm:$0xff]
      %v3324 = vld [vmem:[%s3 + $0x2b0] sm:$0xff]
      %v3325 = vld [vmem:[%s3 + $0x2b8] sm:$0xff]
      %v3326 = vld [vmem:[%s3 + $0x2c0] sm:$0xff]
      %v3327 = vld [vmem:[%s3 + $0x2c8] sm:$0xff]
      %v3328 = vld [vmem:[%s3 + $0x2d0] sm:$0xff]
      %v3329 = vld [vmem:[%s3 + $0x2d8] sm:$0xff]
      %v3330 = vld [vmem:[%s3 + $0x2e0] sm:$0xff]
      %v3331 = vld [vmem:[%s3 + $0x2e8] sm:$0xff]
      %v3332 = vld [vmem:[%s3 + $0x2f0] sm:$0xff]
      %v3333 = vld [vmem:[%s3 + $0x2f8] sm:$0xff]
      %v3334 = vld [vmem:[%s3 + $0x300] sm:$0xff]
      %v3335 = vld [vmem:[%s3 + $0x308] sm:$0xff]
      %v3336 = vld [vmem:[%s3 + $0x310] sm:$0xff]
      %v3337 = vld [vmem:[%s3 + $0x318] sm:$0xff]
      %v3338 = vld [vmem:[%s3 + $0x320] sm:$0xff]
      %v3339 = vld [vmem:[%s3 + $0x328] sm:$0xff]
      %v3340 = vld [vmem:[%s3 + $0x330] sm:$0xff]
      %v3341 = vld [vmem:[%s3 + $0x338] sm:$0xff]
      %v3342 = vld [vmem:[%s3 + $0x340] sm:$0xff]
      %v3343 = vld [vmem:[%s3 + $0x348] sm:$0xff]
      %v3344 = vld [vmem:[%s3 + $0x350] sm:$0xff]
      %v3345 = vld [vmem:[%s3 + $0x358] sm:$0xff]
      %v3346 = vld [vmem:[%s3 + $0x360] sm:$0xff]
      %v3347 = vld [vmem:[%s3 + $0x368] sm:$0xff]
      %v3348 = vld [vmem:[%s3 + $0x370] sm:$0xff]
      %v3349 = vld [vmem:[%s3 + $0x378] sm:$0xff]
      %v3350 = vld [vmem:[%s3 + $0x380] sm:$0xff]
      %v3351 = vld [vmem:[%s3 + $0x388] sm:$0xff]
      %v3352 = vld [vmem:[%s3 + $0x390] sm:$0xff]
      %v3353 = vld [vmem:[%s3 + $0x398] sm:$0xff]
      %v3354 = vld [vmem:[%s3 + $0x3a0] sm:$0xff]
      %v3355 = vld [vmem:[%s3 + $0x3a8] sm:$0xff]
      %v3356 = vld [vmem:[%s3 + $0x3b0] sm:$0xff]
      %v3357 = vld [vmem:[%s3 + $0x3b8] sm:$0xff]
      %v3358 = vld [vmem:[%s3 + $0x3c0] sm:$0xff]
      %v3359 = vld [vmem:[%s3 + $0x3c8] sm:$0xff]
      %v3360 = vld [vmem:[%s3 + $0x3d0] sm:$0xff]
      %v3361 = vld [vmem:[%s3 + $0x3d8] sm:$0xff]
      %v3362 = vld [vmem:[%s3 + $0x3e0] sm:$0xff]
      %v3363 = vld [vmem:[%s3 + $0x3e8] sm:$0xff]
      %v3364 = vld [vmem:[%s3 + $0x3f0] sm:$0xff]
      %v3365 = vld [vmem:[%s3 + $0x3f8] sm:$0xff]
      %v3366 = vld [vmem:[%s4] sm:$0xf]
      %v3368 = vlaneseq
      %v3369 = vshrl.u32 %v3368, 7
      %v3370 = vsub.s32 0, %v3369
      %v3371 = vrot.slane %v3366, %v3370
      %v3372 = vlaneseq
      %v3373 = vshrl.u32 %v3372, 7
      %v3374 = vsub.s32 1, %v3373
      %v3375 = vrot.slane %v3366, %v3374
      %v3376 = vlaneseq
      %v3377 = vshrl.u32 %v3376, 7
      %v3378 = vsub.s32 2, %v3377
      %v3379 = vrot.slane %v3366, %v3378
      %v3380 = vlaneseq
      %v3381 = vshrl.u32 %v3380, 7
      %v3382 = vsub.s32 3, %v3381
      %v3383 = vrot.slane %v3366, %v3382
      %v3516 = vunpack.c.l.b16 %v3238
      %v3517 = vunpack.c.h.b16 %v3238
      %v3518 = vunpack.c.l.b16 %v3239
      %v3519 = vunpack.c.h.b16 %v3239
      %v3520 = vunpack.c.l.b16 %v3240
      %v3521 = vunpack.c.h.b16 %v3240
      %v3522 = vunpack.c.l.b16 %v3241
      %v3523 = vunpack.c.h.b16 %v3241
      %v3524 = vunpack.c.l.b16 %v3242
      %v3525 = vunpack.c.h.b16 %v3242
      %v3526 = vunpack.c.l.b16 %v3243
      %v3527 = vunpack.c.h.b16 %v3243
      %v3528 = vunpack.c.l.b16 %v3244
      %v3529 = vunpack.c.h.b16 %v3244
      %v3530 = vunpack.c.l.b16 %v3245
      %v3531 = vunpack.c.h.b16 %v3245
      %v3532 = vunpack.c.l.b16 %v3246
      %v3533 = vunpack.c.h.b16 %v3246
      %v3534 = vunpack.c.l.b16 %v3247
      %v3535 = vunpack.c.h.b16 %v3247
      %v3536 = vunpack.c.l.b16 %v3248
      %v3537 = vunpack.c.h.b16 %v3248
      %v3538 = vunpack.c.l.b16 %v3249
      %v3539 = vunpack.c.h.b16 %v3249
      %v3540 = vunpack.c.l.b16 %v3250
      %v3541 = vunpack.c.h.b16 %v3250
      %v3542 = vunpack.c.l.b16 %v3251
      %v3543 = vunpack.c.h.b16 %v3251
      %v3544 = vunpack.c.l.b16 %v3252
      %v3545 = vunpack.c.h.b16 %v3252
      %v3546 = vunpack.c.l.b16 %v3253
      %v3547 = vunpack.c.h.b16 %v3253
      %v3548 = vunpack.c.l.b16 %v3254
      %v3549 = vunpack.c.h.b16 %v3254
      %v3550 = vunpack.c.l.b16 %v3255
      %v3551 = vunpack.c.h.b16 %v3255
      %v3552 = vunpack.c.l.b16 %v3256
      %v3553 = vunpack.c.h.b16 %v3256
      %v3554 = vunpack.c.l.b16 %v3257
      %v3555 = vunpack.c.h.b16 %v3257
      %v3556 = vunpack.c.l.b16 %v3258
      %v3557 = vunpack.c.h.b16 %v3258
      %v3558 = vunpack.c.l.b16 %v3259
      %v3559 = vunpack.c.h.b16 %v3259
      %v3560 = vunpack.c.l.b16 %v3260
      %v3561 = vunpack.c.h.b16 %v3260
      %v3562 = vunpack.c.l.b16 %v3261
      %v3563 = vunpack.c.h.b16 %v3261
      %v3564 = vunpack.c.l.b16 %v3262
      %v3565 = vunpack.c.h.b16 %v3262
      %v3566 = vunpack.c.l.b16 %v3263
      %v3567 = vunpack.c.h.b16 %v3263
      %v3568 = vunpack.c.l.b16 %v3264
      %v3569 = vunpack.c.h.b16 %v3264
      %v3570 = vunpack.c.l.b16 %v3265
      %v3571 = vunpack.c.h.b16 %v3265
      %v3572 = vunpack.c.l.b16 %v3266
      %v3573 = vunpack.c.h.b16 %v3266
      %v3574 = vunpack.c.l.b16 %v3267
      %v3575 = vunpack.c.h.b16 %v3267
      %v3576 = vunpack.c.l.b16 %v3268
      %v3577 = vunpack.c.h.b16 %v3268
      %v3578 = vunpack.c.l.b16 %v3269
      %v3579 = vunpack.c.h.b16 %v3269
      %v3580 = vunpack.c.l.b16 %v3270
      %v3581 = vunpack.c.h.b16 %v3270
      %v3582 = vunpack.c.l.b16 %v3271
      %v3583 = vunpack.c.h.b16 %v3271
      %v3584 = vunpack.c.l.b16 %v3272
      %v3585 = vunpack.c.h.b16 %v3272
      %v3586 = vunpack.c.l.b16 %v3273
      %v3587 = vunpack.c.h.b16 %v3273
      %v3588 = vunpack.c.l.b16 %v3274
      %v3589 = vunpack.c.h.b16 %v3274
      %v3590 = vunpack.c.l.b16 %v3275
      %v3591 = vunpack.c.h.b16 %v3275
      %v3592 = vunpack.c.l.b16 %v3276
      %v3593 = vunpack.c.h.b16 %v3276
      %v3594 = vunpack.c.l.b16 %v3277
      %v3595 = vunpack.c.h.b16 %v3277
      %v3596 = vunpack.c.l.b16 %v3278
      %v3597 = vunpack.c.h.b16 %v3278
      %v3598 = vunpack.c.l.b16 %v3279
      %v3599 = vunpack.c.h.b16 %v3279
      %v3600 = vunpack.c.l.b16 %v3280
      %v3601 = vunpack.c.h.b16 %v3280
      %v3602 = vunpack.c.l.b16 %v3281
      %v3603 = vunpack.c.h.b16 %v3281
      %v3604 = vunpack.c.l.b16 %v3282
      %v3605 = vunpack.c.h.b16 %v3282
      %v3606 = vunpack.c.l.b16 %v3283
      %v3607 = vunpack.c.h.b16 %v3283
      %v3608 = vunpack.c.l.b16 %v3284
      %v3609 = vunpack.c.h.b16 %v3284
      %v3610 = vunpack.c.l.b16 %v3285
      %v3611 = vunpack.c.h.b16 %v3285
      %v3612 = vunpack.c.l.b16 %v3286
      %v3613 = vunpack.c.h.b16 %v3286
      %v3614 = vunpack.c.l.b16 %v3287
      %v3615 = vunpack.c.h.b16 %v3287
      %v3616 = vunpack.c.l.b16 %v3288
      %v3617 = vunpack.c.h.b16 %v3288
      %v3618 = vunpack.c.l.b16 %v3289
      %v3619 = vunpack.c.h.b16 %v3289
      %v3620 = vunpack.c.l.b16 %v3290
      %v3621 = vunpack.c.h.b16 %v3290
      %v3622 = vunpack.c.l.b16 %v3291
      %v3623 = vunpack.c.h.b16 %v3291
      %v3624 = vunpack.c.l.b16 %v3292
      %v3625 = vunpack.c.h.b16 %v3292
      %v3626 = vunpack.c.l.b16 %v3293
      %v3627 = vunpack.c.h.b16 %v3293
      %v3628 = vunpack.c.l.b16 %v3294
      %v3629 = vunpack.c.h.b16 %v3294
      %v3630 = vunpack.c.l.b16 %v3295
      %v3631 = vunpack.c.h.b16 %v3295
      %v3632 = vunpack.c.l.b16 %v3296
      %v3633 = vunpack.c.h.b16 %v3296
      %v3634 = vunpack.c.l.b16 %v3297
      %v3635 = vunpack.c.h.b16 %v3297
      %v3636 = vunpack.c.l.b16 %v3298
      %v3637 = vunpack.c.h.b16 %v3298
      %v3638 = vunpack.c.l.b16 %v3299
      %v3639 = vunpack.c.h.b16 %v3299
      %v3640 = vunpack.c.l.b16 %v3300
      %v3641 = vunpack.c.h.b16 %v3300
      %v3642 = vunpack.c.l.b16 %v3301
      %v3643 = vunpack.c.h.b16 %v3301
      %v3644 = vunpack.c.l.b16 %v3302
      %v3645 = vunpack.c.h.b16 %v3302
      %v3646 = vunpack.c.l.b16 %v3303
      %v3647 = vunpack.c.h.b16 %v3303
      %v3648 = vunpack.c.l.b16 %v3304
      %v3649 = vunpack.c.h.b16 %v3304
      %v3650 = vunpack.c.l.b16 %v3305
      %v3651 = vunpack.c.h.b16 %v3305
      %v3652 = vunpack.c.l.b16 %v3306
      %v3653 = vunpack.c.h.b16 %v3306
      %v3654 = vunpack.c.l.b16 %v3307
      %v3655 = vunpack.c.h.b16 %v3307
      %v3656 = vunpack.c.l.b16 %v3308
      %v3657 = vunpack.c.h.b16 %v3308
      %v3658 = vunpack.c.l.b16 %v3309
      %v3659 = vunpack.c.h.b16 %v3309
      %v3660 = vunpack.c.l.b16 %v3310
      %v3661 = vunpack.c.h.b16 %v3310
      %v3662 = vunpack.c.l.b16 %v3311
      %v3663 = vunpack.c.h.b16 %v3311
      %v3664 = vunpack.c.l.b16 %v3312
      %v3665 = vunpack.c.h.b16 %v3312
      %v3666 = vunpack.c.l.b16 %v3313
      %v3667 = vunpack.c.h.b16 %v3313
      %v3668 = vunpack.c.l.b16 %v3314
      %v3669 = vunpack.c.h.b16 %v3314
      %v3670 = vunpack.c.l.b16 %v3315
      %v3671 = vunpack.c.h.b16 %v3315
      %v3672 = vunpack.c.l.b16 %v3316
      %v3673 = vunpack.c.h.b16 %v3316
      %v3674 = vunpack.c.l.b16 %v3317
      %v3675 = vunpack.c.h.b16 %v3317
      %v3676 = vunpack.c.l.b16 %v3318
      %v3677 = vunpack.c.h.b16 %v3318
      %v3678 = vunpack.c.l.b16 %v3319
      %v3679 = vunpack.c.h.b16 %v3319
      %v3680 = vunpack.c.l.b16 %v3320
      %v3681 = vunpack.c.h.b16 %v3320
      %v3682 = vunpack.c.l.b16 %v3321
      %v3683 = vunpack.c.h.b16 %v3321
      %v3684 = vunpack.c.l.b16 %v3322
      %v3685 = vunpack.c.h.b16 %v3322
      %v3686 = vunpack.c.l.b16 %v3323
      %v3687 = vunpack.c.h.b16 %v3323
      %v3688 = vunpack.c.l.b16 %v3324
      %v3689 = vunpack.c.h.b16 %v3324
      %v3690 = vunpack.c.l.b16 %v3325
      %v3691 = vunpack.c.h.b16 %v3325
      %v3692 = vunpack.c.l.b16 %v3326
      %v3693 = vunpack.c.h.b16 %v3326
      %v3694 = vunpack.c.l.b16 %v3327
      %v3695 = vunpack.c.h.b16 %v3327
      %v3696 = vunpack.c.l.b16 %v3328
      %v3697 = vunpack.c.h.b16 %v3328
      %v3698 = vunpack.c.l.b16 %v3329
      %v3699 = vunpack.c.h.b16 %v3329
      %v3700 = vunpack.c.l.b16 %v3330
      %v3701 = vunpack.c.h.b16 %v3330
      %v3702 = vunpack.c.l.b16 %v3331
      %v3703 = vunpack.c.h.b16 %v3331
      %v3704 = vunpack.c.l.b16 %v3332
      %v3705 = vunpack.c.h.b16 %v3332
      %v3706 = vunpack.c.l.b16 %v3333
      %v3707 = vunpack.c.h.b16 %v3333
      %v3708 = vunpack.c.l.b16 %v3334
      %v3709 = vunpack.c.h.b16 %v3334
      %v3710 = vunpack.c.l.b16 %v3335
      %v3711 = vunpack.c.h.b16 %v3335
      %v3712 = vunpack.c.l.b16 %v3336
      %v3713 = vunpack.c.h.b16 %v3336
      %v3714 = vunpack.c.l.b16 %v3337
      %v3715 = vunpack.c.h.b16 %v3337
      %v3716 = vunpack.c.l.b16 %v3338
      %v3717 = vunpack.c.h.b16 %v3338
      %v3718 = vunpack.c.l.b16 %v3339
      %v3719 = vunpack.c.h.b16 %v3339
      %v3720 = vunpack.c.l.b16 %v3340
      %v3721 = vunpack.c.h.b16 %v3340
      %v3722 = vunpack.c.l.b16 %v3341
      %v3723 = vunpack.c.h.b16 %v3341
      %v3724 = vunpack.c.l.b16 %v3342
      %v3725 = vunpack.c.h.b16 %v3342
      %v3726 = vunpack.c.l.b16 %v3343
      %v3727 = vunpack.c.h.b16 %v3343
      %v3728 = vunpack.c.l.b16 %v3344
      %v3729 = vunpack.c.h.b16 %v3344
      %v3730 = vunpack.c.l.b16 %v3345
      %v3731 = vunpack.c.h.b16 %v3345
      %v3732 = vunpack.c.l.b16 %v3346
      %v3733 = vunpack.c.h.b16 %v3346
      %v3734 = vunpack.c.l.b16 %v3347
      %v3735 = vunpack.c.h.b16 %v3347
      %v3736 = vunpack.c.l.b16 %v3348
      %v3737 = vunpack.c.h.b16 %v3348
      %v3738 = vunpack.c.l.b16 %v3349
      %v3739 = vunpack.c.h.b16 %v3349
      %v3740 = vunpack.c.l.b16 %v3350
      %v3741 = vunpack.c.h.b16 %v3350
      %v3742 = vunpack.c.l.b16 %v3351
      %v3743 = vunpack.c.h.b16 %v3351
      %v3744 = vunpack.c.l.b16 %v3352
      %v3745 = vunpack.c.h.b16 %v3352
      %v3746 = vunpack.c.l.b16 %v3353
      %v3747 = vunpack.c.h.b16 %v3353
      %v3748 = vunpack.c.l.b16 %v3354
      %v3749 = vunpack.c.h.b16 %v3354
      %v3750 = vunpack.c.l.b16 %v3355
      %v3751 = vunpack.c.h.b16 %v3355
      %v3752 = vunpack.c.l.b16 %v3356
      %v3753 = vunpack.c.h.b16 %v3356
      %v3754 = vunpack.c.l.b16 %v3357
      %v3755 = vunpack.c.h.b16 %v3357
      %v3756 = vunpack.c.l.b16 %v3358
      %v3757 = vunpack.c.h.b16 %v3358
      %v3758 = vunpack.c.l.b16 %v3359
      %v3759 = vunpack.c.h.b16 %v3359
      %v3760 = vunpack.c.l.b16 %v3360
      %v3761 = vunpack.c.h.b16 %v3360
      %v3762 = vunpack.c.l.b16 %v3361
      %v3763 = vunpack.c.h.b16 %v3361
      %v3764 = vunpack.c.l.b16 %v3362
      %v3765 = vunpack.c.h.b16 %v3362
      %v3766 = vunpack.c.l.b16 %v3363
      %v3767 = vunpack.c.h.b16 %v3363
      %v3768 = vunpack.c.l.b16 %v3364
      %v3769 = vunpack.c.h.b16 %v3364
      %v3770 = vunpack.c.l.b16 %v3365
      %v3771 = vunpack.c.h.b16 %v3365
      %v3772 = vpack.c.b16 %v3520, %v3516
      %v3773 = vpack.c.b16 %v3521, %v3517
      %v3774 = vpack.c.b16 %v3522, %v3518
      %v3775 = vpack.c.b16 %v3523, %v3519
      %v3776 = vpack.c.b16 %v3528, %v3524
      %v3777 = vpack.c.b16 %v3529, %v3525
      %v3778 = vpack.c.b16 %v3530, %v3526
      %v3779 = vpack.c.b16 %v3531, %v3527
      %v3780 = vpack.c.b16 %v3536, %v3532
      %v3781 = vpack.c.b16 %v3537, %v3533
      %v3782 = vpack.c.b16 %v3538, %v3534
      %v3783 = vpack.c.b16 %v3539, %v3535
      %v3784 = vpack.c.b16 %v3544, %v3540
      %v3785 = vpack.c.b16 %v3545, %v3541
      %v3786 = vpack.c.b16 %v3546, %v3542
      %v3787 = vpack.c.b16 %v3547, %v3543
      %v3788 = vpack.c.b16 %v3552, %v3548
      %v3789 = vpack.c.b16 %v3553, %v3549
      %v3790 = vpack.c.b16 %v3554, %v3550
      %v3791 = vpack.c.b16 %v3555, %v3551
      %v3792 = vpack.c.b16 %v3560, %v3556
      %v3793 = vpack.c.b16 %v3561, %v3557
      %v3794 = vpack.c.b16 %v3562, %v3558
      %v3795 = vpack.c.b16 %v3563, %v3559
      %v3796 = vpack.c.b16 %v3568, %v3564
      %v3797 = vpack.c.b16 %v3569, %v3565
      %v3798 = vpack.c.b16 %v3570, %v3566
      %v3799 = vpack.c.b16 %v3571, %v3567
      %v3800 = vpack.c.b16 %v3576, %v3572
      %v3801 = vpack.c.b16 %v3577, %v3573
      %v3802 = vpack.c.b16 %v3578, %v3574
      %v3803 = vpack.c.b16 %v3579, %v3575
      %v3804 = vpack.c.b16 %v3584, %v3580
      %v3805 = vpack.c.b16 %v3585, %v3581
      %v3806 = vpack.c.b16 %v3586, %v3582
      %v3807 = vpack.c.b16 %v3587, %v3583
      %v3808 = vpack.c.b16 %v3592, %v3588
      %v3809 = vpack.c.b16 %v3593, %v3589
      %v3810 = vpack.c.b16 %v3594, %v3590
      %v3811 = vpack.c.b16 %v3595, %v3591
      %v3812 = vpack.c.b16 %v3600, %v3596
      %v3813 = vpack.c.b16 %v3601, %v3597
      %v3814 = vpack.c.b16 %v3602, %v3598
      %v3815 = vpack.c.b16 %v3603, %v3599
      %v3816 = vpack.c.b16 %v3608, %v3604
      %v3817 = vpack.c.b16 %v3609, %v3605
      %v3818 = vpack.c.b16 %v3610, %v3606
      %v3819 = vpack.c.b16 %v3611, %v3607
      %v3820 = vpack.c.b16 %v3616, %v3612
      %v3821 = vpack.c.b16 %v3617, %v3613
      %v3822 = vpack.c.b16 %v3618, %v3614
      %v3823 = vpack.c.b16 %v3619, %v3615
      %v3824 = vpack.c.b16 %v3624, %v3620
      %v3825 = vpack.c.b16 %v3625, %v3621
      %v3826 = vpack.c.b16 %v3626, %v3622
      %v3827 = vpack.c.b16 %v3627, %v3623
      %v3828 = vpack.c.b16 %v3632, %v3628
      %v3829 = vpack.c.b16 %v3633, %v3629
      %v3830 = vpack.c.b16 %v3634, %v3630
      %v3831 = vpack.c.b16 %v3635, %v3631
      %v3832 = vpack.c.b16 %v3640, %v3636
      %v3833 = vpack.c.b16 %v3641, %v3637
      %v3834 = vpack.c.b16 %v3642, %v3638
      %v3835 = vpack.c.b16 %v3643, %v3639
      %v3836 = vpack.c.b16 %v3648, %v3644
      %v3837 = vpack.c.b16 %v3649, %v3645
      %v3838 = vpack.c.b16 %v3650, %v3646
      %v3839 = vpack.c.b16 %v3651, %v3647
      %v3840 = vpack.c.b16 %v3656, %v3652
      %v3841 = vpack.c.b16 %v3657, %v3653
      %v3842 = vpack.c.b16 %v3658, %v3654
      %v3843 = vpack.c.b16 %v3659, %v3655
      %v3844 = vpack.c.b16 %v3664, %v3660
      %v3845 = vpack.c.b16 %v3665, %v3661
      %v3846 = vpack.c.b16 %v3666, %v3662
      %v3847 = vpack.c.b16 %v3667, %v3663
      %v3848 = vpack.c.b16 %v3672, %v3668
      %v3849 = vpack.c.b16 %v3673, %v3669
      %v3850 = vpack.c.b16 %v3674, %v3670
      %v3851 = vpack.c.b16 %v3675, %v3671
      %v3852 = vpack.c.b16 %v3680, %v3676
      %v3853 = vpack.c.b16 %v3681, %v3677
      %v3854 = vpack.c.b16 %v3682, %v3678
      %v3855 = vpack.c.b16 %v3683, %v3679
      %v3856 = vpack.c.b16 %v3688, %v3684
      %v3857 = vpack.c.b16 %v3689, %v3685
      %v3858 = vpack.c.b16 %v3690, %v3686
      %v3859 = vpack.c.b16 %v3691, %v3687
      %v3860 = vpack.c.b16 %v3696, %v3692
      %v3861 = vpack.c.b16 %v3697, %v3693
      %v3862 = vpack.c.b16 %v3698, %v3694
      %v3863 = vpack.c.b16 %v3699, %v3695
      %v3864 = vpack.c.b16 %v3704, %v3700
      %v3865 = vpack.c.b16 %v3705, %v3701
      %v3866 = vpack.c.b16 %v3706, %v3702
      %v3867 = vpack.c.b16 %v3707, %v3703
      %v3868 = vpack.c.b16 %v3712, %v3708
      %v3869 = vpack.c.b16 %v3713, %v3709
      %v3870 = vpack.c.b16 %v3714, %v3710
      %v3871 = vpack.c.b16 %v3715, %v3711
      %v3872 = vpack.c.b16 %v3720, %v3716
      %v3873 = vpack.c.b16 %v3721, %v3717
      %v3874 = vpack.c.b16 %v3722, %v3718
      %v3875 = vpack.c.b16 %v3723, %v3719
      %v3876 = vpack.c.b16 %v3728, %v3724
      %v3877 = vpack.c.b16 %v3729, %v3725
      %v3878 = vpack.c.b16 %v3730, %v3726
      %v3879 = vpack.c.b16 %v3731, %v3727
      %v3880 = vpack.c.b16 %v3736, %v3732
      %v3881 = vpack.c.b16 %v3737, %v3733
      %v3882 = vpack.c.b16 %v3738, %v3734
      %v3883 = vpack.c.b16 %v3739, %v3735
      %v3884 = vpack.c.b16 %v3744, %v3740
      %v3885 = vpack.c.b16 %v3745, %v3741
      %v3886 = vpack.c.b16 %v3746, %v3742
      %v3887 = vpack.c.b16 %v3747, %v3743
      %v3888 = vpack.c.b16 %v3752, %v3748
      %v3889 = vpack.c.b16 %v3753, %v3749
      %v3890 = vpack.c.b16 %v3754, %v3750
      %v3891 = vpack.c.b16 %v3755, %v3751
      %v3892 = vpack.c.b16 %v3760, %v3756
      %v3893 = vpack.c.b16 %v3761, %v3757
      %v3894 = vpack.c.b16 %v3762, %v3758
      %v3895 = vpack.c.b16 %v3763, %v3759
      %v3896 = vpack.c.b16 %v3768, %v3764
      %v3897 = vpack.c.b16 %v3769, %v3765
      %v3898 = vpack.c.b16 %v3770, %v3766
      %v3899 = vpack.c.b16 %v3771, %v3767
      %4028 = vmatprep.subr.bf16.mxu0 %v3773
      %4029 = vmatpush1.bf16.msra.mxu0 %v3772
      %4030 = vmatprep.subr.bf16.mxu0 %v3777
      %4031 = vmatpush1.bf16.msra.mxu0 %v3776
      %4032 = vmatprep.subr.bf16.mxu0 %v3781
      %4033 = vmatpush1.bf16.msra.mxu0 %v3780
      %4034 = vmatprep.subr.bf16.mxu0 %v3785
      %4035 = vmatpush1.bf16.msra.mxu0 %v3784
      %4036 = vmatprep.subr.bf16.mxu0 %v3789
      %4037 = vmatpush1.bf16.msra.mxu0 %v3788
      %4038 = vmatprep.subr.bf16.mxu0 %v3793
      %4039 = vmatpush1.bf16.msra.mxu0 %v3792
      %4040 = vmatprep.subr.bf16.mxu0 %v3797
      %4041 = vmatpush1.bf16.msra.mxu0 %v3796
      %4042 = vmatprep.subr.bf16.mxu0 %v3801
      %4043 = vmatpush1.bf16.msra.mxu0 %v3800
      %4044 = vmatprep.subr.bf16.mxu0 %v3805
      %4045 = vmatpush1.bf16.msra.mxu0 %v3804
      %4046 = vmatprep.subr.bf16.mxu0 %v3809
      %4047 = vmatpush1.bf16.msra.mxu0 %v3808
      %4048 = vmatprep.subr.bf16.mxu0 %v3813
      %4049 = vmatpush1.bf16.msra.mxu0 %v3812
      %4050 = vmatprep.subr.bf16.mxu0 %v3817
      %4051 = vmatpush1.bf16.msra.mxu0 %v3816
      %4052 = vmatprep.subr.bf16.mxu0 %v3821
      %4053 = vmatpush1.bf16.msra.mxu0 %v3820
      %4054 = vmatprep.subr.bf16.mxu0 %v3825
      %4055 = vmatpush1.bf16.msra.mxu0 %v3824
      %4056 = vmatprep.subr.bf16.mxu0 %v3829
      %4057 = vmatpush1.bf16.msra.mxu0 %v3828
      %4058 = vmatprep.subr.bf16.mxu0 %v3833
      %4059 = vmatpush1.bf16.msra.mxu0 %v3832
      %4060 = vmatprep.mubr.bf16.mxu0 %v3235
      %4061 = vmatmul.mubr.bf16.gmra.mrb[0].mxu0 %v3234
      %v4062 = vpop.f32.mrb[0].mxu0
      %v4063 = vadd.f32 %v3371, %v4062
      %v4064 = vpop.f32.mrb[0].mxu0
      %v4065 = vadd.f32 %v3375, %v4064
      %v4066 = vpop.f32.mrb[0].mxu0
      %v4067 = vpop.f32.mrb[0].mxu0
      %4068 = vdwg.mxu0
      %4069 = vmatprep.subr.bf16.mxu0 %v3837
      %4070 = vmatpush1.bf16.msra.mxu0 %v3836
      %4071 = vmatprep.subr.bf16.mxu0 %v3841
      %4072 = vmatpush1.bf16.msra.mxu0 %v3840
      %4073 = vmatprep.subr.bf16.mxu0 %v3845
      %4074 = vmatpush1.bf16.msra.mxu0 %v3844
      %4075 = vmatprep.subr.bf16.mxu0 %v3849
      %4076 = vmatpush1.bf16.msra.mxu0 %v3848
      %4077 = vmatprep.subr.bf16.mxu0 %v3853
      %4078 = vmatpush1.bf16.msra.mxu0 %v3852
      %4079 = vmatprep.subr.bf16.mxu0 %v3857
      %4080 = vmatpush1.bf16.msra.mxu0 %v3856
      %4081 = vmatprep.subr.bf16.mxu0 %v3861
      %4082 = vmatpush1.bf16.msra.mxu0 %v3860
      %4083 = vmatprep.subr.bf16.mxu0 %v3865
      %4084 = vmatpush1.bf16.msra.mxu0 %v3864
      %4085 = vmatprep.subr.bf16.mxu0 %v3869
      %4086 = vmatpush1.bf16.msra.mxu0 %v3868
      %4087 = vmatprep.subr.bf16.mxu0 %v3873
      %4088 = vmatpush1.bf16.msra.mxu0 %v3872
      %4089 = vmatprep.subr.bf16.mxu0 %v3877
      %4090 = vmatpush1.bf16.msra.mxu0 %v3876
      %4091 = vmatprep.subr.bf16.mxu0 %v3881
      %4092 = vmatpush1.bf16.msra.mxu0 %v3880
      %4093 = vmatprep.subr.bf16.mxu0 %v3885
      %4094 = vmatpush1.bf16.msra.mxu0 %v3884
      %4095 = vmatprep.subr.bf16.mxu0 %v3889
      %4096 = vmatpush1.bf16.msra.mxu0 %v3888
      %4097 = vmatprep.subr.bf16.mxu0 %v3893
      %4098 = vmatpush1.bf16.msra.mxu0 %v3892
      %4099 = vmatprep.subr.bf16.mxu0 %v3897
      %4100 = vmatpush1.bf16.msra.mxu0 %v3896
      %4101 = vmatprep.mubr.bf16.mxu0 %v3237
      %4102 = vmatmul.mubr.bf16.gmra.mrb[0].mxu0 %v3236
      %v4103 = vpop.f32.mrb[0].mxu0
      %v4104 = vadd.f32 %v4063, %v4103
      %v4105 = vpop.f32.mrb[0].mxu0
      %v4106 = vadd.f32 %v4065, %v4105
      %v4107 = vpop.f32.mrb[0].mxu0
      %v4108 = vpop.f32.mrb[0].mxu0
      %4109 = vdwg.mxu0
      %4110 = vmatprep.subr.bf16.mxu0 %v3775
      %4111 = vmatpush1.bf16.msra.mxu0 %v3774
      %4112 = vmatprep.subr.bf16.mxu0 %v3779
      %4113 = vmatpush1.bf16.msra.mxu0 %v3778
      %4114 = vmatprep.subr.bf16.mxu0 %v3783
      %4115 = vmatpush1.bf16.msra.mxu0 %v3782
      %4116 = vmatprep.subr.bf16.mxu0 %v3787
      %4117 = vmatpush1.bf16.msra.mxu0 %v3786
      %4118 = vmatprep.subr.bf16.mxu0 %v3791
      %4119 = vmatpush1.bf16.msra.mxu0 %v3790
      %4120 = vmatprep.subr.bf16.mxu0 %v3795
      %4121 = vmatpush1.bf16.msra.mxu0 %v3794
      %4122 = vmatprep.subr.bf16.mxu0 %v3799
      %4123 = vmatpush1.bf16.msra.mxu0 %v3798
      %4124 = vmatprep.subr.bf16.mxu0 %v3803
      %4125 = vmatpush1.bf16.msra.mxu0 %v3802
      %4126 = vmatprep.subr.bf16.mxu0 %v3807
      %4127 = vmatpush1.bf16.msra.mxu0 %v3806
      %4128 = vmatprep.subr.bf16.mxu0 %v3811
      %4129 = vmatpush1.bf16.msra.mxu0 %v3810
      %4130 = vmatprep.subr.bf16.mxu0 %v3815
      %4131 = vmatpush1.bf16.msra.mxu0 %v3814
      %4132 = vmatprep.subr.bf16.mxu0 %v3819
      %4133 = vmatpush1.bf16.msra.mxu0 %v3818
      %4134 = vmatprep.subr.bf16.mxu0 %v3823
      %4135 = vmatpush1.bf16.msra.mxu0 %v3822
      %4136 = vmatprep.subr.bf16.mxu0 %v3827
      %4137 = vmatpush1.bf16.msra.mxu0 %v3826
      %4138 = vmatprep.subr.bf16.mxu0 %v3831
      %4139 = vmatpush1.bf16.msra.mxu0 %v3830
      %4140 = vmatprep.subr.bf16.mxu0 %v3835
      %4141 = vmatpush1.bf16.msra.mxu0 %v3834
      %4142 = vmatprep.mubr.bf16.mxu0 %v3235
      %4143 = vmatmul.mubr.bf16.gmra.mrb[0].mxu0 %v3234
      %v4144 = vpop.f32.mrb[0].mxu0
      %v4145 = vadd.f32 %v3379, %v4144
      %v4146 = vpop.f32.mrb[0].mxu0
      %v4147 = vadd.f32 %v3383, %v4146
      %v4148 = vpop.f32.mrb[0].mxu0
      %v4149 = vpop.f32.mrb[0].mxu0
      %4150 = vdwg.mxu0
      %4151 = vmatprep.subr.bf16.mxu0 %v3839
      %4152 = vmatpush1.bf16.msra.mxu0 %v3838
      %4153 = vmatprep.subr.bf16.mxu0 %v3843
      %4154 = vmatpush1.bf16.msra.mxu0 %v3842
      %4155 = vmatprep.subr.bf16.mxu0 %v3847
      %4156 = vmatpush1.bf16.msra.mxu0 %v3846
      %4157 = vmatprep.subr.bf16.mxu0 %v3851
      %4158 = vmatpush1.bf16.msra.mxu0 %v3850
      %4159 = vmatprep.subr.bf16.mxu0 %v3855
      %4160 = vmatpush1.bf16.msra.mxu0 %v3854
      %4161 = vmatprep.subr.bf16.mxu0 %v3859
      %4162 = vmatpush1.bf16.msra.mxu0 %v3858
      %4163 = vmatprep.subr.bf16.mxu0 %v3863
      %4164 = vmatpush1.bf16.msra.mxu0 %v3862
      %4165 = vmatprep.subr.bf16.mxu0 %v3867
      %4166 = vmatpush1.bf16.msra.mxu0 %v3866
      %4167 = vmatprep.subr.bf16.mxu0 %v3871
      %4168 = vmatpush1.bf16.msra.mxu0 %v3870
      %4169 = vmatprep.subr.bf16.mxu0 %v3875
      %4170 = vmatpush1.bf16.msra.mxu0 %v3874
      %4171 = vmatprep.subr.bf16.mxu0 %v3879
      %4172 = vmatpush1.bf16.msra.mxu0 %v3878
      %4173 = vmatprep.subr.bf16.mxu0 %v3883
      %4174 = vmatpush1.bf16.msra.mxu0 %v3882
      %4175 = vmatprep.subr.bf16.mxu0 %v3887
      %4176 = vmatpush1.bf16.msra.mxu0 %v3886
      %4177 = vmatprep.subr.bf16.mxu0 %v3891
      %4178 = vmatpush1.bf16.msra.mxu0 %v3890
      %4179 = vmatprep.subr.bf16.mxu0 %v3895
      %4180 = vmatpush1.bf16.msra.mxu0 %v3894
      %4181 = vmatprep.subr.bf16.mxu0 %v3899
      %4182 = vmatpush1.bf16.msra.mxu0 %v3898
      %4183 = vmatprep.mubr.bf16.mxu0 %v3237
      %4184 = vmatmul.mubr.bf16.gmra.mrb[0].mxu0 %v3236
      %v4185 = vpop.f32.mrb[0].mxu0
      %v4186 = vadd.f32 %v4145, %v4185
      %v4187 = vpop.f32.mrb[0].mxu0
      %v4188 = vadd.f32 %v4147, %v4187
      %v4189 = vpop.f32.mrb[0].mxu0
      %v4190 = vpop.f32.mrb[0].mxu0
      %4191 = vdwg.mxu0
      %4192 = vst [vmem:[%s224] sm:$0xff] %v4104
      %4193 = vst [vmem:[%s224 + $0x8] sm:$0xff] %v4106
      %4194 = vst [vmem:[%s224 + $0x10] sm:$0xff] %v4186
      %4195 = vst [vmem:[%s224 + $0x18] sm:$0xff] %v4188
      %p4196 = scmp.lt.s32.totalorder %s16, 1
      %s4197 = scalar_select %p4196, %s16, 1
      %s4198 = smul.addr %s4197, 4
      %s4199 = smul.addr %s4198, 8
      %s4200 = scalar_lea.vmem %s5, %s4199
      // Predicated region
      $region41: #{lstm_conv_forward.9} parent=39 // pred_check
        %p4201 = pneg %p144
      $region42: #{lstm_conv_forward.9} parent=39 // pred_check_branch
        %4203 = sbr.rel (%p4201) target = $region44
      $region43: #{lstm_conv_forward.9} parent=39 // pred_region
        _
      $region44: #{lstm_conv_forward.9} parent=39 // pred_fallthru
        _
    $region40: #{lstm_conv_forward.9} parent=5 // pred_fallthru
      _
    %p4204 = scmp.le.s32.totalorder 2, %s11
    // Predicated region
    $region45: #{lstm_conv_forward.9} parent=5 // pred_check
      %p4205 = pneg %p4204
    $region46: #{lstm_conv_forward.9} parent=5 // pred_check_branch
      %4207 = sbr.rel (%p4205) target = $region48
    $region47: #{lstm_conv_forward.9} parent=5 // pred_region
      %s4208 = ssub.s32 %s11, 2
      // Predicated region
      $region49: #{lstm_conv_forward.9} parent=47 // pred_check
        %p4209 = pneg %p150
      $region50: #{lstm_conv_forward.9} parent=47 // pred_check_branch
        %4211 = sbr.rel (%p4209) target = $region52
      $region51: #{lstm_conv_forward.9} parent=47 // pred_region
        %p4212 = scmp.lt.s32.totalorder %s17, 1
        %s4213 = scalar_select %p4212, %s17, 1
        %s4214 = smul.addr %s4213, 4
        %s4215 = smul.addr %s4214, 8
        %s4216 = scalar_lea.vmem %s5, %s4215
      $region52: #{lstm_conv_forward.9} parent=47 // pred_fallthru
        _
    $region48: #{lstm_conv_forward.9} parent=5 // pred_fallthru
      _
  $region6: #{lstm_conv_forward.9} parent=0 // loop_footer
    %s15 = sadd.s32 1, %s11
  $region7: #{lstm_conv_forward.9} parent=0 // loop_footer_branch
    %10 = sbr.rel target = $region3
  $region8: #{lstm_conv_forward.9} parent=0 // loop_exit
    _

</llo_original>
